<compile_context>
chip_gen: v6e
topology: v6e:2x2x1
jax: 0.10.0
libtpu: 0.0.40
codegen_flags: <defaults>
</compile_context>

<pallas_src>
import jax
import jax.numpy as jnp
from jax import lax
from jax.experimental import pallas as pl
from jax.experimental.pallas import tpu as pltpu


def se_conv1x1_kernel(g_ref, x_ref, w_ref, o_ref):
    # g_ref: (Cin, 1)     f32   pre-sigmoid gate (one scalar per input channel)
    # x_ref: (Cin, HW)    f32   activations, channels on sublanes
    # w_ref: (Cin, Cout)  bf16  pre-transposed 1x1-conv weight
    # o_ref: (HW, Cout)   f32   lane-dense output
    gate = jax.nn.sigmoid(g_ref[...])                  # f32 (EUP)
    xs = (x_ref[...] * gate).astype(jnp.bfloat16)      # (Cin, HW) bf16 for MXU

    # Contract Cin (dim 0 of both operands): (Cin, HW) x (Cin, Cout) -> (HW, Cout).
    o_ref[...] = lax.dot_general(
        xs, w_ref[...],
        dimension_numbers=(((0,), (0,)), ((), ())),
        preferred_element_type=jnp.float32,
    ).astype(o_ref.dtype)


def prepare_conv_weight(w_oihw):
    """One-time prep, outside the hot path: (O, C, 1, 1) -> (C, O) bf16."""
    O, C, kh, kw = w_oihw.shape
    assert (kh, kw) == (1, 1)
    return jnp.asarray(w_oihw.reshape(O, C).T, dtype=jnp.bfloat16)


def se_conv1x1(x_nchw, gate_nchw, w_cin_cout):
    """sigmoid(gate) * x followed by 1x1 conv (no bias). NCHW in / NCHW out."""
    N, C, H, W = x_nchw.shape
    Cw, O = w_cin_cout.shape
    assert N == 1, "gate broadcast implemented for batch=1 (as in the module)"
    assert Cw == C
    HW = H * W

    x2d = x_nchw.reshape(C, HW)      # pure reshape, no transpose
    g2d = gate_nchw.reshape(C, 1)    # pure reshape

    cost = pl.CostEstimate(
        flops=2 * C * O * HW,
        transcendentals=C,
        bytes_accessed=C * HW * 4 + C * 4 + C * O * 2 + HW * O * 4,
    )

    out2d = pl.pallas_call(
        se_conv1x1_kernel,
        out_shape=jax.ShapeDtypeStruct((HW, O), x_nchw.dtype),
        grid=(1,),
        in_specs=[
            pl.BlockSpec((C, 1), lambda k: (0, 0)),    # gate (f32), full array
            pl.BlockSpec((C, HW), lambda k: (0, 0)),   # activations (f32)
            pl.BlockSpec((C, O), lambda k: (0, 0)),    # weight (bf16)
        ],
        out_specs=pl.BlockSpec((HW, O), lambda k: (0, 0)),
        compiler_params=pltpu.CompilerParams(
            dimension_semantics=("arbitrary",),
        ),
        cost_estimate=cost,
    )(g2d, x2d, w_cin_cout)

    # Tiny (~67 KB) transpose back to NCHW outside the kernel (lane-dense
    # stores inside the kernel are worth more than avoiding this).
    return out2d.T.reshape(N, O, H, W)


if __name__ == "__main__":
    # Shapes from the module: x522=(1,2064,7,7), x526=(1,2064,1,1),
    # Conv2d(2064 -> 344, kernel 1x1, bias=False).
    N, C_in, C_out, H, W = 1, 2064, 344, 7, 7

    key = jax.random.PRNGKey(0)
    k1, k2, k3 = jax.random.split(key, 3)
    x522 = jax.random.normal(k1, (N, C_in, H, W), dtype=jnp.float32)
    x526 = jax.random.normal(k2, (N, C_in, 1, 1), dtype=jnp.float32)
    w = jax.random.normal(k3, (C_out, C_in, 1, 1), dtype=jnp.float32) * 0.02

    # One-time weight prep (transpose + bf16 cast) OUTSIDE the hot path.
    w_prepped = prepare_conv_weight(w)

    fwd = jax.jit(se_conv1x1)
    out = jax.block_until_ready(fwd(x522, x526, w_prepped))
    assert out.shape == (N, C_out, H, W), out.shape

    # References.
    gated = x522 * jax.nn.sigmoid(x526)
    # (a) matched precision: bf16-rounded operands, f32 accumulation.
    ref_matched = jnp.einsum(
        "nchw,co->nohw",
        gated.astype(jnp.bfloat16).astype(jnp.float32),
        w_prepped.astype(jnp.float32),
    )
    # (b) full f32 module semantics (looser tol because of bf16 dot operands).
    ref_f32 = jnp.einsum(
        "nchw,oc->nohw", gated, w[:, :, 0, 0],
        precision=lax.Precision.HIGHEST,
    )

    assert jnp.allclose(out, ref_matched, atol=1e-3, rtol=1e-3), \
        "mismatch vs matched-precision reference"
    assert jnp.allclose(out, ref_f32, atol=2e-2, rtol=2e-2), \
        "mismatch vs f32 reference"

    print("KERNEL_OK")
</pallas_src>

<mosaic_0001>
module attributes {stable_mosaic.version = 11 : i64} {
  func.func @se_conv1x1_kernel(%arg0: i32, %arg1: memref<2064x1xf32, #tpu.memory_space<vmem>>, %arg2: memref<2064x49xf32, #tpu.memory_space<vmem>>, %arg3: memref<2064x344xbf16, #tpu.memory_space<vmem>>, %arg4: memref<49x344xf32, #tpu.memory_space<vmem>>) attributes {dimension_semantics = [#tpu.dimension_semantics<arbitrary>], iteration_bounds = array<i64: 1>, scalar_prefetch = 0 : i64, scratch_operands = 0 : i64, tpu.core_type = #tpu.core_type<tc>, window_params = [{pipeline_mode = #tpu.pipeline_mode<synchronous>, transform_indices = @transform_0, window_bounds = array<i64: 2064, 1>}, {pipeline_mode = #tpu.pipeline_mode<synchronous>, transform_indices = @transform_1, window_bounds = array<i64: 2064, 49>}, {pipeline_mode = #tpu.pipeline_mode<synchronous>, transform_indices = @transform_2, window_bounds = array<i64: 2064, 344>}, {pipeline_mode = #tpu.pipeline_mode<synchronous>, transform_indices = @transform_3, window_bounds = array<i64: 49, 344>}]} {
    %c0 = arith.constant 0 : index
    %c0_0 = arith.constant 0 : index
    %0 = vector.load %arg1[%c0, %c0_0] : memref<2064x1xf32, #tpu.memory_space<vmem>>, vector<2064x1xf32>
    %1 = arith.negf %0 : vector<2064x1xf32>
    %2 = math.exp %1 : vector<2064x1xf32>
    %cst = arith.constant 1.000000e+00 : f32
    %3 = vector.broadcast %cst : f32 to vector<2064x1xf32>
    %4 = arith.addf %3, %2 : vector<2064x1xf32>
    %5 = arith.divf %3, %4 : vector<2064x1xf32>
    %c0_1 = arith.constant 0 : index
    %c0_2 = arith.constant 0 : index
    %6 = vector.load %arg2[%c0_1, %c0_2] : memref<2064x49xf32, #tpu.memory_space<vmem>>, vector<2064x49xf32>
    %7 = vector.broadcast %5 : vector<2064x1xf32> to vector<2064x49xf32>
    %8 = arith.mulf %6, %7 : vector<2064x49xf32>
    %9 = arith.truncf %8 : vector<2064x49xf32> to vector<2064x49xbf16>
    %c0_3 = arith.constant 0 : index
    %c0_4 = arith.constant 0 : index
    %10 = vector.load %arg3[%c0_3, %c0_4] : memref<2064x344xbf16, #tpu.memory_space<vmem>>, vector<2064x344xbf16>
    %cst_5 = arith.constant dense<0.000000e+00> : vector<49x344xf32>
    %11 = tpu.matmul %9, %10, %cst_5 {dimension_numbers = #tpu.dot_dimension_numbers<[0], [0], [1], [1], [0, 1, 1, 1], [], []>} : vector<2064x49xbf16>, vector<2064x344xbf16>, vector<49x344xf32> -> vector<49x344xf32>
    %c0_6 = arith.constant 0 : index
    %c0_7 = arith.constant 0 : index
    %12 = vector.load %arg4[%c0_6, %c0_7] : memref<49x344xf32, #tpu.memory_space<vmem>>, vector<49x344xf32>
    tpu.vector_store %arg4[%c0_6, %c0_7], %11 {strides = array<i32>} : memref<49x344xf32, #tpu.memory_space<vmem>>, vector<49x344xf32>,
    return
  }
  func.func @transform_0(%arg0: i32) -> (i32, i32) {
    %c0_i32 = arith.constant 0 : i32
    %c0_i32_0 = arith.constant 0 : i32
    %c0_i32_1 = arith.constant 0 : i32
    return %c0_i32, %c0_i32_0 : i32, i32
  }
  func.func @transform_1(%arg0: i32) -> (i32, i32) {
    %c0_i32 = arith.constant 0 : i32
    %c0_i32_0 = arith.constant 0 : i32
    %c0_i32_1 = arith.constant 0 : i32
    return %c0_i32, %c0_i32_0 : i32, i32
  }
  func.func @transform_2(%arg0: i32) -> (i32, i32) {
    %c0_i32 = arith.constant 0 : i32
    %c0_i32_0 = arith.constant 0 : i32
    %c0_i32_1 = arith.constant 0 : i32
    return %c0_i32, %c0_i32_0 : i32, i32
  }
  func.func @transform_3(%arg0: i32) -> (i32, i32) {
    %c0_i32 = arith.constant 0 : i32
    %c0_i32_0 = arith.constant 0 : i32
    %c0_i32_1 = arith.constant 0 : i32
    return %c0_i32, %c0_i32_0 : i32, i32
  }
}

</mosaic_0001>

<llo_original>
// kernel: se_conv1x1.1
$region0: #{se_conv1x1.1}
  #allocation0 [shape = 'u32[]', space=smem, size = 0x4, offset = 0x4, fixed_abs, tag = 'smem constant byte address 0x4 - core index']
  #allocation1 [shape = 'u32[144,128]{1,0:T(1,128)}', space=vmem, size = 0x12000, scoped, tag = 'internal scratch']
  %s0 = inlined_call_operand.vmem [shape: f32[2064,1], index: 0, kind: input, shape index: {}]
  %s1 = inlined_call_operand.vmem [shape: f32[2064,49], index: 1, kind: input, shape index: {}]
  %s2 = inlined_call_operand.vmem [shape: bf16[2064,344], index: 2, kind: input, shape index: {}]
  %s3 = inlined_call_operand.vmem [shape: f32[49,344], index: 3, kind: output, shape index: {}]
  %s4 = sld [smem:[#allocation0]]
  $region22: #{se_conv1x1.1} parent=0
    _
  %s6 = ssub.s32 1, %s4
  %s7 = scalar_select 0, %s6, %s4
  // Predicated region
  $region2: #{se_conv1x1.1} parent=0 // pred_check
    _
  $region3: #{se_conv1x1.1} parent=0 // pred_check_branch
    %9 = sbr.rel (0) target = $region5
  $region4: #{se_conv1x1.1} parent=0 // pred_region
    _
  $region5: #{se_conv1x1.1} parent=0 // pred_fallthru
    _
  // Predicated region
  $region6: #{se_conv1x1.1} parent=0 // pred_check
    _
  $region7: #{se_conv1x1.1} parent=0 // pred_check_branch
    %11 = sbr.rel (0) target = $region9
  $region8: #{se_conv1x1.1} parent=0 // pred_region
    _
  $region9: #{se_conv1x1.1} parent=0 // pred_fallthru
    _
  // Predicated region
  $region10: #{se_conv1x1.1} parent=0 // pred_check
    _
  $region11: #{se_conv1x1.1} parent=0 // pred_check_branch
    %13 = sbr.rel (0) target = $region13
  $region12: #{se_conv1x1.1} parent=0 // pred_region
    _
  $region13: #{se_conv1x1.1} parent=0 // pred_fallthru
    _
  %v15 = vld [vmem:[%s0] sm:$0xff]
  %v16 = vld [vmem:[%s0 + $0x8] sm:$0xff]
  %v17 = vld [vmem:[%s0 + $0x10] sm:$0xff]
  %v18 = vld [vmem:[%s0 + $0x18] sm:$0xff]
  %v19 = vld [vmem:[%s0 + $0x20] sm:$0xff]
  %v20 = vld [vmem:[%s0 + $0x28] sm:$0xff]
  %v21 = vld [vmem:[%s0 + $0x30] sm:$0xff]
  %v22 = vld [vmem:[%s0 + $0x38] sm:$0xff]
  %v23 = vld [vmem:[%s0 + $0x40] sm:$0xff]
  %v24 = vld [vmem:[%s0 + $0x48] sm:$0xff]
  %v25 = vld [vmem:[%s0 + $0x50] sm:$0xff]
  %v26 = vld [vmem:[%s0 + $0x58] sm:$0xff]
  %v27 = vld [vmem:[%s0 + $0x60] sm:$0xff]
  %v28 = vld [vmem:[%s0 + $0x68] sm:$0xff]
  %v29 = vld [vmem:[%s0 + $0x70] sm:$0xff]
  %v30 = vld [vmem:[%s0 + $0x78] sm:$0xff]
  %v31 = vld [vmem:[%s0 + $0x80] sm:$0xff]
  %v32 = vld [vmem:[%s0 + $0x88] sm:$0xff]
  %v33 = vld [vmem:[%s0 + $0x90] sm:$0xff]
  %v34 = vld [vmem:[%s0 + $0x98] sm:$0xff]
  %v35 = vld [vmem:[%s0 + $0xa0] sm:$0xff]
  %v36 = vld [vmem:[%s0 + $0xa8] sm:$0xff]
  %v37 = vld [vmem:[%s0 + $0xb0] sm:$0xff]
  %v38 = vld [vmem:[%s0 + $0xb8] sm:$0xff]
  %v39 = vld [vmem:[%s0 + $0xc0] sm:$0xff]
  %v40 = vld [vmem:[%s0 + $0xc8] sm:$0xff]
  %v41 = vld [vmem:[%s0 + $0xd0] sm:$0xff]
  %v42 = vld [vmem:[%s0 + $0xd8] sm:$0xff]
  %v43 = vld [vmem:[%s0 + $0xe0] sm:$0xff]
  %v44 = vld [vmem:[%s0 + $0xe8] sm:$0xff]
  %v45 = vld [vmem:[%s0 + $0xf0] sm:$0xff]
  %v46 = vld [vmem:[%s0 + $0xf8] sm:$0xff]
  %v47 = vld [vmem:[%s0 + $0x100] sm:$0xff]
  %v48 = vld [vmem:[%s0 + $0x108] sm:$0xff]
  %v49 = vld [vmem:[%s0 + $0x110] sm:$0xff]
  %v50 = vld [vmem:[%s0 + $0x118] sm:$0xff]
  %v51 = vld [vmem:[%s0 + $0x120] sm:$0xff]
  %v52 = vld [vmem:[%s0 + $0x128] sm:$0xff]
  %v53 = vld [vmem:[%s0 + $0x130] sm:$0xff]
  %v54 = vld [vmem:[%s0 + $0x138] sm:$0xff]
  %v55 = vld [vmem:[%s0 + $0x140] sm:$0xff]
  %v56 = vld [vmem:[%s0 + $0x148] sm:$0xff]
  %v57 = vld [vmem:[%s0 + $0x150] sm:$0xff]
  %v58 = vld [vmem:[%s0 + $0x158] sm:$0xff]
  %v59 = vld [vmem:[%s0 + $0x160] sm:$0xff]
  %v60 = vld [vmem:[%s0 + $0x168] sm:$0xff]
  %v61 = vld [vmem:[%s0 + $0x170] sm:$0xff]
  %v62 = vld [vmem:[%s0 + $0x178] sm:$0xff]
  %v63 = vld [vmem:[%s0 + $0x180] sm:$0xff]
  %v64 = vld [vmem:[%s0 + $0x188] sm:$0xff]
  %v65 = vld [vmem:[%s0 + $0x190] sm:$0xff]
  %v66 = vld [vmem:[%s0 + $0x198] sm:$0xff]
  %v67 = vld [vmem:[%s0 + $0x1a0] sm:$0xff]
  %v68 = vld [vmem:[%s0 + $0x1a8] sm:$0xff]
  %v69 = vld [vmem:[%s0 + $0x1b0] sm:$0xff]
  %v70 = vld [vmem:[%s0 + $0x1b8] sm:$0xff]
  %v71 = vld [vmem:[%s0 + $0x1c0] sm:$0xff]
  %v72 = vld [vmem:[%s0 + $0x1c8] sm:$0xff]
  %v73 = vld [vmem:[%s0 + $0x1d0] sm:$0xff]
  %v74 = vld [vmem:[%s0 + $0x1d8] sm:$0xff]
  %v75 = vld [vmem:[%s0 + $0x1e0] sm:$0xff]
  %v76 = vld [vmem:[%s0 + $0x1e8] sm:$0xff]
  %v77 = vld [vmem:[%s0 + $0x1f0] sm:$0xff]
  %v78 = vld [vmem:[%s0 + $0x1f8] sm:$0xff]
  %v79 = vld [vmem:[%s0 + $0x200] sm:$0xff]
  %v80 = vld [vmem:[%s0 + $0x208] sm:$0xff]
  %v81 = vld [vmem:[%s0 + $0x210] sm:$0xff]
  %v82 = vld [vmem:[%s0 + $0x218] sm:$0xff]
  %v83 = vld [vmem:[%s0 + $0x220] sm:$0xff]
  %v84 = vld [vmem:[%s0 + $0x228] sm:$0xff]
  %v85 = vld [vmem:[%s0 + $0x230] sm:$0xff]
  %v86 = vld [vmem:[%s0 + $0x238] sm:$0xff]
  %v87 = vld [vmem:[%s0 + $0x240] sm:$0xff]
  %v88 = vld [vmem:[%s0 + $0x248] sm:$0xff]
  %v89 = vld [vmem:[%s0 + $0x250] sm:$0xff]
  %v90 = vld [vmem:[%s0 + $0x258] sm:$0xff]
  %v91 = vld [vmem:[%s0 + $0x260] sm:$0xff]
  %v92 = vld [vmem:[%s0 + $0x268] sm:$0xff]
  %v93 = vld [vmem:[%s0 + $0x270] sm:$0xff]
  %v94 = vld [vmem:[%s0 + $0x278] sm:$0xff]
  %v95 = vld [vmem:[%s0 + $0x280] sm:$0xff]
  %v96 = vld [vmem:[%s0 + $0x288] sm:$0xff]
  %v97 = vld [vmem:[%s0 + $0x290] sm:$0xff]
  %v98 = vld [vmem:[%s0 + $0x298] sm:$0xff]
  %v99 = vld [vmem:[%s0 + $0x2a0] sm:$0xff]
  %v100 = vld [vmem:[%s0 + $0x2a8] sm:$0xff]
  %v101 = vld [vmem:[%s0 + $0x2b0] sm:$0xff]
  %v102 = vld [vmem:[%s0 + $0x2b8] sm:$0xff]
  %v103 = vld [vmem:[%s0 + $0x2c0] sm:$0xff]
  %v104 = vld [vmem:[%s0 + $0x2c8] sm:$0xff]
  %v105 = vld [vmem:[%s0 + $0x2d0] sm:$0xff]
  %v106 = vld [vmem:[%s0 + $0x2d8] sm:$0xff]
  %v107 = vld [vmem:[%s0 + $0x2e0] sm:$0xff]
  %v108 = vld [vmem:[%s0 + $0x2e8] sm:$0xff]
  %v109 = vld [vmem:[%s0 + $0x2f0] sm:$0xff]
  %v110 = vld [vmem:[%s0 + $0x2f8] sm:$0xff]
  %v111 = vld [vmem:[%s0 + $0x300] sm:$0xff]
  %v112 = vld [vmem:[%s0 + $0x308] sm:$0xff]
  %v113 = vld [vmem:[%s0 + $0x310] sm:$0xff]
  %v114 = vld [vmem:[%s0 + $0x318] sm:$0xff]
  %v115 = vld [vmem:[%s0 + $0x320] sm:$0xff]
  %v116 = vld [vmem:[%s0 + $0x328] sm:$0xff]
  %v117 = vld [vmem:[%s0 + $0x330] sm:$0xff]
  %v118 = vld [vmem:[%s0 + $0x338] sm:$0xff]
  %v119 = vld [vmem:[%s0 + $0x340] sm:$0xff]
  %v120 = vld [vmem:[%s0 + $0x348] sm:$0xff]
  %v121 = vld [vmem:[%s0 + $0x350] sm:$0xff]
  %v122 = vld [vmem:[%s0 + $0x358] sm:$0xff]
  %v123 = vld [vmem:[%s0 + $0x360] sm:$0xff]
  %v124 = vld [vmem:[%s0 + $0x368] sm:$0xff]
  %v125 = vld [vmem:[%s0 + $0x370] sm:$0xff]
  %v126 = vld [vmem:[%s0 + $0x378] sm:$0xff]
  %v127 = vld [vmem:[%s0 + $0x380] sm:$0xff]
  %v128 = vld [vmem:[%s0 + $0x388] sm:$0xff]
  %v129 = vld [vmem:[%s0 + $0x390] sm:$0xff]
  %v130 = vld [vmem:[%s0 + $0x398] sm:$0xff]
  %v131 = vld [vmem:[%s0 + $0x3a0] sm:$0xff]
  %v132 = vld [vmem:[%s0 + $0x3a8] sm:$0xff]
  %v133 = vld [vmem:[%s0 + $0x3b0] sm:$0xff]
  %v134 = vld [vmem:[%s0 + $0x3b8] sm:$0xff]
  %v135 = vld [vmem:[%s0 + $0x3c0] sm:$0xff]
  %v136 = vld [vmem:[%s0 + $0x3c8] sm:$0xff]
  %v137 = vld [vmem:[%s0 + $0x3d0] sm:$0xff]
  %v138 = vld [vmem:[%s0 + $0x3d8] sm:$0xff]
  %v139 = vld [vmem:[%s0 + $0x3e0] sm:$0xff]
  %v140 = vld [vmem:[%s0 + $0x3e8] sm:$0xff]
  %v141 = vld [vmem:[%s0 + $0x3f0] sm:$0xff]
  %v142 = vld [vmem:[%s0 + $0x3f8] sm:$0xff]
  %v143 = vld [vmem:[%s0 + $0x400] sm:$0xff]
  %v144 = vld [vmem:[%s0 + $0x408] sm:$0xff]
  %v145 = vld [vmem:[%s0 + $0x410] sm:$0xff]
  %v146 = vld [vmem:[%s0 + $0x418] sm:$0xff]
  %v147 = vld [vmem:[%s0 + $0x420] sm:$0xff]
  %v148 = vld [vmem:[%s0 + $0x428] sm:$0xff]
  %v149 = vld [vmem:[%s0 + $0x430] sm:$0xff]
  %v150 = vld [vmem:[%s0 + $0x438] sm:$0xff]
  %v151 = vld [vmem:[%s0 + $0x440] sm:$0xff]
  %v152 = vld [vmem:[%s0 + $0x448] sm:$0xff]
  %v153 = vld [vmem:[%s0 + $0x450] sm:$0xff]
  %v154 = vld [vmem:[%s0 + $0x458] sm:$0xff]
  %v155 = vld [vmem:[%s0 + $0x460] sm:$0xff]
  %v156 = vld [vmem:[%s0 + $0x468] sm:$0xff]
  %v157 = vld [vmem:[%s0 + $0x470] sm:$0xff]
  %v158 = vld [vmem:[%s0 + $0x478] sm:$0xff]
  %v159 = vld [vmem:[%s0 + $0x480] sm:$0xff]
  %v160 = vld [vmem:[%s0 + $0x488] sm:$0xff]
  %v161 = vld [vmem:[%s0 + $0x490] sm:$0xff]
  %v162 = vld [vmem:[%s0 + $0x498] sm:$0xff]
  %v163 = vld [vmem:[%s0 + $0x4a0] sm:$0xff]
  %v164 = vld [vmem:[%s0 + $0x4a8] sm:$0xff]
  %v165 = vld [vmem:[%s0 + $0x4b0] sm:$0xff]
  %v166 = vld [vmem:[%s0 + $0x4b8] sm:$0xff]
  %v167 = vld [vmem:[%s0 + $0x4c0] sm:$0xff]
  %v168 = vld [vmem:[%s0 + $0x4c8] sm:$0xff]
  %v169 = vld [vmem:[%s0 + $0x4d0] sm:$0xff]
  %v170 = vld [vmem:[%s0 + $0x4d8] sm:$0xff]
  %v171 = vld [vmem:[%s0 + $0x4e0] sm:$0xff]
  %v172 = vld [vmem:[%s0 + $0x4e8] sm:$0xff]
  %v173 = vld [vmem:[%s0 + $0x4f0] sm:$0xff]
  %v174 = vld [vmem:[%s0 + $0x4f8] sm:$0xff]
  %v175 = vld [vmem:[%s0 + $0x500] sm:$0xff]
  %v176 = vld [vmem:[%s0 + $0x508] sm:$0xff]
  %v177 = vld [vmem:[%s0 + $0x510] sm:$0xff]
  %v178 = vld [vmem:[%s0 + $0x518] sm:$0xff]
  %v179 = vld [vmem:[%s0 + $0x520] sm:$0xff]
  %v180 = vld [vmem:[%s0 + $0x528] sm:$0xff]
  %v181 = vld [vmem:[%s0 + $0x530] sm:$0xff]
  %v182 = vld [vmem:[%s0 + $0x538] sm:$0xff]
  %v183 = vld [vmem:[%s0 + $0x540] sm:$0xff]
  %v184 = vld [vmem:[%s0 + $0x548] sm:$0xff]
  %v185 = vld [vmem:[%s0 + $0x550] sm:$0xff]
  %v186 = vld [vmem:[%s0 + $0x558] sm:$0xff]
  %v187 = vld [vmem:[%s0 + $0x560] sm:$0xff]
  %v188 = vld [vmem:[%s0 + $0x568] sm:$0xff]
  %v189 = vld [vmem:[%s0 + $0x570] sm:$0xff]
  %v190 = vld [vmem:[%s0 + $0x578] sm:$0xff]
  %v191 = vld [vmem:[%s0 + $0x580] sm:$0xff]
  %v192 = vld [vmem:[%s0 + $0x588] sm:$0xff]
  %v193 = vld [vmem:[%s0 + $0x590] sm:$0xff]
  %v194 = vld [vmem:[%s0 + $0x598] sm:$0xff]
  %v195 = vld [vmem:[%s0 + $0x5a0] sm:$0xff]
  %v196 = vld [vmem:[%s0 + $0x5a8] sm:$0xff]
  %v197 = vld [vmem:[%s0 + $0x5b0] sm:$0xff]
  %v198 = vld [vmem:[%s0 + $0x5b8] sm:$0xff]
  %v199 = vld [vmem:[%s0 + $0x5c0] sm:$0xff]
  %v200 = vld [vmem:[%s0 + $0x5c8] sm:$0xff]
  %v201 = vld [vmem:[%s0 + $0x5d0] sm:$0xff]
  %v202 = vld [vmem:[%s0 + $0x5d8] sm:$0xff]
  %v203 = vld [vmem:[%s0 + $0x5e0] sm:$0xff]
  %v204 = vld [vmem:[%s0 + $0x5e8] sm:$0xff]
  %v205 = vld [vmem:[%s0 + $0x5f0] sm:$0xff]
  %v206 = vld [vmem:[%s0 + $0x5f8] sm:$0xff]
  %v207 = vld [vmem:[%s0 + $0x600] sm:$0xff]
  %v208 = vld [vmem:[%s0 + $0x608] sm:$0xff]
  %v209 = vld [vmem:[%s0 + $0x610] sm:$0xff]
  %v210 = vld [vmem:[%s0 + $0x618] sm:$0xff]
  %v211 = vld [vmem:[%s0 + $0x620] sm:$0xff]
  %v212 = vld [vmem:[%s0 + $0x628] sm:$0xff]
  %v213 = vld [vmem:[%s0 + $0x630] sm:$0xff]
  %v214 = vld [vmem:[%s0 + $0x638] sm:$0xff]
  %v215 = vld [vmem:[%s0 + $0x640] sm:$0xff]
  %v216 = vld [vmem:[%s0 + $0x648] sm:$0xff]
  %v217 = vld [vmem:[%s0 + $0x650] sm:$0xff]
  %v218 = vld [vmem:[%s0 + $0x658] sm:$0xff]
  %v219 = vld [vmem:[%s0 + $0x660] sm:$0xff]
  %v220 = vld [vmem:[%s0 + $0x668] sm:$0xff]
  %v221 = vld [vmem:[%s0 + $0x670] sm:$0xff]
  %v222 = vld [vmem:[%s0 + $0x678] sm:$0xff]
  %v223 = vld [vmem:[%s0 + $0x680] sm:$0xff]
  %v224 = vld [vmem:[%s0 + $0x688] sm:$0xff]
  %v225 = vld [vmem:[%s0 + $0x690] sm:$0xff]
  %v226 = vld [vmem:[%s0 + $0x698] sm:$0xff]
  %v227 = vld [vmem:[%s0 + $0x6a0] sm:$0xff]
  %v228 = vld [vmem:[%s0 + $0x6a8] sm:$0xff]
  %v229 = vld [vmem:[%s0 + $0x6b0] sm:$0xff]
  %v230 = vld [vmem:[%s0 + $0x6b8] sm:$0xff]
  %v231 = vld [vmem:[%s0 + $0x6c0] sm:$0xff]
  %v232 = vld [vmem:[%s0 + $0x6c8] sm:$0xff]
  %v233 = vld [vmem:[%s0 + $0x6d0] sm:$0xff]
  %v234 = vld [vmem:[%s0 + $0x6d8] sm:$0xff]
  %v235 = vld [vmem:[%s0 + $0x6e0] sm:$0xff]
  %v236 = vld [vmem:[%s0 + $0x6e8] sm:$0xff]
  %v237 = vld [vmem:[%s0 + $0x6f0] sm:$0xff]
  %v238 = vld [vmem:[%s0 + $0x6f8] sm:$0xff]
  %v239 = vld [vmem:[%s0 + $0x700] sm:$0xff]
  %v240 = vld [vmem:[%s0 + $0x708] sm:$0xff]
  %v241 = vld [vmem:[%s0 + $0x710] sm:$0xff]
  %v242 = vld [vmem:[%s0 + $0x718] sm:$0xff]
  %v243 = vld [vmem:[%s0 + $0x720] sm:$0xff]
  %v244 = vld [vmem:[%s0 + $0x728] sm:$0xff]
  %v245 = vld [vmem:[%s0 + $0x730] sm:$0xff]
  %v246 = vld [vmem:[%s0 + $0x738] sm:$0xff]
  %v247 = vld [vmem:[%s0 + $0x740] sm:$0xff]
  %v248 = vld [vmem:[%s0 + $0x748] sm:$0xff]
  %v249 = vld [vmem:[%s0 + $0x750] sm:$0xff]
  %v250 = vld [vmem:[%s0 + $0x758] sm:$0xff]
  %v251 = vld [vmem:[%s0 + $0x760] sm:$0xff]
  %v252 = vld [vmem:[%s0 + $0x768] sm:$0xff]
  %v253 = vld [vmem:[%s0 + $0x770] sm:$0xff]
  %v254 = vld [vmem:[%s0 + $0x778] sm:$0xff]
  %v255 = vld [vmem:[%s0 + $0x780] sm:$0xff]
  %v256 = vld [vmem:[%s0 + $0x788] sm:$0xff]
  %v257 = vld [vmem:[%s0 + $0x790] sm:$0xff]
  %v258 = vld [vmem:[%s0 + $0x798] sm:$0xff]
  %v259 = vld [vmem:[%s0 + $0x7a0] sm:$0xff]
  %v260 = vld [vmem:[%s0 + $0x7a8] sm:$0xff]
  %v261 = vld [vmem:[%s0 + $0x7b0] sm:$0xff]
  %v262 = vld [vmem:[%s0 + $0x7b8] sm:$0xff]
  %v263 = vld [vmem:[%s0 + $0x7c0] sm:$0xff]
  %v264 = vld [vmem:[%s0 + $0x7c8] sm:$0xff]
  %v265 = vld [vmem:[%s0 + $0x7d0] sm:$0xff]
  %v266 = vld [vmem:[%s0 + $0x7d8] sm:$0xff]
  %v267 = vld [vmem:[%s0 + $0x7e0] sm:$0xff]
  %v268 = vld [vmem:[%s0 + $0x7e8] sm:$0xff]
  %v269 = vld [vmem:[%s0 + $0x7f0] sm:$0xff]
  %v270 = vld [vmem:[%s0 + $0x7f8] sm:$0xff]
  %v271 = vld [vmem:[%s0 + $0x800] sm:$0xff]
  %v272 = vld [vmem:[%s0 + $0x808] sm:$0xff]
  %v273 = vxor.u32 %v15, 2147483648
  %v274 = vxor.u32 %v16, 2147483648
  %v275 = vxor.u32 %v17, 2147483648
  %v276 = vxor.u32 %v18, 2147483648
  %v277 = vxor.u32 %v19, 2147483648
  %v278 = vxor.u32 %v20, 2147483648
  %v279 = vxor.u32 %v21, 2147483648
  %v280 = vxor.u32 %v22, 2147483648
  %v281 = vxor.u32 %v23, 2147483648
  %v282 = vxor.u32 %v24, 2147483648
  %v283 = vxor.u32 %v25, 2147483648
  %v284 = vxor.u32 %v26, 2147483648
  %v285 = vxor.u32 %v27, 2147483648
  %v286 = vxor.u32 %v28, 2147483648
  %v287 = vxor.u32 %v29, 2147483648
  %v288 = vxor.u32 %v30, 2147483648
  %v289 = vxor.u32 %v31, 2147483648
  %v290 = vxor.u32 %v32, 2147483648
  %v291 = vxor.u32 %v33, 2147483648
  %v292 = vxor.u32 %v34, 2147483648
  %v293 = vxor.u32 %v35, 2147483648
  %v294 = vxor.u32 %v36, 2147483648
  %v295 = vxor.u32 %v37, 2147483648
  %v296 = vxor.u32 %v38, 2147483648
  %v297 = vxor.u32 %v39, 2147483648
  %v298 = vxor.u32 %v40, 2147483648
  %v299 = vxor.u32 %v41, 2147483648
  %v300 = vxor.u32 %v42, 2147483648
  %v301 = vxor.u32 %v43, 2147483648
  %v302 = vxor.u32 %v44, 2147483648
  %v303 = vxor.u32 %v45, 2147483648
  %v304 = vxor.u32 %v46, 2147483648
  %v305 = vxor.u32 %v47, 2147483648
  %v306 = vxor.u32 %v48, 2147483648
  %v307 = vxor.u32 %v49, 2147483648
  %v308 = vxor.u32 %v50, 2147483648
  %v309 = vxor.u32 %v51, 2147483648
  %v310 = vxor.u32 %v52, 2147483648
  %v311 = vxor.u32 %v53, 2147483648
  %v312 = vxor.u32 %v54, 2147483648
  %v313 = vxor.u32 %v55, 2147483648
  %v314 = vxor.u32 %v56, 2147483648
  %v315 = vxor.u32 %v57, 2147483648
  %v316 = vxor.u32 %v58, 2147483648
  %v317 = vxor.u32 %v59, 2147483648
  %v318 = vxor.u32 %v60, 2147483648
  %v319 = vxor.u32 %v61, 2147483648
  %v320 = vxor.u32 %v62, 2147483648
  %v321 = vxor.u32 %v63, 2147483648
  %v322 = vxor.u32 %v64, 2147483648
  %v323 = vxor.u32 %v65, 2147483648
  %v324 = vxor.u32 %v66, 2147483648
  %v325 = vxor.u32 %v67, 2147483648
  %v326 = vxor.u32 %v68, 2147483648
  %v327 = vxor.u32 %v69, 2147483648
  %v328 = vxor.u32 %v70, 2147483648
  %v329 = vxor.u32 %v71, 2147483648
  %v330 = vxor.u32 %v72, 2147483648
  %v331 = vxor.u32 %v73, 2147483648
  %v332 = vxor.u32 %v74, 2147483648
  %v333 = vxor.u32 %v75, 2147483648
  %v334 = vxor.u32 %v76, 2147483648
  %v335 = vxor.u32 %v77, 2147483648
  %v336 = vxor.u32 %v78, 2147483648
  %v337 = vxor.u32 %v79, 2147483648
  %v338 = vxor.u32 %v80, 2147483648
  %v339 = vxor.u32 %v81, 2147483648
  %v340 = vxor.u32 %v82, 2147483648
  %v341 = vxor.u32 %v83, 2147483648
  %v342 = vxor.u32 %v84, 2147483648
  %v343 = vxor.u32 %v85, 2147483648
  %v344 = vxor.u32 %v86, 2147483648
  %v345 = vxor.u32 %v87, 2147483648
  %v346 = vxor.u32 %v88, 2147483648
  %v347 = vxor.u32 %v89, 2147483648
  %v348 = vxor.u32 %v90, 2147483648
  %v349 = vxor.u32 %v91, 2147483648
  %v350 = vxor.u32 %v92, 2147483648
  %v351 = vxor.u32 %v93, 2147483648
  %v352 = vxor.u32 %v94, 2147483648
  %v353 = vxor.u32 %v95, 2147483648
  %v354 = vxor.u32 %v96, 2147483648
  %v355 = vxor.u32 %v97, 2147483648
  %v356 = vxor.u32 %v98, 2147483648
  %v357 = vxor.u32 %v99, 2147483648
  %v358 = vxor.u32 %v100, 2147483648
  %v359 = vxor.u32 %v101, 2147483648
  %v360 = vxor.u32 %v102, 2147483648
  %v361 = vxor.u32 %v103, 2147483648
  %v362 = vxor.u32 %v104, 2147483648
  %v363 = vxor.u32 %v105, 2147483648
  %v364 = vxor.u32 %v106, 2147483648
  %v365 = vxor.u32 %v107, 2147483648
  %v366 = vxor.u32 %v108, 2147483648
  %v367 = vxor.u32 %v109, 2147483648
  %v368 = vxor.u32 %v110, 2147483648
  %v369 = vxor.u32 %v111, 2147483648
  %v370 = vxor.u32 %v112, 2147483648
  %v371 = vxor.u32 %v113, 2147483648
  %v372 = vxor.u32 %v114, 2147483648
  %v373 = vxor.u32 %v115, 2147483648
  %v374 = vxor.u32 %v116, 2147483648
  %v375 = vxor.u32 %v117, 2147483648
  %v376 = vxor.u32 %v118, 2147483648
  %v377 = vxor.u32 %v119, 2147483648
  %v378 = vxor.u32 %v120, 2147483648
  %v379 = vxor.u32 %v121, 2147483648
  %v380 = vxor.u32 %v122, 2147483648
  %v381 = vxor.u32 %v123, 2147483648
  %v382 = vxor.u32 %v124, 2147483648
  %v383 = vxor.u32 %v125, 2147483648
  %v384 = vxor.u32 %v126, 2147483648
  %v385 = vxor.u32 %v127, 2147483648
  %v386 = vxor.u32 %v128, 2147483648
  %v387 = vxor.u32 %v129, 2147483648
  %v388 = vxor.u32 %v130, 2147483648
  %v389 = vxor.u32 %v131, 2147483648
  %v390 = vxor.u32 %v132, 2147483648
  %v391 = vxor.u32 %v133, 2147483648
  %v392 = vxor.u32 %v134, 2147483648
  %v393 = vxor.u32 %v135, 2147483648
  %v394 = vxor.u32 %v136, 2147483648
  %v395 = vxor.u32 %v137, 2147483648
  %v396 = vxor.u32 %v138, 2147483648
  %v397 = vxor.u32 %v139, 2147483648
  %v398 = vxor.u32 %v140, 2147483648
  %v399 = vxor.u32 %v141, 2147483648
  %v400 = vxor.u32 %v142, 2147483648
  %v401 = vxor.u32 %v143, 2147483648
  %v402 = vxor.u32 %v144, 2147483648
  %v403 = vxor.u32 %v145, 2147483648
  %v404 = vxor.u32 %v146, 2147483648
  %v405 = vxor.u32 %v147, 2147483648
  %v406 = vxor.u32 %v148, 2147483648
  %v407 = vxor.u32 %v149, 2147483648
  %v408 = vxor.u32 %v150, 2147483648
  %v409 = vxor.u32 %v151, 2147483648
  %v410 = vxor.u32 %v152, 2147483648
  %v411 = vxor.u32 %v153, 2147483648
  %v412 = vxor.u32 %v154, 2147483648
  %v413 = vxor.u32 %v155, 2147483648
  %v414 = vxor.u32 %v156, 2147483648
  %v415 = vxor.u32 %v157, 2147483648
  %v416 = vxor.u32 %v158, 2147483648
  %v417 = vxor.u32 %v159, 2147483648
  %v418 = vxor.u32 %v160, 2147483648
  %v419 = vxor.u32 %v161, 2147483648
  %v420 = vxor.u32 %v162, 2147483648
  %v421 = vxor.u32 %v163, 2147483648
  %v422 = vxor.u32 %v164, 2147483648
  %v423 = vxor.u32 %v165, 2147483648
  %v424 = vxor.u32 %v166, 2147483648
  %v425 = vxor.u32 %v167, 2147483648
  %v426 = vxor.u32 %v168, 2147483648
  %v427 = vxor.u32 %v169, 2147483648
  %v428 = vxor.u32 %v170, 2147483648
  %v429 = vxor.u32 %v171, 2147483648
  %v430 = vxor.u32 %v172, 2147483648
  %v431 = vxor.u32 %v173, 2147483648
  %v432 = vxor.u32 %v174, 2147483648
  %v433 = vxor.u32 %v175, 2147483648
  %v434 = vxor.u32 %v176, 2147483648
  %v435 = vxor.u32 %v177, 2147483648
  %v436 = vxor.u32 %v178, 2147483648
  %v437 = vxor.u32 %v179, 2147483648
  %v438 = vxor.u32 %v180, 2147483648
  %v439 = vxor.u32 %v181, 2147483648
  %v440 = vxor.u32 %v182, 2147483648
  %v441 = vxor.u32 %v183, 2147483648
  %v442 = vxor.u32 %v184, 2147483648
  %v443 = vxor.u32 %v185, 2147483648
  %v444 = vxor.u32 %v186, 2147483648
  %v445 = vxor.u32 %v187, 2147483648
  %v446 = vxor.u32 %v188, 2147483648
  %v447 = vxor.u32 %v189, 2147483648
  %v448 = vxor.u32 %v190, 2147483648
  %v449 = vxor.u32 %v191, 2147483648
  %v450 = vxor.u32 %v192, 2147483648
  %v451 = vxor.u32 %v193, 2147483648
  %v452 = vxor.u32 %v194, 2147483648
  %v453 = vxor.u32 %v195, 2147483648
  %v454 = vxor.u32 %v196, 2147483648
  %v455 = vxor.u32 %v197, 2147483648
  %v456 = vxor.u32 %v198, 2147483648
  %v457 = vxor.u32 %v199, 2147483648
  %v458 = vxor.u32 %v200, 2147483648
  %v459 = vxor.u32 %v201, 2147483648
  %v460 = vxor.u32 %v202, 2147483648
  %v461 = vxor.u32 %v203, 2147483648
  %v462 = vxor.u32 %v204, 2147483648
  %v463 = vxor.u32 %v205, 2147483648
  %v464 = vxor.u32 %v206, 2147483648
  %v465 = vxor.u32 %v207, 2147483648
  %v466 = vxor.u32 %v208, 2147483648
  %v467 = vxor.u32 %v209, 2147483648
  %v468 = vxor.u32 %v210, 2147483648
  %v469 = vxor.u32 %v211, 2147483648
  %v470 = vxor.u32 %v212, 2147483648
  %v471 = vxor.u32 %v213, 2147483648
  %v472 = vxor.u32 %v214, 2147483648
  %v473 = vxor.u32 %v215, 2147483648
  %v474 = vxor.u32 %v216, 2147483648
  %v475 = vxor.u32 %v217, 2147483648
  %v476 = vxor.u32 %v218, 2147483648
  %v477 = vxor.u32 %v219, 2147483648
  %v478 = vxor.u32 %v220, 2147483648
  %v479 = vxor.u32 %v221, 2147483648
  %v480 = vxor.u32 %v222, 2147483648
  %v481 = vxor.u32 %v223, 2147483648
  %v482 = vxor.u32 %v224, 2147483648
  %v483 = vxor.u32 %v225, 2147483648
  %v484 = vxor.u32 %v226, 2147483648
  %v485 = vxor.u32 %v227, 2147483648
  %v486 = vxor.u32 %v228, 2147483648
  %v487 = vxor.u32 %v229, 2147483648
  %v488 = vxor.u32 %v230, 2147483648
  %v489 = vxor.u32 %v231, 2147483648
  %v490 = vxor.u32 %v232, 2147483648
  %v491 = vxor.u32 %v233, 2147483648
  %v492 = vxor.u32 %v234, 2147483648
  %v493 = vxor.u32 %v235, 2147483648
  %v494 = vxor.u32 %v236, 2147483648
  %v495 = vxor.u32 %v237, 2147483648
  %v496 = vxor.u32 %v238, 2147483648
  %v497 = vxor.u32 %v239, 2147483648
  %v498 = vxor.u32 %v240, 2147483648
  %v499 = vxor.u32 %v241, 2147483648
  %v500 = vxor.u32 %v242, 2147483648
  %v501 = vxor.u32 %v243, 2147483648
  %v502 = vxor.u32 %v244, 2147483648
  %v503 = vxor.u32 %v245, 2147483648
  %v504 = vxor.u32 %v246, 2147483648
  %v505 = vxor.u32 %v247, 2147483648
  %v506 = vxor.u32 %v248, 2147483648
  %v507 = vxor.u32 %v249, 2147483648
  %v508 = vxor.u32 %v250, 2147483648
  %v509 = vxor.u32 %v251, 2147483648
  %v510 = vxor.u32 %v252, 2147483648
  %v511 = vxor.u32 %v253, 2147483648
  %v512 = vxor.u32 %v254, 2147483648
  %v513 = vxor.u32 %v255, 2147483648
  %v514 = vxor.u32 %v256, 2147483648
  %v515 = vxor.u32 %v257, 2147483648
  %v516 = vxor.u32 %v258, 2147483648
  %v517 = vxor.u32 %v259, 2147483648
  %v518 = vxor.u32 %v260, 2147483648
  %v519 = vxor.u32 %v261, 2147483648
  %v520 = vxor.u32 %v262, 2147483648
  %v521 = vxor.u32 %v263, 2147483648
  %v522 = vxor.u32 %v264, 2147483648
  %v523 = vxor.u32 %v265, 2147483648
  %v524 = vxor.u32 %v266, 2147483648
  %v525 = vxor.u32 %v267, 2147483648
  %v526 = vxor.u32 %v268, 2147483648
  %v527 = vxor.u32 %v269, 2147483648
  %v528 = vxor.u32 %v270, 2147483648
  %v529 = vxor.u32 %v271, 2147483648
  %v530 = vxor.u32 %v272, 2147483648
  %v531 = vmul.f32 %v273, 1.442695
  %v532 = vpow.pop %v531
  %v533 = vmul.f32 %v274, 1.442695
  %v534 = vpow.pop %v533
  %v535 = vmul.f32 %v275, 1.442695
  %v536 = vpow.pop %v535
  %v537 = vmul.f32 %v276, 1.442695
  %v538 = vpow.pop %v537
  %v539 = vmul.f32 %v277, 1.442695
  %v540 = vpow.pop %v539
  %v541 = vmul.f32 %v278, 1.442695
  %v542 = vpow.pop %v541
  %v543 = vmul.f32 %v279, 1.442695
  %v544 = vpow.pop %v543
  %v545 = vmul.f32 %v280, 1.442695
  %v546 = vpow.pop %v545
  %v547 = vmul.f32 %v281, 1.442695
  %v548 = vpow.pop %v547
  %v549 = vmul.f32 %v282, 1.442695
  %v550 = vpow.pop %v549
  %v551 = vmul.f32 %v283, 1.442695
  %v552 = vpow.pop %v551
  %v553 = vmul.f32 %v284, 1.442695
  %v554 = vpow.pop %v553
  %v555 = vmul.f32 %v285, 1.442695
  %v556 = vpow.pop %v555
  %v557 = vmul.f32 %v286, 1.442695
  %v558 = vpow.pop %v557
  %v559 = vmul.f32 %v287, 1.442695
  %v560 = vpow.pop %v559
  %v561 = vmul.f32 %v288, 1.442695
  %v562 = vpow.pop %v561
  %v563 = vmul.f32 %v289, 1.442695
  %v564 = vpow.pop %v563
  %v565 = vmul.f32 %v290, 1.442695
  %v566 = vpow.pop %v565
  %v567 = vmul.f32 %v291, 1.442695
  %v568 = vpow.pop %v567
  %v569 = vmul.f32 %v292, 1.442695
  %v570 = vpow.pop %v569
  %v571 = vmul.f32 %v293, 1.442695
  %v572 = vpow.pop %v571
  %v573 = vmul.f32 %v294, 1.442695
  %v574 = vpow.pop %v573
  %v575 = vmul.f32 %v295, 1.442695
  %v576 = vpow.pop %v575
  %v577 = vmul.f32 %v296, 1.442695
  %v578 = vpow.pop %v577
  %v579 = vmul.f32 %v297, 1.442695
  %v580 = vpow.pop %v579
  %v581 = vmul.f32 %v298, 1.442695
  %v582 = vpow.pop %v581
  %v583 = vmul.f32 %v299, 1.442695
  %v584 = vpow.pop %v583
  %v585 = vmul.f32 %v300, 1.442695
  %v586 = vpow.pop %v585
  %v587 = vmul.f32 %v301, 1.442695
  %v588 = vpow.pop %v587
  %v589 = vmul.f32 %v302, 1.442695
  %v590 = vpow.pop %v589
  %v591 = vmul.f32 %v303, 1.442695
  %v592 = vpow.pop %v591
  %v593 = vmul.f32 %v304, 1.442695
  %v594 = vpow.pop %v593
  %v595 = vmul.f32 %v305, 1.442695
  %v596 = vpow.pop %v595
  %v597 = vmul.f32 %v306, 1.442695
  %v598 = vpow.pop %v597
  %v599 = vmul.f32 %v307, 1.442695
  %v600 = vpow.pop %v599
  %v601 = vmul.f32 %v308, 1.442695
  %v602 = vpow.pop %v601
  %v603 = vmul.f32 %v309, 1.442695
  %v604 = vpow.pop %v603
  %v605 = vmul.f32 %v310, 1.442695
  %v606 = vpow.pop %v605
  %v607 = vmul.f32 %v311, 1.442695
  %v608 = vpow.pop %v607
  %v609 = vmul.f32 %v312, 1.442695
  %v610 = vpow.pop %v609
  %v611 = vmul.f32 %v313, 1.442695
  %v612 = vpow.pop %v611
  %v613 = vmul.f32 %v314, 1.442695
  %v614 = vpow.pop %v613
  %v615 = vmul.f32 %v315, 1.442695
  %v616 = vpow.pop %v615
  %v617 = vmul.f32 %v316, 1.442695
  %v618 = vpow.pop %v617
  %v619 = vmul.f32 %v317, 1.442695
  %v620 = vpow.pop %v619
  %v621 = vmul.f32 %v318, 1.442695
  %v622 = vpow.pop %v621
  %v623 = vmul.f32 %v319, 1.442695
  %v624 = vpow.pop %v623
  %v625 = vmul.f32 %v320, 1.442695
  %v626 = vpow.pop %v625
  %v627 = vmul.f32 %v321, 1.442695
  %v628 = vpow.pop %v627
  %v629 = vmul.f32 %v322, 1.442695
  %v630 = vpow.pop %v629
  %v631 = vmul.f32 %v323, 1.442695
  %v632 = vpow.pop %v631
  %v633 = vmul.f32 %v324, 1.442695
  %v634 = vpow.pop %v633
  %v635 = vmul.f32 %v325, 1.442695
  %v636 = vpow.pop %v635
  %v637 = vmul.f32 %v326, 1.442695
  %v638 = vpow.pop %v637
  %v639 = vmul.f32 %v327, 1.442695
  %v640 = vpow.pop %v639
  %v641 = vmul.f32 %v328, 1.442695
  %v642 = vpow.pop %v641
  %v643 = vmul.f32 %v329, 1.442695
  %v644 = vpow.pop %v643
  %v645 = vmul.f32 %v330, 1.442695
  %v646 = vpow.pop %v645
  %v647 = vmul.f32 %v331, 1.442695
  %v648 = vpow.pop %v647
  %v649 = vmul.f32 %v332, 1.442695
  %v650 = vpow.pop %v649
  %v651 = vmul.f32 %v333, 1.442695
  %v652 = vpow.pop %v651
  %v653 = vmul.f32 %v334, 1.442695
  %v654 = vpow.pop %v653
  %v655 = vmul.f32 %v335, 1.442695
  %v656 = vpow.pop %v655
  %v657 = vmul.f32 %v336, 1.442695
  %v658 = vpow.pop %v657
  %v659 = vmul.f32 %v337, 1.442695
  %v660 = vpow.pop %v659
  %v661 = vmul.f32 %v338, 1.442695
  %v662 = vpow.pop %v661
  %v663 = vmul.f32 %v339, 1.442695
  %v664 = vpow.pop %v663
  %v665 = vmul.f32 %v340, 1.442695
  %v666 = vpow.pop %v665
  %v667 = vmul.f32 %v341, 1.442695
  %v668 = vpow.pop %v667
  %v669 = vmul.f32 %v342, 1.442695
  %v670 = vpow.pop %v669
  %v671 = vmul.f32 %v343, 1.442695
  %v672 = vpow.pop %v671
  %v673 = vmul.f32 %v344, 1.442695
  %v674 = vpow.pop %v673
  %v675 = vmul.f32 %v345, 1.442695
  %v676 = vpow.pop %v675
  %v677 = vmul.f32 %v346, 1.442695
  %v678 = vpow.pop %v677
  %v679 = vmul.f32 %v347, 1.442695
  %v680 = vpow.pop %v679
  %v681 = vmul.f32 %v348, 1.442695
  %v682 = vpow.pop %v681
  %v683 = vmul.f32 %v349, 1.442695
  %v684 = vpow.pop %v683
  %v685 = vmul.f32 %v350, 1.442695
  %v686 = vpow.pop %v685
  %v687 = vmul.f32 %v351, 1.442695
  %v688 = vpow.pop %v687
  %v689 = vmul.f32 %v352, 1.442695
  %v690 = vpow.pop %v689
  %v691 = vmul.f32 %v353, 1.442695
  %v692 = vpow.pop %v691
  %v693 = vmul.f32 %v354, 1.442695
  %v694 = vpow.pop %v693
  %v695 = vmul.f32 %v355, 1.442695
  %v696 = vpow.pop %v695
  %v697 = vmul.f32 %v356, 1.442695
  %v698 = vpow.pop %v697
  %v699 = vmul.f32 %v357, 1.442695
  %v700 = vpow.pop %v699
  %v701 = vmul.f32 %v358, 1.442695
  %v702 = vpow.pop %v701
  %v703 = vmul.f32 %v359, 1.442695
  %v704 = vpow.pop %v703
  %v705 = vmul.f32 %v360, 1.442695
  %v706 = vpow.pop %v705
  %v707 = vmul.f32 %v361, 1.442695
  %v708 = vpow.pop %v707
  %v709 = vmul.f32 %v362, 1.442695
  %v710 = vpow.pop %v709
  %v711 = vmul.f32 %v363, 1.442695
  %v712 = vpow.pop %v711
  %v713 = vmul.f32 %v364, 1.442695
  %v714 = vpow.pop %v713
  %v715 = vmul.f32 %v365, 1.442695
  %v716 = vpow.pop %v715
  %v717 = vmul.f32 %v366, 1.442695
  %v718 = vpow.pop %v717
  %v719 = vmul.f32 %v367, 1.442695
  %v720 = vpow.pop %v719
  %v721 = vmul.f32 %v368, 1.442695
  %v722 = vpow.pop %v721
  %v723 = vmul.f32 %v369, 1.442695
  %v724 = vpow.pop %v723
  %v725 = vmul.f32 %v370, 1.442695
  %v726 = vpow.pop %v725
  %v727 = vmul.f32 %v371, 1.442695
  %v728 = vpow.pop %v727
  %v729 = vmul.f32 %v372, 1.442695
  %v730 = vpow.pop %v729
  %v731 = vmul.f32 %v373, 1.442695
  %v732 = vpow.pop %v731
  %v733 = vmul.f32 %v374, 1.442695
  %v734 = vpow.pop %v733
  %v735 = vmul.f32 %v375, 1.442695
  %v736 = vpow.pop %v735
  %v737 = vmul.f32 %v376, 1.442695
  %v738 = vpow.pop %v737
  %v739 = vmul.f32 %v377, 1.442695
  %v740 = vpow.pop %v739
  %v741 = vmul.f32 %v378, 1.442695
  %v742 = vpow.pop %v741
  %v743 = vmul.f32 %v379, 1.442695
  %v744 = vpow.pop %v743
  %v745 = vmul.f32 %v380, 1.442695
  %v746 = vpow.pop %v745
  %v747 = vmul.f32 %v381, 1.442695
  %v748 = vpow.pop %v747
  %v749 = vmul.f32 %v382, 1.442695
  %v750 = vpow.pop %v749
  %v751 = vmul.f32 %v383, 1.442695
  %v752 = vpow.pop %v751
  %v753 = vmul.f32 %v384, 1.442695
  %v754 = vpow.pop %v753
  %v755 = vmul.f32 %v385, 1.442695
  %v756 = vpow.pop %v755
  %v757 = vmul.f32 %v386, 1.442695
  %v758 = vpow.pop %v757
  %v759 = vmul.f32 %v387, 1.442695
  %v760 = vpow.pop %v759
  %v761 = vmul.f32 %v388, 1.442695
  %v762 = vpow.pop %v761
  %v763 = vmul.f32 %v389, 1.442695
  %v764 = vpow.pop %v763
  %v765 = vmul.f32 %v390, 1.442695
  %v766 = vpow.pop %v765
  %v767 = vmul.f32 %v391, 1.442695
  %v768 = vpow.pop %v767
  %v769 = vmul.f32 %v392, 1.442695
  %v770 = vpow.pop %v769
  %v771 = vmul.f32 %v393, 1.442695
  %v772 = vpow.pop %v771
  %v773 = vmul.f32 %v394, 1.442695
  %v774 = vpow.pop %v773
  %v775 = vmul.f32 %v395, 1.442695
  %v776 = vpow.pop %v775
  %v777 = vmul.f32 %v396, 1.442695
  %v778 = vpow.pop %v777
  %v779 = vmul.f32 %v397, 1.442695
  %v780 = vpow.pop %v779
  %v781 = vmul.f32 %v398, 1.442695
  %v782 = vpow.pop %v781
  %v783 = vmul.f32 %v399, 1.442695
  %v784 = vpow.pop %v783
  %v785 = vmul.f32 %v400, 1.442695
  %v786 = vpow.pop %v785
  %v787 = vmul.f32 %v401, 1.442695
  %v788 = vpow.pop %v787
  %v789 = vmul.f32 %v402, 1.442695
  %v790 = vpow.pop %v789
  %v791 = vmul.f32 %v403, 1.442695
  %v792 = vpow.pop %v791
  %v793 = vmul.f32 %v404, 1.442695
  %v794 = vpow.pop %v793
  %v795 = vmul.f32 %v405, 1.442695
  %v796 = vpow.pop %v795
  %v797 = vmul.f32 %v406, 1.442695
  %v798 = vpow.pop %v797
  %v799 = vmul.f32 %v407, 1.442695
  %v800 = vpow.pop %v799
  %v801 = vmul.f32 %v408, 1.442695
  %v802 = vpow.pop %v801
  %v803 = vmul.f32 %v409, 1.442695
  %v804 = vpow.pop %v803
  %v805 = vmul.f32 %v410, 1.442695
  %v806 = vpow.pop %v805
  %v807 = vmul.f32 %v411, 1.442695
  %v808 = vpow.pop %v807
  %v809 = vmul.f32 %v412, 1.442695
  %v810 = vpow.pop %v809
  %v811 = vmul.f32 %v413, 1.442695
  %v812 = vpow.pop %v811
  %v813 = vmul.f32 %v414, 1.442695
  %v814 = vpow.pop %v813
  %v815 = vmul.f32 %v415, 1.442695
  %v816 = vpow.pop %v815
  %v817 = vmul.f32 %v416, 1.442695
  %v818 = vpow.pop %v817
  %v819 = vmul.f32 %v417, 1.442695
  %v820 = vpow.pop %v819
  %v821 = vmul.f32 %v418, 1.442695
  %v822 = vpow.pop %v821
  %v823 = vmul.f32 %v419, 1.442695
  %v824 = vpow.pop %v823
  %v825 = vmul.f32 %v420, 1.442695
  %v826 = vpow.pop %v825
  %v827 = vmul.f32 %v421, 1.442695
  %v828 = vpow.pop %v827
  %v829 = vmul.f32 %v422, 1.442695
  %v830 = vpow.pop %v829
  %v831 = vmul.f32 %v423, 1.442695
  %v832 = vpow.pop %v831
  %v833 = vmul.f32 %v424, 1.442695
  %v834 = vpow.pop %v833
  %v835 = vmul.f32 %v425, 1.442695
  %v836 = vpow.pop %v835
  %v837 = vmul.f32 %v426, 1.442695
  %v838 = vpow.pop %v837
  %v839 = vmul.f32 %v427, 1.442695
  %v840 = vpow.pop %v839
  %v841 = vmul.f32 %v428, 1.442695
  %v842 = vpow.pop %v841
  %v843 = vmul.f32 %v429, 1.442695
  %v844 = vpow.pop %v843
  %v845 = vmul.f32 %v430, 1.442695
  %v846 = vpow.pop %v845
  %v847 = vmul.f32 %v431, 1.442695
  %v848 = vpow.pop %v847
  %v849 = vmul.f32 %v432, 1.442695
  %v850 = vpow.pop %v849
  %v851 = vmul.f32 %v433, 1.442695
  %v852 = vpow.pop %v851
  %v853 = vmul.f32 %v434, 1.442695
  %v854 = vpow.pop %v853
  %v855 = vmul.f32 %v435, 1.442695
  %v856 = vpow.pop %v855
  %v857 = vmul.f32 %v436, 1.442695
  %v858 = vpow.pop %v857
  %v859 = vmul.f32 %v437, 1.442695
  %v860 = vpow.pop %v859
  %v861 = vmul.f32 %v438, 1.442695
  %v862 = vpow.pop %v861
  %v863 = vmul.f32 %v439, 1.442695
  %v864 = vpow.pop %v863
  %v865 = vmul.f32 %v440, 1.442695
  %v866 = vpow.pop %v865
  %v867 = vmul.f32 %v441, 1.442695
  %v868 = vpow.pop %v867
  %v869 = vmul.f32 %v442, 1.442695
  %v870 = vpow.pop %v869
  %v871 = vmul.f32 %v443, 1.442695
  %v872 = vpow.pop %v871
  %v873 = vmul.f32 %v444, 1.442695
  %v874 = vpow.pop %v873
  %v875 = vmul.f32 %v445, 1.442695
  %v876 = vpow.pop %v875
  %v877 = vmul.f32 %v446, 1.442695
  %v878 = vpow.pop %v877
  %v879 = vmul.f32 %v447, 1.442695
  %v880 = vpow.pop %v879
  %v881 = vmul.f32 %v448, 1.442695
  %v882 = vpow.pop %v881
  %v883 = vmul.f32 %v449, 1.442695
  %v884 = vpow.pop %v883
  %v885 = vmul.f32 %v450, 1.442695
  %v886 = vpow.pop %v885
  %v887 = vmul.f32 %v451, 1.442695
  %v888 = vpow.pop %v887
  %v889 = vmul.f32 %v452, 1.442695
  %v890 = vpow.pop %v889
  %v891 = vmul.f32 %v453, 1.442695
  %v892 = vpow.pop %v891
  %v893 = vmul.f32 %v454, 1.442695
  %v894 = vpow.pop %v893
  %v895 = vmul.f32 %v455, 1.442695
  %v896 = vpow.pop %v895
  %v897 = vmul.f32 %v456, 1.442695
  %v898 = vpow.pop %v897
  %v899 = vmul.f32 %v457, 1.442695
  %v900 = vpow.pop %v899
  %v901 = vmul.f32 %v458, 1.442695
  %v902 = vpow.pop %v901
  %v903 = vmul.f32 %v459, 1.442695
  %v904 = vpow.pop %v903
  %v905 = vmul.f32 %v460, 1.442695
  %v906 = vpow.pop %v905
  %v907 = vmul.f32 %v461, 1.442695
  %v908 = vpow.pop %v907
  %v909 = vmul.f32 %v462, 1.442695
  %v910 = vpow.pop %v909
  %v911 = vmul.f32 %v463, 1.442695
  %v912 = vpow.pop %v911
  %v913 = vmul.f32 %v464, 1.442695
  %v914 = vpow.pop %v913
  %v915 = vmul.f32 %v465, 1.442695
  %v916 = vpow.pop %v915
  %v917 = vmul.f32 %v466, 1.442695
  %v918 = vpow.pop %v917
  %v919 = vmul.f32 %v467, 1.442695
  %v920 = vpow.pop %v919
  %v921 = vmul.f32 %v468, 1.442695
  %v922 = vpow.pop %v921
  %v923 = vmul.f32 %v469, 1.442695
  %v924 = vpow.pop %v923
  %v925 = vmul.f32 %v470, 1.442695
  %v926 = vpow.pop %v925
  %v927 = vmul.f32 %v471, 1.442695
  %v928 = vpow.pop %v927
  %v929 = vmul.f32 %v472, 1.442695
  %v930 = vpow.pop %v929
  %v931 = vmul.f32 %v473, 1.442695
  %v932 = vpow.pop %v931
  %v933 = vmul.f32 %v474, 1.442695
  %v934 = vpow.pop %v933
  %v935 = vmul.f32 %v475, 1.442695
  %v936 = vpow.pop %v935
  %v937 = vmul.f32 %v476, 1.442695
  %v938 = vpow.pop %v937
  %v939 = vmul.f32 %v477, 1.442695
  %v940 = vpow.pop %v939
  %v941 = vmul.f32 %v478, 1.442695
  %v942 = vpow.pop %v941
  %v943 = vmul.f32 %v479, 1.442695
  %v944 = vpow.pop %v943
  %v945 = vmul.f32 %v480, 1.442695
  %v946 = vpow.pop %v945
  %v947 = vmul.f32 %v481, 1.442695
  %v948 = vpow.pop %v947
  %v949 = vmul.f32 %v482, 1.442695
  %v950 = vpow.pop %v949
  %v951 = vmul.f32 %v483, 1.442695
  %v952 = vpow.pop %v951
  %v953 = vmul.f32 %v484, 1.442695
  %v954 = vpow.pop %v953
  %v955 = vmul.f32 %v485, 1.442695
  %v956 = vpow.pop %v955
  %v957 = vmul.f32 %v486, 1.442695
  %v958 = vpow.pop %v957
  %v959 = vmul.f32 %v487, 1.442695
  %v960 = vpow.pop %v959
  %v961 = vmul.f32 %v488, 1.442695
  %v962 = vpow.pop %v961
  %v963 = vmul.f32 %v489, 1.442695
  %v964 = vpow.pop %v963
  %v965 = vmul.f32 %v490, 1.442695
  %v966 = vpow.pop %v965
  %v967 = vmul.f32 %v491, 1.442695
  %v968 = vpow.pop %v967
  %v969 = vmul.f32 %v492, 1.442695
  %v970 = vpow.pop %v969
  %v971 = vmul.f32 %v493, 1.442695
  %v972 = vpow.pop %v971
  %v973 = vmul.f32 %v494, 1.442695
  %v974 = vpow.pop %v973
  %v975 = vmul.f32 %v495, 1.442695
  %v976 = vpow.pop %v975
  %v977 = vmul.f32 %v496, 1.442695
  %v978 = vpow.pop %v977
  %v979 = vmul.f32 %v497, 1.442695
  %v980 = vpow.pop %v979
  %v981 = vmul.f32 %v498, 1.442695
  %v982 = vpow.pop %v981
  %v983 = vmul.f32 %v499, 1.442695
  %v984 = vpow.pop %v983
  %v985 = vmul.f32 %v500, 1.442695
  %v986 = vpow.pop %v985
  %v987 = vmul.f32 %v501, 1.442695
  %v988 = vpow.pop %v987
  %v989 = vmul.f32 %v502, 1.442695
  %v990 = vpow.pop %v989
  %v991 = vmul.f32 %v503, 1.442695
  %v992 = vpow.pop %v991
  %v993 = vmul.f32 %v504, 1.442695
  %v994 = vpow.pop %v993
  %v995 = vmul.f32 %v505, 1.442695
  %v996 = vpow.pop %v995
  %v997 = vmul.f32 %v506, 1.442695
  %v998 = vpow.pop %v997
  %v999 = vmul.f32 %v507, 1.442695
  %v1000 = vpow.pop %v999
  %v1001 = vmul.f32 %v508, 1.442695
  %v1002 = vpow.pop %v1001
  %v1003 = vmul.f32 %v509, 1.442695
  %v1004 = vpow.pop %v1003
  %v1005 = vmul.f32 %v510, 1.442695
  %v1006 = vpow.pop %v1005
  %v1007 = vmul.f32 %v511, 1.442695
  %v1008 = vpow.pop %v1007
  %v1009 = vmul.f32 %v512, 1.442695
  %v1010 = vpow.pop %v1009
  %v1011 = vmul.f32 %v513, 1.442695
  %v1012 = vpow.pop %v1011
  %v1013 = vmul.f32 %v514, 1.442695
  %v1014 = vpow.pop %v1013
  %v1015 = vmul.f32 %v515, 1.442695
  %v1016 = vpow.pop %v1015
  %v1017 = vmul.f32 %v516, 1.442695
  %v1018 = vpow.pop %v1017
  %v1019 = vmul.f32 %v517, 1.442695
  %v1020 = vpow.pop %v1019
  %v1021 = vmul.f32 %v518, 1.442695
  %v1022 = vpow.pop %v1021
  %v1023 = vmul.f32 %v519, 1.442695
  %v1024 = vpow.pop %v1023
  %v1025 = vmul.f32 %v520, 1.442695
  %v1026 = vpow.pop %v1025
  %v1027 = vmul.f32 %v521, 1.442695
  %v1028 = vpow.pop %v1027
  %v1029 = vmul.f32 %v522, 1.442695
  %v1030 = vpow.pop %v1029
  %v1031 = vmul.f32 %v523, 1.442695
  %v1032 = vpow.pop %v1031
  %v1033 = vmul.f32 %v524, 1.442695
  %v1034 = vpow.pop %v1033
  %v1035 = vmul.f32 %v525, 1.442695
  %v1036 = vpow.pop %v1035
  %v1037 = vmul.f32 %v526, 1.442695
  %v1038 = vpow.pop %v1037
  %v1039 = vmul.f32 %v527, 1.442695
  %v1040 = vpow.pop %v1039
  %v1041 = vmul.f32 %v528, 1.442695
  %v1042 = vpow.pop %v1041
  %v1043 = vmul.f32 %v529, 1.442695
  %v1044 = vpow.pop %v1043
  %v1045 = vmul.f32 %v530, 1.442695
  %v1046 = vpow.pop %v1045
  %v1047 = vadd.f32 %v532, 1.0
  %v1048 = vadd.f32 %v534, 1.0
  %v1049 = vadd.f32 %v536, 1.0
  %v1050 = vadd.f32 %v538, 1.0
  %v1051 = vadd.f32 %v540, 1.0
  %v1052 = vadd.f32 %v542, 1.0
  %v1053 = vadd.f32 %v544, 1.0
  %v1054 = vadd.f32 %v546, 1.0
  %v1055 = vadd.f32 %v548, 1.0
  %v1056 = vadd.f32 %v550, 1.0
  %v1057 = vadd.f32 %v552, 1.0
  %v1058 = vadd.f32 %v554, 1.0
  %v1059 = vadd.f32 %v556, 1.0
  %v1060 = vadd.f32 %v558, 1.0
  %v1061 = vadd.f32 %v560, 1.0
  %v1062 = vadd.f32 %v562, 1.0
  %v1063 = vadd.f32 %v564, 1.0
  %v1064 = vadd.f32 %v566, 1.0
  %v1065 = vadd.f32 %v568, 1.0
  %v1066 = vadd.f32 %v570, 1.0
  %v1067 = vadd.f32 %v572, 1.0
  %v1068 = vadd.f32 %v574, 1.0
  %v1069 = vadd.f32 %v576, 1.0
  %v1070 = vadd.f32 %v578, 1.0
  %v1071 = vadd.f32 %v580, 1.0
  %v1072 = vadd.f32 %v582, 1.0
  %v1073 = vadd.f32 %v584, 1.0
  %v1074 = vadd.f32 %v586, 1.0
  %v1075 = vadd.f32 %v588, 1.0
  %v1076 = vadd.f32 %v590, 1.0
  %v1077 = vadd.f32 %v592, 1.0
  %v1078 = vadd.f32 %v594, 1.0
  %v1079 = vadd.f32 %v596, 1.0
  %v1080 = vadd.f32 %v598, 1.0
  %v1081 = vadd.f32 %v600, 1.0
  %v1082 = vadd.f32 %v602, 1.0
  %v1083 = vadd.f32 %v604, 1.0
  %v1084 = vadd.f32 %v606, 1.0
  %v1085 = vadd.f32 %v608, 1.0
  %v1086 = vadd.f32 %v610, 1.0
  %v1087 = vadd.f32 %v612, 1.0
  %v1088 = vadd.f32 %v614, 1.0
  %v1089 = vadd.f32 %v616, 1.0
  %v1090 = vadd.f32 %v618, 1.0
  %v1091 = vadd.f32 %v620, 1.0
  %v1092 = vadd.f32 %v622, 1.0
  %v1093 = vadd.f32 %v624, 1.0
  %v1094 = vadd.f32 %v626, 1.0
  %v1095 = vadd.f32 %v628, 1.0
  %v1096 = vadd.f32 %v630, 1.0
  %v1097 = vadd.f32 %v632, 1.0
  %v1098 = vadd.f32 %v634, 1.0
  %v1099 = vadd.f32 %v636, 1.0
  %v1100 = vadd.f32 %v638, 1.0
  %v1101 = vadd.f32 %v640, 1.0
  %v1102 = vadd.f32 %v642, 1.0
  %v1103 = vadd.f32 %v644, 1.0
  %v1104 = vadd.f32 %v646, 1.0
  %v1105 = vadd.f32 %v648, 1.0
  %v1106 = vadd.f32 %v650, 1.0
  %v1107 = vadd.f32 %v652, 1.0
  %v1108 = vadd.f32 %v654, 1.0
  %v1109 = vadd.f32 %v656, 1.0
  %v1110 = vadd.f32 %v658, 1.0
  %v1111 = vadd.f32 %v660, 1.0
  %v1112 = vadd.f32 %v662, 1.0
  %v1113 = vadd.f32 %v664, 1.0
  %v1114 = vadd.f32 %v666, 1.0
  %v1115 = vadd.f32 %v668, 1.0
  %v1116 = vadd.f32 %v670, 1.0
  %v1117 = vadd.f32 %v672, 1.0
  %v1118 = vadd.f32 %v674, 1.0
  %v1119 = vadd.f32 %v676, 1.0
  %v1120 = vadd.f32 %v678, 1.0
  %v1121 = vadd.f32 %v680, 1.0
  %v1122 = vadd.f32 %v682, 1.0
  %v1123 = vadd.f32 %v684, 1.0
  %v1124 = vadd.f32 %v686, 1.0
  %v1125 = vadd.f32 %v688, 1.0
  %v1126 = vadd.f32 %v690, 1.0
  %v1127 = vadd.f32 %v692, 1.0
  %v1128 = vadd.f32 %v694, 1.0
  %v1129 = vadd.f32 %v696, 1.0
  %v1130 = vadd.f32 %v698, 1.0
  %v1131 = vadd.f32 %v700, 1.0
  %v1132 = vadd.f32 %v702, 1.0
  %v1133 = vadd.f32 %v704, 1.0
  %v1134 = vadd.f32 %v706, 1.0
  %v1135 = vadd.f32 %v708, 1.0
  %v1136 = vadd.f32 %v710, 1.0
  %v1137 = vadd.f32 %v712, 1.0
  %v1138 = vadd.f32 %v714, 1.0
  %v1139 = vadd.f32 %v716, 1.0
  %v1140 = vadd.f32 %v718, 1.0
  %v1141 = vadd.f32 %v720, 1.0
  %v1142 = vadd.f32 %v722, 1.0
  %v1143 = vadd.f32 %v724, 1.0
  %v1144 = vadd.f32 %v726, 1.0
  %v1145 = vadd.f32 %v728, 1.0
  %v1146 = vadd.f32 %v730, 1.0
  %v1147 = vadd.f32 %v732, 1.0
  %v1148 = vadd.f32 %v734, 1.0
  %v1149 = vadd.f32 %v736, 1.0
  %v1150 = vadd.f32 %v738, 1.0
  %v1151 = vadd.f32 %v740, 1.0
  %v1152 = vadd.f32 %v742, 1.0
  %v1153 = vadd.f32 %v744, 1.0
  %v1154 = vadd.f32 %v746, 1.0
  %v1155 = vadd.f32 %v748, 1.0
  %v1156 = vadd.f32 %v750, 1.0
  %v1157 = vadd.f32 %v752, 1.0
  %v1158 = vadd.f32 %v754, 1.0
  %v1159 = vadd.f32 %v756, 1.0
  %v1160 = vadd.f32 %v758, 1.0
  %v1161 = vadd.f32 %v760, 1.0
  %v1162 = vadd.f32 %v762, 1.0
  %v1163 = vadd.f32 %v764, 1.0
  %v1164 = vadd.f32 %v766, 1.0
  %v1165 = vadd.f32 %v768, 1.0
  %v1166 = vadd.f32 %v770, 1.0
  %v1167 = vadd.f32 %v772, 1.0
  %v1168 = vadd.f32 %v774, 1.0
  %v1169 = vadd.f32 %v776, 1.0
  %v1170 = vadd.f32 %v778, 1.0
  %v1171 = vadd.f32 %v780, 1.0
  %v1172 = vadd.f32 %v782, 1.0
  %v1173 = vadd.f32 %v784, 1.0
  %v1174 = vadd.f32 %v786, 1.0
  %v1175 = vadd.f32 %v788, 1.0
  %v1176 = vadd.f32 %v790, 1.0
  %v1177 = vadd.f32 %v792, 1.0
  %v1178 = vadd.f32 %v794, 1.0
  %v1179 = vadd.f32 %v796, 1.0
  %v1180 = vadd.f32 %v798, 1.0
  %v1181 = vadd.f32 %v800, 1.0
  %v1182 = vadd.f32 %v802, 1.0
  %v1183 = vadd.f32 %v804, 1.0
  %v1184 = vadd.f32 %v806, 1.0
  %v1185 = vadd.f32 %v808, 1.0
  %v1186 = vadd.f32 %v810, 1.0
  %v1187 = vadd.f32 %v812, 1.0
  %v1188 = vadd.f32 %v814, 1.0
  %v1189 = vadd.f32 %v816, 1.0
  %v1190 = vadd.f32 %v818, 1.0
  %v1191 = vadd.f32 %v820, 1.0
  %v1192 = vadd.f32 %v822, 1.0
  %v1193 = vadd.f32 %v824, 1.0
  %v1194 = vadd.f32 %v826, 1.0
  %v1195 = vadd.f32 %v828, 1.0
  %v1196 = vadd.f32 %v830, 1.0
  %v1197 = vadd.f32 %v832, 1.0
  %v1198 = vadd.f32 %v834, 1.0
  %v1199 = vadd.f32 %v836, 1.0
  %v1200 = vadd.f32 %v838, 1.0
  %v1201 = vadd.f32 %v840, 1.0
  %v1202 = vadd.f32 %v842, 1.0
  %v1203 = vadd.f32 %v844, 1.0
  %v1204 = vadd.f32 %v846, 1.0
  %v1205 = vadd.f32 %v848, 1.0
  %v1206 = vadd.f32 %v850, 1.0
  %v1207 = vadd.f32 %v852, 1.0
  %v1208 = vadd.f32 %v854, 1.0
  %v1209 = vadd.f32 %v856, 1.0
  %v1210 = vadd.f32 %v858, 1.0
  %v1211 = vadd.f32 %v860, 1.0
  %v1212 = vadd.f32 %v862, 1.0
  %v1213 = vadd.f32 %v864, 1.0
  %v1214 = vadd.f32 %v866, 1.0
  %v1215 = vadd.f32 %v868, 1.0
  %v1216 = vadd.f32 %v870, 1.0
  %v1217 = vadd.f32 %v872, 1.0
  %v1218 = vadd.f32 %v874, 1.0
  %v1219 = vadd.f32 %v876, 1.0
  %v1220 = vadd.f32 %v878, 1.0
  %v1221 = vadd.f32 %v880, 1.0
  %v1222 = vadd.f32 %v882, 1.0
  %v1223 = vadd.f32 %v884, 1.0
  %v1224 = vadd.f32 %v886, 1.0
  %v1225 = vadd.f32 %v888, 1.0
  %v1226 = vadd.f32 %v890, 1.0
  %v1227 = vadd.f32 %v892, 1.0
  %v1228 = vadd.f32 %v894, 1.0
  %v1229 = vadd.f32 %v896, 1.0
  %v1230 = vadd.f32 %v898, 1.0
  %v1231 = vadd.f32 %v900, 1.0
  %v1232 = vadd.f32 %v902, 1.0
  %v1233 = vadd.f32 %v904, 1.0
  %v1234 = vadd.f32 %v906, 1.0
  %v1235 = vadd.f32 %v908, 1.0
  %v1236 = vadd.f32 %v910, 1.0
  %v1237 = vadd.f32 %v912, 1.0
  %v1238 = vadd.f32 %v914, 1.0
  %v1239 = vadd.f32 %v916, 1.0
  %v1240 = vadd.f32 %v918, 1.0
  %v1241 = vadd.f32 %v920, 1.0
  %v1242 = vadd.f32 %v922, 1.0
  %v1243 = vadd.f32 %v924, 1.0
  %v1244 = vadd.f32 %v926, 1.0
  %v1245 = vadd.f32 %v928, 1.0
  %v1246 = vadd.f32 %v930, 1.0
  %v1247 = vadd.f32 %v932, 1.0
  %v1248 = vadd.f32 %v934, 1.0
  %v1249 = vadd.f32 %v936, 1.0
  %v1250 = vadd.f32 %v938, 1.0
  %v1251 = vadd.f32 %v940, 1.0
  %v1252 = vadd.f32 %v942, 1.0
  %v1253 = vadd.f32 %v944, 1.0
  %v1254 = vadd.f32 %v946, 1.0
  %v1255 = vadd.f32 %v948, 1.0
  %v1256 = vadd.f32 %v950, 1.0
  %v1257 = vadd.f32 %v952, 1.0
  %v1258 = vadd.f32 %v954, 1.0
  %v1259 = vadd.f32 %v956, 1.0
  %v1260 = vadd.f32 %v958, 1.0
  %v1261 = vadd.f32 %v960, 1.0
  %v1262 = vadd.f32 %v962, 1.0
  %v1263 = vadd.f32 %v964, 1.0
  %v1264 = vadd.f32 %v966, 1.0
  %v1265 = vadd.f32 %v968, 1.0
  %v1266 = vadd.f32 %v970, 1.0
  %v1267 = vadd.f32 %v972, 1.0
  %v1268 = vadd.f32 %v974, 1.0
  %v1269 = vadd.f32 %v976, 1.0
  %v1270 = vadd.f32 %v978, 1.0
  %v1271 = vadd.f32 %v980, 1.0
  %v1272 = vadd.f32 %v982, 1.0
  %v1273 = vadd.f32 %v984, 1.0
  %v1274 = vadd.f32 %v986, 1.0
  %v1275 = vadd.f32 %v988, 1.0
  %v1276 = vadd.f32 %v990, 1.0
  %v1277 = vadd.f32 %v992, 1.0
  %v1278 = vadd.f32 %v994, 1.0
  %v1279 = vadd.f32 %v996, 1.0
  %v1280 = vadd.f32 %v998, 1.0
  %v1281 = vadd.f32 %v1000, 1.0
  %v1282 = vadd.f32 %v1002, 1.0
  %v1283 = vadd.f32 %v1004, 1.0
  %v1284 = vadd.f32 %v1006, 1.0
  %v1285 = vadd.f32 %v1008, 1.0
  %v1286 = vadd.f32 %v1010, 1.0
  %v1287 = vadd.f32 %v1012, 1.0
  %v1288 = vadd.f32 %v1014, 1.0
  %v1289 = vadd.f32 %v1016, 1.0
  %v1290 = vadd.f32 %v1018, 1.0
  %v1291 = vadd.f32 %v1020, 1.0
  %v1292 = vadd.f32 %v1022, 1.0
  %v1293 = vadd.f32 %v1024, 1.0
  %v1294 = vadd.f32 %v1026, 1.0
  %v1295 = vadd.f32 %v1028, 1.0
  %v1296 = vadd.f32 %v1030, 1.0
  %v1297 = vadd.f32 %v1032, 1.0
  %v1298 = vadd.f32 %v1034, 1.0
  %v1299 = vadd.f32 %v1036, 1.0
  %v1300 = vadd.f32 %v1038, 1.0
  %v1301 = vadd.f32 %v1040, 1.0
  %v1302 = vadd.f32 %v1042, 1.0
  %v1303 = vadd.f32 %v1044, 1.0
  %v1304 = vadd.f32 %v1046, 1.0
  %v1305 = vrcp.pop %v1047
  %v1306 = vmul.f32 1.0, %v1305
  %v1307 = vrcp.pop %v1048
  %v1308 = vmul.f32 1.0, %v1307
  %v1309 = vrcp.pop %v1049
  %v1310 = vmul.f32 1.0, %v1309
  %v1311 = vrcp.pop %v1050
  %v1312 = vmul.f32 1.0, %v1311
  %v1313 = vrcp.pop %v1051
  %v1314 = vmul.f32 1.0, %v1313
  %v1315 = vrcp.pop %v1052
  %v1316 = vmul.f32 1.0, %v1315
  %v1317 = vrcp.pop %v1053
  %v1318 = vmul.f32 1.0, %v1317
  %v1319 = vrcp.pop %v1054
  %v1320 = vmul.f32 1.0, %v1319
  %v1321 = vrcp.pop %v1055
  %v1322 = vmul.f32 1.0, %v1321
  %v1323 = vrcp.pop %v1056
  %v1324 = vmul.f32 1.0, %v1323
  %v1325 = vrcp.pop %v1057
  %v1326 = vmul.f32 1.0, %v1325
  %v1327 = vrcp.pop %v1058
  %v1328 = vmul.f32 1.0, %v1327
  %v1329 = vrcp.pop %v1059
  %v1330 = vmul.f32 1.0, %v1329
  %v1331 = vrcp.pop %v1060
  %v1332 = vmul.f32 1.0, %v1331
  %v1333 = vrcp.pop %v1061
  %v1334 = vmul.f32 1.0, %v1333
  %v1335 = vrcp.pop %v1062
  %v1336 = vmul.f32 1.0, %v1335
  %v1337 = vrcp.pop %v1063
  %v1338 = vmul.f32 1.0, %v1337
  %v1339 = vrcp.pop %v1064
  %v1340 = vmul.f32 1.0, %v1339
  %v1341 = vrcp.pop %v1065
  %v1342 = vmul.f32 1.0, %v1341
  %v1343 = vrcp.pop %v1066
  %v1344 = vmul.f32 1.0, %v1343
  %v1345 = vrcp.pop %v1067
  %v1346 = vmul.f32 1.0, %v1345
  %v1347 = vrcp.pop %v1068
  %v1348 = vmul.f32 1.0, %v1347
  %v1349 = vrcp.pop %v1069
  %v1350 = vmul.f32 1.0, %v1349
  %v1351 = vrcp.pop %v1070
  %v1352 = vmul.f32 1.0, %v1351
  %v1353 = vrcp.pop %v1071
  %v1354 = vmul.f32 1.0, %v1353
  %v1355 = vrcp.pop %v1072
  %v1356 = vmul.f32 1.0, %v1355
  %v1357 = vrcp.pop %v1073
  %v1358 = vmul.f32 1.0, %v1357
  %v1359 = vrcp.pop %v1074
  %v1360 = vmul.f32 1.0, %v1359
  %v1361 = vrcp.pop %v1075
  %v1362 = vmul.f32 1.0, %v1361
  %v1363 = vrcp.pop %v1076
  %v1364 = vmul.f32 1.0, %v1363
  %v1365 = vrcp.pop %v1077
  %v1366 = vmul.f32 1.0, %v1365
  %v1367 = vrcp.pop %v1078
  %v1368 = vmul.f32 1.0, %v1367
  %v1369 = vrcp.pop %v1079
  %v1370 = vmul.f32 1.0, %v1369
  %v1371 = vrcp.pop %v1080
  %v1372 = vmul.f32 1.0, %v1371
  %v1373 = vrcp.pop %v1081
  %v1374 = vmul.f32 1.0, %v1373
  %v1375 = vrcp.pop %v1082
  %v1376 = vmul.f32 1.0, %v1375
  %v1377 = vrcp.pop %v1083
  %v1378 = vmul.f32 1.0, %v1377
  %v1379 = vrcp.pop %v1084
  %v1380 = vmul.f32 1.0, %v1379
  %v1381 = vrcp.pop %v1085
  %v1382 = vmul.f32 1.0, %v1381
  %v1383 = vrcp.pop %v1086
  %v1384 = vmul.f32 1.0, %v1383
  %v1385 = vrcp.pop %v1087
  %v1386 = vmul.f32 1.0, %v1385
  %v1387 = vrcp.pop %v1088
  %v1388 = vmul.f32 1.0, %v1387
  %v1389 = vrcp.pop %v1089
  %v1390 = vmul.f32 1.0, %v1389
  %v1391 = vrcp.pop %v1090
  %v1392 = vmul.f32 1.0, %v1391
  %v1393 = vrcp.pop %v1091
  %v1394 = vmul.f32 1.0, %v1393
  %v1395 = vrcp.pop %v1092
  %v1396 = vmul.f32 1.0, %v1395
  %v1397 = vrcp.pop %v1093
  %v1398 = vmul.f32 1.0, %v1397
  %v1399 = vrcp.pop %v1094
  %v1400 = vmul.f32 1.0, %v1399
  %v1401 = vrcp.pop %v1095
  %v1402 = vmul.f32 1.0, %v1401
  %v1403 = vrcp.pop %v1096
  %v1404 = vmul.f32 1.0, %v1403
  %v1405 = vrcp.pop %v1097
  %v1406 = vmul.f32 1.0, %v1405
  %v1407 = vrcp.pop %v1098
  %v1408 = vmul.f32 1.0, %v1407
  %v1409 = vrcp.pop %v1099
  %v1410 = vmul.f32 1.0, %v1409
  %v1411 = vrcp.pop %v1100
  %v1412 = vmul.f32 1.0, %v1411
  %v1413 = vrcp.pop %v1101
  %v1414 = vmul.f32 1.0, %v1413
  %v1415 = vrcp.pop %v1102
  %v1416 = vmul.f32 1.0, %v1415
  %v1417 = vrcp.pop %v1103
  %v1418 = vmul.f32 1.0, %v1417
  %v1419 = vrcp.pop %v1104
  %v1420 = vmul.f32 1.0, %v1419
  %v1421 = vrcp.pop %v1105
  %v1422 = vmul.f32 1.0, %v1421
  %v1423 = vrcp.pop %v1106
  %v1424 = vmul.f32 1.0, %v1423
  %v1425 = vrcp.pop %v1107
  %v1426 = vmul.f32 1.0, %v1425
  %v1427 = vrcp.pop %v1108
  %v1428 = vmul.f32 1.0, %v1427
  %v1429 = vrcp.pop %v1109
  %v1430 = vmul.f32 1.0, %v1429
  %v1431 = vrcp.pop %v1110
  %v1432 = vmul.f32 1.0, %v1431
  %v1433 = vrcp.pop %v1111
  %v1434 = vmul.f32 1.0, %v1433
  %v1435 = vrcp.pop %v1112
  %v1436 = vmul.f32 1.0, %v1435
  %v1437 = vrcp.pop %v1113
  %v1438 = vmul.f32 1.0, %v1437
  %v1439 = vrcp.pop %v1114
  %v1440 = vmul.f32 1.0, %v1439
  %v1441 = vrcp.pop %v1115
  %v1442 = vmul.f32 1.0, %v1441
  %v1443 = vrcp.pop %v1116
  %v1444 = vmul.f32 1.0, %v1443
  %v1445 = vrcp.pop %v1117
  %v1446 = vmul.f32 1.0, %v1445
  %v1447 = vrcp.pop %v1118
  %v1448 = vmul.f32 1.0, %v1447
  %v1449 = vrcp.pop %v1119
  %v1450 = vmul.f32 1.0, %v1449
  %v1451 = vrcp.pop %v1120
  %v1452 = vmul.f32 1.0, %v1451
  %v1453 = vrcp.pop %v1121
  %v1454 = vmul.f32 1.0, %v1453
  %v1455 = vrcp.pop %v1122
  %v1456 = vmul.f32 1.0, %v1455
  %v1457 = vrcp.pop %v1123
  %v1458 = vmul.f32 1.0, %v1457
  %v1459 = vrcp.pop %v1124
  %v1460 = vmul.f32 1.0, %v1459
  %v1461 = vrcp.pop %v1125
  %v1462 = vmul.f32 1.0, %v1461
  %v1463 = vrcp.pop %v1126
  %v1464 = vmul.f32 1.0, %v1463
  %v1465 = vrcp.pop %v1127
  %v1466 = vmul.f32 1.0, %v1465
  %v1467 = vrcp.pop %v1128
  %v1468 = vmul.f32 1.0, %v1467
  %v1469 = vrcp.pop %v1129
  %v1470 = vmul.f32 1.0, %v1469
  %v1471 = vrcp.pop %v1130
  %v1472 = vmul.f32 1.0, %v1471
  %v1473 = vrcp.pop %v1131
  %v1474 = vmul.f32 1.0, %v1473
  %v1475 = vrcp.pop %v1132
  %v1476 = vmul.f32 1.0, %v1475
  %v1477 = vrcp.pop %v1133
  %v1478 = vmul.f32 1.0, %v1477
  %v1479 = vrcp.pop %v1134
  %v1480 = vmul.f32 1.0, %v1479
  %v1481 = vrcp.pop %v1135
  %v1482 = vmul.f32 1.0, %v1481
  %v1483 = vrcp.pop %v1136
  %v1484 = vmul.f32 1.0, %v1483
  %v1485 = vrcp.pop %v1137
  %v1486 = vmul.f32 1.0, %v1485
  %v1487 = vrcp.pop %v1138
  %v1488 = vmul.f32 1.0, %v1487
  %v1489 = vrcp.pop %v1139
  %v1490 = vmul.f32 1.0, %v1489
  %v1491 = vrcp.pop %v1140
  %v1492 = vmul.f32 1.0, %v1491
  %v1493 = vrcp.pop %v1141
  %v1494 = vmul.f32 1.0, %v1493
  %v1495 = vrcp.pop %v1142
  %v1496 = vmul.f32 1.0, %v1495
  %v1497 = vrcp.pop %v1143
  %v1498 = vmul.f32 1.0, %v1497
  %v1499 = vrcp.pop %v1144
  %v1500 = vmul.f32 1.0, %v1499
  %v1501 = vrcp.pop %v1145
  %v1502 = vmul.f32 1.0, %v1501
  %v1503 = vrcp.pop %v1146
  %v1504 = vmul.f32 1.0, %v1503
  %v1505 = vrcp.pop %v1147
  %v1506 = vmul.f32 1.0, %v1505
  %v1507 = vrcp.pop %v1148
  %v1508 = vmul.f32 1.0, %v1507
  %v1509 = vrcp.pop %v1149
  %v1510 = vmul.f32 1.0, %v1509
  %v1511 = vrcp.pop %v1150
  %v1512 = vmul.f32 1.0, %v1511
  %v1513 = vrcp.pop %v1151
  %v1514 = vmul.f32 1.0, %v1513
  %v1515 = vrcp.pop %v1152
  %v1516 = vmul.f32 1.0, %v1515
  %v1517 = vrcp.pop %v1153
  %v1518 = vmul.f32 1.0, %v1517
  %v1519 = vrcp.pop %v1154
  %v1520 = vmul.f32 1.0, %v1519
  %v1521 = vrcp.pop %v1155
  %v1522 = vmul.f32 1.0, %v1521
  %v1523 = vrcp.pop %v1156
  %v1524 = vmul.f32 1.0, %v1523
  %v1525 = vrcp.pop %v1157
  %v1526 = vmul.f32 1.0, %v1525
  %v1527 = vrcp.pop %v1158
  %v1528 = vmul.f32 1.0, %v1527
  %v1529 = vrcp.pop %v1159
  %v1530 = vmul.f32 1.0, %v1529
  %v1531 = vrcp.pop %v1160
  %v1532 = vmul.f32 1.0, %v1531
  %v1533 = vrcp.pop %v1161
  %v1534 = vmul.f32 1.0, %v1533
  %v1535 = vrcp.pop %v1162
  %v1536 = vmul.f32 1.0, %v1535
  %v1537 = vrcp.pop %v1163
  %v1538 = vmul.f32 1.0, %v1537
  %v1539 = vrcp.pop %v1164
  %v1540 = vmul.f32 1.0, %v1539
  %v1541 = vrcp.pop %v1165
  %v1542 = vmul.f32 1.0, %v1541
  %v1543 = vrcp.pop %v1166
  %v1544 = vmul.f32 1.0, %v1543
  %v1545 = vrcp.pop %v1167
  %v1546 = vmul.f32 1.0, %v1545
  %v1547 = vrcp.pop %v1168
  %v1548 = vmul.f32 1.0, %v1547
  %v1549 = vrcp.pop %v1169
  %v1550 = vmul.f32 1.0, %v1549
  %v1551 = vrcp.pop %v1170
  %v1552 = vmul.f32 1.0, %v1551
  %v1553 = vrcp.pop %v1171
  %v1554 = vmul.f32 1.0, %v1553
  %v1555 = vrcp.pop %v1172
  %v1556 = vmul.f32 1.0, %v1555
  %v1557 = vrcp.pop %v1173
  %v1558 = vmul.f32 1.0, %v1557
  %v1559 = vrcp.pop %v1174
  %v1560 = vmul.f32 1.0, %v1559
  %v1561 = vrcp.pop %v1175
  %v1562 = vmul.f32 1.0, %v1561
  %v1563 = vrcp.pop %v1176
  %v1564 = vmul.f32 1.0, %v1563
  %v1565 = vrcp.pop %v1177
  %v1566 = vmul.f32 1.0, %v1565
  %v1567 = vrcp.pop %v1178
  %v1568 = vmul.f32 1.0, %v1567
  %v1569 = vrcp.pop %v1179
  %v1570 = vmul.f32 1.0, %v1569
  %v1571 = vrcp.pop %v1180
  %v1572 = vmul.f32 1.0, %v1571
  %v1573 = vrcp.pop %v1181
  %v1574 = vmul.f32 1.0, %v1573
  %v1575 = vrcp.pop %v1182
  %v1576 = vmul.f32 1.0, %v1575
  %v1577 = vrcp.pop %v1183
  %v1578 = vmul.f32 1.0, %v1577
  %v1579 = vrcp.pop %v1184
  %v1580 = vmul.f32 1.0, %v1579
  %v1581 = vrcp.pop %v1185
  %v1582 = vmul.f32 1.0, %v1581
  %v1583 = vrcp.pop %v1186
  %v1584 = vmul.f32 1.0, %v1583
  %v1585 = vrcp.pop %v1187
  %v1586 = vmul.f32 1.0, %v1585
  %v1587 = vrcp.pop %v1188
  %v1588 = vmul.f32 1.0, %v1587
  %v1589 = vrcp.pop %v1189
  %v1590 = vmul.f32 1.0, %v1589
  %v1591 = vrcp.pop %v1190
  %v1592 = vmul.f32 1.0, %v1591
  %v1593 = vrcp.pop %v1191
  %v1594 = vmul.f32 1.0, %v1593
  %v1595 = vrcp.pop %v1192
  %v1596 = vmul.f32 1.0, %v1595
  %v1597 = vrcp.pop %v1193
  %v1598 = vmul.f32 1.0, %v1597
  %v1599 = vrcp.pop %v1194
  %v1600 = vmul.f32 1.0, %v1599
  %v1601 = vrcp.pop %v1195
  %v1602 = vmul.f32 1.0, %v1601
  %v1603 = vrcp.pop %v1196
  %v1604 = vmul.f32 1.0, %v1603
  %v1605 = vrcp.pop %v1197
  %v1606 = vmul.f32 1.0, %v1605
  %v1607 = vrcp.pop %v1198
  %v1608 = vmul.f32 1.0, %v1607
  %v1609 = vrcp.pop %v1199
  %v1610 = vmul.f32 1.0, %v1609
  %v1611 = vrcp.pop %v1200
  %v1612 = vmul.f32 1.0, %v1611
  %v1613 = vrcp.pop %v1201
  %v1614 = vmul.f32 1.0, %v1613
  %v1615 = vrcp.pop %v1202
  %v1616 = vmul.f32 1.0, %v1615
  %v1617 = vrcp.pop %v1203
  %v1618 = vmul.f32 1.0, %v1617
  %v1619 = vrcp.pop %v1204
  %v1620 = vmul.f32 1.0, %v1619
  %v1621 = vrcp.pop %v1205
  %v1622 = vmul.f32 1.0, %v1621
  %v1623 = vrcp.pop %v1206
  %v1624 = vmul.f32 1.0, %v1623
  %v1625 = vrcp.pop %v1207
  %v1626 = vmul.f32 1.0, %v1625
  %v1627 = vrcp.pop %v1208
  %v1628 = vmul.f32 1.0, %v1627
  %v1629 = vrcp.pop %v1209
  %v1630 = vmul.f32 1.0, %v1629
  %v1631 = vrcp.pop %v1210
  %v1632 = vmul.f32 1.0, %v1631
  %v1633 = vrcp.pop %v1211
  %v1634 = vmul.f32 1.0, %v1633
  %v1635 = vrcp.pop %v1212
  %v1636 = vmul.f32 1.0, %v1635
  %v1637 = vrcp.pop %v1213
  %v1638 = vmul.f32 1.0, %v1637
  %v1639 = vrcp.pop %v1214
  %v1640 = vmul.f32 1.0, %v1639
  %v1641 = vrcp.pop %v1215
  %v1642 = vmul.f32 1.0, %v1641
  %v1643 = vrcp.pop %v1216
  %v1644 = vmul.f32 1.0, %v1643
  %v1645 = vrcp.pop %v1217
  %v1646 = vmul.f32 1.0, %v1645
  %v1647 = vrcp.pop %v1218
  %v1648 = vmul.f32 1.0, %v1647
  %v1649 = vrcp.pop %v1219
  %v1650 = vmul.f32 1.0, %v1649
  %v1651 = vrcp.pop %v1220
  %v1652 = vmul.f32 1.0, %v1651
  %v1653 = vrcp.pop %v1221
  %v1654 = vmul.f32 1.0, %v1653
  %v1655 = vrcp.pop %v1222
  %v1656 = vmul.f32 1.0, %v1655
  %v1657 = vrcp.pop %v1223
  %v1658 = vmul.f32 1.0, %v1657
  %v1659 = vrcp.pop %v1224
  %v1660 = vmul.f32 1.0, %v1659
  %v1661 = vrcp.pop %v1225
  %v1662 = vmul.f32 1.0, %v1661
  %v1663 = vrcp.pop %v1226
  %v1664 = vmul.f32 1.0, %v1663
  %v1665 = vrcp.pop %v1227
  %v1666 = vmul.f32 1.0, %v1665
  %v1667 = vrcp.pop %v1228
  %v1668 = vmul.f32 1.0, %v1667
  %v1669 = vrcp.pop %v1229
  %v1670 = vmul.f32 1.0, %v1669
  %v1671 = vrcp.pop %v1230
  %v1672 = vmul.f32 1.0, %v1671
  %v1673 = vrcp.pop %v1231
  %v1674 = vmul.f32 1.0, %v1673
  %v1675 = vrcp.pop %v1232
  %v1676 = vmul.f32 1.0, %v1675
  %v1677 = vrcp.pop %v1233
  %v1678 = vmul.f32 1.0, %v1677
  %v1679 = vrcp.pop %v1234
  %v1680 = vmul.f32 1.0, %v1679
  %v1681 = vrcp.pop %v1235
  %v1682 = vmul.f32 1.0, %v1681
  %v1683 = vrcp.pop %v1236
  %v1684 = vmul.f32 1.0, %v1683
  %v1685 = vrcp.pop %v1237
  %v1686 = vmul.f32 1.0, %v1685
  %v1687 = vrcp.pop %v1238
  %v1688 = vmul.f32 1.0, %v1687
  %v1689 = vrcp.pop %v1239
  %v1690 = vmul.f32 1.0, %v1689
  %v1691 = vrcp.pop %v1240
  %v1692 = vmul.f32 1.0, %v1691
  %v1693 = vrcp.pop %v1241
  %v1694 = vmul.f32 1.0, %v1693
  %v1695 = vrcp.pop %v1242
  %v1696 = vmul.f32 1.0, %v1695
  %v1697 = vrcp.pop %v1243
  %v1698 = vmul.f32 1.0, %v1697
  %v1699 = vrcp.pop %v1244
  %v1700 = vmul.f32 1.0, %v1699
  %v1701 = vrcp.pop %v1245
  %v1702 = vmul.f32 1.0, %v1701
  %v1703 = vrcp.pop %v1246
  %v1704 = vmul.f32 1.0, %v1703
  %v1705 = vrcp.pop %v1247
  %v1706 = vmul.f32 1.0, %v1705
  %v1707 = vrcp.pop %v1248
  %v1708 = vmul.f32 1.0, %v1707
  %v1709 = vrcp.pop %v1249
  %v1710 = vmul.f32 1.0, %v1709
  %v1711 = vrcp.pop %v1250
  %v1712 = vmul.f32 1.0, %v1711
  %v1713 = vrcp.pop %v1251
  %v1714 = vmul.f32 1.0, %v1713
  %v1715 = vrcp.pop %v1252
  %v1716 = vmul.f32 1.0, %v1715
  %v1717 = vrcp.pop %v1253
  %v1718 = vmul.f32 1.0, %v1717
  %v1719 = vrcp.pop %v1254
  %v1720 = vmul.f32 1.0, %v1719
  %v1721 = vrcp.pop %v1255
  %v1722 = vmul.f32 1.0, %v1721
  %v1723 = vrcp.pop %v1256
  %v1724 = vmul.f32 1.0, %v1723
  %v1725 = vrcp.pop %v1257
  %v1726 = vmul.f32 1.0, %v1725
  %v1727 = vrcp.pop %v1258
  %v1728 = vmul.f32 1.0, %v1727
  %v1729 = vrcp.pop %v1259
  %v1730 = vmul.f32 1.0, %v1729
  %v1731 = vrcp.pop %v1260
  %v1732 = vmul.f32 1.0, %v1731
  %v1733 = vrcp.pop %v1261
  %v1734 = vmul.f32 1.0, %v1733
  %v1735 = vrcp.pop %v1262
  %v1736 = vmul.f32 1.0, %v1735
  %v1737 = vrcp.pop %v1263
  %v1738 = vmul.f32 1.0, %v1737
  %v1739 = vrcp.pop %v1264
  %v1740 = vmul.f32 1.0, %v1739
  %v1741 = vrcp.pop %v1265
  %v1742 = vmul.f32 1.0, %v1741
  %v1743 = vrcp.pop %v1266
  %v1744 = vmul.f32 1.0, %v1743
  %v1745 = vrcp.pop %v1267
  %v1746 = vmul.f32 1.0, %v1745
  %v1747 = vrcp.pop %v1268
  %v1748 = vmul.f32 1.0, %v1747
  %v1749 = vrcp.pop %v1269
  %v1750 = vmul.f32 1.0, %v1749
  %v1751 = vrcp.pop %v1270
  %v1752 = vmul.f32 1.0, %v1751
  %v1753 = vrcp.pop %v1271
  %v1754 = vmul.f32 1.0, %v1753
  %v1755 = vrcp.pop %v1272
  %v1756 = vmul.f32 1.0, %v1755
  %v1757 = vrcp.pop %v1273
  %v1758 = vmul.f32 1.0, %v1757
  %v1759 = vrcp.pop %v1274
  %v1760 = vmul.f32 1.0, %v1759
  %v1761 = vrcp.pop %v1275
  %v1762 = vmul.f32 1.0, %v1761
  %v1763 = vrcp.pop %v1276
  %v1764 = vmul.f32 1.0, %v1763
  %v1765 = vrcp.pop %v1277
  %v1766 = vmul.f32 1.0, %v1765
  %v1767 = vrcp.pop %v1278
  %v1768 = vmul.f32 1.0, %v1767
  %v1769 = vrcp.pop %v1279
  %v1770 = vmul.f32 1.0, %v1769
  %v1771 = vrcp.pop %v1280
  %v1772 = vmul.f32 1.0, %v1771
  %v1773 = vrcp.pop %v1281
  %v1774 = vmul.f32 1.0, %v1773
  %v1775 = vrcp.pop %v1282
  %v1776 = vmul.f32 1.0, %v1775
  %v1777 = vrcp.pop %v1283
  %v1778 = vmul.f32 1.0, %v1777
  %v1779 = vrcp.pop %v1284
  %v1780 = vmul.f32 1.0, %v1779
  %v1781 = vrcp.pop %v1285
  %v1782 = vmul.f32 1.0, %v1781
  %v1783 = vrcp.pop %v1286
  %v1784 = vmul.f32 1.0, %v1783
  %v1785 = vrcp.pop %v1287
  %v1786 = vmul.f32 1.0, %v1785
  %v1787 = vrcp.pop %v1288
  %v1788 = vmul.f32 1.0, %v1787
  %v1789 = vrcp.pop %v1289
  %v1790 = vmul.f32 1.0, %v1789
  %v1791 = vrcp.pop %v1290
  %v1792 = vmul.f32 1.0, %v1791
  %v1793 = vrcp.pop %v1291
  %v1794 = vmul.f32 1.0, %v1793
  %v1795 = vrcp.pop %v1292
  %v1796 = vmul.f32 1.0, %v1795
  %v1797 = vrcp.pop %v1293
  %v1798 = vmul.f32 1.0, %v1797
  %v1799 = vrcp.pop %v1294
  %v1800 = vmul.f32 1.0, %v1799
  %v1801 = vrcp.pop %v1295
  %v1802 = vmul.f32 1.0, %v1801
  %v1803 = vrcp.pop %v1296
  %v1804 = vmul.f32 1.0, %v1803
  %v1805 = vrcp.pop %v1297
  %v1806 = vmul.f32 1.0, %v1805
  %v1807 = vrcp.pop %v1298
  %v1808 = vmul.f32 1.0, %v1807
  %v1809 = vrcp.pop %v1299
  %v1810 = vmul.f32 1.0, %v1809
  %v1811 = vrcp.pop %v1300
  %v1812 = vmul.f32 1.0, %v1811
  %v1813 = vrcp.pop %v1301
  %v1814 = vmul.f32 1.0, %v1813
  %v1815 = vrcp.pop %v1302
  %v1816 = vmul.f32 1.0, %v1815
  %v1817 = vrcp.pop %v1303
  %v1818 = vmul.f32 1.0, %v1817
  %v1819 = vrcp.pop %v1304
  %v1820 = vmul.f32 1.0, %v1819
  %v1821 = vld [vmem:[%s1] sm:$0xff]
  %v1822 = vld [vmem:[%s1 + $0x8] sm:$0xff]
  %v1823 = vld [vmem:[%s1 + $0x10] sm:$0xff]
  %v1824 = vld [vmem:[%s1 + $0x18] sm:$0xff]
  %v1825 = vld [vmem:[%s1 + $0x20] sm:$0xff]
  %v1826 = vld [vmem:[%s1 + $0x28] sm:$0xff]
  %v1827 = vld [vmem:[%s1 + $0x30] sm:$0xff]
  %v1828 = vld [vmem:[%s1 + $0x38] sm:$0xff]
  %v1829 = vld [vmem:[%s1 + $0x40] sm:$0xff]
  %v1830 = vld [vmem:[%s1 + $0x48] sm:$0xff]
  %v1831 = vld [vmem:[%s1 + $0x50] sm:$0xff]
  %v1832 = vld [vmem:[%s1 + $0x58] sm:$0xff]
  %v1833 = vld [vmem:[%s1 + $0x60] sm:$0xff]
  %v1834 = vld [vmem:[%s1 + $0x68] sm:$0xff]
  %v1835 = vld [vmem:[%s1 + $0x70] sm:$0xff]
  %v1836 = vld [vmem:[%s1 + $0x78] sm:$0xff]
  %v1837 = vld [vmem:[%s1 + $0x80] sm:$0xff]
  %v1838 = vld [vmem:[%s1 + $0x88] sm:$0xff]
  %v1839 = vld [vmem:[%s1 + $0x90] sm:$0xff]
  %v1840 = vld [vmem:[%s1 + $0x98] sm:$0xff]
  %v1841 = vld [vmem:[%s1 + $0xa0] sm:$0xff]
  %v1842 = vld [vmem:[%s1 + $0xa8] sm:$0xff]
  %v1843 = vld [vmem:[%s1 + $0xb0] sm:$0xff]
  %v1844 = vld [vmem:[%s1 + $0xb8] sm:$0xff]
  %v1845 = vld [vmem:[%s1 + $0xc0] sm:$0xff]
  %v1846 = vld [vmem:[%s1 + $0xc8] sm:$0xff]
  %v1847 = vld [vmem:[%s1 + $0xd0] sm:$0xff]
  %v1848 = vld [vmem:[%s1 + $0xd8] sm:$0xff]
  %v1849 = vld [vmem:[%s1 + $0xe0] sm:$0xff]
  %v1850 = vld [vmem:[%s1 + $0xe8] sm:$0xff]
  %v1851 = vld [vmem:[%s1 + $0xf0] sm:$0xff]
  %v1852 = vld [vmem:[%s1 + $0xf8] sm:$0xff]
  %v1853 = vld [vmem:[%s1 + $0x100] sm:$0xff]
  %v1854 = vld [vmem:[%s1 + $0x108] sm:$0xff]
  %v1855 = vld [vmem:[%s1 + $0x110] sm:$0xff]
  %v1856 = vld [vmem:[%s1 + $0x118] sm:$0xff]
  %v1857 = vld [vmem:[%s1 + $0x120] sm:$0xff]
  %v1858 = vld [vmem:[%s1 + $0x128] sm:$0xff]
  %v1859 = vld [vmem:[%s1 + $0x130] sm:$0xff]
  %v1860 = vld [vmem:[%s1 + $0x138] sm:$0xff]
  %v1861 = vld [vmem:[%s1 + $0x140] sm:$0xff]
  %v1862 = vld [vmem:[%s1 + $0x148] sm:$0xff]
  %v1863 = vld [vmem:[%s1 + $0x150] sm:$0xff]
  %v1864 = vld [vmem:[%s1 + $0x158] sm:$0xff]
  %v1865 = vld [vmem:[%s1 + $0x160] sm:$0xff]
  %v1866 = vld [vmem:[%s1 + $0x168] sm:$0xff]
  %v1867 = vld [vmem:[%s1 + $0x170] sm:$0xff]
  %v1868 = vld [vmem:[%s1 + $0x178] sm:$0xff]
  %v1869 = vld [vmem:[%s1 + $0x180] sm:$0xff]
  %v1870 = vld [vmem:[%s1 + $0x188] sm:$0xff]
  %v1871 = vld [vmem:[%s1 + $0x190] sm:$0xff]
  %v1872 = vld [vmem:[%s1 + $0x198] sm:$0xff]
  %v1873 = vld [vmem:[%s1 + $0x1a0] sm:$0xff]
  %v1874 = vld [vmem:[%s1 + $0x1a8] sm:$0xff]
  %v1875 = vld [vmem:[%s1 + $0x1b0] sm:$0xff]
  %v1876 = vld [vmem:[%s1 + $0x1b8] sm:$0xff]
  %v1877 = vld [vmem:[%s1 + $0x1c0] sm:$0xff]
  %v1878 = vld [vmem:[%s1 + $0x1c8] sm:$0xff]
  %v1879 = vld [vmem:[%s1 + $0x1d0] sm:$0xff]
  %v1880 = vld [vmem:[%s1 + $0x1d8] sm:$0xff]
  %v1881 = vld [vmem:[%s1 + $0x1e0] sm:$0xff]
  %v1882 = vld [vmem:[%s1 + $0x1e8] sm:$0xff]
  %v1883 = vld [vmem:[%s1 + $0x1f0] sm:$0xff]
  %v1884 = vld [vmem:[%s1 + $0x1f8] sm:$0xff]
  %v1885 = vld [vmem:[%s1 + $0x200] sm:$0xff]
  %v1886 = vld [vmem:[%s1 + $0x208] sm:$0xff]
  %v1887 = vld [vmem:[%s1 + $0x210] sm:$0xff]
  %v1888 = vld [vmem:[%s1 + $0x218] sm:$0xff]
  %v1889 = vld [vmem:[%s1 + $0x220] sm:$0xff]
  %v1890 = vld [vmem:[%s1 + $0x228] sm:$0xff]
  %v1891 = vld [vmem:[%s1 + $0x230] sm:$0xff]
  %v1892 = vld [vmem:[%s1 + $0x238] sm:$0xff]
  %v1893 = vld [vmem:[%s1 + $0x240] sm:$0xff]
  %v1894 = vld [vmem:[%s1 + $0x248] sm:$0xff]
  %v1895 = vld [vmem:[%s1 + $0x250] sm:$0xff]
  %v1896 = vld [vmem:[%s1 + $0x258] sm:$0xff]
  %v1897 = vld [vmem:[%s1 + $0x260] sm:$0xff]
  %v1898 = vld [vmem:[%s1 + $0x268] sm:$0xff]
  %v1899 = vld [vmem:[%s1 + $0x270] sm:$0xff]
  %v1900 = vld [vmem:[%s1 + $0x278] sm:$0xff]
  %v1901 = vld [vmem:[%s1 + $0x280] sm:$0xff]
  %v1902 = vld [vmem:[%s1 + $0x288] sm:$0xff]
  %v1903 = vld [vmem:[%s1 + $0x290] sm:$0xff]
  %v1904 = vld [vmem:[%s1 + $0x298] sm:$0xff]
  %v1905 = vld [vmem:[%s1 + $0x2a0] sm:$0xff]
  %v1906 = vld [vmem:[%s1 + $0x2a8] sm:$0xff]
  %v1907 = vld [vmem:[%s1 + $0x2b0] sm:$0xff]
  %v1908 = vld [vmem:[%s1 + $0x2b8] sm:$0xff]
  %v1909 = vld [vmem:[%s1 + $0x2c0] sm:$0xff]
  %v1910 = vld [vmem:[%s1 + $0x2c8] sm:$0xff]
  %v1911 = vld [vmem:[%s1 + $0x2d0] sm:$0xff]
  %v1912 = vld [vmem:[%s1 + $0x2d8] sm:$0xff]
  %v1913 = vld [vmem:[%s1 + $0x2e0] sm:$0xff]
  %v1914 = vld [vmem:[%s1 + $0x2e8] sm:$0xff]
  %v1915 = vld [vmem:[%s1 + $0x2f0] sm:$0xff]
  %v1916 = vld [vmem:[%s1 + $0x2f8] sm:$0xff]
  %v1917 = vld [vmem:[%s1 + $0x300] sm:$0xff]
  %v1918 = vld [vmem:[%s1 + $0x308] sm:$0xff]
  %v1919 = vld [vmem:[%s1 + $0x310] sm:$0xff]
  %v1920 = vld [vmem:[%s1 + $0x318] sm:$0xff]
  %v1921 = vld [vmem:[%s1 + $0x320] sm:$0xff]
  %v1922 = vld [vmem:[%s1 + $0x328] sm:$0xff]
  %v1923 = vld [vmem:[%s1 + $0x330] sm:$0xff]
  %v1924 = vld [vmem:[%s1 + $0x338] sm:$0xff]
  %v1925 = vld [vmem:[%s1 + $0x340] sm:$0xff]
  %v1926 = vld [vmem:[%s1 + $0x348] sm:$0xff]
  %v1927 = vld [vmem:[%s1 + $0x350] sm:$0xff]
  %v1928 = vld [vmem:[%s1 + $0x358] sm:$0xff]
  %v1929 = vld [vmem:[%s1 + $0x360] sm:$0xff]
  %v1930 = vld [vmem:[%s1 + $0x368] sm:$0xff]
  %v1931 = vld [vmem:[%s1 + $0x370] sm:$0xff]
  %v1932 = vld [vmem:[%s1 + $0x378] sm:$0xff]
  %v1933 = vld [vmem:[%s1 + $0x380] sm:$0xff]
  %v1934 = vld [vmem:[%s1 + $0x388] sm:$0xff]
  %v1935 = vld [vmem:[%s1 + $0x390] sm:$0xff]
  %v1936 = vld [vmem:[%s1 + $0x398] sm:$0xff]
  %v1937 = vld [vmem:[%s1 + $0x3a0] sm:$0xff]
  %v1938 = vld [vmem:[%s1 + $0x3a8] sm:$0xff]
  %v1939 = vld [vmem:[%s1 + $0x3b0] sm:$0xff]
  %v1940 = vld [vmem:[%s1 + $0x3b8] sm:$0xff]
  %v1941 = vld [vmem:[%s1 + $0x3c0] sm:$0xff]
  %v1942 = vld [vmem:[%s1 + $0x3c8] sm:$0xff]
  %v1943 = vld [vmem:[%s1 + $0x3d0] sm:$0xff]
  %v1944 = vld [vmem:[%s1 + $0x3d8] sm:$0xff]
  %v1945 = vld [vmem:[%s1 + $0x3e0] sm:$0xff]
  %v1946 = vld [vmem:[%s1 + $0x3e8] sm:$0xff]
  %v1947 = vld [vmem:[%s1 + $0x3f0] sm:$0xff]
  %v1948 = vld [vmem:[%s1 + $0x3f8] sm:$0xff]
  %v1949 = vld [vmem:[%s1 + $0x400] sm:$0xff]
  %v1950 = vld [vmem:[%s1 + $0x408] sm:$0xff]
  %v1951 = vld [vmem:[%s1 + $0x410] sm:$0xff]
  %v1952 = vld [vmem:[%s1 + $0x418] sm:$0xff]
  %v1953 = vld [vmem:[%s1 + $0x420] sm:$0xff]
  %v1954 = vld [vmem:[%s1 + $0x428] sm:$0xff]
  %v1955 = vld [vmem:[%s1 + $0x430] sm:$0xff]
  %v1956 = vld [vmem:[%s1 + $0x438] sm:$0xff]
  %v1957 = vld [vmem:[%s1 + $0x440] sm:$0xff]
  %v1958 = vld [vmem:[%s1 + $0x448] sm:$0xff]
  %v1959 = vld [vmem:[%s1 + $0x450] sm:$0xff]
  %v1960 = vld [vmem:[%s1 + $0x458] sm:$0xff]
  %v1961 = vld [vmem:[%s1 + $0x460] sm:$0xff]
  %v1962 = vld [vmem:[%s1 + $0x468] sm:$0xff]
  %v1963 = vld [vmem:[%s1 + $0x470] sm:$0xff]
  %v1964 = vld [vmem:[%s1 + $0x478] sm:$0xff]
  %v1965 = vld [vmem:[%s1 + $0x480] sm:$0xff]
  %v1966 = vld [vmem:[%s1 + $0x488] sm:$0xff]
  %v1967 = vld [vmem:[%s1 + $0x490] sm:$0xff]
  %v1968 = vld [vmem:[%s1 + $0x498] sm:$0xff]
  %v1969 = vld [vmem:[%s1 + $0x4a0] sm:$0xff]
  %v1970 = vld [vmem:[%s1 + $0x4a8] sm:$0xff]
  %v1971 = vld [vmem:[%s1 + $0x4b0] sm:$0xff]
  %v1972 = vld [vmem:[%s1 + $0x4b8] sm:$0xff]
  %v1973 = vld [vmem:[%s1 + $0x4c0] sm:$0xff]
  %v1974 = vld [vmem:[%s1 + $0x4c8] sm:$0xff]
  %v1975 = vld [vmem:[%s1 + $0x4d0] sm:$0xff]
  %v1976 = vld [vmem:[%s1 + $0x4d8] sm:$0xff]
  %v1977 = vld [vmem:[%s1 + $0x4e0] sm:$0xff]
  %v1978 = vld [vmem:[%s1 + $0x4e8] sm:$0xff]
  %v1979 = vld [vmem:[%s1 + $0x4f0] sm:$0xff]
  %v1980 = vld [vmem:[%s1 + $0x4f8] sm:$0xff]
  %v1981 = vld [vmem:[%s1 + $0x500] sm:$0xff]
  %v1982 = vld [vmem:[%s1 + $0x508] sm:$0xff]
  %v1983 = vld [vmem:[%s1 + $0x510] sm:$0xff]
  %v1984 = vld [vmem:[%s1 + $0x518] sm:$0xff]
  %v1985 = vld [vmem:[%s1 + $0x520] sm:$0xff]
  %v1986 = vld [vmem:[%s1 + $0x528] sm:$0xff]
  %v1987 = vld [vmem:[%s1 + $0x530] sm:$0xff]
  %v1988 = vld [vmem:[%s1 + $0x538] sm:$0xff]
  %v1989 = vld [vmem:[%s1 + $0x540] sm:$0xff]
  %v1990 = vld [vmem:[%s1 + $0x548] sm:$0xff]
  %v1991 = vld [vmem:[%s1 + $0x550] sm:$0xff]
  %v1992 = vld [vmem:[%s1 + $0x558] sm:$0xff]
  %v1993 = vld [vmem:[%s1 + $0x560] sm:$0xff]
  %v1994 = vld [vmem:[%s1 + $0x568] sm:$0xff]
  %v1995 = vld [vmem:[%s1 + $0x570] sm:$0xff]
  %v1996 = vld [vmem:[%s1 + $0x578] sm:$0xff]
  %v1997 = vld [vmem:[%s1 + $0x580] sm:$0xff]
  %v1998 = vld [vmem:[%s1 + $0x588] sm:$0xff]
  %v1999 = vld [vmem:[%s1 + $0x590] sm:$0xff]
  %v2000 = vld [vmem:[%s1 + $0x598] sm:$0xff]
  %v2001 = vld [vmem:[%s1 + $0x5a0] sm:$0xff]
  %v2002 = vld [vmem:[%s1 + $0x5a8] sm:$0xff]
  %v2003 = vld [vmem:[%s1 + $0x5b0] sm:$0xff]
  %v2004 = vld [vmem:[%s1 + $0x5b8] sm:$0xff]
  %v2005 = vld [vmem:[%s1 + $0x5c0] sm:$0xff]
  %v2006 = vld [vmem:[%s1 + $0x5c8] sm:$0xff]
  %v2007 = vld [vmem:[%s1 + $0x5d0] sm:$0xff]
  %v2008 = vld [vmem:[%s1 + $0x5d8] sm:$0xff]
  %v2009 = vld [vmem:[%s1 + $0x5e0] sm:$0xff]
  %v2010 = vld [vmem:[%s1 + $0x5e8] sm:$0xff]
  %v2011 = vld [vmem:[%s1 + $0x5f0] sm:$0xff]
  %v2012 = vld [vmem:[%s1 + $0x5f8] sm:$0xff]
  %v2013 = vld [vmem:[%s1 + $0x600] sm:$0xff]
  %v2014 = vld [vmem:[%s1 + $0x608] sm:$0xff]
  %v2015 = vld [vmem:[%s1 + $0x610] sm:$0xff]
  %v2016 = vld [vmem:[%s1 + $0x618] sm:$0xff]
  %v2017 = vld [vmem:[%s1 + $0x620] sm:$0xff]
  %v2018 = vld [vmem:[%s1 + $0x628] sm:$0xff]
  %v2019 = vld [vmem:[%s1 + $0x630] sm:$0xff]
  %v2020 = vld [vmem:[%s1 + $0x638] sm:$0xff]
  %v2021 = vld [vmem:[%s1 + $0x640] sm:$0xff]
  %v2022 = vld [vmem:[%s1 + $0x648] sm:$0xff]
  %v2023 = vld [vmem:[%s1 + $0x650] sm:$0xff]
  %v2024 = vld [vmem:[%s1 + $0x658] sm:$0xff]
  %v2025 = vld [vmem:[%s1 + $0x660] sm:$0xff]
  %v2026 = vld [vmem:[%s1 + $0x668] sm:$0xff]
  %v2027 = vld [vmem:[%s1 + $0x670] sm:$0xff]
  %v2028 = vld [vmem:[%s1 + $0x678] sm:$0xff]
  %v2029 = vld [vmem:[%s1 + $0x680] sm:$0xff]
  %v2030 = vld [vmem:[%s1 + $0x688] sm:$0xff]
  %v2031 = vld [vmem:[%s1 + $0x690] sm:$0xff]
  %v2032 = vld [vmem:[%s1 + $0x698] sm:$0xff]
  %v2033 = vld [vmem:[%s1 + $0x6a0] sm:$0xff]
  %v2034 = vld [vmem:[%s1 + $0x6a8] sm:$0xff]
  %v2035 = vld [vmem:[%s1 + $0x6b0] sm:$0xff]
  %v2036 = vld [vmem:[%s1 + $0x6b8] sm:$0xff]
  %v2037 = vld [vmem:[%s1 + $0x6c0] sm:$0xff]
  %v2038 = vld [vmem:[%s1 + $0x6c8] sm:$0xff]
  %v2039 = vld [vmem:[%s1 + $0x6d0] sm:$0xff]
  %v2040 = vld [vmem:[%s1 + $0x6d8] sm:$0xff]
  %v2041 = vld [vmem:[%s1 + $0x6e0] sm:$0xff]
  %v2042 = vld [vmem:[%s1 + $0x6e8] sm:$0xff]
  %v2043 = vld [vmem:[%s1 + $0x6f0] sm:$0xff]
  %v2044 = vld [vmem:[%s1 + $0x6f8] sm:$0xff]
  %v2045 = vld [vmem:[%s1 + $0x700] sm:$0xff]
  %v2046 = vld [vmem:[%s1 + $0x708] sm:$0xff]
  %v2047 = vld [vmem:[%s1 + $0x710] sm:$0xff]
  %v2048 = vld [vmem:[%s1 + $0x718] sm:$0xff]
  %v2049 = vld [vmem:[%s1 + $0x720] sm:$0xff]
  %v2050 = vld [vmem:[%s1 + $0x728] sm:$0xff]
  %v2051 = vld [vmem:[%s1 + $0x730] sm:$0xff]
  %v2052 = vld [vmem:[%s1 + $0x738] sm:$0xff]
  %v2053 = vld [vmem:[%s1 + $0x740] sm:$0xff]
  %v2054 = vld [vmem:[%s1 + $0x748] sm:$0xff]
  %v2055 = vld [vmem:[%s1 + $0x750] sm:$0xff]
  %v2056 = vld [vmem:[%s1 + $0x758] sm:$0xff]
  %v2057 = vld [vmem:[%s1 + $0x760] sm:$0xff]
  %v2058 = vld [vmem:[%s1 + $0x768] sm:$0xff]
  %v2059 = vld [vmem:[%s1 + $0x770] sm:$0xff]
  %v2060 = vld [vmem:[%s1 + $0x778] sm:$0xff]
  %v2061 = vld [vmem:[%s1 + $0x780] sm:$0xff]
  %v2062 = vld [vmem:[%s1 + $0x788] sm:$0xff]
  %v2063 = vld [vmem:[%s1 + $0x790] sm:$0xff]
  %v2064 = vld [vmem:[%s1 + $0x798] sm:$0xff]
  %v2065 = vld [vmem:[%s1 + $0x7a0] sm:$0xff]
  %v2066 = vld [vmem:[%s1 + $0x7a8] sm:$0xff]
  %v2067 = vld [vmem:[%s1 + $0x7b0] sm:$0xff]
  %v2068 = vld [vmem:[%s1 + $0x7b8] sm:$0xff]
  %v2069 = vld [vmem:[%s1 + $0x7c0] sm:$0xff]
  %v2070 = vld [vmem:[%s1 + $0x7c8] sm:$0xff]
  %v2071 = vld [vmem:[%s1 + $0x7d0] sm:$0xff]
  %v2072 = vld [vmem:[%s1 + $0x7d8] sm:$0xff]
  %v2073 = vld [vmem:[%s1 + $0x7e0] sm:$0xff]
  %v2074 = vld [vmem:[%s1 + $0x7e8] sm:$0xff]
  %v2075 = vld [vmem:[%s1 + $0x7f0] sm:$0xff]
  %v2076 = vld [vmem:[%s1 + $0x7f8] sm:$0xff]
  %v2077 = vld [vmem:[%s1 + $0x800] sm:$0xff]
  %v2078 = vld [vmem:[%s1 + $0x808] sm:$0xff]
  %2080 = vset.pattern.permute.xlu0 0
  %2081 = vperm.xlu0 %2080, %v1306
  %v2082 = vpop.permute.xlu0 %2081
  %2085 = vset.pattern.permute.xlu0 0
  %2086 = vperm.xlu0 %2085, %v1308
  %v2087 = vpop.permute.xlu0 %2086
  %2090 = vset.pattern.permute.xlu0 0
  %2091 = vperm.xlu0 %2090, %v1310
  %v2092 = vpop.permute.xlu0 %2091
  %2095 = vset.pattern.permute.xlu0 0
  %2096 = vperm.xlu0 %2095, %v1312
  %v2097 = vpop.permute.xlu0 %2096
  %2100 = vset.pattern.permute.xlu0 0
  %2101 = vperm.xlu0 %2100, %v1314
  %v2102 = vpop.permute.xlu0 %2101
  %2105 = vset.pattern.permute.xlu0 0
  %2106 = vperm.xlu0 %2105, %v1316
  %v2107 = vpop.permute.xlu0 %2106
  %2110 = vset.pattern.permute.xlu0 0
  %2111 = vperm.xlu0 %2110, %v1318
  %v2112 = vpop.permute.xlu0 %2111
  %2115 = vset.pattern.permute.xlu0 0
  %2116 = vperm.xlu0 %2115, %v1320
  %v2117 = vpop.permute.xlu0 %2116
  %2120 = vset.pattern.permute.xlu0 0
  %2121 = vperm.xlu0 %2120, %v1322
  %v2122 = vpop.permute.xlu0 %2121
  %2125 = vset.pattern.permute.xlu0 0
  %2126 = vperm.xlu0 %2125, %v1324
  %v2127 = vpop.permute.xlu0 %2126
  %2130 = vset.pattern.permute.xlu0 0
  %2131 = vperm.xlu0 %2130, %v1326
  %v2132 = vpop.permute.xlu0 %2131
  %2135 = vset.pattern.permute.xlu0 0
  %2136 = vperm.xlu0 %2135, %v1328
  %v2137 = vpop.permute.xlu0 %2136
  %2140 = vset.pattern.permute.xlu0 0
  %2141 = vperm.xlu0 %2140, %v1330
  %v2142 = vpop.permute.xlu0 %2141
  %2145 = vset.pattern.permute.xlu0 0
  %2146 = vperm.xlu0 %2145, %v1332
  %v2147 = vpop.permute.xlu0 %2146
  %2150 = vset.pattern.permute.xlu0 0
  %2151 = vperm.xlu0 %2150, %v1334
  %v2152 = vpop.permute.xlu0 %2151
  %2155 = vset.pattern.permute.xlu0 0
  %2156 = vperm.xlu0 %2155, %v1336
  %v2157 = vpop.permute.xlu0 %2156
  %2160 = vset.pattern.permute.xlu0 0
  %2161 = vperm.xlu0 %2160, %v1338
  %v2162 = vpop.permute.xlu0 %2161
  %2165 = vset.pattern.permute.xlu0 0
  %2166 = vperm.xlu0 %2165, %v1340
  %v2167 = vpop.permute.xlu0 %2166
  %2170 = vset.pattern.permute.xlu0 0
  %2171 = vperm.xlu0 %2170, %v1342
  %v2172 = vpop.permute.xlu0 %2171
  %2175 = vset.pattern.permute.xlu0 0
  %2176 = vperm.xlu0 %2175, %v1344
  %v2177 = vpop.permute.xlu0 %2176
  %2180 = vset.pattern.permute.xlu0 0
  %2181 = vperm.xlu0 %2180, %v1346
  %v2182 = vpop.permute.xlu0 %2181
  %2185 = vset.pattern.permute.xlu0 0
  %2186 = vperm.xlu0 %2185, %v1348
  %v2187 = vpop.permute.xlu0 %2186
  %2190 = vset.pattern.permute.xlu0 0
  %2191 = vperm.xlu0 %2190, %v1350
  %v2192 = vpop.permute.xlu0 %2191
  %2195 = vset.pattern.permute.xlu0 0
  %2196 = vperm.xlu0 %2195, %v1352
  %v2197 = vpop.permute.xlu0 %2196
  %2200 = vset.pattern.permute.xlu0 0
  %2201 = vperm.xlu0 %2200, %v1354
  %v2202 = vpop.permute.xlu0 %2201
  %2205 = vset.pattern.permute.xlu0 0
  %2206 = vperm.xlu0 %2205, %v1356
  %v2207 = vpop.permute.xlu0 %2206
  %2210 = vset.pattern.permute.xlu0 0
  %2211 = vperm.xlu0 %2210, %v1358
  %v2212 = vpop.permute.xlu0 %2211
  %2215 = vset.pattern.permute.xlu0 0
  %2216 = vperm.xlu0 %2215, %v1360
  %v2217 = vpop.permute.xlu0 %2216
  %2220 = vset.pattern.permute.xlu0 0
  %2221 = vperm.xlu0 %2220, %v1362
  %v2222 = vpop.permute.xlu0 %2221
  %2225 = vset.pattern.permute.xlu0 0
  %2226 = vperm.xlu0 %2225, %v1364
  %v2227 = vpop.permute.xlu0 %2226
  %2230 = vset.pattern.permute.xlu0 0
  %2231 = vperm.xlu0 %2230, %v1366
  %v2232 = vpop.permute.xlu0 %2231
  %2235 = vset.pattern.permute.xlu0 0
  %2236 = vperm.xlu0 %2235, %v1368
  %v2237 = vpop.permute.xlu0 %2236
  %2240 = vset.pattern.permute.xlu0 0
  %2241 = vperm.xlu0 %2240, %v1370
  %v2242 = vpop.permute.xlu0 %2241
  %2245 = vset.pattern.permute.xlu0 0
  %2246 = vperm.xlu0 %2245, %v1372
  %v2247 = vpop.permute.xlu0 %2246
  %2250 = vset.pattern.permute.xlu0 0
  %2251 = vperm.xlu0 %2250, %v1374
  %v2252 = vpop.permute.xlu0 %2251
  %2255 = vset.pattern.permute.xlu0 0
  %2256 = vperm.xlu0 %2255, %v1376
  %v2257 = vpop.permute.xlu0 %2256
  %2260 = vset.pattern.permute.xlu0 0
  %2261 = vperm.xlu0 %2260, %v1378
  %v2262 = vpop.permute.xlu0 %2261
  %2265 = vset.pattern.permute.xlu0 0
  %2266 = vperm.xlu0 %2265, %v1380
  %v2267 = vpop.permute.xlu0 %2266
  %2270 = vset.pattern.permute.xlu0 0
  %2271 = vperm.xlu0 %2270, %v1382
  %v2272 = vpop.permute.xlu0 %2271
  %2275 = vset.pattern.permute.xlu0 0
  %2276 = vperm.xlu0 %2275, %v1384
  %v2277 = vpop.permute.xlu0 %2276
  %2280 = vset.pattern.permute.xlu0 0
  %2281 = vperm.xlu0 %2280, %v1386
  %v2282 = vpop.permute.xlu0 %2281
  %2285 = vset.pattern.permute.xlu0 0
  %2286 = vperm.xlu0 %2285, %v1388
  %v2287 = vpop.permute.xlu0 %2286
  %2290 = vset.pattern.permute.xlu0 0
  %2291 = vperm.xlu0 %2290, %v1390
  %v2292 = vpop.permute.xlu0 %2291
  %2295 = vset.pattern.permute.xlu0 0
  %2296 = vperm.xlu0 %2295, %v1392
  %v2297 = vpop.permute.xlu0 %2296
  %2300 = vset.pattern.permute.xlu0 0
  %2301 = vperm.xlu0 %2300, %v1394
  %v2302 = vpop.permute.xlu0 %2301
  %2305 = vset.pattern.permute.xlu0 0
  %2306 = vperm.xlu0 %2305, %v1396
  %v2307 = vpop.permute.xlu0 %2306
  %2310 = vset.pattern.permute.xlu0 0
  %2311 = vperm.xlu0 %2310, %v1398
  %v2312 = vpop.permute.xlu0 %2311
  %2315 = vset.pattern.permute.xlu0 0
  %2316 = vperm.xlu0 %2315, %v1400
  %v2317 = vpop.permute.xlu0 %2316
  %2320 = vset.pattern.permute.xlu0 0
  %2321 = vperm.xlu0 %2320, %v1402
  %v2322 = vpop.permute.xlu0 %2321
  %2325 = vset.pattern.permute.xlu0 0
  %2326 = vperm.xlu0 %2325, %v1404
  %v2327 = vpop.permute.xlu0 %2326
  %2330 = vset.pattern.permute.xlu0 0
  %2331 = vperm.xlu0 %2330, %v1406
  %v2332 = vpop.permute.xlu0 %2331
  %2335 = vset.pattern.permute.xlu0 0
  %2336 = vperm.xlu0 %2335, %v1408
  %v2337 = vpop.permute.xlu0 %2336
  %2340 = vset.pattern.permute.xlu0 0
  %2341 = vperm.xlu0 %2340, %v1410
  %v2342 = vpop.permute.xlu0 %2341
  %2345 = vset.pattern.permute.xlu0 0
  %2346 = vperm.xlu0 %2345, %v1412
  %v2347 = vpop.permute.xlu0 %2346
  %2350 = vset.pattern.permute.xlu0 0
  %2351 = vperm.xlu0 %2350, %v1414
  %v2352 = vpop.permute.xlu0 %2351
  %2355 = vset.pattern.permute.xlu0 0
  %2356 = vperm.xlu0 %2355, %v1416
  %v2357 = vpop.permute.xlu0 %2356
  %2360 = vset.pattern.permute.xlu0 0
  %2361 = vperm.xlu0 %2360, %v1418
  %v2362 = vpop.permute.xlu0 %2361
  %2365 = vset.pattern.permute.xlu0 0
  %2366 = vperm.xlu0 %2365, %v1420
  %v2367 = vpop.permute.xlu0 %2366
  %2370 = vset.pattern.permute.xlu0 0
  %2371 = vperm.xlu0 %2370, %v1422
  %v2372 = vpop.permute.xlu0 %2371
  %2375 = vset.pattern.permute.xlu0 0
  %2376 = vperm.xlu0 %2375, %v1424
  %v2377 = vpop.permute.xlu0 %2376
  %2380 = vset.pattern.permute.xlu0 0
  %2381 = vperm.xlu0 %2380, %v1426
  %v2382 = vpop.permute.xlu0 %2381
  %2385 = vset.pattern.permute.xlu0 0
  %2386 = vperm.xlu0 %2385, %v1428
  %v2387 = vpop.permute.xlu0 %2386
  %2390 = vset.pattern.permute.xlu0 0
  %2391 = vperm.xlu0 %2390, %v1430
  %v2392 = vpop.permute.xlu0 %2391
  %2395 = vset.pattern.permute.xlu0 0
  %2396 = vperm.xlu0 %2395, %v1432
  %v2397 = vpop.permute.xlu0 %2396
  %2400 = vset.pattern.permute.xlu0 0
  %2401 = vperm.xlu0 %2400, %v1434
  %v2402 = vpop.permute.xlu0 %2401
  %2405 = vset.pattern.permute.xlu0 0
  %2406 = vperm.xlu0 %2405, %v1436
  %v2407 = vpop.permute.xlu0 %2406
  %2410 = vset.pattern.permute.xlu0 0
  %2411 = vperm.xlu0 %2410, %v1438
  %v2412 = vpop.permute.xlu0 %2411
  %2415 = vset.pattern.permute.xlu0 0
  %2416 = vperm.xlu0 %2415, %v1440
  %v2417 = vpop.permute.xlu0 %2416
  %2420 = vset.pattern.permute.xlu0 0
  %2421 = vperm.xlu0 %2420, %v1442
  %v2422 = vpop.permute.xlu0 %2421
  %2425 = vset.pattern.permute.xlu0 0
  %2426 = vperm.xlu0 %2425, %v1444
  %v2427 = vpop.permute.xlu0 %2426
  %2430 = vset.pattern.permute.xlu0 0
  %2431 = vperm.xlu0 %2430, %v1446
  %v2432 = vpop.permute.xlu0 %2431
  %2435 = vset.pattern.permute.xlu0 0
  %2436 = vperm.xlu0 %2435, %v1448
  %v2437 = vpop.permute.xlu0 %2436
  %2440 = vset.pattern.permute.xlu0 0
  %2441 = vperm.xlu0 %2440, %v1450
  %v2442 = vpop.permute.xlu0 %2441
  %2445 = vset.pattern.permute.xlu0 0
  %2446 = vperm.xlu0 %2445, %v1452
  %v2447 = vpop.permute.xlu0 %2446
  %2450 = vset.pattern.permute.xlu0 0
  %2451 = vperm.xlu0 %2450, %v1454
  %v2452 = vpop.permute.xlu0 %2451
  %2455 = vset.pattern.permute.xlu0 0
  %2456 = vperm.xlu0 %2455, %v1456
  %v2457 = vpop.permute.xlu0 %2456
  %2460 = vset.pattern.permute.xlu0 0
  %2461 = vperm.xlu0 %2460, %v1458
  %v2462 = vpop.permute.xlu0 %2461
  %2465 = vset.pattern.permute.xlu0 0
  %2466 = vperm.xlu0 %2465, %v1460
  %v2467 = vpop.permute.xlu0 %2466
  %2470 = vset.pattern.permute.xlu0 0
  %2471 = vperm.xlu0 %2470, %v1462
  %v2472 = vpop.permute.xlu0 %2471
  %2475 = vset.pattern.permute.xlu0 0
  %2476 = vperm.xlu0 %2475, %v1464
  %v2477 = vpop.permute.xlu0 %2476
  %2480 = vset.pattern.permute.xlu0 0
  %2481 = vperm.xlu0 %2480, %v1466
  %v2482 = vpop.permute.xlu0 %2481
  %2485 = vset.pattern.permute.xlu0 0
  %2486 = vperm.xlu0 %2485, %v1468
  %v2487 = vpop.permute.xlu0 %2486
  %2490 = vset.pattern.permute.xlu0 0
  %2491 = vperm.xlu0 %2490, %v1470
  %v2492 = vpop.permute.xlu0 %2491
  %2495 = vset.pattern.permute.xlu0 0
  %2496 = vperm.xlu0 %2495, %v1472
  %v2497 = vpop.permute.xlu0 %2496
  %2500 = vset.pattern.permute.xlu0 0
  %2501 = vperm.xlu0 %2500, %v1474
  %v2502 = vpop.permute.xlu0 %2501
  %2505 = vset.pattern.permute.xlu0 0
  %2506 = vperm.xlu0 %2505, %v1476
  %v2507 = vpop.permute.xlu0 %2506
  %2510 = vset.pattern.permute.xlu0 0
  %2511 = vperm.xlu0 %2510, %v1478
  %v2512 = vpop.permute.xlu0 %2511
  %2515 = vset.pattern.permute.xlu0 0
  %2516 = vperm.xlu0 %2515, %v1480
  %v2517 = vpop.permute.xlu0 %2516
  %2520 = vset.pattern.permute.xlu0 0
  %2521 = vperm.xlu0 %2520, %v1482
  %v2522 = vpop.permute.xlu0 %2521
  %2525 = vset.pattern.permute.xlu0 0
  %2526 = vperm.xlu0 %2525, %v1484
  %v2527 = vpop.permute.xlu0 %2526
  %2530 = vset.pattern.permute.xlu0 0
  %2531 = vperm.xlu0 %2530, %v1486
  %v2532 = vpop.permute.xlu0 %2531
  %2535 = vset.pattern.permute.xlu0 0
  %2536 = vperm.xlu0 %2535, %v1488
  %v2537 = vpop.permute.xlu0 %2536
  %2540 = vset.pattern.permute.xlu0 0
  %2541 = vperm.xlu0 %2540, %v1490
  %v2542 = vpop.permute.xlu0 %2541
  %2545 = vset.pattern.permute.xlu0 0
  %2546 = vperm.xlu0 %2545, %v1492
  %v2547 = vpop.permute.xlu0 %2546
  %2550 = vset.pattern.permute.xlu0 0
  %2551 = vperm.xlu0 %2550, %v1494
  %v2552 = vpop.permute.xlu0 %2551
  %2555 = vset.pattern.permute.xlu0 0
  %2556 = vperm.xlu0 %2555, %v1496
  %v2557 = vpop.permute.xlu0 %2556
  %2560 = vset.pattern.permute.xlu0 0
  %2561 = vperm.xlu0 %2560, %v1498
  %v2562 = vpop.permute.xlu0 %2561
  %2565 = vset.pattern.permute.xlu0 0
  %2566 = vperm.xlu0 %2565, %v1500
  %v2567 = vpop.permute.xlu0 %2566
  %2570 = vset.pattern.permute.xlu0 0
  %2571 = vperm.xlu0 %2570, %v1502
  %v2572 = vpop.permute.xlu0 %2571
  %2575 = vset.pattern.permute.xlu0 0
  %2576 = vperm.xlu0 %2575, %v1504
  %v2577 = vpop.permute.xlu0 %2576
  %2580 = vset.pattern.permute.xlu0 0
  %2581 = vperm.xlu0 %2580, %v1506
  %v2582 = vpop.permute.xlu0 %2581
  %2585 = vset.pattern.permute.xlu0 0
  %2586 = vperm.xlu0 %2585, %v1508
  %v2587 = vpop.permute.xlu0 %2586
  %2590 = vset.pattern.permute.xlu0 0
  %2591 = vperm.xlu0 %2590, %v1510
  %v2592 = vpop.permute.xlu0 %2591
  %2595 = vset.pattern.permute.xlu0 0
  %2596 = vperm.xlu0 %2595, %v1512
  %v2597 = vpop.permute.xlu0 %2596
  %2600 = vset.pattern.permute.xlu0 0
  %2601 = vperm.xlu0 %2600, %v1514
  %v2602 = vpop.permute.xlu0 %2601
  %2605 = vset.pattern.permute.xlu0 0
  %2606 = vperm.xlu0 %2605, %v1516
  %v2607 = vpop.permute.xlu0 %2606
  %2610 = vset.pattern.permute.xlu0 0
  %2611 = vperm.xlu0 %2610, %v1518
  %v2612 = vpop.permute.xlu0 %2611
  %2615 = vset.pattern.permute.xlu0 0
  %2616 = vperm.xlu0 %2615, %v1520
  %v2617 = vpop.permute.xlu0 %2616
  %2620 = vset.pattern.permute.xlu0 0
  %2621 = vperm.xlu0 %2620, %v1522
  %v2622 = vpop.permute.xlu0 %2621
  %2625 = vset.pattern.permute.xlu0 0
  %2626 = vperm.xlu0 %2625, %v1524
  %v2627 = vpop.permute.xlu0 %2626
  %2630 = vset.pattern.permute.xlu0 0
  %2631 = vperm.xlu0 %2630, %v1526
  %v2632 = vpop.permute.xlu0 %2631
  %2635 = vset.pattern.permute.xlu0 0
  %2636 = vperm.xlu0 %2635, %v1528
  %v2637 = vpop.permute.xlu0 %2636
  %2640 = vset.pattern.permute.xlu0 0
  %2641 = vperm.xlu0 %2640, %v1530
  %v2642 = vpop.permute.xlu0 %2641
  %2645 = vset.pattern.permute.xlu0 0
  %2646 = vperm.xlu0 %2645, %v1532
  %v2647 = vpop.permute.xlu0 %2646
  %2650 = vset.pattern.permute.xlu0 0
  %2651 = vperm.xlu0 %2650, %v1534
  %v2652 = vpop.permute.xlu0 %2651
  %2655 = vset.pattern.permute.xlu0 0
  %2656 = vperm.xlu0 %2655, %v1536
  %v2657 = vpop.permute.xlu0 %2656
  %2660 = vset.pattern.permute.xlu0 0
  %2661 = vperm.xlu0 %2660, %v1538
  %v2662 = vpop.permute.xlu0 %2661
  %2665 = vset.pattern.permute.xlu0 0
  %2666 = vperm.xlu0 %2665, %v1540
  %v2667 = vpop.permute.xlu0 %2666
  %2670 = vset.pattern.permute.xlu0 0
  %2671 = vperm.xlu0 %2670, %v1542
  %v2672 = vpop.permute.xlu0 %2671
  %2675 = vset.pattern.permute.xlu0 0
  %2676 = vperm.xlu0 %2675, %v1544
  %v2677 = vpop.permute.xlu0 %2676
  %2680 = vset.pattern.permute.xlu0 0
  %2681 = vperm.xlu0 %2680, %v1546
  %v2682 = vpop.permute.xlu0 %2681
  %2685 = vset.pattern.permute.xlu0 0
  %2686 = vperm.xlu0 %2685, %v1548
  %v2687 = vpop.permute.xlu0 %2686
  %2690 = vset.pattern.permute.xlu0 0
  %2691 = vperm.xlu0 %2690, %v1550
  %v2692 = vpop.permute.xlu0 %2691
  %2695 = vset.pattern.permute.xlu0 0
  %2696 = vperm.xlu0 %2695, %v1552
  %v2697 = vpop.permute.xlu0 %2696
  %2700 = vset.pattern.permute.xlu0 0
  %2701 = vperm.xlu0 %2700, %v1554
  %v2702 = vpop.permute.xlu0 %2701
  %2705 = vset.pattern.permute.xlu0 0
  %2706 = vperm.xlu0 %2705, %v1556
  %v2707 = vpop.permute.xlu0 %2706
  %2710 = vset.pattern.permute.xlu0 0
  %2711 = vperm.xlu0 %2710, %v1558
  %v2712 = vpop.permute.xlu0 %2711
  %2715 = vset.pattern.permute.xlu0 0
  %2716 = vperm.xlu0 %2715, %v1560
  %v2717 = vpop.permute.xlu0 %2716
  %2720 = vset.pattern.permute.xlu0 0
  %2721 = vperm.xlu0 %2720, %v1562
  %v2722 = vpop.permute.xlu0 %2721
  %2725 = vset.pattern.permute.xlu0 0
  %2726 = vperm.xlu0 %2725, %v1564
  %v2727 = vpop.permute.xlu0 %2726
  %2730 = vset.pattern.permute.xlu0 0
  %2731 = vperm.xlu0 %2730, %v1566
  %v2732 = vpop.permute.xlu0 %2731
  %2735 = vset.pattern.permute.xlu0 0
  %2736 = vperm.xlu0 %2735, %v1568
  %v2737 = vpop.permute.xlu0 %2736
  %2740 = vset.pattern.permute.xlu0 0
  %2741 = vperm.xlu0 %2740, %v1570
  %v2742 = vpop.permute.xlu0 %2741
  %2745 = vset.pattern.permute.xlu0 0
  %2746 = vperm.xlu0 %2745, %v1572
  %v2747 = vpop.permute.xlu0 %2746
  %2750 = vset.pattern.permute.xlu0 0
  %2751 = vperm.xlu0 %2750, %v1574
  %v2752 = vpop.permute.xlu0 %2751
  %2755 = vset.pattern.permute.xlu0 0
  %2756 = vperm.xlu0 %2755, %v1576
  %v2757 = vpop.permute.xlu0 %2756
  %2760 = vset.pattern.permute.xlu0 0
  %2761 = vperm.xlu0 %2760, %v1578
  %v2762 = vpop.permute.xlu0 %2761
  %2765 = vset.pattern.permute.xlu0 0
  %2766 = vperm.xlu0 %2765, %v1580
  %v2767 = vpop.permute.xlu0 %2766
  %2770 = vset.pattern.permute.xlu0 0
  %2771 = vperm.xlu0 %2770, %v1582
  %v2772 = vpop.permute.xlu0 %2771
  %2775 = vset.pattern.permute.xlu0 0
  %2776 = vperm.xlu0 %2775, %v1584
  %v2777 = vpop.permute.xlu0 %2776
  %2780 = vset.pattern.permute.xlu0 0
  %2781 = vperm.xlu0 %2780, %v1586
  %v2782 = vpop.permute.xlu0 %2781
  %2785 = vset.pattern.permute.xlu0 0
  %2786 = vperm.xlu0 %2785, %v1588
  %v2787 = vpop.permute.xlu0 %2786
  %2790 = vset.pattern.permute.xlu0 0
  %2791 = vperm.xlu0 %2790, %v1590
  %v2792 = vpop.permute.xlu0 %2791
  %2795 = vset.pattern.permute.xlu0 0
  %2796 = vperm.xlu0 %2795, %v1592
  %v2797 = vpop.permute.xlu0 %2796
  %2800 = vset.pattern.permute.xlu0 0
  %2801 = vperm.xlu0 %2800, %v1594
  %v2802 = vpop.permute.xlu0 %2801
  %2805 = vset.pattern.permute.xlu0 0
  %2806 = vperm.xlu0 %2805, %v1596
  %v2807 = vpop.permute.xlu0 %2806
  %2810 = vset.pattern.permute.xlu0 0
  %2811 = vperm.xlu0 %2810, %v1598
  %v2812 = vpop.permute.xlu0 %2811
  %2815 = vset.pattern.permute.xlu0 0
  %2816 = vperm.xlu0 %2815, %v1600
  %v2817 = vpop.permute.xlu0 %2816
  %2820 = vset.pattern.permute.xlu0 0
  %2821 = vperm.xlu0 %2820, %v1602
  %v2822 = vpop.permute.xlu0 %2821
  %2825 = vset.pattern.permute.xlu0 0
  %2826 = vperm.xlu0 %2825, %v1604
  %v2827 = vpop.permute.xlu0 %2826
  %2830 = vset.pattern.permute.xlu0 0
  %2831 = vperm.xlu0 %2830, %v1606
  %v2832 = vpop.permute.xlu0 %2831
  %2835 = vset.pattern.permute.xlu0 0
  %2836 = vperm.xlu0 %2835, %v1608
  %v2837 = vpop.permute.xlu0 %2836
  %2840 = vset.pattern.permute.xlu0 0
  %2841 = vperm.xlu0 %2840, %v1610
  %v2842 = vpop.permute.xlu0 %2841
  %2845 = vset.pattern.permute.xlu0 0
  %2846 = vperm.xlu0 %2845, %v1612
  %v2847 = vpop.permute.xlu0 %2846
  %2850 = vset.pattern.permute.xlu0 0
  %2851 = vperm.xlu0 %2850, %v1614
  %v2852 = vpop.permute.xlu0 %2851
  %2855 = vset.pattern.permute.xlu0 0
  %2856 = vperm.xlu0 %2855, %v1616
  %v2857 = vpop.permute.xlu0 %2856
  %2860 = vset.pattern.permute.xlu0 0
  %2861 = vperm.xlu0 %2860, %v1618
  %v2862 = vpop.permute.xlu0 %2861
  %2865 = vset.pattern.permute.xlu0 0
  %2866 = vperm.xlu0 %2865, %v1620
  %v2867 = vpop.permute.xlu0 %2866
  %2870 = vset.pattern.permute.xlu0 0
  %2871 = vperm.xlu0 %2870, %v1622
  %v2872 = vpop.permute.xlu0 %2871
  %2875 = vset.pattern.permute.xlu0 0
  %2876 = vperm.xlu0 %2875, %v1624
  %v2877 = vpop.permute.xlu0 %2876
  %2880 = vset.pattern.permute.xlu0 0
  %2881 = vperm.xlu0 %2880, %v1626
  %v2882 = vpop.permute.xlu0 %2881
  %2885 = vset.pattern.permute.xlu0 0
  %2886 = vperm.xlu0 %2885, %v1628
  %v2887 = vpop.permute.xlu0 %2886
  %2890 = vset.pattern.permute.xlu0 0
  %2891 = vperm.xlu0 %2890, %v1630
  %v2892 = vpop.permute.xlu0 %2891
  %2895 = vset.pattern.permute.xlu0 0
  %2896 = vperm.xlu0 %2895, %v1632
  %v2897 = vpop.permute.xlu0 %2896
  %2900 = vset.pattern.permute.xlu0 0
  %2901 = vperm.xlu0 %2900, %v1634
  %v2902 = vpop.permute.xlu0 %2901
  %2905 = vset.pattern.permute.xlu0 0
  %2906 = vperm.xlu0 %2905, %v1636
  %v2907 = vpop.permute.xlu0 %2906
  %2910 = vset.pattern.permute.xlu0 0
  %2911 = vperm.xlu0 %2910, %v1638
  %v2912 = vpop.permute.xlu0 %2911
  %2915 = vset.pattern.permute.xlu0 0
  %2916 = vperm.xlu0 %2915, %v1640
  %v2917 = vpop.permute.xlu0 %2916
  %2920 = vset.pattern.permute.xlu0 0
  %2921 = vperm.xlu0 %2920, %v1642
  %v2922 = vpop.permute.xlu0 %2921
  %2925 = vset.pattern.permute.xlu0 0
  %2926 = vperm.xlu0 %2925, %v1644
  %v2927 = vpop.permute.xlu0 %2926
  %2930 = vset.pattern.permute.xlu0 0
  %2931 = vperm.xlu0 %2930, %v1646
  %v2932 = vpop.permute.xlu0 %2931
  %2935 = vset.pattern.permute.xlu0 0
  %2936 = vperm.xlu0 %2935, %v1648
  %v2937 = vpop.permute.xlu0 %2936
  %2940 = vset.pattern.permute.xlu0 0
  %2941 = vperm.xlu0 %2940, %v1650
  %v2942 = vpop.permute.xlu0 %2941
  %2945 = vset.pattern.permute.xlu0 0
  %2946 = vperm.xlu0 %2945, %v1652
  %v2947 = vpop.permute.xlu0 %2946
  %2950 = vset.pattern.permute.xlu0 0
  %2951 = vperm.xlu0 %2950, %v1654
  %v2952 = vpop.permute.xlu0 %2951
  %2955 = vset.pattern.permute.xlu0 0
  %2956 = vperm.xlu0 %2955, %v1656
  %v2957 = vpop.permute.xlu0 %2956
  %2960 = vset.pattern.permute.xlu0 0
  %2961 = vperm.xlu0 %2960, %v1658
  %v2962 = vpop.permute.xlu0 %2961
  %2965 = vset.pattern.permute.xlu0 0
  %2966 = vperm.xlu0 %2965, %v1660
  %v2967 = vpop.permute.xlu0 %2966
  %2970 = vset.pattern.permute.xlu0 0
  %2971 = vperm.xlu0 %2970, %v1662
  %v2972 = vpop.permute.xlu0 %2971
  %2975 = vset.pattern.permute.xlu0 0
  %2976 = vperm.xlu0 %2975, %v1664
  %v2977 = vpop.permute.xlu0 %2976
  %2980 = vset.pattern.permute.xlu0 0
  %2981 = vperm.xlu0 %2980, %v1666
  %v2982 = vpop.permute.xlu0 %2981
  %2985 = vset.pattern.permute.xlu0 0
  %2986 = vperm.xlu0 %2985, %v1668
  %v2987 = vpop.permute.xlu0 %2986
  %2990 = vset.pattern.permute.xlu0 0
  %2991 = vperm.xlu0 %2990, %v1670
  %v2992 = vpop.permute.xlu0 %2991
  %2995 = vset.pattern.permute.xlu0 0
  %2996 = vperm.xlu0 %2995, %v1672
  %v2997 = vpop.permute.xlu0 %2996
  %3000 = vset.pattern.permute.xlu0 0
  %3001 = vperm.xlu0 %3000, %v1674
  %v3002 = vpop.permute.xlu0 %3001
  %3005 = vset.pattern.permute.xlu0 0
  %3006 = vperm.xlu0 %3005, %v1676
  %v3007 = vpop.permute.xlu0 %3006
  %3010 = vset.pattern.permute.xlu0 0
  %3011 = vperm.xlu0 %3010, %v1678
  %v3012 = vpop.permute.xlu0 %3011
  %3015 = vset.pattern.permute.xlu0 0
  %3016 = vperm.xlu0 %3015, %v1680
  %v3017 = vpop.permute.xlu0 %3016
  %3020 = vset.pattern.permute.xlu0 0
  %3021 = vperm.xlu0 %3020, %v1682
  %v3022 = vpop.permute.xlu0 %3021
  %3025 = vset.pattern.permute.xlu0 0
  %3026 = vperm.xlu0 %3025, %v1684
  %v3027 = vpop.permute.xlu0 %3026
  %3030 = vset.pattern.permute.xlu0 0
  %3031 = vperm.xlu0 %3030, %v1686
  %v3032 = vpop.permute.xlu0 %3031
  %3035 = vset.pattern.permute.xlu0 0
  %3036 = vperm.xlu0 %3035, %v1688
  %v3037 = vpop.permute.xlu0 %3036
  %3040 = vset.pattern.permute.xlu0 0
  %3041 = vperm.xlu0 %3040, %v1690
  %v3042 = vpop.permute.xlu0 %3041
  %3045 = vset.pattern.permute.xlu0 0
  %3046 = vperm.xlu0 %3045, %v1692
  %v3047 = vpop.permute.xlu0 %3046
  %3050 = vset.pattern.permute.xlu0 0
  %3051 = vperm.xlu0 %3050, %v1694
  %v3052 = vpop.permute.xlu0 %3051
  %3055 = vset.pattern.permute.xlu0 0
  %3056 = vperm.xlu0 %3055, %v1696
  %v3057 = vpop.permute.xlu0 %3056
  %3060 = vset.pattern.permute.xlu0 0
  %3061 = vperm.xlu0 %3060, %v1698
  %v3062 = vpop.permute.xlu0 %3061
  %3065 = vset.pattern.permute.xlu0 0
  %3066 = vperm.xlu0 %3065, %v1700
  %v3067 = vpop.permute.xlu0 %3066
  %3070 = vset.pattern.permute.xlu0 0
  %3071 = vperm.xlu0 %3070, %v1702
  %v3072 = vpop.permute.xlu0 %3071
  %3075 = vset.pattern.permute.xlu0 0
  %3076 = vperm.xlu0 %3075, %v1704
  %v3077 = vpop.permute.xlu0 %3076
  %3080 = vset.pattern.permute.xlu0 0
  %3081 = vperm.xlu0 %3080, %v1706
  %v3082 = vpop.permute.xlu0 %3081
  %3085 = vset.pattern.permute.xlu0 0
  %3086 = vperm.xlu0 %3085, %v1708
  %v3087 = vpop.permute.xlu0 %3086
  %3090 = vset.pattern.permute.xlu0 0
  %3091 = vperm.xlu0 %3090, %v1710
  %v3092 = vpop.permute.xlu0 %3091
  %3095 = vset.pattern.permute.xlu0 0
  %3096 = vperm.xlu0 %3095, %v1712
  %v3097 = vpop.permute.xlu0 %3096
  %3100 = vset.pattern.permute.xlu0 0
  %3101 = vperm.xlu0 %3100, %v1714
  %v3102 = vpop.permute.xlu0 %3101
  %3105 = vset.pattern.permute.xlu0 0
  %3106 = vperm.xlu0 %3105, %v1716
  %v3107 = vpop.permute.xlu0 %3106
  %3110 = vset.pattern.permute.xlu0 0
  %3111 = vperm.xlu0 %3110, %v1718
  %v3112 = vpop.permute.xlu0 %3111
  %3115 = vset.pattern.permute.xlu0 0
  %3116 = vperm.xlu0 %3115, %v1720
  %v3117 = vpop.permute.xlu0 %3116
  %3120 = vset.pattern.permute.xlu0 0
  %3121 = vperm.xlu0 %3120, %v1722
  %v3122 = vpop.permute.xlu0 %3121
  %3125 = vset.pattern.permute.xlu0 0
  %3126 = vperm.xlu0 %3125, %v1724
  %v3127 = vpop.permute.xlu0 %3126
  %3130 = vset.pattern.permute.xlu0 0
  %3131 = vperm.xlu0 %3130, %v1726
  %v3132 = vpop.permute.xlu0 %3131
  %3135 = vset.pattern.permute.xlu0 0
  %3136 = vperm.xlu0 %3135, %v1728
  %v3137 = vpop.permute.xlu0 %3136
  %3140 = vset.pattern.permute.xlu0 0
  %3141 = vperm.xlu0 %3140, %v1730
  %v3142 = vpop.permute.xlu0 %3141
  %3145 = vset.pattern.permute.xlu0 0
  %3146 = vperm.xlu0 %3145, %v1732
  %v3147 = vpop.permute.xlu0 %3146
  %3150 = vset.pattern.permute.xlu0 0
  %3151 = vperm.xlu0 %3150, %v1734
  %v3152 = vpop.permute.xlu0 %3151
  %3155 = vset.pattern.permute.xlu0 0
  %3156 = vperm.xlu0 %3155, %v1736
  %v3157 = vpop.permute.xlu0 %3156
  %3160 = vset.pattern.permute.xlu0 0
  %3161 = vperm.xlu0 %3160, %v1738
  %v3162 = vpop.permute.xlu0 %3161
  %3165 = vset.pattern.permute.xlu0 0
  %3166 = vperm.xlu0 %3165, %v1740
  %v3167 = vpop.permute.xlu0 %3166
  %3170 = vset.pattern.permute.xlu0 0
  %3171 = vperm.xlu0 %3170, %v1742
  %v3172 = vpop.permute.xlu0 %3171
  %3175 = vset.pattern.permute.xlu0 0
  %3176 = vperm.xlu0 %3175, %v1744
  %v3177 = vpop.permute.xlu0 %3176
  %3180 = vset.pattern.permute.xlu0 0
  %3181 = vperm.xlu0 %3180, %v1746
  %v3182 = vpop.permute.xlu0 %3181
  %3185 = vset.pattern.permute.xlu0 0
  %3186 = vperm.xlu0 %3185, %v1748
  %v3187 = vpop.permute.xlu0 %3186
  %3190 = vset.pattern.permute.xlu0 0
  %3191 = vperm.xlu0 %3190, %v1750
  %v3192 = vpop.permute.xlu0 %3191
  %3195 = vset.pattern.permute.xlu0 0
  %3196 = vperm.xlu0 %3195, %v1752
  %v3197 = vpop.permute.xlu0 %3196
  %3200 = vset.pattern.permute.xlu0 0
  %3201 = vperm.xlu0 %3200, %v1754
  %v3202 = vpop.permute.xlu0 %3201
  %3205 = vset.pattern.permute.xlu0 0
  %3206 = vperm.xlu0 %3205, %v1756
  %v3207 = vpop.permute.xlu0 %3206
  %3210 = vset.pattern.permute.xlu0 0
  %3211 = vperm.xlu0 %3210, %v1758
  %v3212 = vpop.permute.xlu0 %3211
  %3215 = vset.pattern.permute.xlu0 0
  %3216 = vperm.xlu0 %3215, %v1760
  %v3217 = vpop.permute.xlu0 %3216
  %3220 = vset.pattern.permute.xlu0 0
  %3221 = vperm.xlu0 %3220, %v1762
  %v3222 = vpop.permute.xlu0 %3221
  %3225 = vset.pattern.permute.xlu0 0
  %3226 = vperm.xlu0 %3225, %v1764
  %v3227 = vpop.permute.xlu0 %3226
  %3230 = vset.pattern.permute.xlu0 0
  %3231 = vperm.xlu0 %3230, %v1766
  %v3232 = vpop.permute.xlu0 %3231
  %3235 = vset.pattern.permute.xlu0 0
  %3236 = vperm.xlu0 %3235, %v1768
  %v3237 = vpop.permute.xlu0 %3236
  %3240 = vset.pattern.permute.xlu0 0
  %3241 = vperm.xlu0 %3240, %v1770
  %v3242 = vpop.permute.xlu0 %3241
  %3245 = vset.pattern.permute.xlu0 0
  %3246 = vperm.xlu0 %3245, %v1772
  %v3247 = vpop.permute.xlu0 %3246
  %3250 = vset.pattern.permute.xlu0 0
  %3251 = vperm.xlu0 %3250, %v1774
  %v3252 = vpop.permute.xlu0 %3251
  %3255 = vset.pattern.permute.xlu0 0
  %3256 = vperm.xlu0 %3255, %v1776
  %v3257 = vpop.permute.xlu0 %3256
  %3260 = vset.pattern.permute.xlu0 0
  %3261 = vperm.xlu0 %3260, %v1778
  %v3262 = vpop.permute.xlu0 %3261
  %3265 = vset.pattern.permute.xlu0 0
  %3266 = vperm.xlu0 %3265, %v1780
  %v3267 = vpop.permute.xlu0 %3266
  %3270 = vset.pattern.permute.xlu0 0
  %3271 = vperm.xlu0 %3270, %v1782
  %v3272 = vpop.permute.xlu0 %3271
  %3275 = vset.pattern.permute.xlu0 0
  %3276 = vperm.xlu0 %3275, %v1784
  %v3277 = vpop.permute.xlu0 %3276
  %3280 = vset.pattern.permute.xlu0 0
  %3281 = vperm.xlu0 %3280, %v1786
  %v3282 = vpop.permute.xlu0 %3281
  %3285 = vset.pattern.permute.xlu0 0
  %3286 = vperm.xlu0 %3285, %v1788
  %v3287 = vpop.permute.xlu0 %3286
  %3290 = vset.pattern.permute.xlu0 0
  %3291 = vperm.xlu0 %3290, %v1790
  %v3292 = vpop.permute.xlu0 %3291
  %3295 = vset.pattern.permute.xlu0 0
  %3296 = vperm.xlu0 %3295, %v1792
  %v3297 = vpop.permute.xlu0 %3296
  %3300 = vset.pattern.permute.xlu0 0
  %3301 = vperm.xlu0 %3300, %v1794
  %v3302 = vpop.permute.xlu0 %3301
  %3305 = vset.pattern.permute.xlu0 0
  %3306 = vperm.xlu0 %3305, %v1796
  %v3307 = vpop.permute.xlu0 %3306
  %3310 = vset.pattern.permute.xlu0 0
  %3311 = vperm.xlu0 %3310, %v1798
  %v3312 = vpop.permute.xlu0 %3311
  %3315 = vset.pattern.permute.xlu0 0
  %3316 = vperm.xlu0 %3315, %v1800
  %v3317 = vpop.permute.xlu0 %3316
  %3320 = vset.pattern.permute.xlu0 0
  %3321 = vperm.xlu0 %3320, %v1802
  %v3322 = vpop.permute.xlu0 %3321
  %3325 = vset.pattern.permute.xlu0 0
  %3326 = vperm.xlu0 %3325, %v1804
  %v3327 = vpop.permute.xlu0 %3326
  %3330 = vset.pattern.permute.xlu0 0
  %3331 = vperm.xlu0 %3330, %v1806
  %v3332 = vpop.permute.xlu0 %3331
  %3335 = vset.pattern.permute.xlu0 0
  %3336 = vperm.xlu0 %3335, %v1808
  %v3337 = vpop.permute.xlu0 %3336
  %3340 = vset.pattern.permute.xlu0 0
  %3341 = vperm.xlu0 %3340, %v1810
  %v3342 = vpop.permute.xlu0 %3341
  %3345 = vset.pattern.permute.xlu0 0
  %3346 = vperm.xlu0 %3345, %v1812
  %v3347 = vpop.permute.xlu0 %3346
  %3350 = vset.pattern.permute.xlu0 0
  %3351 = vperm.xlu0 %3350, %v1814
  %v3352 = vpop.permute.xlu0 %3351
  %3355 = vset.pattern.permute.xlu0 0
  %3356 = vperm.xlu0 %3355, %v1816
  %v3357 = vpop.permute.xlu0 %3356
  %3360 = vset.pattern.permute.xlu0 0
  %3361 = vperm.xlu0 %3360, %v1818
  %v3362 = vpop.permute.xlu0 %3361
  %3365 = vset.pattern.permute.xlu0 0
  %3366 = vperm.xlu0 %3365, %v1820
  %v3367 = vpop.permute.xlu0 %3366
  %v3369 = vmul.f32 %v1821, %v2082
  %v3370 = vmul.f32 %v1822, %v2087
  %v3371 = vmul.f32 %v1823, %v2092
  %v3372 = vmul.f32 %v1824, %v2097
  %v3373 = vmul.f32 %v1825, %v2102
  %v3374 = vmul.f32 %v1826, %v2107
  %v3375 = vmul.f32 %v1827, %v2112
  %v3376 = vmul.f32 %v1828, %v2117
  %v3377 = vmul.f32 %v1829, %v2122
  %v3378 = vmul.f32 %v1830, %v2127
  %v3379 = vmul.f32 %v1831, %v2132
  %v3380 = vmul.f32 %v1832, %v2137
  %v3381 = vmul.f32 %v1833, %v2142
  %v3382 = vmul.f32 %v1834, %v2147
  %v3383 = vmul.f32 %v1835, %v2152
  %v3384 = vmul.f32 %v1836, %v2157
  %v3385 = vmul.f32 %v1837, %v2162
  %v3386 = vmul.f32 %v1838, %v2167
  %v3387 = vmul.f32 %v1839, %v2172
  %v3388 = vmul.f32 %v1840, %v2177
  %v3389 = vmul.f32 %v1841, %v2182
  %v3390 = vmul.f32 %v1842, %v2187
  %v3391 = vmul.f32 %v1843, %v2192
  %v3392 = vmul.f32 %v1844, %v2197
  %v3393 = vmul.f32 %v1845, %v2202
  %v3394 = vmul.f32 %v1846, %v2207
  %v3395 = vmul.f32 %v1847, %v2212
  %v3396 = vmul.f32 %v1848, %v2217
  %v3397 = vmul.f32 %v1849, %v2222
  %v3398 = vmul.f32 %v1850, %v2227
  %v3399 = vmul.f32 %v1851, %v2232
  %v3400 = vmul.f32 %v1852, %v2237
  %v3401 = vmul.f32 %v1853, %v2242
  %v3402 = vmul.f32 %v1854, %v2247
  %v3403 = vmul.f32 %v1855, %v2252
  %v3404 = vmul.f32 %v1856, %v2257
  %v3405 = vmul.f32 %v1857, %v2262
  %v3406 = vmul.f32 %v1858, %v2267
  %v3407 = vmul.f32 %v1859, %v2272
  %v3408 = vmul.f32 %v1860, %v2277
  %v3409 = vmul.f32 %v1861, %v2282
  %v3410 = vmul.f32 %v1862, %v2287
  %v3411 = vmul.f32 %v1863, %v2292
  %v3412 = vmul.f32 %v1864, %v2297
  %v3413 = vmul.f32 %v1865, %v2302
  %v3414 = vmul.f32 %v1866, %v2307
  %v3415 = vmul.f32 %v1867, %v2312
  %v3416 = vmul.f32 %v1868, %v2317
  %v3417 = vmul.f32 %v1869, %v2322
  %v3418 = vmul.f32 %v1870, %v2327
  %v3419 = vmul.f32 %v1871, %v2332
  %v3420 = vmul.f32 %v1872, %v2337
  %v3421 = vmul.f32 %v1873, %v2342
  %v3422 = vmul.f32 %v1874, %v2347
  %v3423 = vmul.f32 %v1875, %v2352
  %v3424 = vmul.f32 %v1876, %v2357
  %v3425 = vmul.f32 %v1877, %v2362
  %v3426 = vmul.f32 %v1878, %v2367
  %v3427 = vmul.f32 %v1879, %v2372
  %v3428 = vmul.f32 %v1880, %v2377
  %v3429 = vmul.f32 %v1881, %v2382
  %v3430 = vmul.f32 %v1882, %v2387
  %v3431 = vmul.f32 %v1883, %v2392
  %v3432 = vmul.f32 %v1884, %v2397
  %v3433 = vmul.f32 %v1885, %v2402
  %v3434 = vmul.f32 %v1886, %v2407
  %v3435 = vmul.f32 %v1887, %v2412
  %v3436 = vmul.f32 %v1888, %v2417
  %v3437 = vmul.f32 %v1889, %v2422
  %v3438 = vmul.f32 %v1890, %v2427
  %v3439 = vmul.f32 %v1891, %v2432
  %v3440 = vmul.f32 %v1892, %v2437
  %v3441 = vmul.f32 %v1893, %v2442
  %v3442 = vmul.f32 %v1894, %v2447
  %v3443 = vmul.f32 %v1895, %v2452
  %v3444 = vmul.f32 %v1896, %v2457
  %v3445 = vmul.f32 %v1897, %v2462
  %v3446 = vmul.f32 %v1898, %v2467
  %v3447 = vmul.f32 %v1899, %v2472
  %v3448 = vmul.f32 %v1900, %v2477
  %v3449 = vmul.f32 %v1901, %v2482
  %v3450 = vmul.f32 %v1902, %v2487
  %v3451 = vmul.f32 %v1903, %v2492
  %v3452 = vmul.f32 %v1904, %v2497
  %v3453 = vmul.f32 %v1905, %v2502
  %v3454 = vmul.f32 %v1906, %v2507
  %v3455 = vmul.f32 %v1907, %v2512
  %v3456 = vmul.f32 %v1908, %v2517
  %v3457 = vmul.f32 %v1909, %v2522
  %v3458 = vmul.f32 %v1910, %v2527
  %v3459 = vmul.f32 %v1911, %v2532
  %v3460 = vmul.f32 %v1912, %v2537
  %v3461 = vmul.f32 %v1913, %v2542
  %v3462 = vmul.f32 %v1914, %v2547
  %v3463 = vmul.f32 %v1915, %v2552
  %v3464 = vmul.f32 %v1916, %v2557
  %v3465 = vmul.f32 %v1917, %v2562
  %v3466 = vmul.f32 %v1918, %v2567
  %v3467 = vmul.f32 %v1919, %v2572
  %v3468 = vmul.f32 %v1920, %v2577
  %v3469 = vmul.f32 %v1921, %v2582
  %v3470 = vmul.f32 %v1922, %v2587
  %v3471 = vmul.f32 %v1923, %v2592
  %v3472 = vmul.f32 %v1924, %v2597
  %v3473 = vmul.f32 %v1925, %v2602
  %v3474 = vmul.f32 %v1926, %v2607
  %v3475 = vmul.f32 %v1927, %v2612
  %v3476 = vmul.f32 %v1928, %v2617
  %v3477 = vmul.f32 %v1929, %v2622
  %v3478 = vmul.f32 %v1930, %v2627
  %v3479 = vmul.f32 %v1931, %v2632
  %v3480 = vmul.f32 %v1932, %v2637
  %v3481 = vmul.f32 %v1933, %v2642
  %v3482 = vmul.f32 %v1934, %v2647
  %v3483 = vmul.f32 %v1935, %v2652
  %v3484 = vmul.f32 %v1936, %v2657
  %v3485 = vmul.f32 %v1937, %v2662
  %v3486 = vmul.f32 %v1938, %v2667
  %v3487 = vmul.f32 %v1939, %v2672
  %v3488 = vmul.f32 %v1940, %v2677
  %v3489 = vmul.f32 %v1941, %v2682
  %v3490 = vmul.f32 %v1942, %v2687
  %v3491 = vmul.f32 %v1943, %v2692
  %v3492 = vmul.f32 %v1944, %v2697
  %v3493 = vmul.f32 %v1945, %v2702
  %v3494 = vmul.f32 %v1946, %v2707
  %v3495 = vmul.f32 %v1947, %v2712
  %v3496 = vmul.f32 %v1948, %v2717
  %v3497 = vmul.f32 %v1949, %v2722
  %v3498 = vmul.f32 %v1950, %v2727
  %v3499 = vmul.f32 %v1951, %v2732
  %v3500 = vmul.f32 %v1952, %v2737
  %v3501 = vmul.f32 %v1953, %v2742
  %v3502 = vmul.f32 %v1954, %v2747
  %v3503 = vmul.f32 %v1955, %v2752
  %v3504 = vmul.f32 %v1956, %v2757
  %v3505 = vmul.f32 %v1957, %v2762
  %v3506 = vmul.f32 %v1958, %v2767
  %v3507 = vmul.f32 %v1959, %v2772
  %v3508 = vmul.f32 %v1960, %v2777
  %v3509 = vmul.f32 %v1961, %v2782
  %v3510 = vmul.f32 %v1962, %v2787
  %v3511 = vmul.f32 %v1963, %v2792
  %v3512 = vmul.f32 %v1964, %v2797
  %v3513 = vmul.f32 %v1965, %v2802
  %v3514 = vmul.f32 %v1966, %v2807
  %v3515 = vmul.f32 %v1967, %v2812
  %v3516 = vmul.f32 %v1968, %v2817
  %v3517 = vmul.f32 %v1969, %v2822
  %v3518 = vmul.f32 %v1970, %v2827
  %v3519 = vmul.f32 %v1971, %v2832
  %v3520 = vmul.f32 %v1972, %v2837
  %v3521 = vmul.f32 %v1973, %v2842
  %v3522 = vmul.f32 %v1974, %v2847
  %v3523 = vmul.f32 %v1975, %v2852
  %v3524 = vmul.f32 %v1976, %v2857
  %v3525 = vmul.f32 %v1977, %v2862
  %v3526 = vmul.f32 %v1978, %v2867
  %v3527 = vmul.f32 %v1979, %v2872
  %v3528 = vmul.f32 %v1980, %v2877
  %v3529 = vmul.f32 %v1981, %v2882
  %v3530 = vmul.f32 %v1982, %v2887
  %v3531 = vmul.f32 %v1983, %v2892
  %v3532 = vmul.f32 %v1984, %v2897
  %v3533 = vmul.f32 %v1985, %v2902
  %v3534 = vmul.f32 %v1986, %v2907
  %v3535 = vmul.f32 %v1987, %v2912
  %v3536 = vmul.f32 %v1988, %v2917
  %v3537 = vmul.f32 %v1989, %v2922
  %v3538 = vmul.f32 %v1990, %v2927
  %v3539 = vmul.f32 %v1991, %v2932
  %v3540 = vmul.f32 %v1992, %v2937
  %v3541 = vmul.f32 %v1993, %v2942
  %v3542 = vmul.f32 %v1994, %v2947
  %v3543 = vmul.f32 %v1995, %v2952
  %v3544 = vmul.f32 %v1996, %v2957
  %v3545 = vmul.f32 %v1997, %v2962
  %v3546 = vmul.f32 %v1998, %v2967
  %v3547 = vmul.f32 %v1999, %v2972
  %v3548 = vmul.f32 %v2000, %v2977
  %v3549 = vmul.f32 %v2001, %v2982
  %v3550 = vmul.f32 %v2002, %v2987
  %v3551 = vmul.f32 %v2003, %v2992
  %v3552 = vmul.f32 %v2004, %v2997
  %v3553 = vmul.f32 %v2005, %v3002
  %v3554 = vmul.f32 %v2006, %v3007
  %v3555 = vmul.f32 %v2007, %v3012
  %v3556 = vmul.f32 %v2008, %v3017
  %v3557 = vmul.f32 %v2009, %v3022
  %v3558 = vmul.f32 %v2010, %v3027
  %v3559 = vmul.f32 %v2011, %v3032
  %v3560 = vmul.f32 %v2012, %v3037
  %v3561 = vmul.f32 %v2013, %v3042
  %v3562 = vmul.f32 %v2014, %v3047
  %v3563 = vmul.f32 %v2015, %v3052
  %v3564 = vmul.f32 %v2016, %v3057
  %v3565 = vmul.f32 %v2017, %v3062
  %v3566 = vmul.f32 %v2018, %v3067
  %v3567 = vmul.f32 %v2019, %v3072
  %v3568 = vmul.f32 %v2020, %v3077
  %v3569 = vmul.f32 %v2021, %v3082
  %v3570 = vmul.f32 %v2022, %v3087
  %v3571 = vmul.f32 %v2023, %v3092
  %v3572 = vmul.f32 %v2024, %v3097
  %v3573 = vmul.f32 %v2025, %v3102
  %v3574 = vmul.f32 %v2026, %v3107
  %v3575 = vmul.f32 %v2027, %v3112
  %v3576 = vmul.f32 %v2028, %v3117
  %v3577 = vmul.f32 %v2029, %v3122
  %v3578 = vmul.f32 %v2030, %v3127
  %v3579 = vmul.f32 %v2031, %v3132
  %v3580 = vmul.f32 %v2032, %v3137
  %v3581 = vmul.f32 %v2033, %v3142
  %v3582 = vmul.f32 %v2034, %v3147
  %v3583 = vmul.f32 %v2035, %v3152
  %v3584 = vmul.f32 %v2036, %v3157
  %v3585 = vmul.f32 %v2037, %v3162
  %v3586 = vmul.f32 %v2038, %v3167
  %v3587 = vmul.f32 %v2039, %v3172
  %v3588 = vmul.f32 %v2040, %v3177
  %v3589 = vmul.f32 %v2041, %v3182
  %v3590 = vmul.f32 %v2042, %v3187
  %v3591 = vmul.f32 %v2043, %v3192
  %v3592 = vmul.f32 %v2044, %v3197
  %v3593 = vmul.f32 %v2045, %v3202
  %v3594 = vmul.f32 %v2046, %v3207
  %v3595 = vmul.f32 %v2047, %v3212
  %v3596 = vmul.f32 %v2048, %v3217
  %v3597 = vmul.f32 %v2049, %v3222
  %v3598 = vmul.f32 %v2050, %v3227
  %v3599 = vmul.f32 %v2051, %v3232
  %v3600 = vmul.f32 %v2052, %v3237
  %v3601 = vmul.f32 %v2053, %v3242
  %v3602 = vmul.f32 %v2054, %v3247
  %v3603 = vmul.f32 %v2055, %v3252
  %v3604 = vmul.f32 %v2056, %v3257
  %v3605 = vmul.f32 %v2057, %v3262
  %v3606 = vmul.f32 %v2058, %v3267
  %v3607 = vmul.f32 %v2059, %v3272
  %v3608 = vmul.f32 %v2060, %v3277
  %v3609 = vmul.f32 %v2061, %v3282
  %v3610 = vmul.f32 %v2062, %v3287
  %v3611 = vmul.f32 %v2063, %v3292
  %v3612 = vmul.f32 %v2064, %v3297
  %v3613 = vmul.f32 %v2065, %v3302
  %v3614 = vmul.f32 %v2066, %v3307
  %v3615 = vmul.f32 %v2067, %v3312
  %v3616 = vmul.f32 %v2068, %v3317
  %v3617 = vmul.f32 %v2069, %v3322
  %v3618 = vmul.f32 %v2070, %v3327
  %v3619 = vmul.f32 %v2071, %v3332
  %v3620 = vmul.f32 %v2072, %v3337
  %v3621 = vmul.f32 %v2073, %v3342
  %v3622 = vmul.f32 %v2074, %v3347
  %v3623 = vmul.f32 %v2075, %v3352
  %v3624 = vmul.f32 %v2076, %v3357
  %v3625 = vmul.f32 %v2077, %v3362
  %v3626 = vmul.f32 %v2078, %v3367
  %v3627 = vpack.c.bf16 %v3370, %v3369
  %v3628 = vpack.c.bf16 %v3372, %v3371
  %v3629 = vpack.c.bf16 %v3374, %v3373
  %v3630 = vpack.c.bf16 %v3376, %v3375
  %v3631 = vpack.c.bf16 %v3378, %v3377
  %v3632 = vpack.c.bf16 %v3380, %v3379
  %v3633 = vpack.c.bf16 %v3382, %v3381
  %v3634 = vpack.c.bf16 %v3384, %v3383
  %v3635 = vpack.c.bf16 %v3386, %v3385
  %v3636 = vpack.c.bf16 %v3388, %v3387
  %v3637 = vpack.c.bf16 %v3390, %v3389
  %v3638 = vpack.c.bf16 %v3392, %v3391
  %v3639 = vpack.c.bf16 %v3394, %v3393
  %v3640 = vpack.c.bf16 %v3396, %v3395
  %v3641 = vpack.c.bf16 %v3398, %v3397
  %v3642 = vpack.c.bf16 %v3400, %v3399
  %v3643 = vpack.c.bf16 %v3402, %v3401
  %v3644 = vpack.c.bf16 %v3404, %v3403
  %v3645 = vpack.c.bf16 %v3406, %v3405
  %v3646 = vpack.c.bf16 %v3408, %v3407
  %v3647 = vpack.c.bf16 %v3410, %v3409
  %v3648 = vpack.c.bf16 %v3412, %v3411
  %v3649 = vpack.c.bf16 %v3414, %v3413
  %v3650 = vpack.c.bf16 %v3416, %v3415
  %v3651 = vpack.c.bf16 %v3418, %v3417
  %v3652 = vpack.c.bf16 %v3420, %v3419
  %v3653 = vpack.c.bf16 %v3422, %v3421
  %v3654 = vpack.c.bf16 %v3424, %v3423
  %v3655 = vpack.c.bf16 %v3426, %v3425
  %v3656 = vpack.c.bf16 %v3428, %v3427
  %v3657 = vpack.c.bf16 %v3430, %v3429
  %v3658 = vpack.c.bf16 %v3432, %v3431
  %v3659 = vpack.c.bf16 %v3434, %v3433
  %v3660 = vpack.c.bf16 %v3436, %v3435
  %v3661 = vpack.c.bf16 %v3438, %v3437
  %v3662 = vpack.c.bf16 %v3440, %v3439
  %v3663 = vpack.c.bf16 %v3442, %v3441
  %v3664 = vpack.c.bf16 %v3444, %v3443
  %v3665 = vpack.c.bf16 %v3446, %v3445
  %v3666 = vpack.c.bf16 %v3448, %v3447
  %v3667 = vpack.c.bf16 %v3450, %v3449
  %v3668 = vpack.c.bf16 %v3452, %v3451
  %v3669 = vpack.c.bf16 %v3454, %v3453
  %v3670 = vpack.c.bf16 %v3456, %v3455
  %v3671 = vpack.c.bf16 %v3458, %v3457
  %v3672 = vpack.c.bf16 %v3460, %v3459
  %v3673 = vpack.c.bf16 %v3462, %v3461
  %v3674 = vpack.c.bf16 %v3464, %v3463
  %v3675 = vpack.c.bf16 %v3466, %v3465
  %v3676 = vpack.c.bf16 %v3468, %v3467
  %v3677 = vpack.c.bf16 %v3470, %v3469
  %v3678 = vpack.c.bf16 %v3472, %v3471
  %v3679 = vpack.c.bf16 %v3474, %v3473
  %v3680 = vpack.c.bf16 %v3476, %v3475
  %v3681 = vpack.c.bf16 %v3478, %v3477
  %v3682 = vpack.c.bf16 %v3480, %v3479
  %v3683 = vpack.c.bf16 %v3482, %v3481
  %v3684 = vpack.c.bf16 %v3484, %v3483
  %v3685 = vpack.c.bf16 %v3486, %v3485
  %v3686 = vpack.c.bf16 %v3488, %v3487
  %v3687 = vpack.c.bf16 %v3490, %v3489
  %v3688 = vpack.c.bf16 %v3492, %v3491
  %v3689 = vpack.c.bf16 %v3494, %v3493
  %v3690 = vpack.c.bf16 %v3496, %v3495
  %v3691 = vpack.c.bf16 %v3498, %v3497
  %v3692 = vpack.c.bf16 %v3500, %v3499
  %v3693 = vpack.c.bf16 %v3502, %v3501
  %v3694 = vpack.c.bf16 %v3504, %v3503
  %v3695 = vpack.c.bf16 %v3506, %v3505
  %v3696 = vpack.c.bf16 %v3508, %v3507
  %v3697 = vpack.c.bf16 %v3510, %v3509
  %v3698 = vpack.c.bf16 %v3512, %v3511
  %v3699 = vpack.c.bf16 %v3514, %v3513
  %v3700 = vpack.c.bf16 %v3516, %v3515
  %v3701 = vpack.c.bf16 %v3518, %v3517
  %v3702 = vpack.c.bf16 %v3520, %v3519
  %v3703 = vpack.c.bf16 %v3522, %v3521
  %v3704 = vpack.c.bf16 %v3524, %v3523
  %v3705 = vpack.c.bf16 %v3526, %v3525
  %v3706 = vpack.c.bf16 %v3528, %v3527
  %v3707 = vpack.c.bf16 %v3530, %v3529
  %v3708 = vpack.c.bf16 %v3532, %v3531
  %v3709 = vpack.c.bf16 %v3534, %v3533
  %v3710 = vpack.c.bf16 %v3536, %v3535
  %v3711 = vpack.c.bf16 %v3538, %v3537
  %v3712 = vpack.c.bf16 %v3540, %v3539
  %v3713 = vpack.c.bf16 %v3542, %v3541
  %v3714 = vpack.c.bf16 %v3544, %v3543
  %v3715 = vpack.c.bf16 %v3546, %v3545
  %v3716 = vpack.c.bf16 %v3548, %v3547
  %v3717 = vpack.c.bf16 %v3550, %v3549
  %v3718 = vpack.c.bf16 %v3552, %v3551
  %v3719 = vpack.c.bf16 %v3554, %v3553
  %v3720 = vpack.c.bf16 %v3556, %v3555
  %v3721 = vpack.c.bf16 %v3558, %v3557
  %v3722 = vpack.c.bf16 %v3560, %v3559
  %v3723 = vpack.c.bf16 %v3562, %v3561
  %v3724 = vpack.c.bf16 %v3564, %v3563
  %v3725 = vpack.c.bf16 %v3566, %v3565
  %v3726 = vpack.c.bf16 %v3568, %v3567
  %v3727 = vpack.c.bf16 %v3570, %v3569
  %v3728 = vpack.c.bf16 %v3572, %v3571
  %v3729 = vpack.c.bf16 %v3574, %v3573
  %v3730 = vpack.c.bf16 %v3576, %v3575
  %v3731 = vpack.c.bf16 %v3578, %v3577
  %v3732 = vpack.c.bf16 %v3580, %v3579
  %v3733 = vpack.c.bf16 %v3582, %v3581
  %v3734 = vpack.c.bf16 %v3584, %v3583
  %v3735 = vpack.c.bf16 %v3586, %v3585
  %v3736 = vpack.c.bf16 %v3588, %v3587
  %v3737 = vpack.c.bf16 %v3590, %v3589
  %v3738 = vpack.c.bf16 %v3592, %v3591
  %v3739 = vpack.c.bf16 %v3594, %v3593
  %v3740 = vpack.c.bf16 %v3596, %v3595
  %v3741 = vpack.c.bf16 %v3598, %v3597
  %v3742 = vpack.c.bf16 %v3600, %v3599
  %v3743 = vpack.c.bf16 %v3602, %v3601
  %v3744 = vpack.c.bf16 %v3604, %v3603
  %v3745 = vpack.c.bf16 %v3606, %v3605
  %v3746 = vpack.c.bf16 %v3608, %v3607
  %v3747 = vpack.c.bf16 %v3610, %v3609
  %v3748 = vpack.c.bf16 %v3612, %v3611
  %v3749 = vpack.c.bf16 %v3614, %v3613
  %v3750 = vpack.c.bf16 %v3616, %v3615
  %v3751 = vpack.c.bf16 %v3618, %v3617
  %v3752 = vpack.c.bf16 %v3620, %v3619
  %v3753 = vpack.c.bf16 %v3622, %v3621
  %v3754 = vpack.c.bf16 %v3624, %v3623
  %v3755 = vpack.c.bf16 %v3626, %v3625
  %v3756 = vld [vmem:[%s2] sm:$0xff]
  %v3757 = vld [vmem:[%s2 + $0x8] sm:$0xf]
  %v3758 = vld [vmem:[%s2 + $0xc] sm:$0xff]
  %v3759 = vld [vmem:[%s2 + $0x14] sm:$0xf]
  %v3760 = vld [vmem:[%s2 + $0x18] sm:$0xff]
  %v3761 = vld [vmem:[%s2 + $0x20] sm:$0xf]
  %v3762 = vld [vmem:[%s2 + $0x24] sm:$0xff]
  %v3763 = vld [vmem:[%s2 + $0x2c] sm:$0xf]
  %v3764 = vld [vmem:[%s2 + $0x30] sm:$0xff]
  %v3765 = vld [vmem:[%s2 + $0x38] sm:$0xf]
  %v3766 = vld [vmem:[%s2 + $0x3c] sm:$0xff]
  %v3767 = vld [vmem:[%s2 + $0x44] sm:$0xf]
  %v3768 = vld [vmem:[%s2 + $0x48] sm:$0xff]
  %v3769 = vld [vmem:[%s2 + $0x50] sm:$0xf]
  %v3770 = vld [vmem:[%s2 + $0x54] sm:$0xff]
  %v3771 = vld [vmem:[%s2 + $0x5c] sm:$0xf]
  %v3772 = vld [vmem:[%s2 + $0x60] sm:$0xff]
  %v3773 = vld [vmem:[%s2 + $0x68] sm:$0xf]
  %v3774 = vld [vmem:[%s2 + $0x6c] sm:$0xff]
  %v3775 = vld [vmem:[%s2 + $0x74] sm:$0xf]
  %v3776 = vld [vmem:[%s2 + $0x78] sm:$0xff]
  %v3777 = vld [vmem:[%s2 + $0x80] sm:$0xf]
  %v3778 = vld [vmem:[%s2 + $0x84] sm:$0xff]
  %v3779 = vld [vmem:[%s2 + $0x8c] sm:$0xf]
  %v3780 = vld [vmem:[%s2 + $0x90] sm:$0xff]
  %v3781 = vld [vmem:[%s2 + $0x98] sm:$0xf]
  %v3782 = vld [vmem:[%s2 + $0x9c] sm:$0xff]
  %v3783 = vld [vmem:[%s2 + $0xa4] sm:$0xf]
  %v3784 = vld [vmem:[%s2 + $0xa8] sm:$0xff]
  %v3785 = vld [vmem:[%s2 + $0xb0] sm:$0xf]
  %v3786 = vld [vmem:[%s2 + $0xb4] sm:$0xff]
  %v3787 = vld [vmem:[%s2 + $0xbc] sm:$0xf]
  %v3788 = vld [vmem:[%s2 + $0xc0] sm:$0xff]
  %v3789 = vld [vmem:[%s2 + $0xc8] sm:$0xf]
  %v3790 = vld [vmem:[%s2 + $0xcc] sm:$0xff]
  %v3791 = vld [vmem:[%s2 + $0xd4] sm:$0xf]
  %v3792 = vld [vmem:[%s2 + $0xd8] sm:$0xff]
  %v3793 = vld [vmem:[%s2 + $0xe0] sm:$0xf]
  %v3794 = vld [vmem:[%s2 + $0xe4] sm:$0xff]
  %v3795 = vld [vmem:[%s2 + $0xec] sm:$0xf]
  %v3796 = vld [vmem:[%s2 + $0xf0] sm:$0xff]
  %v3797 = vld [vmem:[%s2 + $0xf8] sm:$0xf]
  %v3798 = vld [vmem:[%s2 + $0xfc] sm:$0xff]
  %v3799 = vld [vmem:[%s2 + $0x104] sm:$0xf]
  %v3800 = vld [vmem:[%s2 + $0x108] sm:$0xff]
  %v3801 = vld [vmem:[%s2 + $0x110] sm:$0xf]
  %v3802 = vld [vmem:[%s2 + $0x114] sm:$0xff]
  %v3803 = vld [vmem:[%s2 + $0x11c] sm:$0xf]
  %v3804 = vld [vmem:[%s2 + $0x120] sm:$0xff]
  %v3805 = vld [vmem:[%s2 + $0x128] sm:$0xf]
  %v3806 = vld [vmem:[%s2 + $0x12c] sm:$0xff]
  %v3807 = vld [vmem:[%s2 + $0x134] sm:$0xf]
  %v3808 = vld [vmem:[%s2 + $0x138] sm:$0xff]
  %v3809 = vld [vmem:[%s2 + $0x140] sm:$0xf]
  %v3810 = vld [vmem:[%s2 + $0x144] sm:$0xff]
  %v3811 = vld [vmem:[%s2 + $0x14c] sm:$0xf]
  %v3812 = vld [vmem:[%s2 + $0x150] sm:$0xff]
  %v3813 = vld [vmem:[%s2 + $0x158] sm:$0xf]
  %v3814 = vld [vmem:[%s2 + $0x15c] sm:$0xff]
  %v3815 = vld [vmem:[%s2 + $0x164] sm:$0xf]
  %v3816 = vld [vmem:[%s2 + $0x168] sm:$0xff]
  %v3817 = vld [vmem:[%s2 + $0x170] sm:$0xf]
  %v3818 = vld [vmem:[%s2 + $0x174] sm:$0xff]
  %v3819 = vld [vmem:[%s2 + $0x17c] sm:$0xf]
  %v3820 = vld [vmem:[%s2 + $0x180] sm:$0xff]
  %v3821 = vld [vmem:[%s2 + $0x188] sm:$0xf]
  %v3822 = vld [vmem:[%s2 + $0x18c] sm:$0xff]
  %v3823 = vld [vmem:[%s2 + $0x194] sm:$0xf]
  %v3824 = vld [vmem:[%s2 + $0x198] sm:$0xff]
  %v3825 = vld [vmem:[%s2 + $0x1a0] sm:$0xf]
  %v3826 = vld [vmem:[%s2 + $0x1a4] sm:$0xff]
  %v3827 = vld [vmem:[%s2 + $0x1ac] sm:$0xf]
  %v3828 = vld [vmem:[%s2 + $0x1b0] sm:$0xff]
  %v3829 = vld [vmem:[%s2 + $0x1b8] sm:$0xf]
  %v3830 = vld [vmem:[%s2 + $0x1bc] sm:$0xff]
  %v3831 = vld [vmem:[%s2 + $0x1c4] sm:$0xf]
  %v3832 = vld [vmem:[%s2 + $0x1c8] sm:$0xff]
  %v3833 = vld [vmem:[%s2 + $0x1d0] sm:$0xf]
  %v3834 = vld [vmem:[%s2 + $0x1d4] sm:$0xff]
  %v3835 = vld [vmem:[%s2 + $0x1dc] sm:$0xf]
  %v3836 = vld [vmem:[%s2 + $0x1e0] sm:$0xff]
  %v3837 = vld [vmem:[%s2 + $0x1e8] sm:$0xf]
  %v3838 = vld [vmem:[%s2 + $0x1ec] sm:$0xff]
  %v3839 = vld [vmem:[%s2 + $0x1f4] sm:$0xf]
  %v3840 = vld [vmem:[%s2 + $0x1f8] sm:$0xff]
  %v3841 = vld [vmem:[%s2 + $0x200] sm:$0xf]
  %v3842 = vld [vmem:[%s2 + $0x204] sm:$0xff]
  %v3843 = vld [vmem:[%s2 + $0x20c] sm:$0xf]
  %v3844 = vld [vmem:[%s2 + $0x210] sm:$0xff]
  %v3845 = vld [vmem:[%s2 + $0x218] sm:$0xf]
  %v3846 = vld [vmem:[%s2 + $0x21c] sm:$0xff]
  %v3847 = vld [vmem:[%s2 + $0x224] sm:$0xf]
  %v3848 = vld [vmem:[%s2 + $0x228] sm:$0xff]
  %v3849 = vld [vmem:[%s2 + $0x230] sm:$0xf]
  %v3850 = vld [vmem:[%s2 + $0x234] sm:$0xff]
  %v3851 = vld [vmem:[%s2 + $0x23c] sm:$0xf]
  %v3852 = vld [vmem:[%s2 + $0x240] sm:$0xff]
  %v3853 = vld [vmem:[%s2 + $0x248] sm:$0xf]
  %v3854 = vld [vmem:[%s2 + $0x24c] sm:$0xff]
  %v3855 = vld [vmem:[%s2 + $0x254] sm:$0xf]
  %v3856 = vld [vmem:[%s2 + $0x258] sm:$0xff]
  %v3857 = vld [vmem:[%s2 + $0x260] sm:$0xf]
  %v3858 = vld [vmem:[%s2 + $0x264] sm:$0xff]
  %v3859 = vld [vmem:[%s2 + $0x26c] sm:$0xf]
  %v3860 = vld [vmem:[%s2 + $0x270] sm:$0xff]
  %v3861 = vld [vmem:[%s2 + $0x278] sm:$0xf]
  %v3862 = vld [vmem:[%s2 + $0x27c] sm:$0xff]
  %v3863 = vld [vmem:[%s2 + $0x284] sm:$0xf]
  %v3864 = vld [vmem:[%s2 + $0x288] sm:$0xff]
  %v3865 = vld [vmem:[%s2 + $0x290] sm:$0xf]
  %v3866 = vld [vmem:[%s2 + $0x294] sm:$0xff]
  %v3867 = vld [vmem:[%s2 + $0x29c] sm:$0xf]
  %v3868 = vld [vmem:[%s2 + $0x2a0] sm:$0xff]
  %v3869 = vld [vmem:[%s2 + $0x2a8] sm:$0xf]
  %v3870 = vld [vmem:[%s2 + $0x2ac] sm:$0xff]
  %v3871 = vld [vmem:[%s2 + $0x2b4] sm:$0xf]
  %v3872 = vld [vmem:[%s2 + $0x2b8] sm:$0xff]
  %v3873 = vld [vmem:[%s2 + $0x2c0] sm:$0xf]
  %v3874 = vld [vmem:[%s2 + $0x2c4] sm:$0xff]
  %v3875 = vld [vmem:[%s2 + $0x2cc] sm:$0xf]
  %v3876 = vld [vmem:[%s2 + $0x2d0] sm:$0xff]
  %v3877 = vld [vmem:[%s2 + $0x2d8] sm:$0xf]
  %v3878 = vld [vmem:[%s2 + $0x2dc] sm:$0xff]
  %v3879 = vld [vmem:[%s2 + $0x2e4] sm:$0xf]
  %v3880 = vld [vmem:[%s2 + $0x2e8] sm:$0xff]
  %v3881 = vld [vmem:[%s2 + $0x2f0] sm:$0xf]
  %v3882 = vld [vmem:[%s2 + $0x2f4] sm:$0xff]
  %v3883 = vld [vmem:[%s2 + $0x2fc] sm:$0xf]
  %v3884 = vld [vmem:[%s2 + $0x300] sm:$0xff]
  %v3885 = vld [vmem:[%s2 + $0x308] sm:$0xf]
  %v3886 = vld [vmem:[%s2 + $0x30c] sm:$0xff]
  %v3887 = vld [vmem:[%s2 + $0x314] sm:$0xf]
  %v3888 = vld [vmem:[%s2 + $0x318] sm:$0xff]
  %v3889 = vld [vmem:[%s2 + $0x320] sm:$0xf]
  %v3890 = vld [vmem:[%s2 + $0x324] sm:$0xff]
  %v3891 = vld [vmem:[%s2 + $0x32c] sm:$0xf]
  %v3892 = vld [vmem:[%s2 + $0x330] sm:$0xff]
  %v3893 = vld [vmem:[%s2 + $0x338] sm:$0xf]
  %v3894 = vld [vmem:[%s2 + $0x33c] sm:$0xff]
  %v3895 = vld [vmem:[%s2 + $0x344] sm:$0xf]
  %v3896 = vld [vmem:[%s2 + $0x348] sm:$0xff]
  %v3897 = vld [vmem:[%s2 + $0x350] sm:$0xf]
  %v3898 = vld [vmem:[%s2 + $0x354] sm:$0xff]
  %v3899 = vld [vmem:[%s2 + $0x35c] sm:$0xf]
  %v3900 = vld [vmem:[%s2 + $0x360] sm:$0xff]
  %v3901 = vld [vmem:[%s2 + $0x368] sm:$0xf]
  %v3902 = vld [vmem:[%s2 + $0x36c] sm:$0xff]
  %v3903 = vld [vmem:[%s2 + $0x374] sm:$0xf]
  %v3904 = vld [vmem:[%s2 + $0x378] sm:$0xff]
  %v3905 = vld [vmem:[%s2 + $0x380] sm:$0xf]
  %v3906 = vld [vmem:[%s2 + $0x384] sm:$0xff]
  %v3907 = vld [vmem:[%s2 + $0x38c] sm:$0xf]
  %v3908 = vld [vmem:[%s2 + $0x390] sm:$0xff]
  %v3909 = vld [vmem:[%s2 + $0x398] sm:$0xf]
  %v3910 = vld [vmem:[%s2 + $0x39c] sm:$0xff]
  %v3911 = vld [vmem:[%s2 + $0x3a4] sm:$0xf]
  %v3912 = vld [vmem:[%s2 + $0x3a8] sm:$0xff]
  %v3913 = vld [vmem:[%s2 + $0x3b0] sm:$0xf]
  %v3914 = vld [vmem:[%s2 + $0x3b4] sm:$0xff]
  %v3915 = vld [vmem:[%s2 + $0x3bc] sm:$0xf]
  %v3916 = vld [vmem:[%s2 + $0x3c0] sm:$0xff]
  %v3917 = vld [vmem:[%s2 + $0x3c8] sm:$0xf]
  %v3918 = vld [vmem:[%s2 + $0x3cc] sm:$0xff]
  %v3919 = vld [vmem:[%s2 + $0x3d4] sm:$0xf]
  %v3920 = vld [vmem:[%s2 + $0x3d8] sm:$0xff]
  %v3921 = vld [vmem:[%s2 + $0x3e0] sm:$0xf]
  %v3922 = vld [vmem:[%s2 + $0x3e4] sm:$0xff]
  %v3923 = vld [vmem:[%s2 + $0x3ec] sm:$0xf]
  %v3924 = vld [vmem:[%s2 + $0x3f0] sm:$0xff]
  %v3925 = vld [vmem:[%s2 + $0x3f8] sm:$0xf]
  %v3926 = vld [vmem:[%s2 + $0x3fc] sm:$0xff]
  %v3927 = vld [vmem:[%s2 + $0x404] sm:$0xf]
  %v3928 = vld [vmem:[%s2 + $0x408] sm:$0xff]
  %v3929 = vld [vmem:[%s2 + $0x410] sm:$0xf]
  %v3930 = vld [vmem:[%s2 + $0x414] sm:$0xff]
  %v3931 = vld [vmem:[%s2 + $0x41c] sm:$0xf]
  %v3932 = vld [vmem:[%s2 + $0x420] sm:$0xff]
  %v3933 = vld [vmem:[%s2 + $0x428] sm:$0xf]
  %v3934 = vld [vmem:[%s2 + $0x42c] sm:$0xff]
  %v3935 = vld [vmem:[%s2 + $0x434] sm:$0xf]
  %v3936 = vld [vmem:[%s2 + $0x438] sm:$0xff]
  %v3937 = vld [vmem:[%s2 + $0x440] sm:$0xf]
  %v3938 = vld [vmem:[%s2 + $0x444] sm:$0xff]
  %v3939 = vld [vmem:[%s2 + $0x44c] sm:$0xf]
  %v3940 = vld [vmem:[%s2 + $0x450] sm:$0xff]
  %v3941 = vld [vmem:[%s2 + $0x458] sm:$0xf]
  %v3942 = vld [vmem:[%s2 + $0x45c] sm:$0xff]
  %v3943 = vld [vmem:[%s2 + $0x464] sm:$0xf]
  %v3944 = vld [vmem:[%s2 + $0x468] sm:$0xff]
  %v3945 = vld [vmem:[%s2 + $0x470] sm:$0xf]
  %v3946 = vld [vmem:[%s2 + $0x474] sm:$0xff]
  %v3947 = vld [vmem:[%s2 + $0x47c] sm:$0xf]
  %v3948 = vld [vmem:[%s2 + $0x480] sm:$0xff]
  %v3949 = vld [vmem:[%s2 + $0x488] sm:$0xf]
  %v3950 = vld [vmem:[%s2 + $0x48c] sm:$0xff]
  %v3951 = vld [vmem:[%s2 + $0x494] sm:$0xf]
  %v3952 = vld [vmem:[%s2 + $0x498] sm:$0xff]
  %v3953 = vld [vmem:[%s2 + $0x4a0] sm:$0xf]
  %v3954 = vld [vmem:[%s2 + $0x4a4] sm:$0xff]
  %v3955 = vld [vmem:[%s2 + $0x4ac] sm:$0xf]
  %v3956 = vld [vmem:[%s2 + $0x4b0] sm:$0xff]
  %v3957 = vld [vmem:[%s2 + $0x4b8] sm:$0xf]
  %v3958 = vld [vmem:[%s2 + $0x4bc] sm:$0xff]
  %v3959 = vld [vmem:[%s2 + $0x4c4] sm:$0xf]
  %v3960 = vld [vmem:[%s2 + $0x4c8] sm:$0xff]
  %v3961 = vld [vmem:[%s2 + $0x4d0] sm:$0xf]
  %v3962 = vld [vmem:[%s2 + $0x4d4] sm:$0xff]
  %v3963 = vld [vmem:[%s2 + $0x4dc] sm:$0xf]
  %v3964 = vld [vmem:[%s2 + $0x4e0] sm:$0xff]
  %v3965 = vld [vmem:[%s2 + $0x4e8] sm:$0xf]
  %v3966 = vld [vmem:[%s2 + $0x4ec] sm:$0xff]
  %v3967 = vld [vmem:[%s2 + $0x4f4] sm:$0xf]
  %v3968 = vld [vmem:[%s2 + $0x4f8] sm:$0xff]
  %v3969 = vld [vmem:[%s2 + $0x500] sm:$0xf]
  %v3970 = vld [vmem:[%s2 + $0x504] sm:$0xff]
  %v3971 = vld [vmem:[%s2 + $0x50c] sm:$0xf]
  %v3972 = vld [vmem:[%s2 + $0x510] sm:$0xff]
  %v3973 = vld [vmem:[%s2 + $0x518] sm:$0xf]
  %v3974 = vld [vmem:[%s2 + $0x51c] sm:$0xff]
  %v3975 = vld [vmem:[%s2 + $0x524] sm:$0xf]
  %v3976 = vld [vmem:[%s2 + $0x528] sm:$0xff]
  %v3977 = vld [vmem:[%s2 + $0x530] sm:$0xf]
  %v3978 = vld [vmem:[%s2 + $0x534] sm:$0xff]
  %v3979 = vld [vmem:[%s2 + $0x53c] sm:$0xf]
  %v3980 = vld [vmem:[%s2 + $0x540] sm:$0xff]
  %v3981 = vld [vmem:[%s2 + $0x548] sm:$0xf]
  %v3982 = vld [vmem:[%s2 + $0x54c] sm:$0xff]
  %v3983 = vld [vmem:[%s2 + $0x554] sm:$0xf]
  %v3984 = vld [vmem:[%s2 + $0x558] sm:$0xff]
  %v3985 = vld [vmem:[%s2 + $0x560] sm:$0xf]
  %v3986 = vld [vmem:[%s2 + $0x564] sm:$0xff]
  %v3987 = vld [vmem:[%s2 + $0x56c] sm:$0xf]
  %v3988 = vld [vmem:[%s2 + $0x570] sm:$0xff]
  %v3989 = vld [vmem:[%s2 + $0x578] sm:$0xf]
  %v3990 = vld [vmem:[%s2 + $0x57c] sm:$0xff]
  %v3991 = vld [vmem:[%s2 + $0x584] sm:$0xf]
  %v3992 = vld [vmem:[%s2 + $0x588] sm:$0xff]
  %v3993 = vld [vmem:[%s2 + $0x590] sm:$0xf]
  %v3994 = vld [vmem:[%s2 + $0x594] sm:$0xff]
  %v3995 = vld [vmem:[%s2 + $0x59c] sm:$0xf]
  %v3996 = vld [vmem:[%s2 + $0x5a0] sm:$0xff]
  %v3997 = vld [vmem:[%s2 + $0x5a8] sm:$0xf]
  %v3998 = vld [vmem:[%s2 + $0x5ac] sm:$0xff]
  %v3999 = vld [vmem:[%s2 + $0x5b4] sm:$0xf]
  %v4000 = vld [vmem:[%s2 + $0x5b8] sm:$0xff]
  %v4001 = vld [vmem:[%s2 + $0x5c0] sm:$0xf]
  %v4002 = vld [vmem:[%s2 + $0x5c4] sm:$0xff]
  %v4003 = vld [vmem:[%s2 + $0x5cc] sm:$0xf]
  %v4004 = vld [vmem:[%s2 + $0x5d0] sm:$0xff]
  %v4005 = vld [vmem:[%s2 + $0x5d8] sm:$0xf]
  %v4006 = vld [vmem:[%s2 + $0x5dc] sm:$0xff]
  %v4007 = vld [vmem:[%s2 + $0x5e4] sm:$0xf]
  %v4008 = vld [vmem:[%s2 + $0x5e8] sm:$0xff]
  %v4009 = vld [vmem:[%s2 + $0x5f0] sm:$0xf]
  %v4010 = vld [vmem:[%s2 + $0x5f4] sm:$0xff]
  %v4011 = vld [vmem:[%s2 + $0x5fc] sm:$0xf]
  %v4012 = vld [vmem:[%s2 + $0x600] sm:$0xff]
  %v4013 = vld [vmem:[%s2 + $0x608] sm:$0xf]
  %v4014 = vld [vmem:[%s2 + $0x60c] sm:$0xff]
  %v4015 = vld [vmem:[%s2 + $0x614] sm:$0xf]
  %v4016 = vld [vmem:[%s2 + $0x618] sm:$0xff]
  %v4017 = vld [vmem:[%s2 + $0x620] sm:$0xf]
  %v4018 = vld [vmem:[%s2 + $0x624] sm:$0xff]
  %v4019 = vld [vmem:[%s2 + $0x62c] sm:$0xf]
  %v4020 = vld [vmem:[%s2 + $0x630] sm:$0xff]
  %v4021 = vld [vmem:[%s2 + $0x638] sm:$0xf]
  %v4022 = vld [vmem:[%s2 + $0x63c] sm:$0xff]
  %v4023 = vld [vmem:[%s2 + $0x644] sm:$0xf]
  %v4024 = vld [vmem:[%s2 + $0x648] sm:$0xff]
  %v4025 = vld [vmem:[%s2 + $0x650] sm:$0xf]
  %v4026 = vld [vmem:[%s2 + $0x654] sm:$0xff]
  %v4027 = vld [vmem:[%s2 + $0x65c] sm:$0xf]
  %v4028 = vld [vmem:[%s2 + $0x660] sm:$0xff]
  %v4029 = vld [vmem:[%s2 + $0x668] sm:$0xf]
  %v4030 = vld [vmem:[%s2 + $0x66c] sm:$0xff]
  %v4031 = vld [vmem:[%s2 + $0x674] sm:$0xf]
  %v4032 = vld [vmem:[%s2 + $0x678] sm:$0xff]
  %v4033 = vld [vmem:[%s2 + $0x680] sm:$0xf]
  %v4034 = vld [vmem:[%s2 + $0x684] sm:$0xff]
  %v4035 = vld [vmem:[%s2 + $0x68c] sm:$0xf]
  %v4036 = vld [vmem:[%s2 + $0x690] sm:$0xff]
  %v4037 = vld [vmem:[%s2 + $0x698] sm:$0xf]
  %v4038 = vld [vmem:[%s2 + $0x69c] sm:$0xff]
  %v4039 = vld [vmem:[%s2 + $0x6a4] sm:$0xf]
  %v4040 = vld [vmem:[%s2 + $0x6a8] sm:$0xff]
  %v4041 = vld [vmem:[%s2 + $0x6b0] sm:$0xf]
  %v4042 = vld [vmem:[%s2 + $0x6b4] sm:$0xff]
  %v4043 = vld [vmem:[%s2 + $0x6bc] sm:$0xf]
  %v4044 = vld [vmem:[%s2 + $0x6c0] sm:$0xff]
  %v4045 = vld [vmem:[%s2 + $0x6c8] sm:$0xf]
  %v4046 = vld [vmem:[%s2 + $0x6cc] sm:$0xff]
  %v4047 = vld [vmem:[%s2 + $0x6d4] sm:$0xf]
  %v4048 = vld [vmem:[%s2 + $0x6d8] sm:$0xff]
  %v4049 = vld [vmem:[%s2 + $0x6e0] sm:$0xf]
  %v4050 = vld [vmem:[%s2 + $0x6e4] sm:$0xff]
  %v4051 = vld [vmem:[%s2 + $0x6ec] sm:$0xf]
  %v4052 = vld [vmem:[%s2 + $0x6f0] sm:$0xff]
  %v4053 = vld [vmem:[%s2 + $0x6f8] sm:$0xf]
  %v4054 = vld [vmem:[%s2 + $0x6fc] sm:$0xff]
  %v4055 = vld [vmem:[%s2 + $0x704] sm:$0xf]
  %v4056 = vld [vmem:[%s2 + $0x708] sm:$0xff]
  %v4057 = vld [vmem:[%s2 + $0x710] sm:$0xf]
  %v4058 = vld [vmem:[%s2 + $0x714] sm:$0xff]
  %v4059 = vld [vmem:[%s2 + $0x71c] sm:$0xf]
  %v4060 = vld [vmem:[%s2 + $0x720] sm:$0xff]
  %v4061 = vld [vmem:[%s2 + $0x728] sm:$0xf]
  %v4062 = vld [vmem:[%s2 + $0x72c] sm:$0xff]
  %v4063 = vld [vmem:[%s2 + $0x734] sm:$0xf]
  %v4064 = vld [vmem:[%s2 + $0x738] sm:$0xff]
  %v4065 = vld [vmem:[%s2 + $0x740] sm:$0xf]
  %v4066 = vld [vmem:[%s2 + $0x744] sm:$0xff]
  %v4067 = vld [vmem:[%s2 + $0x74c] sm:$0xf]
  %v4068 = vld [vmem:[%s2 + $0x750] sm:$0xff]
  %v4069 = vld [vmem:[%s2 + $0x758] sm:$0xf]
  %v4070 = vld [vmem:[%s2 + $0x75c] sm:$0xff]
  %v4071 = vld [vmem:[%s2 + $0x764] sm:$0xf]
  %v4072 = vld [vmem:[%s2 + $0x768] sm:$0xff]
  %v4073 = vld [vmem:[%s2 + $0x770] sm:$0xf]
  %v4074 = vld [vmem:[%s2 + $0x774] sm:$0xff]
  %v4075 = vld [vmem:[%s2 + $0x77c] sm:$0xf]
  %v4076 = vld [vmem:[%s2 + $0x780] sm:$0xff]
  %v4077 = vld [vmem:[%s2 + $0x788] sm:$0xf]
  %v4078 = vld [vmem:[%s2 + $0x78c] sm:$0xff]
  %v4079 = vld [vmem:[%s2 + $0x794] sm:$0xf]
  %v4080 = vld [vmem:[%s2 + $0x798] sm:$0xff]
  %v4081 = vld [vmem:[%s2 + $0x7a0] sm:$0xf]
  %v4082 = vld [vmem:[%s2 + $0x7a4] sm:$0xff]
  %v4083 = vld [vmem:[%s2 + $0x7ac] sm:$0xf]
  %v4084 = vld [vmem:[%s2 + $0x7b0] sm:$0xff]
  %v4085 = vld [vmem:[%s2 + $0x7b8] sm:$0xf]
  %v4086 = vld [vmem:[%s2 + $0x7bc] sm:$0xff]
  %v4087 = vld [vmem:[%s2 + $0x7c4] sm:$0xf]
  %v4088 = vld [vmem:[%s2 + $0x7c8] sm:$0xff]
  %v4089 = vld [vmem:[%s2 + $0x7d0] sm:$0xf]
  %v4090 = vld [vmem:[%s2 + $0x7d4] sm:$0xff]
  %v4091 = vld [vmem:[%s2 + $0x7dc] sm:$0xf]
  %v4092 = vld [vmem:[%s2 + $0x7e0] sm:$0xff]
  %v4093 = vld [vmem:[%s2 + $0x7e8] sm:$0xf]
  %v4094 = vld [vmem:[%s2 + $0x7ec] sm:$0xff]
  %v4095 = vld [vmem:[%s2 + $0x7f4] sm:$0xf]
  %v4096 = vld [vmem:[%s2 + $0x7f8] sm:$0xff]
  %v4097 = vld [vmem:[%s2 + $0x800] sm:$0xf]
  %v4098 = vld [vmem:[%s2 + $0x804] sm:$0xff]
  %v4099 = vld [vmem:[%s2 + $0x80c] sm:$0xf]
  %v4100 = vld [vmem:[%s2 + $0x810] sm:$0xff]
  %v4101 = vld [vmem:[%s2 + $0x818] sm:$0xf]
  %v4102 = vld [vmem:[%s2 + $0x81c] sm:$0xff]
  %v4103 = vld [vmem:[%s2 + $0x824] sm:$0xf]
  %v4104 = vld [vmem:[%s2 + $0x828] sm:$0xff]
  %v4105 = vld [vmem:[%s2 + $0x830] sm:$0xf]
  %v4106 = vld [vmem:[%s2 + $0x834] sm:$0xff]
  %v4107 = vld [vmem:[%s2 + $0x83c] sm:$0xf]
  %v4108 = vld [vmem:[%s2 + $0x840] sm:$0xff]
  %v4109 = vld [vmem:[%s2 + $0x848] sm:$0xf]
  %v4110 = vld [vmem:[%s2 + $0x84c] sm:$0xff]
  %v4111 = vld [vmem:[%s2 + $0x854] sm:$0xf]
  %v4112 = vld [vmem:[%s2 + $0x858] sm:$0xff]
  %v4113 = vld [vmem:[%s2 + $0x860] sm:$0xf]
  %v4114 = vld [vmem:[%s2 + $0x864] sm:$0xff]
  %v4115 = vld [vmem:[%s2 + $0x86c] sm:$0xf]
  %v4116 = vld [vmem:[%s2 + $0x870] sm:$0xff]
  %v4117 = vld [vmem:[%s2 + $0x878] sm:$0xf]
  %v4118 = vld [vmem:[%s2 + $0x87c] sm:$0xff]
  %v4119 = vld [vmem:[%s2 + $0x884] sm:$0xf]
  %v4120 = vld [vmem:[%s2 + $0x888] sm:$0xff]
  %v4121 = vld [vmem:[%s2 + $0x890] sm:$0xf]
  %v4122 = vld [vmem:[%s2 + $0x894] sm:$0xff]
  %v4123 = vld [vmem:[%s2 + $0x89c] sm:$0xf]
  %v4124 = vld [vmem:[%s2 + $0x8a0] sm:$0xff]
  %v4125 = vld [vmem:[%s2 + $0x8a8] sm:$0xf]
  %v4126 = vld [vmem:[%s2 + $0x8ac] sm:$0xff]
  %v4127 = vld [vmem:[%s2 + $0x8b4] sm:$0xf]
  %v4128 = vld [vmem:[%s2 + $0x8b8] sm:$0xff]
  %v4129 = vld [vmem:[%s2 + $0x8c0] sm:$0xf]
  %v4130 = vld [vmem:[%s2 + $0x8c4] sm:$0xff]
  %v4131 = vld [vmem:[%s2 + $0x8cc] sm:$0xf]
  %v4132 = vld [vmem:[%s2 + $0x8d0] sm:$0xff]
  %v4133 = vld [vmem:[%s2 + $0x8d8] sm:$0xf]
  %v4134 = vld [vmem:[%s2 + $0x8dc] sm:$0xff]
  %v4135 = vld [vmem:[%s2 + $0x8e4] sm:$0xf]
  %v4136 = vld [vmem:[%s2 + $0x8e8] sm:$0xff]
  %v4137 = vld [vmem:[%s2 + $0x8f0] sm:$0xf]
  %v4138 = vld [vmem:[%s2 + $0x8f4] sm:$0xff]
  %v4139 = vld [vmem:[%s2 + $0x8fc] sm:$0xf]
  %v4140 = vld [vmem:[%s2 + $0x900] sm:$0xff]
  %v4141 = vld [vmem:[%s2 + $0x908] sm:$0xf]
  %v4142 = vld [vmem:[%s2 + $0x90c] sm:$0xff]
  %v4143 = vld [vmem:[%s2 + $0x914] sm:$0xf]
  %v4144 = vld [vmem:[%s2 + $0x918] sm:$0xff]
  %v4145 = vld [vmem:[%s2 + $0x920] sm:$0xf]
  %v4146 = vld [vmem:[%s2 + $0x924] sm:$0xff]
  %v4147 = vld [vmem:[%s2 + $0x92c] sm:$0xf]
  %v4148 = vld [vmem:[%s2 + $0x930] sm:$0xff]
  %v4149 = vld [vmem:[%s2 + $0x938] sm:$0xf]
  %v4150 = vld [vmem:[%s2 + $0x93c] sm:$0xff]
  %v4151 = vld [vmem:[%s2 + $0x944] sm:$0xf]
  %v4152 = vld [vmem:[%s2 + $0x948] sm:$0xff]
  %v4153 = vld [vmem:[%s2 + $0x950] sm:$0xf]
  %v4154 = vld [vmem:[%s2 + $0x954] sm:$0xff]
  %v4155 = vld [vmem:[%s2 + $0x95c] sm:$0xf]
  %v4156 = vld [vmem:[%s2 + $0x960] sm:$0xff]
  %v4157 = vld [vmem:[%s2 + $0x968] sm:$0xf]
  %v4158 = vld [vmem:[%s2 + $0x96c] sm:$0xff]
  %v4159 = vld [vmem:[%s2 + $0x974] sm:$0xf]
  %v4160 = vld [vmem:[%s2 + $0x978] sm:$0xff]
  %v4161 = vld [vmem:[%s2 + $0x980] sm:$0xf]
  %v4162 = vld [vmem:[%s2 + $0x984] sm:$0xff]
  %v4163 = vld [vmem:[%s2 + $0x98c] sm:$0xf]
  %v4164 = vld [vmem:[%s2 + $0x990] sm:$0xff]
  %v4165 = vld [vmem:[%s2 + $0x998] sm:$0xf]
  %v4166 = vld [vmem:[%s2 + $0x99c] sm:$0xff]
  %v4167 = vld [vmem:[%s2 + $0x9a4] sm:$0xf]
  %v4168 = vld [vmem:[%s2 + $0x9a8] sm:$0xff]
  %v4169 = vld [vmem:[%s2 + $0x9b0] sm:$0xf]
  %v4170 = vld [vmem:[%s2 + $0x9b4] sm:$0xff]
  %v4171 = vld [vmem:[%s2 + $0x9bc] sm:$0xf]
  %v4172 = vld [vmem:[%s2 + $0x9c0] sm:$0xff]
  %v4173 = vld [vmem:[%s2 + $0x9c8] sm:$0xf]
  %v4174 = vld [vmem:[%s2 + $0x9cc] sm:$0xff]
  %v4175 = vld [vmem:[%s2 + $0x9d4] sm:$0xf]
  %v4176 = vld [vmem:[%s2 + $0x9d8] sm:$0xff]
  %v4177 = vld [vmem:[%s2 + $0x9e0] sm:$0xf]
  %v4178 = vld [vmem:[%s2 + $0x9e4] sm:$0xff]
  %v4179 = vld [vmem:[%s2 + $0x9ec] sm:$0xf]
  %v4180 = vld [vmem:[%s2 + $0x9f0] sm:$0xff]
  %v4181 = vld [vmem:[%s2 + $0x9f8] sm:$0xf]
  %v4182 = vld [vmem:[%s2 + $0x9fc] sm:$0xff]
  %v4183 = vld [vmem:[%s2 + $0xa04] sm:$0xf]
  %v4184 = vld [vmem:[%s2 + $0xa08] sm:$0xff]
  %v4185 = vld [vmem:[%s2 + $0xa10] sm:$0xf]
  %v4186 = vld [vmem:[%s2 + $0xa14] sm:$0xff]
  %v4187 = vld [vmem:[%s2 + $0xa1c] sm:$0xf]
  %v4188 = vld [vmem:[%s2 + $0xa20] sm:$0xff]
  %v4189 = vld [vmem:[%s2 + $0xa28] sm:$0xf]
  %v4190 = vld [vmem:[%s2 + $0xa2c] sm:$0xff]
  %v4191 = vld [vmem:[%s2 + $0xa34] sm:$0xf]
  %v4192 = vld [vmem:[%s2 + $0xa38] sm:$0xff]
  %v4193 = vld [vmem:[%s2 + $0xa40] sm:$0xf]
  %v4194 = vld [vmem:[%s2 + $0xa44] sm:$0xff]
  %v4195 = vld [vmem:[%s2 + $0xa4c] sm:$0xf]
  %v4196 = vld [vmem:[%s2 + $0xa50] sm:$0xff]
  %v4197 = vld [vmem:[%s2 + $0xa58] sm:$0xf]
  %v4198 = vld [vmem:[%s2 + $0xa5c] sm:$0xff]
  %v4199 = vld [vmem:[%s2 + $0xa64] sm:$0xf]
  %v4200 = vld [vmem:[%s2 + $0xa68] sm:$0xff]
  %v4201 = vld [vmem:[%s2 + $0xa70] sm:$0xf]
  %v4202 = vld [vmem:[%s2 + $0xa74] sm:$0xff]
  %v4203 = vld [vmem:[%s2 + $0xa7c] sm:$0xf]
  %v4204 = vld [vmem:[%s2 + $0xa80] sm:$0xff]
  %v4205 = vld [vmem:[%s2 + $0xa88] sm:$0xf]
  %v4206 = vld [vmem:[%s2 + $0xa8c] sm:$0xff]
  %v4207 = vld [vmem:[%s2 + $0xa94] sm:$0xf]
  %v4208 = vld [vmem:[%s2 + $0xa98] sm:$0xff]
  %v4209 = vld [vmem:[%s2 + $0xaa0] sm:$0xf]
  %v4210 = vld [vmem:[%s2 + $0xaa4] sm:$0xff]
  %v4211 = vld [vmem:[%s2 + $0xaac] sm:$0xf]
  %v4212 = vld [vmem:[%s2 + $0xab0] sm:$0xff]
  %v4213 = vld [vmem:[%s2 + $0xab8] sm:$0xf]
  %v4214 = vld [vmem:[%s2 + $0xabc] sm:$0xff]
  %v4215 = vld [vmem:[%s2 + $0xac4] sm:$0xf]
  %v4216 = vld [vmem:[%s2 + $0xac8] sm:$0xff]
  %v4217 = vld [vmem:[%s2 + $0xad0] sm:$0xf]
  %v4218 = vld [vmem:[%s2 + $0xad4] sm:$0xff]
  %v4219 = vld [vmem:[%s2 + $0xadc] sm:$0xf]
  %v4220 = vld [vmem:[%s2 + $0xae0] sm:$0xff]
  %v4221 = vld [vmem:[%s2 + $0xae8] sm:$0xf]
  %v4222 = vld [vmem:[%s2 + $0xaec] sm:$0xff]
  %v4223 = vld [vmem:[%s2 + $0xaf4] sm:$0xf]
  %v4224 = vld [vmem:[%s2 + $0xaf8] sm:$0xff]
  %v4225 = vld [vmem:[%s2 + $0xb00] sm:$0xf]
  %v4226 = vld [vmem:[%s2 + $0xb04] sm:$0xff]
  %v4227 = vld [vmem:[%s2 + $0xb0c] sm:$0xf]
  %v4228 = vld [vmem:[%s2 + $0xb10] sm:$0xff]
  %v4229 = vld [vmem:[%s2 + $0xb18] sm:$0xf]
  %v4230 = vld [vmem:[%s2 + $0xb1c] sm:$0xff]
  %v4231 = vld [vmem:[%s2 + $0xb24] sm:$0xf]
  %v4232 = vld [vmem:[%s2 + $0xb28] sm:$0xff]
  %v4233 = vld [vmem:[%s2 + $0xb30] sm:$0xf]
  %v4234 = vld [vmem:[%s2 + $0xb34] sm:$0xff]
  %v4235 = vld [vmem:[%s2 + $0xb3c] sm:$0xf]
  %v4236 = vld [vmem:[%s2 + $0xb40] sm:$0xff]
  %v4237 = vld [vmem:[%s2 + $0xb48] sm:$0xf]
  %v4238 = vld [vmem:[%s2 + $0xb4c] sm:$0xff]
  %v4239 = vld [vmem:[%s2 + $0xb54] sm:$0xf]
  %v4240 = vld [vmem:[%s2 + $0xb58] sm:$0xff]
  %v4241 = vld [vmem:[%s2 + $0xb60] sm:$0xf]
  %v4242 = vld [vmem:[%s2 + $0xb64] sm:$0xff]
  %v4243 = vld [vmem:[%s2 + $0xb6c] sm:$0xf]
  %v4244 = vld [vmem:[%s2 + $0xb70] sm:$0xff]
  %v4245 = vld [vmem:[%s2 + $0xb78] sm:$0xf]
  %v4246 = vld [vmem:[%s2 + $0xb7c] sm:$0xff]
  %v4247 = vld [vmem:[%s2 + $0xb84] sm:$0xf]
  %v4248 = vld [vmem:[%s2 + $0xb88] sm:$0xff]
  %v4249 = vld [vmem:[%s2 + $0xb90] sm:$0xf]
  %v4250 = vld [vmem:[%s2 + $0xb94] sm:$0xff]
  %v4251 = vld [vmem:[%s2 + $0xb9c] sm:$0xf]
  %v4252 = vld [vmem:[%s2 + $0xba0] sm:$0xff]
  %v4253 = vld [vmem:[%s2 + $0xba8] sm:$0xf]
  %v4254 = vld [vmem:[%s2 + $0xbac] sm:$0xff]
  %v4255 = vld [vmem:[%s2 + $0xbb4] sm:$0xf]
  %v4256 = vld [vmem:[%s2 + $0xbb8] sm:$0xff]
  %v4257 = vld [vmem:[%s2 + $0xbc0] sm:$0xf]
  %v4258 = vld [vmem:[%s2 + $0xbc4] sm:$0xff]
  %v4259 = vld [vmem:[%s2 + $0xbcc] sm:$0xf]
  %v4260 = vld [vmem:[%s2 + $0xbd0] sm:$0xff]
  %v4261 = vld [vmem:[%s2 + $0xbd8] sm:$0xf]
  %v4262 = vld [vmem:[%s2 + $0xbdc] sm:$0xff]
  %v4263 = vld [vmem:[%s2 + $0xbe4] sm:$0xf]
  %v4264 = vld [vmem:[%s2 + $0xbe8] sm:$0xff]
  %v4265 = vld [vmem:[%s2 + $0xbf0] sm:$0xf]
  %v4266 = vld [vmem:[%s2 + $0xbf4] sm:$0xff]
  %v4267 = vld [vmem:[%s2 + $0xbfc] sm:$0xf]
  %v4268 = vld [vmem:[%s2 + $0xc00] sm:$0xff]
  %v4269 = vld [vmem:[%s2 + $0xc08] sm:$0xf]
  %v4270 = vld [vmem:[%s2 + $0xc0c] sm:$0xff]
  %v4271 = vld [vmem:[%s2 + $0xc14] sm:$0xf]
  %4272 = vxpose.xlu0.c.b16.start [1/8] %v3627, 128
  %4273 = vxpose.xlu0.c.b16.cont [2/8] %v3628, 128
  %4274 = vxpose.xlu0.c.b16.cont [3/8] %v3629, 128
  %4275 = vxpose.xlu0.c.b16.cont [4/8] %v3630, 128
  %4276 = vxpose.xlu0.c.b16.cont [5/8] %v3631, 128
  %4277 = vxpose.xlu0.c.b16.cont [6/8] %v3632, 128
  %4278 = vxpose.xlu0.c.b16.cont [7/8] %v3633, 128
  %4279 = vxpose.xlu0.c.b16.end [8/8] %v3634, 128
  %v4280 = vpop.trf.xlu0
  %v4281 = vpop.trf.xlu0
  %v4282 = vpop.trf.xlu0
  %v4283 = vpop.trf.xlu0
  %v4284 = vpop.trf.xlu0
  %v4285 = vpop.trf.xlu0
  %v4286 = vpop.trf.xlu0
  %v4287 = vpop.trf.xlu0
  %4288 = vxpose.xlu0.c.b16.start [1/8] %v3635, 128
  %4289 = vxpose.xlu0.c.b16.cont [2/8] %v3636, 128
  %4290 = vxpose.xlu0.c.b16.cont [3/8] %v3637, 128
  %4291 = vxpose.xlu0.c.b16.cont [4/8] %v3638, 128
  %4292 = vxpose.xlu0.c.b16.cont [5/8] %v3639, 128
  %4293 = vxpose.xlu0.c.b16.cont [6/8] %v3640, 128
  %4294 = vxpose.xlu0.c.b16.cont [7/8] %v3641, 128
  %4295 = vxpose.xlu0.c.b16.end [8/8] %v3642, 128
  %v4296 = vpop.trf.xlu0
  %v4297 = vpop.trf.xlu0
  %v4298 = vpop.trf.xlu0
  %v4299 = vpop.trf.xlu0
  %v4300 = vpop.trf.xlu0
  %v4301 = vpop.trf.xlu0
  %v4302 = vpop.trf.xlu0
  %v4303 = vpop.trf.xlu0
  %4304 = vxpose.xlu0.c.b16.start [1/8] %v3643, 128
  %4305 = vxpose.xlu0.c.b16.cont [2/8] %v3644, 128
  %4306 = vxpose.xlu0.c.b16.cont [3/8] %v3645, 128
  %4307 = vxpose.xlu0.c.b16.cont [4/8] %v3646, 128
  %4308 = vxpose.xlu0.c.b16.cont [5/8] %v3647, 128
  %4309 = vxpose.xlu0.c.b16.cont [6/8] %v3648, 128
  %4310 = vxpose.xlu0.c.b16.cont [7/8] %v3649, 128
  %4311 = vxpose.xlu0.c.b16.end [8/8] %v3650, 128
  %v4312 = vpop.trf.xlu0
  %v4313 = vpop.trf.xlu0
  %v4314 = vpop.trf.xlu0
  %v4315 = vpop.trf.xlu0
  %v4316 = vpop.trf.xlu0
  %v4317 = vpop.trf.xlu0
  %v4318 = vpop.trf.xlu0
  %v4319 = vpop.trf.xlu0
  %4320 = vxpose.xlu0.c.b16.start [1/8] %v3651, 128
  %4321 = vxpose.xlu0.c.b16.cont [2/8] %v3652, 128
  %4322 = vxpose.xlu0.c.b16.cont [3/8] %v3653, 128
  %4323 = vxpose.xlu0.c.b16.cont [4/8] %v3654, 128
  %4324 = vxpose.xlu0.c.b16.cont [5/8] %v3655, 128
  %4325 = vxpose.xlu0.c.b16.cont [6/8] %v3656, 128
  %4326 = vxpose.xlu0.c.b16.cont [7/8] %v3657, 128
  %4327 = vxpose.xlu0.c.b16.end [8/8] %v3658, 128
  %v4328 = vpop.trf.xlu0
  %v4329 = vpop.trf.xlu0
  %v4330 = vpop.trf.xlu0
  %v4331 = vpop.trf.xlu0
  %v4332 = vpop.trf.xlu0
  %v4333 = vpop.trf.xlu0
  %v4334 = vpop.trf.xlu0
  %v4335 = vpop.trf.xlu0
  %4336 = vxpose.xlu0.c.b16.start [1/8] %v3659, 128
  %4337 = vxpose.xlu0.c.b16.cont [2/8] %v3660, 128
  %4338 = vxpose.xlu0.c.b16.cont [3/8] %v3661, 128
  %4339 = vxpose.xlu0.c.b16.cont [4/8] %v3662, 128
  %4340 = vxpose.xlu0.c.b16.cont [5/8] %v3663, 128
  %4341 = vxpose.xlu0.c.b16.cont [6/8] %v3664, 128
  %4342 = vxpose.xlu0.c.b16.cont [7/8] %v3665, 128
  %4343 = vxpose.xlu0.c.b16.end [8/8] %v3666, 128
  %v4344 = vpop.trf.xlu0
  %v4345 = vpop.trf.xlu0
  %v4346 = vpop.trf.xlu0
  %v4347 = vpop.trf.xlu0
  %v4348 = vpop.trf.xlu0
  %v4349 = vpop.trf.xlu0
  %v4350 = vpop.trf.xlu0
  %v4351 = vpop.trf.xlu0
  %4352 = vxpose.xlu0.c.b16.start [1/8] %v3667, 128
  %4353 = vxpose.xlu0.c.b16.cont [2/8] %v3668, 128
  %4354 = vxpose.xlu0.c.b16.cont [3/8] %v3669, 128
  %4355 = vxpose.xlu0.c.b16.cont [4/8] %v3670, 128
  %4356 = vxpose.xlu0.c.b16.cont [5/8] %v3671, 128
  %4357 = vxpose.xlu0.c.b16.cont [6/8] %v3672, 128
  %4358 = vxpose.xlu0.c.b16.cont [7/8] %v3673, 128
  %4359 = vxpose.xlu0.c.b16.end [8/8] %v3674, 128
  %v4360 = vpop.trf.xlu0
  %v4361 = vpop.trf.xlu0
  %v4362 = vpop.trf.xlu0
  %v4363 = vpop.trf.xlu0
  %v4364 = vpop.trf.xlu0
  %v4365 = vpop.trf.xlu0
  %v4366 = vpop.trf.xlu0
  %v4367 = vpop.trf.xlu0
  %4368 = vxpose.xlu0.c.b16.start [1/8] %v3675, 128
  %4369 = vxpose.xlu0.c.b16.cont [2/8] %v3676, 128
  %4370 = vxpose.xlu0.c.b16.cont [3/8] %v3677, 128
  %4371 = vxpose.xlu0.c.b16.cont [4/8] %v3678, 128
  %4372 = vxpose.xlu0.c.b16.cont [5/8] %v3679, 128
  %4373 = vxpose.xlu0.c.b16.cont [6/8] %v3680, 128
  %4374 = vxpose.xlu0.c.b16.cont [7/8] %v3681, 128
  %4375 = vxpose.xlu0.c.b16.end [8/8] %v3682, 128
  %v4376 = vpop.trf.xlu0
  %v4377 = vpop.trf.xlu0
  %v4378 = vpop.trf.xlu0
  %v4379 = vpop.trf.xlu0
  %v4380 = vpop.trf.xlu0
  %v4381 = vpop.trf.xlu0
  %v4382 = vpop.trf.xlu0
  %v4383 = vpop.trf.xlu0
  %4384 = vxpose.xlu0.c.b16.start [1/8] %v3683, 128
  %4385 = vxpose.xlu0.c.b16.cont [2/8] %v3684, 128
  %4386 = vxpose.xlu0.c.b16.cont [3/8] %v3685, 128
  %4387 = vxpose.xlu0.c.b16.cont [4/8] %v3686, 128
  %4388 = vxpose.xlu0.c.b16.cont [5/8] %v3687, 128
  %4389 = vxpose.xlu0.c.b16.cont [6/8] %v3688, 128
  %4390 = vxpose.xlu0.c.b16.cont [7/8] %v3689, 128
  %4391 = vxpose.xlu0.c.b16.end [8/8] %v3690, 128
  %v4392 = vpop.trf.xlu0
  %v4393 = vpop.trf.xlu0
  %v4394 = vpop.trf.xlu0
  %v4395 = vpop.trf.xlu0
  %v4396 = vpop.trf.xlu0
  %v4397 = vpop.trf.xlu0
  %v4398 = vpop.trf.xlu0
  %v4399 = vpop.trf.xlu0
  %4400 = vxpose.xlu0.c.b16.start [1/8] %v3691, 128
  %4401 = vxpose.xlu0.c.b16.cont [2/8] %v3692, 128
  %4402 = vxpose.xlu0.c.b16.cont [3/8] %v3693, 128
  %4403 = vxpose.xlu0.c.b16.cont [4/8] %v3694, 128
  %4404 = vxpose.xlu0.c.b16.cont [5/8] %v3695, 128
  %4405 = vxpose.xlu0.c.b16.cont [6/8] %v3696, 128
  %4406 = vxpose.xlu0.c.b16.cont [7/8] %v3697, 128
  %4407 = vxpose.xlu0.c.b16.end [8/8] %v3698, 128
  %v4408 = vpop.trf.xlu0
  %v4409 = vpop.trf.xlu0
  %v4410 = vpop.trf.xlu0
  %v4411 = vpop.trf.xlu0
  %v4412 = vpop.trf.xlu0
  %v4413 = vpop.trf.xlu0
  %v4414 = vpop.trf.xlu0
  %v4415 = vpop.trf.xlu0
  %4416 = vxpose.xlu0.c.b16.start [1/8] %v3699, 128
  %4417 = vxpose.xlu0.c.b16.cont [2/8] %v3700, 128
  %4418 = vxpose.xlu0.c.b16.cont [3/8] %v3701, 128
  %4419 = vxpose.xlu0.c.b16.cont [4/8] %v3702, 128
  %4420 = vxpose.xlu0.c.b16.cont [5/8] %v3703, 128
  %4421 = vxpose.xlu0.c.b16.cont [6/8] %v3704, 128
  %4422 = vxpose.xlu0.c.b16.cont [7/8] %v3705, 128
  %4423 = vxpose.xlu0.c.b16.end [8/8] %v3706, 128
  %v4424 = vpop.trf.xlu0
  %v4425 = vpop.trf.xlu0
  %v4426 = vpop.trf.xlu0
  %v4427 = vpop.trf.xlu0
  %v4428 = vpop.trf.xlu0
  %v4429 = vpop.trf.xlu0
  %v4430 = vpop.trf.xlu0
  %v4431 = vpop.trf.xlu0
  %4432 = vxpose.xlu0.c.b16.start [1/8] %v3707, 128
  %4433 = vxpose.xlu0.c.b16.cont [2/8] %v3708, 128
  %4434 = vxpose.xlu0.c.b16.cont [3/8] %v3709, 128
  %4435 = vxpose.xlu0.c.b16.cont [4/8] %v3710, 128
  %4436 = vxpose.xlu0.c.b16.cont [5/8] %v3711, 128
  %4437 = vxpose.xlu0.c.b16.cont [6/8] %v3712, 128
  %4438 = vxpose.xlu0.c.b16.cont [7/8] %v3713, 128
  %4439 = vxpose.xlu0.c.b16.end [8/8] %v3714, 128
  %v4440 = vpop.trf.xlu0
  %v4441 = vpop.trf.xlu0
  %v4442 = vpop.trf.xlu0
  %v4443 = vpop.trf.xlu0
  %v4444 = vpop.trf.xlu0
  %v4445 = vpop.trf.xlu0
  %v4446 = vpop.trf.xlu0
  %v4447 = vpop.trf.xlu0
  %4448 = vxpose.xlu0.c.b16.start [1/8] %v3715, 128
  %4449 = vxpose.xlu0.c.b16.cont [2/8] %v3716, 128
  %4450 = vxpose.xlu0.c.b16.cont [3/8] %v3717, 128
  %4451 = vxpose.xlu0.c.b16.cont [4/8] %v3718, 128
  %4452 = vxpose.xlu0.c.b16.cont [5/8] %v3719, 128
  %4453 = vxpose.xlu0.c.b16.cont [6/8] %v3720, 128
  %4454 = vxpose.xlu0.c.b16.cont [7/8] %v3721, 128
  %4455 = vxpose.xlu0.c.b16.end [8/8] %v3722, 128
  %v4456 = vpop.trf.xlu0
  %v4457 = vpop.trf.xlu0
  %v4458 = vpop.trf.xlu0
  %v4459 = vpop.trf.xlu0
  %v4460 = vpop.trf.xlu0
  %v4461 = vpop.trf.xlu0
  %v4462 = vpop.trf.xlu0
  %v4463 = vpop.trf.xlu0
  %4464 = vxpose.xlu0.c.b16.start [1/8] %v3723, 128
  %4465 = vxpose.xlu0.c.b16.cont [2/8] %v3724, 128
  %4466 = vxpose.xlu0.c.b16.cont [3/8] %v3725, 128
  %4467 = vxpose.xlu0.c.b16.cont [4/8] %v3726, 128
  %4468 = vxpose.xlu0.c.b16.cont [5/8] %v3727, 128
  %4469 = vxpose.xlu0.c.b16.cont [6/8] %v3728, 128
  %4470 = vxpose.xlu0.c.b16.cont [7/8] %v3729, 128
  %4471 = vxpose.xlu0.c.b16.end [8/8] %v3730, 128
  %v4472 = vpop.trf.xlu0
  %v4473 = vpop.trf.xlu0
  %v4474 = vpop.trf.xlu0
  %v4475 = vpop.trf.xlu0
  %v4476 = vpop.trf.xlu0
  %v4477 = vpop.trf.xlu0
  %v4478 = vpop.trf.xlu0
  %v4479 = vpop.trf.xlu0
  %4480 = vxpose.xlu0.c.b16.start [1/8] %v3731, 128
  %4481 = vxpose.xlu0.c.b16.cont [2/8] %v3732, 128
  %4482 = vxpose.xlu0.c.b16.cont [3/8] %v3733, 128
  %4483 = vxpose.xlu0.c.b16.cont [4/8] %v3734, 128
  %4484 = vxpose.xlu0.c.b16.cont [5/8] %v3735, 128
  %4485 = vxpose.xlu0.c.b16.cont [6/8] %v3736, 128
  %4486 = vxpose.xlu0.c.b16.cont [7/8] %v3737, 128
  %4487 = vxpose.xlu0.c.b16.end [8/8] %v3738, 128
  %v4488 = vpop.trf.xlu0
  %v4489 = vpop.trf.xlu0
  %v4490 = vpop.trf.xlu0
  %v4491 = vpop.trf.xlu0
  %v4492 = vpop.trf.xlu0
  %v4493 = vpop.trf.xlu0
  %v4494 = vpop.trf.xlu0
  %v4495 = vpop.trf.xlu0
  %4496 = vxpose.xlu0.c.b16.start [1/8] %v3739, 128
  %4497 = vxpose.xlu0.c.b16.cont [2/8] %v3740, 128
  %4498 = vxpose.xlu0.c.b16.cont [3/8] %v3741, 128
  %4499 = vxpose.xlu0.c.b16.cont [4/8] %v3742, 128
  %4500 = vxpose.xlu0.c.b16.cont [5/8] %v3743, 128
  %4501 = vxpose.xlu0.c.b16.cont [6/8] %v3744, 128
  %4502 = vxpose.xlu0.c.b16.cont [7/8] %v3745, 128
  %4503 = vxpose.xlu0.c.b16.end [8/8] %v3746, 128
  %v4504 = vpop.trf.xlu0
  %v4505 = vpop.trf.xlu0
  %v4506 = vpop.trf.xlu0
  %v4507 = vpop.trf.xlu0
  %v4508 = vpop.trf.xlu0
  %v4509 = vpop.trf.xlu0
  %v4510 = vpop.trf.xlu0
  %v4511 = vpop.trf.xlu0
  %4512 = vxpose.xlu0.c.b16.start [1/8] %v3747, 128
  %4513 = vxpose.xlu0.c.b16.cont [2/8] %v3748, 128
  %4514 = vxpose.xlu0.c.b16.cont [3/8] %v3749, 128
  %4515 = vxpose.xlu0.c.b16.cont [4/8] %v3750, 128
  %4516 = vxpose.xlu0.c.b16.cont [5/8] %v3751, 128
  %4517 = vxpose.xlu0.c.b16.cont [6/8] %v3752, 128
  %4518 = vxpose.xlu0.c.b16.cont [7/8] %v3753, 128
  %4519 = vxpose.xlu0.c.b16.end [8/8] %v3754, 128
  %v4520 = vpop.trf.xlu0
  %v4521 = vpop.trf.xlu0
  %v4522 = vpop.trf.xlu0
  %v4523 = vpop.trf.xlu0
  %v4524 = vpop.trf.xlu0
  %v4525 = vpop.trf.xlu0
  %v4526 = vpop.trf.xlu0
  %v4527 = vpop.trf.xlu0
  %4528 = vxpose.xlu0.c.b16.start [1/8] %v3755, 128
  %4529 = vxpose.xlu0.c.b16.cont [2/8] 0, 128
  %4530 = vxpose.xlu0.c.b16.cont [3/8] 0, 128
  %4531 = vxpose.xlu0.c.b16.cont [4/8] 0, 128
  %4532 = vxpose.xlu0.c.b16.cont [5/8] 0, 128
  %4533 = vxpose.xlu0.c.b16.cont [6/8] 0, 128
  %4534 = vxpose.xlu0.c.b16.cont [7/8] 0, 128
  %4535 = vxpose.xlu0.c.b16.end [8/8] 0, 128
  %v4536 = vpop.trf.xlu0
  %v4537 = vpop.trf.xlu0
  %v4538 = vpop.trf.xlu0
  %v4539 = vpop.trf.xlu0
  %v4540 = vpop.trf.xlu0
  %v4541 = vpop.trf.xlu0
  %v4542 = vpop.trf.xlu0
  %v4543 = vpop.trf.xlu0
  %v5060 = vunpack.c.l.b16 %v3756
  %v5061 = vunpack.c.h.b16 %v3756
  %v5062 = vunpack.c.l.b16 %v3757
  %v5063 = vunpack.c.l.b16 %v3758
  %v5064 = vunpack.c.h.b16 %v3758
  %v5065 = vunpack.c.l.b16 %v3759
  %v5066 = vunpack.c.l.b16 %v3760
  %v5067 = vunpack.c.h.b16 %v3760
  %v5068 = vunpack.c.l.b16 %v3761
  %v5069 = vunpack.c.l.b16 %v3762
  %v5070 = vunpack.c.h.b16 %v3762
  %v5071 = vunpack.c.l.b16 %v3763
  %v5072 = vunpack.c.l.b16 %v3764
  %v5073 = vunpack.c.h.b16 %v3764
  %v5074 = vunpack.c.l.b16 %v3765
  %v5075 = vunpack.c.l.b16 %v3766
  %v5076 = vunpack.c.h.b16 %v3766
  %v5077 = vunpack.c.l.b16 %v3767
  %v5078 = vunpack.c.l.b16 %v3768
  %v5079 = vunpack.c.h.b16 %v3768
  %v5080 = vunpack.c.l.b16 %v3769
  %v5081 = vunpack.c.l.b16 %v3770
  %v5082 = vunpack.c.h.b16 %v3770
  %v5083 = vunpack.c.l.b16 %v3771
  %v5084 = vunpack.c.l.b16 %v3772
  %v5085 = vunpack.c.h.b16 %v3772
  %v5086 = vunpack.c.l.b16 %v3773
  %v5087 = vunpack.c.l.b16 %v3774
  %v5088 = vunpack.c.h.b16 %v3774
  %v5089 = vunpack.c.l.b16 %v3775
  %v5090 = vunpack.c.l.b16 %v3776
  %v5091 = vunpack.c.h.b16 %v3776
  %v5092 = vunpack.c.l.b16 %v3777
  %v5093 = vunpack.c.l.b16 %v3778
  %v5094 = vunpack.c.h.b16 %v3778
  %v5095 = vunpack.c.l.b16 %v3779
  %v5096 = vunpack.c.l.b16 %v3780
  %v5097 = vunpack.c.h.b16 %v3780
  %v5098 = vunpack.c.l.b16 %v3781
  %v5099 = vunpack.c.l.b16 %v3782
  %v5100 = vunpack.c.h.b16 %v3782
  %v5101 = vunpack.c.l.b16 %v3783
  %v5102 = vunpack.c.l.b16 %v3784
  %v5103 = vunpack.c.h.b16 %v3784
  %v5104 = vunpack.c.l.b16 %v3785
  %v5105 = vunpack.c.l.b16 %v3786
  %v5106 = vunpack.c.h.b16 %v3786
  %v5107 = vunpack.c.l.b16 %v3787
  %v5108 = vunpack.c.l.b16 %v3788
  %v5109 = vunpack.c.h.b16 %v3788
  %v5110 = vunpack.c.l.b16 %v3789
  %v5111 = vunpack.c.l.b16 %v3790
  %v5112 = vunpack.c.h.b16 %v3790
  %v5113 = vunpack.c.l.b16 %v3791
  %v5114 = vunpack.c.l.b16 %v3792
  %v5115 = vunpack.c.h.b16 %v3792
  %v5116 = vunpack.c.l.b16 %v3793
  %v5117 = vunpack.c.l.b16 %v3794
  %v5118 = vunpack.c.h.b16 %v3794
  %v5119 = vunpack.c.l.b16 %v3795
  %v5120 = vunpack.c.l.b16 %v3796
  %v5121 = vunpack.c.h.b16 %v3796
  %v5122 = vunpack.c.l.b16 %v3797
  %v5123 = vunpack.c.l.b16 %v3798
  %v5124 = vunpack.c.h.b16 %v3798
  %v5125 = vunpack.c.l.b16 %v3799
  %v5126 = vunpack.c.l.b16 %v3800
  %v5127 = vunpack.c.h.b16 %v3800
  %v5128 = vunpack.c.l.b16 %v3801
  %v5129 = vunpack.c.l.b16 %v3802
  %v5130 = vunpack.c.h.b16 %v3802
  %v5131 = vunpack.c.l.b16 %v3803
  %v5132 = vunpack.c.l.b16 %v3804
  %v5133 = vunpack.c.h.b16 %v3804
  %v5134 = vunpack.c.l.b16 %v3805
  %v5135 = vunpack.c.l.b16 %v3806
  %v5136 = vunpack.c.h.b16 %v3806
  %v5137 = vunpack.c.l.b16 %v3807
  %v5138 = vunpack.c.l.b16 %v3808
  %v5139 = vunpack.c.h.b16 %v3808
  %v5140 = vunpack.c.l.b16 %v3809
  %v5141 = vunpack.c.l.b16 %v3810
  %v5142 = vunpack.c.h.b16 %v3810
  %v5143 = vunpack.c.l.b16 %v3811
  %v5144 = vunpack.c.l.b16 %v3812
  %v5145 = vunpack.c.h.b16 %v3812
  %v5146 = vunpack.c.l.b16 %v3813
  %v5147 = vunpack.c.l.b16 %v3814
  %v5148 = vunpack.c.h.b16 %v3814
  %v5149 = vunpack.c.l.b16 %v3815
  %v5150 = vunpack.c.l.b16 %v3816
  %v5151 = vunpack.c.h.b16 %v3816
  %v5152 = vunpack.c.l.b16 %v3817
  %v5153 = vunpack.c.l.b16 %v3818
  %v5154 = vunpack.c.h.b16 %v3818
  %v5155 = vunpack.c.l.b16 %v3819
  %v5156 = vunpack.c.l.b16 %v3820
  %v5157 = vunpack.c.h.b16 %v3820
  %v5158 = vunpack.c.l.b16 %v3821
  %v5159 = vunpack.c.l.b16 %v3822
  %v5160 = vunpack.c.h.b16 %v3822
  %v5161 = vunpack.c.l.b16 %v3823
  %v5162 = vunpack.c.l.b16 %v3824
  %v5163 = vunpack.c.h.b16 %v3824
  %v5164 = vunpack.c.l.b16 %v3825
  %v5165 = vunpack.c.l.b16 %v3826
  %v5166 = vunpack.c.h.b16 %v3826
  %v5167 = vunpack.c.l.b16 %v3827
  %v5168 = vunpack.c.l.b16 %v3828
  %v5169 = vunpack.c.h.b16 %v3828
  %v5170 = vunpack.c.l.b16 %v3829
  %v5171 = vunpack.c.l.b16 %v3830
  %v5172 = vunpack.c.h.b16 %v3830
  %v5173 = vunpack.c.l.b16 %v3831
  %v5174 = vunpack.c.l.b16 %v3832
  %v5175 = vunpack.c.h.b16 %v3832
  %v5176 = vunpack.c.l.b16 %v3833
  %v5177 = vunpack.c.l.b16 %v3834
  %v5178 = vunpack.c.h.b16 %v3834
  %v5179 = vunpack.c.l.b16 %v3835
  %v5180 = vunpack.c.l.b16 %v3836
  %v5181 = vunpack.c.h.b16 %v3836
  %v5182 = vunpack.c.l.b16 %v3837
  %v5183 = vunpack.c.l.b16 %v3838
  %v5184 = vunpack.c.h.b16 %v3838
  %v5185 = vunpack.c.l.b16 %v3839
  %v5186 = vunpack.c.l.b16 %v3840
  %v5187 = vunpack.c.h.b16 %v3840
  %v5188 = vunpack.c.l.b16 %v3841
  %v5189 = vunpack.c.l.b16 %v3842
  %v5190 = vunpack.c.h.b16 %v3842
  %v5191 = vunpack.c.l.b16 %v3843
  %v5192 = vunpack.c.l.b16 %v3844
  %v5193 = vunpack.c.h.b16 %v3844
  %v5194 = vunpack.c.l.b16 %v3845
  %v5195 = vunpack.c.l.b16 %v3846
  %v5196 = vunpack.c.h.b16 %v3846
  %v5197 = vunpack.c.l.b16 %v3847
  %v5198 = vunpack.c.l.b16 %v3848
  %v5199 = vunpack.c.h.b16 %v3848
  %v5200 = vunpack.c.l.b16 %v3849
  %v5201 = vunpack.c.l.b16 %v3850
  %v5202 = vunpack.c.h.b16 %v3850
  %v5203 = vunpack.c.l.b16 %v3851
  %v5204 = vunpack.c.l.b16 %v3852
  %v5205 = vunpack.c.h.b16 %v3852
  %v5206 = vunpack.c.l.b16 %v3853
  %v5207 = vunpack.c.l.b16 %v3854
  %v5208 = vunpack.c.h.b16 %v3854
  %v5209 = vunpack.c.l.b16 %v3855
  %v5210 = vunpack.c.l.b16 %v3856
  %v5211 = vunpack.c.h.b16 %v3856
  %v5212 = vunpack.c.l.b16 %v3857
  %v5213 = vunpack.c.l.b16 %v3858
  %v5214 = vunpack.c.h.b16 %v3858
  %v5215 = vunpack.c.l.b16 %v3859
  %v5216 = vunpack.c.l.b16 %v3860
  %v5217 = vunpack.c.h.b16 %v3860
  %v5218 = vunpack.c.l.b16 %v3861
  %v5219 = vunpack.c.l.b16 %v3862
  %v5220 = vunpack.c.h.b16 %v3862
  %v5221 = vunpack.c.l.b16 %v3863
  %v5222 = vunpack.c.l.b16 %v3864
  %v5223 = vunpack.c.h.b16 %v3864
  %v5224 = vunpack.c.l.b16 %v3865
  %v5225 = vunpack.c.l.b16 %v3866
  %v5226 = vunpack.c.h.b16 %v3866
  %v5227 = vunpack.c.l.b16 %v3867
  %v5228 = vunpack.c.l.b16 %v3868
  %v5229 = vunpack.c.h.b16 %v3868
  %v5230 = vunpack.c.l.b16 %v3869
  %v5231 = vunpack.c.l.b16 %v3870
  %v5232 = vunpack.c.h.b16 %v3870
  %v5233 = vunpack.c.l.b16 %v3871
  %v5234 = vunpack.c.l.b16 %v3872
  %v5235 = vunpack.c.h.b16 %v3872
  %v5236 = vunpack.c.l.b16 %v3873
  %v5237 = vunpack.c.l.b16 %v3874
  %v5238 = vunpack.c.h.b16 %v3874
  %v5239 = vunpack.c.l.b16 %v3875
  %v5240 = vunpack.c.l.b16 %v3876
  %v5241 = vunpack.c.h.b16 %v3876
  %v5242 = vunpack.c.l.b16 %v3877
  %v5243 = vunpack.c.l.b16 %v3878
  %v5244 = vunpack.c.h.b16 %v3878
  %v5245 = vunpack.c.l.b16 %v3879
  %v5246 = vunpack.c.l.b16 %v3880
  %v5247 = vunpack.c.h.b16 %v3880
  %v5248 = vunpack.c.l.b16 %v3881
  %v5249 = vunpack.c.l.b16 %v3882
  %v5250 = vunpack.c.h.b16 %v3882
  %v5251 = vunpack.c.l.b16 %v3883
  %v5252 = vunpack.c.l.b16 %v3884
  %v5253 = vunpack.c.h.b16 %v3884
  %v5254 = vunpack.c.l.b16 %v3885
  %v5255 = vunpack.c.l.b16 %v3886
  %v5256 = vunpack.c.h.b16 %v3886
  %v5257 = vunpack.c.l.b16 %v3887
  %v5258 = vunpack.c.l.b16 %v3888
  %v5259 = vunpack.c.h.b16 %v3888
  %v5260 = vunpack.c.l.b16 %v3889
  %v5261 = vunpack.c.l.b16 %v3890
  %v5262 = vunpack.c.h.b16 %v3890
  %v5263 = vunpack.c.l.b16 %v3891
  %v5264 = vunpack.c.l.b16 %v3892
  %v5265 = vunpack.c.h.b16 %v3892
  %v5266 = vunpack.c.l.b16 %v3893
  %v5267 = vunpack.c.l.b16 %v3894
  %v5268 = vunpack.c.h.b16 %v3894
  %v5269 = vunpack.c.l.b16 %v3895
  %v5270 = vunpack.c.l.b16 %v3896
  %v5271 = vunpack.c.h.b16 %v3896
  %v5272 = vunpack.c.l.b16 %v3897
  %v5273 = vunpack.c.l.b16 %v3898
  %v5274 = vunpack.c.h.b16 %v3898
  %v5275 = vunpack.c.l.b16 %v3899
  %v5276 = vunpack.c.l.b16 %v3900
  %v5277 = vunpack.c.h.b16 %v3900
  %v5278 = vunpack.c.l.b16 %v3901
  %v5279 = vunpack.c.l.b16 %v3902
  %v5280 = vunpack.c.h.b16 %v3902
  %v5281 = vunpack.c.l.b16 %v3903
  %v5282 = vunpack.c.l.b16 %v3904
  %v5283 = vunpack.c.h.b16 %v3904
  %v5284 = vunpack.c.l.b16 %v3905
  %v5285 = vunpack.c.l.b16 %v3906
  %v5286 = vunpack.c.h.b16 %v3906
  %v5287 = vunpack.c.l.b16 %v3907
  %v5288 = vunpack.c.l.b16 %v3908
  %v5289 = vunpack.c.h.b16 %v3908
  %v5290 = vunpack.c.l.b16 %v3909
  %v5291 = vunpack.c.l.b16 %v3910
  %v5292 = vunpack.c.h.b16 %v3910
  %v5293 = vunpack.c.l.b16 %v3911
  %v5294 = vunpack.c.l.b16 %v3912
  %v5295 = vunpack.c.h.b16 %v3912
  %v5296 = vunpack.c.l.b16 %v3913
  %v5297 = vunpack.c.l.b16 %v3914
  %v5298 = vunpack.c.h.b16 %v3914
  %v5299 = vunpack.c.l.b16 %v3915
  %v5300 = vunpack.c.l.b16 %v3916
  %v5301 = vunpack.c.h.b16 %v3916
  %v5302 = vunpack.c.l.b16 %v3917
  %v5303 = vunpack.c.l.b16 %v3918
  %v5304 = vunpack.c.h.b16 %v3918
  %v5305 = vunpack.c.l.b16 %v3919
  %v5306 = vunpack.c.l.b16 %v3920
  %v5307 = vunpack.c.h.b16 %v3920
  %v5308 = vunpack.c.l.b16 %v3921
  %v5309 = vunpack.c.l.b16 %v3922
  %v5310 = vunpack.c.h.b16 %v3922
  %v5311 = vunpack.c.l.b16 %v3923
  %v5312 = vunpack.c.l.b16 %v3924
  %v5313 = vunpack.c.h.b16 %v3924
  %v5314 = vunpack.c.l.b16 %v3925
  %v5315 = vunpack.c.l.b16 %v3926
  %v5316 = vunpack.c.h.b16 %v3926
  %v5317 = vunpack.c.l.b16 %v3927
  %v5318 = vunpack.c.l.b16 %v3928
  %v5319 = vunpack.c.h.b16 %v3928
  %v5320 = vunpack.c.l.b16 %v3929
  %v5321 = vunpack.c.l.b16 %v3930
  %v5322 = vunpack.c.h.b16 %v3930
  %v5323 = vunpack.c.l.b16 %v3931
  %v5324 = vunpack.c.l.b16 %v3932
  %v5325 = vunpack.c.h.b16 %v3932
  %v5326 = vunpack.c.l.b16 %v3933
  %v5327 = vunpack.c.l.b16 %v3934
  %v5328 = vunpack.c.h.b16 %v3934
  %v5329 = vunpack.c.l.b16 %v3935
  %v5330 = vunpack.c.l.b16 %v3936
  %v5331 = vunpack.c.h.b16 %v3936
  %v5332 = vunpack.c.l.b16 %v3937
  %v5333 = vunpack.c.l.b16 %v3938
  %v5334 = vunpack.c.h.b16 %v3938
  %v5335 = vunpack.c.l.b16 %v3939
  %v5336 = vunpack.c.l.b16 %v3940
  %v5337 = vunpack.c.h.b16 %v3940
  %v5338 = vunpack.c.l.b16 %v3941
  %v5339 = vunpack.c.l.b16 %v3942
  %v5340 = vunpack.c.h.b16 %v3942
  %v5341 = vunpack.c.l.b16 %v3943
  %v5342 = vunpack.c.l.b16 %v3944
  %v5343 = vunpack.c.h.b16 %v3944
  %v5344 = vunpack.c.l.b16 %v3945
  %v5345 = vunpack.c.l.b16 %v3946
  %v5346 = vunpack.c.h.b16 %v3946
  %v5347 = vunpack.c.l.b16 %v3947
  %v5348 = vunpack.c.l.b16 %v3948
  %v5349 = vunpack.c.h.b16 %v3948
  %v5350 = vunpack.c.l.b16 %v3949
  %v5351 = vunpack.c.l.b16 %v3950
  %v5352 = vunpack.c.h.b16 %v3950
  %v5353 = vunpack.c.l.b16 %v3951
  %v5354 = vunpack.c.l.b16 %v3952
  %v5355 = vunpack.c.h.b16 %v3952
  %v5356 = vunpack.c.l.b16 %v3953
  %v5357 = vunpack.c.l.b16 %v3954
  %v5358 = vunpack.c.h.b16 %v3954
  %v5359 = vunpack.c.l.b16 %v3955
  %v5360 = vunpack.c.l.b16 %v3956
  %v5361 = vunpack.c.h.b16 %v3956
  %v5362 = vunpack.c.l.b16 %v3957
  %v5363 = vunpack.c.l.b16 %v3958
  %v5364 = vunpack.c.h.b16 %v3958
  %v5365 = vunpack.c.l.b16 %v3959
  %v5366 = vunpack.c.l.b16 %v3960
  %v5367 = vunpack.c.h.b16 %v3960
  %v5368 = vunpack.c.l.b16 %v3961
  %v5369 = vunpack.c.l.b16 %v3962
  %v5370 = vunpack.c.h.b16 %v3962
  %v5371 = vunpack.c.l.b16 %v3963
  %v5372 = vunpack.c.l.b16 %v3964
  %v5373 = vunpack.c.h.b16 %v3964
  %v5374 = vunpack.c.l.b16 %v3965
  %v5375 = vunpack.c.l.b16 %v3966
  %v5376 = vunpack.c.h.b16 %v3966
  %v5377 = vunpack.c.l.b16 %v3967
  %v5378 = vunpack.c.l.b16 %v3968
  %v5379 = vunpack.c.h.b16 %v3968
  %v5380 = vunpack.c.l.b16 %v3969
  %v5381 = vunpack.c.l.b16 %v3970
  %v5382 = vunpack.c.h.b16 %v3970
  %v5383 = vunpack.c.l.b16 %v3971
  %v5384 = vunpack.c.l.b16 %v3972
  %v5385 = vunpack.c.h.b16 %v3972
  %v5386 = vunpack.c.l.b16 %v3973
  %v5387 = vunpack.c.l.b16 %v3974
  %v5388 = vunpack.c.h.b16 %v3974
  %v5389 = vunpack.c.l.b16 %v3975
  %v5390 = vunpack.c.l.b16 %v3976
  %v5391 = vunpack.c.h.b16 %v3976
  %v5392 = vunpack.c.l.b16 %v3977
  %v5393 = vunpack.c.l.b16 %v3978
  %v5394 = vunpack.c.h.b16 %v3978
  %v5395 = vunpack.c.l.b16 %v3979
  %v5396 = vunpack.c.l.b16 %v3980
  %v5397 = vunpack.c.h.b16 %v3980
  %v5398 = vunpack.c.l.b16 %v3981
  %v5399 = vunpack.c.l.b16 %v3982
  %v5400 = vunpack.c.h.b16 %v3982
  %v5401 = vunpack.c.l.b16 %v3983
  %v5402 = vunpack.c.l.b16 %v3984
  %v5403 = vunpack.c.h.b16 %v3984
  %v5404 = vunpack.c.l.b16 %v3985
  %v5405 = vunpack.c.l.b16 %v3986
  %v5406 = vunpack.c.h.b16 %v3986
  %v5407 = vunpack.c.l.b16 %v3987
  %v5408 = vunpack.c.l.b16 %v3988
  %v5409 = vunpack.c.h.b16 %v3988
  %v5410 = vunpack.c.l.b16 %v3989
  %v5411 = vunpack.c.l.b16 %v3990
  %v5412 = vunpack.c.h.b16 %v3990
  %v5413 = vunpack.c.l.b16 %v3991
  %v5414 = vunpack.c.l.b16 %v3992
  %v5415 = vunpack.c.h.b16 %v3992
  %v5416 = vunpack.c.l.b16 %v3993
  %v5417 = vunpack.c.l.b16 %v3994
  %v5418 = vunpack.c.h.b16 %v3994
  %v5419 = vunpack.c.l.b16 %v3995
  %v5420 = vunpack.c.l.b16 %v3996
  %v5421 = vunpack.c.h.b16 %v3996
  %v5422 = vunpack.c.l.b16 %v3997
  %v5423 = vunpack.c.l.b16 %v3998
  %v5424 = vunpack.c.h.b16 %v3998
  %v5425 = vunpack.c.l.b16 %v3999
  %v5426 = vunpack.c.l.b16 %v4000
  %v5427 = vunpack.c.h.b16 %v4000
  %v5428 = vunpack.c.l.b16 %v4001
  %v5429 = vunpack.c.l.b16 %v4002
  %v5430 = vunpack.c.h.b16 %v4002
  %v5431 = vunpack.c.l.b16 %v4003
  %v5432 = vunpack.c.l.b16 %v4004
  %v5433 = vunpack.c.h.b16 %v4004
  %v5434 = vunpack.c.l.b16 %v4005
  %v5435 = vunpack.c.l.b16 %v4006
  %v5436 = vunpack.c.h.b16 %v4006
  %v5437 = vunpack.c.l.b16 %v4007
  %v5438 = vunpack.c.l.b16 %v4008
  %v5439 = vunpack.c.h.b16 %v4008
  %v5440 = vunpack.c.l.b16 %v4009
  %v5441 = vunpack.c.l.b16 %v4010
  %v5442 = vunpack.c.h.b16 %v4010
  %v5443 = vunpack.c.l.b16 %v4011
  %v5444 = vunpack.c.l.b16 %v4012
  %v5445 = vunpack.c.h.b16 %v4012
  %v5446 = vunpack.c.l.b16 %v4013
  %v5447 = vunpack.c.l.b16 %v4014
  %v5448 = vunpack.c.h.b16 %v4014
  %v5449 = vunpack.c.l.b16 %v4015
  %v5450 = vunpack.c.l.b16 %v4016
  %v5451 = vunpack.c.h.b16 %v4016
  %v5452 = vunpack.c.l.b16 %v4017
  %v5453 = vunpack.c.l.b16 %v4018
  %v5454 = vunpack.c.h.b16 %v4018
  %v5455 = vunpack.c.l.b16 %v4019
  %v5456 = vunpack.c.l.b16 %v4020
  %v5457 = vunpack.c.h.b16 %v4020
  %v5458 = vunpack.c.l.b16 %v4021
  %v5459 = vunpack.c.l.b16 %v4022
  %v5460 = vunpack.c.h.b16 %v4022
  %v5461 = vunpack.c.l.b16 %v4023
  %v5462 = vunpack.c.l.b16 %v4024
  %v5463 = vunpack.c.h.b16 %v4024
  %v5464 = vunpack.c.l.b16 %v4025
  %v5465 = vunpack.c.l.b16 %v4026
  %v5466 = vunpack.c.h.b16 %v4026
  %v5467 = vunpack.c.l.b16 %v4027
  %v5468 = vunpack.c.l.b16 %v4028
  %v5469 = vunpack.c.h.b16 %v4028
  %v5470 = vunpack.c.l.b16 %v4029
  %v5471 = vunpack.c.l.b16 %v4030
  %v5472 = vunpack.c.h.b16 %v4030
  %v5473 = vunpack.c.l.b16 %v4031
  %v5474 = vunpack.c.l.b16 %v4032
  %v5475 = vunpack.c.h.b16 %v4032
  %v5476 = vunpack.c.l.b16 %v4033
  %v5477 = vunpack.c.l.b16 %v4034
  %v5478 = vunpack.c.h.b16 %v4034
  %v5479 = vunpack.c.l.b16 %v4035
  %v5480 = vunpack.c.l.b16 %v4036
  %v5481 = vunpack.c.h.b16 %v4036
  %v5482 = vunpack.c.l.b16 %v4037
  %v5483 = vunpack.c.l.b16 %v4038
  %v5484 = vunpack.c.h.b16 %v4038
  %v5485 = vunpack.c.l.b16 %v4039
  %v5486 = vunpack.c.l.b16 %v4040
  %v5487 = vunpack.c.h.b16 %v4040
  %v5488 = vunpack.c.l.b16 %v4041
  %v5489 = vunpack.c.l.b16 %v4042
  %v5490 = vunpack.c.h.b16 %v4042
  %v5491 = vunpack.c.l.b16 %v4043
  %v5492 = vunpack.c.l.b16 %v4044
  %v5493 = vunpack.c.h.b16 %v4044
  %v5494 = vunpack.c.l.b16 %v4045
  %v5495 = vunpack.c.l.b16 %v4046
  %v5496 = vunpack.c.h.b16 %v4046
  %v5497 = vunpack.c.l.b16 %v4047
  %v5498 = vunpack.c.l.b16 %v4048
  %v5499 = vunpack.c.h.b16 %v4048
  %v5500 = vunpack.c.l.b16 %v4049
  %v5501 = vunpack.c.l.b16 %v4050
  %v5502 = vunpack.c.h.b16 %v4050
  %v5503 = vunpack.c.l.b16 %v4051
  %v5504 = vunpack.c.l.b16 %v4052
  %v5505 = vunpack.c.h.b16 %v4052
  %v5506 = vunpack.c.l.b16 %v4053
  %v5507 = vunpack.c.l.b16 %v4054
  %v5508 = vunpack.c.h.b16 %v4054
  %v5509 = vunpack.c.l.b16 %v4055
  %v5510 = vunpack.c.l.b16 %v4056
  %v5511 = vunpack.c.h.b16 %v4056
  %v5512 = vunpack.c.l.b16 %v4057
  %v5513 = vunpack.c.l.b16 %v4058
  %v5514 = vunpack.c.h.b16 %v4058
  %v5515 = vunpack.c.l.b16 %v4059
  %v5516 = vunpack.c.l.b16 %v4060
  %v5517 = vunpack.c.h.b16 %v4060
  %v5518 = vunpack.c.l.b16 %v4061
  %v5519 = vunpack.c.l.b16 %v4062
  %v5520 = vunpack.c.h.b16 %v4062
  %v5521 = vunpack.c.l.b16 %v4063
  %v5522 = vunpack.c.l.b16 %v4064
  %v5523 = vunpack.c.h.b16 %v4064
  %v5524 = vunpack.c.l.b16 %v4065
  %v5525 = vunpack.c.l.b16 %v4066
  %v5526 = vunpack.c.h.b16 %v4066
  %v5527 = vunpack.c.l.b16 %v4067
  %v5528 = vunpack.c.l.b16 %v4068
  %v5529 = vunpack.c.h.b16 %v4068
  %v5530 = vunpack.c.l.b16 %v4069
  %v5531 = vunpack.c.l.b16 %v4070
  %v5532 = vunpack.c.h.b16 %v4070
  %v5533 = vunpack.c.l.b16 %v4071
  %v5534 = vunpack.c.l.b16 %v4072
  %v5535 = vunpack.c.h.b16 %v4072
  %v5536 = vunpack.c.l.b16 %v4073
  %v5537 = vunpack.c.l.b16 %v4074
  %v5538 = vunpack.c.h.b16 %v4074
  %v5539 = vunpack.c.l.b16 %v4075
  %v5540 = vunpack.c.l.b16 %v4076
  %v5541 = vunpack.c.h.b16 %v4076
  %v5542 = vunpack.c.l.b16 %v4077
  %v5543 = vunpack.c.l.b16 %v4078
  %v5544 = vunpack.c.h.b16 %v4078
  %v5545 = vunpack.c.l.b16 %v4079
  %v5546 = vunpack.c.l.b16 %v4080
  %v5547 = vunpack.c.h.b16 %v4080
  %v5548 = vunpack.c.l.b16 %v4081
  %v5549 = vunpack.c.l.b16 %v4082
  %v5550 = vunpack.c.h.b16 %v4082
  %v5551 = vunpack.c.l.b16 %v4083
  %v5552 = vunpack.c.l.b16 %v4084
  %v5553 = vunpack.c.h.b16 %v4084
  %v5554 = vunpack.c.l.b16 %v4085
  %v5555 = vunpack.c.l.b16 %v4086
  %v5556 = vunpack.c.h.b16 %v4086
  %v5557 = vunpack.c.l.b16 %v4087
  %v5558 = vunpack.c.l.b16 %v4088
  %v5559 = vunpack.c.h.b16 %v4088
  %v5560 = vunpack.c.l.b16 %v4089
  %v5561 = vunpack.c.l.b16 %v4090
  %v5562 = vunpack.c.h.b16 %v4090
  %v5563 = vunpack.c.l.b16 %v4091
  %v5564 = vunpack.c.l.b16 %v4092
  %v5565 = vunpack.c.h.b16 %v4092
  %v5566 = vunpack.c.l.b16 %v4093
  %v5567 = vunpack.c.l.b16 %v4094
  %v5568 = vunpack.c.h.b16 %v4094
  %v5569 = vunpack.c.l.b16 %v4095
  %v5570 = vunpack.c.l.b16 %v4096
  %v5571 = vunpack.c.h.b16 %v4096
  %v5572 = vunpack.c.l.b16 %v4097
  %v5573 = vunpack.c.l.b16 %v4098
  %v5574 = vunpack.c.h.b16 %v4098
  %v5575 = vunpack.c.l.b16 %v4099
  %v5576 = vunpack.c.l.b16 %v4100
  %v5577 = vunpack.c.h.b16 %v4100
  %v5578 = vunpack.c.l.b16 %v4101
  %v5579 = vunpack.c.l.b16 %v4102
  %v5580 = vunpack.c.h.b16 %v4102
  %v5581 = vunpack.c.l.b16 %v4103
  %v5582 = vunpack.c.l.b16 %v4104
  %v5583 = vunpack.c.h.b16 %v4104
  %v5584 = vunpack.c.l.b16 %v4105
  %v5585 = vunpack.c.l.b16 %v4106
  %v5586 = vunpack.c.h.b16 %v4106
  %v5587 = vunpack.c.l.b16 %v4107
  %v5588 = vunpack.c.l.b16 %v4108
  %v5589 = vunpack.c.h.b16 %v4108
  %v5590 = vunpack.c.l.b16 %v4109
  %v5591 = vunpack.c.l.b16 %v4110
  %v5592 = vunpack.c.h.b16 %v4110
  %v5593 = vunpack.c.l.b16 %v4111
  %v5594 = vunpack.c.l.b16 %v4112
  %v5595 = vunpack.c.h.b16 %v4112
  %v5596 = vunpack.c.l.b16 %v4113
  %v5597 = vunpack.c.l.b16 %v4114
  %v5598 = vunpack.c.h.b16 %v4114
  %v5599 = vunpack.c.l.b16 %v4115
  %v5600 = vunpack.c.l.b16 %v4116
  %v5601 = vunpack.c.h.b16 %v4116
  %v5602 = vunpack.c.l.b16 %v4117
  %v5603 = vunpack.c.l.b16 %v4118
  %v5604 = vunpack.c.h.b16 %v4118
  %v5605 = vunpack.c.l.b16 %v4119
  %v5606 = vunpack.c.l.b16 %v4120
  %v5607 = vunpack.c.h.b16 %v4120
  %v5608 = vunpack.c.l.b16 %v4121
  %v5609 = vunpack.c.l.b16 %v4122
  %v5610 = vunpack.c.h.b16 %v4122
  %v5611 = vunpack.c.l.b16 %v4123
  %v5612 = vunpack.c.l.b16 %v4124
  %v5613 = vunpack.c.h.b16 %v4124
  %v5614 = vunpack.c.l.b16 %v4125
  %v5615 = vunpack.c.l.b16 %v4126
  %v5616 = vunpack.c.h.b16 %v4126
  %v5617 = vunpack.c.l.b16 %v4127
  %v5618 = vunpack.c.l.b16 %v4128
  %v5619 = vunpack.c.h.b16 %v4128
  %v5620 = vunpack.c.l.b16 %v4129
  %v5621 = vunpack.c.l.b16 %v4130
  %v5622 = vunpack.c.h.b16 %v4130
  %v5623 = vunpack.c.l.b16 %v4131
  %v5624 = vunpack.c.l.b16 %v4132
  %v5625 = vunpack.c.h.b16 %v4132
  %v5626 = vunpack.c.l.b16 %v4133
  %v5627 = vunpack.c.l.b16 %v4134
  %v5628 = vunpack.c.h.b16 %v4134
  %v5629 = vunpack.c.l.b16 %v4135
  %v5630 = vunpack.c.l.b16 %v4136
  %v5631 = vunpack.c.h.b16 %v4136
  %v5632 = vunpack.c.l.b16 %v4137
  %v5633 = vunpack.c.l.b16 %v4138
  %v5634 = vunpack.c.h.b16 %v4138
  %v5635 = vunpack.c.l.b16 %v4139
  %v5636 = vunpack.c.l.b16 %v4140
  %v5637 = vunpack.c.h.b16 %v4140
  %v5638 = vunpack.c.l.b16 %v4141
  %v5639 = vunpack.c.l.b16 %v4142
  %v5640 = vunpack.c.h.b16 %v4142
  %v5641 = vunpack.c.l.b16 %v4143
  %v5642 = vunpack.c.l.b16 %v4144
  %v5643 = vunpack.c.h.b16 %v4144
  %v5644 = vunpack.c.l.b16 %v4145
  %v5645 = vunpack.c.l.b16 %v4146
  %v5646 = vunpack.c.h.b16 %v4146
  %v5647 = vunpack.c.l.b16 %v4147
  %v5648 = vunpack.c.l.b16 %v4148
  %v5649 = vunpack.c.h.b16 %v4148
  %v5650 = vunpack.c.l.b16 %v4149
  %v5651 = vunpack.c.l.b16 %v4150
  %v5652 = vunpack.c.h.b16 %v4150
  %v5653 = vunpack.c.l.b16 %v4151
  %v5654 = vunpack.c.l.b16 %v4152
  %v5655 = vunpack.c.h.b16 %v4152
  %v5656 = vunpack.c.l.b16 %v4153
  %v5657 = vunpack.c.l.b16 %v4154
  %v5658 = vunpack.c.h.b16 %v4154
  %v5659 = vunpack.c.l.b16 %v4155
  %v5660 = vunpack.c.l.b16 %v4156
  %v5661 = vunpack.c.h.b16 %v4156
  %v5662 = vunpack.c.l.b16 %v4157
  %v5663 = vunpack.c.l.b16 %v4158
  %v5664 = vunpack.c.h.b16 %v4158
  %v5665 = vunpack.c.l.b16 %v4159
  %v5666 = vunpack.c.l.b16 %v4160
  %v5667 = vunpack.c.h.b16 %v4160
  %v5668 = vunpack.c.l.b16 %v4161
  %v5669 = vunpack.c.l.b16 %v4162
  %v5670 = vunpack.c.h.b16 %v4162
  %v5671 = vunpack.c.l.b16 %v4163
  %v5672 = vunpack.c.l.b16 %v4164
  %v5673 = vunpack.c.h.b16 %v4164
  %v5674 = vunpack.c.l.b16 %v4165
  %v5675 = vunpack.c.l.b16 %v4166
  %v5676 = vunpack.c.h.b16 %v4166
  %v5677 = vunpack.c.l.b16 %v4167
  %v5678 = vunpack.c.l.b16 %v4168
  %v5679 = vunpack.c.h.b16 %v4168
  %v5680 = vunpack.c.l.b16 %v4169
  %v5681 = vunpack.c.l.b16 %v4170
  %v5682 = vunpack.c.h.b16 %v4170
  %v5683 = vunpack.c.l.b16 %v4171
  %v5684 = vunpack.c.l.b16 %v4172
  %v5685 = vunpack.c.h.b16 %v4172
  %v5686 = vunpack.c.l.b16 %v4173
  %v5687 = vunpack.c.l.b16 %v4174
  %v5688 = vunpack.c.h.b16 %v4174
  %v5689 = vunpack.c.l.b16 %v4175
  %v5690 = vunpack.c.l.b16 %v4176
  %v5691 = vunpack.c.h.b16 %v4176
  %v5692 = vunpack.c.l.b16 %v4177
  %v5693 = vunpack.c.l.b16 %v4178
  %v5694 = vunpack.c.h.b16 %v4178
  %v5695 = vunpack.c.l.b16 %v4179
  %v5696 = vunpack.c.l.b16 %v4180
  %v5697 = vunpack.c.h.b16 %v4180
  %v5698 = vunpack.c.l.b16 %v4181
  %v5699 = vunpack.c.l.b16 %v4182
  %v5700 = vunpack.c.h.b16 %v4182
  %v5701 = vunpack.c.l.b16 %v4183
  %v5702 = vunpack.c.l.b16 %v4184
  %v5703 = vunpack.c.h.b16 %v4184
  %v5704 = vunpack.c.l.b16 %v4185
  %v5705 = vunpack.c.l.b16 %v4186
  %v5706 = vunpack.c.h.b16 %v4186
  %v5707 = vunpack.c.l.b16 %v4187
  %v5708 = vunpack.c.l.b16 %v4188
  %v5709 = vunpack.c.h.b16 %v4188
  %v5710 = vunpack.c.l.b16 %v4189
  %v5711 = vunpack.c.l.b16 %v4190
  %v5712 = vunpack.c.h.b16 %v4190
  %v5713 = vunpack.c.l.b16 %v4191
  %v5714 = vunpack.c.l.b16 %v4192
  %v5715 = vunpack.c.h.b16 %v4192
  %v5716 = vunpack.c.l.b16 %v4193
  %v5717 = vunpack.c.l.b16 %v4194
  %v5718 = vunpack.c.h.b16 %v4194
  %v5719 = vunpack.c.l.b16 %v4195
  %v5720 = vunpack.c.l.b16 %v4196
  %v5721 = vunpack.c.h.b16 %v4196
  %v5722 = vunpack.c.l.b16 %v4197
  %v5723 = vunpack.c.l.b16 %v4198
  %v5724 = vunpack.c.h.b16 %v4198
  %v5725 = vunpack.c.l.b16 %v4199
  %v5726 = vunpack.c.l.b16 %v4200
  %v5727 = vunpack.c.h.b16 %v4200
  %v5728 = vunpack.c.l.b16 %v4201
  %v5729 = vunpack.c.l.b16 %v4202
  %v5730 = vunpack.c.h.b16 %v4202
  %v5731 = vunpack.c.l.b16 %v4203
  %v5732 = vunpack.c.l.b16 %v4204
  %v5733 = vunpack.c.h.b16 %v4204
  %v5734 = vunpack.c.l.b16 %v4205
  %v5735 = vunpack.c.l.b16 %v4206
  %v5736 = vunpack.c.h.b16 %v4206
  %v5737 = vunpack.c.l.b16 %v4207
  %v5738 = vunpack.c.l.b16 %v4208
  %v5739 = vunpack.c.h.b16 %v4208
  %v5740 = vunpack.c.l.b16 %v4209
  %v5741 = vunpack.c.l.b16 %v4210
  %v5742 = vunpack.c.h.b16 %v4210
  %v5743 = vunpack.c.l.b16 %v4211
  %v5744 = vunpack.c.l.b16 %v4212
  %v5745 = vunpack.c.h.b16 %v4212
  %v5746 = vunpack.c.l.b16 %v4213
  %v5747 = vunpack.c.l.b16 %v4214
  %v5748 = vunpack.c.h.b16 %v4214
  %v5749 = vunpack.c.l.b16 %v4215
  %v5750 = vunpack.c.l.b16 %v4216
  %v5751 = vunpack.c.h.b16 %v4216
  %v5752 = vunpack.c.l.b16 %v4217
  %v5753 = vunpack.c.l.b16 %v4218
  %v5754 = vunpack.c.h.b16 %v4218
  %v5755 = vunpack.c.l.b16 %v4219
  %v5756 = vunpack.c.l.b16 %v4220
  %v5757 = vunpack.c.h.b16 %v4220
  %v5758 = vunpack.c.l.b16 %v4221
  %v5759 = vunpack.c.l.b16 %v4222
  %v5760 = vunpack.c.h.b16 %v4222
  %v5761 = vunpack.c.l.b16 %v4223
  %v5762 = vunpack.c.l.b16 %v4224
  %v5763 = vunpack.c.h.b16 %v4224
  %v5764 = vunpack.c.l.b16 %v4225
  %v5765 = vunpack.c.l.b16 %v4226
  %v5766 = vunpack.c.h.b16 %v4226
  %v5767 = vunpack.c.l.b16 %v4227
  %v5768 = vunpack.c.l.b16 %v4228
  %v5769 = vunpack.c.h.b16 %v4228
  %v5770 = vunpack.c.l.b16 %v4229
  %v5771 = vunpack.c.l.b16 %v4230
  %v5772 = vunpack.c.h.b16 %v4230
  %v5773 = vunpack.c.l.b16 %v4231
  %v5774 = vunpack.c.l.b16 %v4232
  %v5775 = vunpack.c.h.b16 %v4232
  %v5776 = vunpack.c.l.b16 %v4233
  %v5777 = vunpack.c.l.b16 %v4234
  %v5778 = vunpack.c.h.b16 %v4234
  %v5779 = vunpack.c.l.b16 %v4235
  %v5780 = vunpack.c.l.b16 %v4236
  %v5781 = vunpack.c.h.b16 %v4236
  %v5782 = vunpack.c.l.b16 %v4237
  %v5783 = vunpack.c.l.b16 %v4238
  %v5784 = vunpack.c.h.b16 %v4238
  %v5785 = vunpack.c.l.b16 %v4239
  %v5786 = vunpack.c.l.b16 %v4240
  %v5787 = vunpack.c.h.b16 %v4240
  %v5788 = vunpack.c.l.b16 %v4241
  %v5789 = vunpack.c.l.b16 %v4242
  %v5790 = vunpack.c.h.b16 %v4242
  %v5791 = vunpack.c.l.b16 %v4243
  %v5792 = vunpack.c.l.b16 %v4244
  %v5793 = vunpack.c.h.b16 %v4244
  %v5794 = vunpack.c.l.b16 %v4245
  %v5795 = vunpack.c.l.b16 %v4246
  %v5796 = vunpack.c.h.b16 %v4246
  %v5797 = vunpack.c.l.b16 %v4247
  %v5798 = vunpack.c.l.b16 %v4248
  %v5799 = vunpack.c.h.b16 %v4248
  %v5800 = vunpack.c.l.b16 %v4249
  %v5801 = vunpack.c.l.b16 %v4250
  %v5802 = vunpack.c.h.b16 %v4250
  %v5803 = vunpack.c.l.b16 %v4251
  %v5804 = vunpack.c.l.b16 %v4252
  %v5805 = vunpack.c.h.b16 %v4252
  %v5806 = vunpack.c.l.b16 %v4253
  %v5807 = vunpack.c.l.b16 %v4254
  %v5808 = vunpack.c.h.b16 %v4254
  %v5809 = vunpack.c.l.b16 %v4255
  %v5810 = vunpack.c.l.b16 %v4256
  %v5811 = vunpack.c.h.b16 %v4256
  %v5812 = vunpack.c.l.b16 %v4257
  %v5813 = vunpack.c.l.b16 %v4258
  %v5814 = vunpack.c.h.b16 %v4258
  %v5815 = vunpack.c.l.b16 %v4259
  %v5816 = vunpack.c.l.b16 %v4260
  %v5817 = vunpack.c.h.b16 %v4260
  %v5818 = vunpack.c.l.b16 %v4261
  %v5819 = vunpack.c.l.b16 %v4262
  %v5820 = vunpack.c.h.b16 %v4262
  %v5821 = vunpack.c.l.b16 %v4263
  %v5822 = vunpack.c.l.b16 %v4264
  %v5823 = vunpack.c.h.b16 %v4264
  %v5824 = vunpack.c.l.b16 %v4265
  %v5825 = vunpack.c.l.b16 %v4266
  %v5826 = vunpack.c.h.b16 %v4266
  %v5827 = vunpack.c.l.b16 %v4267
  %v5828 = vunpack.c.l.b16 %v4268
  %v5829 = vunpack.c.h.b16 %v4268
  %v5830 = vunpack.c.l.b16 %v4269
  %v5831 = vunpack.c.l.b16 %v4270
  %v5832 = vunpack.c.h.b16 %v4270
  %v5833 = vunpack.c.l.b16 %v4271
  %v5834 = vpack.c.b16 %v5063, %v5060
  %v5835 = vpack.c.b16 %v5064, %v5061
  %v5836 = vpack.c.b16 %v5065, %v5062
  %v5837 = vpack.c.b16 %v5069, %v5066
  %v5838 = vpack.c.b16 %v5070, %v5067
  %v5839 = vpack.c.b16 %v5071, %v5068
  %v5840 = vpack.c.b16 %v5075, %v5072
  %v5841 = vpack.c.b16 %v5076, %v5073
  %v5842 = vpack.c.b16 %v5077, %v5074
  %v5843 = vpack.c.b16 %v5081, %v5078
  %v5844 = vpack.c.b16 %v5082, %v5079
  %v5845 = vpack.c.b16 %v5083, %v5080
  %v5846 = vpack.c.b16 %v5087, %v5084
  %v5847 = vpack.c.b16 %v5088, %v5085
  %v5848 = vpack.c.b16 %v5089, %v5086
  %v5849 = vpack.c.b16 %v5093, %v5090
  %v5850 = vpack.c.b16 %v5094, %v5091
  %v5851 = vpack.c.b16 %v5095, %v5092
  %v5852 = vpack.c.b16 %v5099, %v5096
  %v5853 = vpack.c.b16 %v5100, %v5097
  %v5854 = vpack.c.b16 %v5101, %v5098
  %v5855 = vpack.c.b16 %v5105, %v5102
  %v5856 = vpack.c.b16 %v5106, %v5103
  %v5857 = vpack.c.b16 %v5107, %v5104
  %v5858 = vpack.c.b16 %v5111, %v5108
  %v5859 = vpack.c.b16 %v5112, %v5109
  %v5860 = vpack.c.b16 %v5113, %v5110
  %v5861 = vpack.c.b16 %v5117, %v5114
  %v5862 = vpack.c.b16 %v5118, %v5115
  %v5863 = vpack.c.b16 %v5119, %v5116
  %v5864 = vpack.c.b16 %v5123, %v5120
  %v5865 = vpack.c.b16 %v5124, %v5121
  %v5866 = vpack.c.b16 %v5125, %v5122
  %v5867 = vpack.c.b16 %v5129, %v5126
  %v5868 = vpack.c.b16 %v5130, %v5127
  %v5869 = vpack.c.b16 %v5131, %v5128
  %v5870 = vpack.c.b16 %v5135, %v5132
  %v5871 = vpack.c.b16 %v5136, %v5133
  %v5872 = vpack.c.b16 %v5137, %v5134
  %v5873 = vpack.c.b16 %v5141, %v5138
  %v5874 = vpack.c.b16 %v5142, %v5139
  %v5875 = vpack.c.b16 %v5143, %v5140
  %v5876 = vpack.c.b16 %v5147, %v5144
  %v5877 = vpack.c.b16 %v5148, %v5145
  %v5878 = vpack.c.b16 %v5149, %v5146
  %v5879 = vpack.c.b16 %v5153, %v5150
  %v5880 = vpack.c.b16 %v5154, %v5151
  %v5881 = vpack.c.b16 %v5155, %v5152
  %v5882 = vpack.c.b16 %v5159, %v5156
  %v5883 = vpack.c.b16 %v5160, %v5157
  %v5884 = vpack.c.b16 %v5161, %v5158
  %v5885 = vpack.c.b16 %v5165, %v5162
  %v5886 = vpack.c.b16 %v5166, %v5163
  %v5887 = vpack.c.b16 %v5167, %v5164
  %v5888 = vpack.c.b16 %v5171, %v5168
  %v5889 = vpack.c.b16 %v5172, %v5169
  %v5890 = vpack.c.b16 %v5173, %v5170
  %v5891 = vpack.c.b16 %v5177, %v5174
  %v5892 = vpack.c.b16 %v5178, %v5175
  %v5893 = vpack.c.b16 %v5179, %v5176
  %v5894 = vpack.c.b16 %v5183, %v5180
  %v5895 = vpack.c.b16 %v5184, %v5181
  %v5896 = vpack.c.b16 %v5185, %v5182
  %v5897 = vpack.c.b16 %v5189, %v5186
  %v5898 = vpack.c.b16 %v5190, %v5187
  %v5899 = vpack.c.b16 %v5191, %v5188
  %v5900 = vpack.c.b16 %v5195, %v5192
  %v5901 = vpack.c.b16 %v5196, %v5193
  %v5902 = vpack.c.b16 %v5197, %v5194
  %v5903 = vpack.c.b16 %v5201, %v5198
  %v5904 = vpack.c.b16 %v5202, %v5199
  %v5905 = vpack.c.b16 %v5203, %v5200
  %v5906 = vpack.c.b16 %v5207, %v5204
  %v5907 = vpack.c.b16 %v5208, %v5205
  %v5908 = vpack.c.b16 %v5209, %v5206
  %v5909 = vpack.c.b16 %v5213, %v5210
  %v5910 = vpack.c.b16 %v5214, %v5211
  %v5911 = vpack.c.b16 %v5215, %v5212
  %v5912 = vpack.c.b16 %v5219, %v5216
  %v5913 = vpack.c.b16 %v5220, %v5217
  %v5914 = vpack.c.b16 %v5221, %v5218
  %v5915 = vpack.c.b16 %v5225, %v5222
  %v5916 = vpack.c.b16 %v5226, %v5223
  %v5917 = vpack.c.b16 %v5227, %v5224
  %v5918 = vpack.c.b16 %v5231, %v5228
  %v5919 = vpack.c.b16 %v5232, %v5229
  %v5920 = vpack.c.b16 %v5233, %v5230
  %v5921 = vpack.c.b16 %v5237, %v5234
  %v5922 = vpack.c.b16 %v5238, %v5235
  %v5923 = vpack.c.b16 %v5239, %v5236
  %v5924 = vpack.c.b16 %v5243, %v5240
  %v5925 = vpack.c.b16 %v5244, %v5241
  %v5926 = vpack.c.b16 %v5245, %v5242
  %v5927 = vpack.c.b16 %v5249, %v5246
  %v5928 = vpack.c.b16 %v5250, %v5247
  %v5929 = vpack.c.b16 %v5251, %v5248
  %v5930 = vpack.c.b16 %v5255, %v5252
  %v5931 = vpack.c.b16 %v5256, %v5253
  %v5932 = vpack.c.b16 %v5257, %v5254
  %v5933 = vpack.c.b16 %v5261, %v5258
  %v5934 = vpack.c.b16 %v5262, %v5259
  %v5935 = vpack.c.b16 %v5263, %v5260
  %v5936 = vpack.c.b16 %v5267, %v5264
  %v5937 = vpack.c.b16 %v5268, %v5265
  %v5938 = vpack.c.b16 %v5269, %v5266
  %v5939 = vpack.c.b16 %v5273, %v5270
  %v5940 = vpack.c.b16 %v5274, %v5271
  %v5941 = vpack.c.b16 %v5275, %v5272
  %v5942 = vpack.c.b16 %v5279, %v5276
  %v5943 = vpack.c.b16 %v5280, %v5277
  %v5944 = vpack.c.b16 %v5281, %v5278
  %v5945 = vpack.c.b16 %v5285, %v5282
  %v5946 = vpack.c.b16 %v5286, %v5283
  %v5947 = vpack.c.b16 %v5287, %v5284
  %v5948 = vpack.c.b16 %v5291, %v5288
  %v5949 = vpack.c.b16 %v5292, %v5289
  %v5950 = vpack.c.b16 %v5293, %v5290
  %v5951 = vpack.c.b16 %v5297, %v5294
  %v5952 = vpack.c.b16 %v5298, %v5295
  %v5953 = vpack.c.b16 %v5299, %v5296
  %v5954 = vpack.c.b16 %v5303, %v5300
  %v5955 = vpack.c.b16 %v5304, %v5301
  %v5956 = vpack.c.b16 %v5305, %v5302
  %v5957 = vpack.c.b16 %v5309, %v5306
  %v5958 = vpack.c.b16 %v5310, %v5307
  %v5959 = vpack.c.b16 %v5311, %v5308
  %v5960 = vpack.c.b16 %v5315, %v5312
  %v5961 = vpack.c.b16 %v5316, %v5313
  %v5962 = vpack.c.b16 %v5317, %v5314
  %v5963 = vpack.c.b16 %v5321, %v5318
  %v5964 = vpack.c.b16 %v5322, %v5319
  %v5965 = vpack.c.b16 %v5323, %v5320
  %v5966 = vpack.c.b16 %v5327, %v5324
  %v5967 = vpack.c.b16 %v5328, %v5325
  %v5968 = vpack.c.b16 %v5329, %v5326
  %v5969 = vpack.c.b16 %v5333, %v5330
  %v5970 = vpack.c.b16 %v5334, %v5331
  %v5971 = vpack.c.b16 %v5335, %v5332
  %v5972 = vpack.c.b16 %v5339, %v5336
  %v5973 = vpack.c.b16 %v5340, %v5337
  %v5974 = vpack.c.b16 %v5341, %v5338
  %v5975 = vpack.c.b16 %v5345, %v5342
  %v5976 = vpack.c.b16 %v5346, %v5343
  %v5977 = vpack.c.b16 %v5347, %v5344
  %v5978 = vpack.c.b16 %v5351, %v5348
  %v5979 = vpack.c.b16 %v5352, %v5349
  %v5980 = vpack.c.b16 %v5353, %v5350
  %v5981 = vpack.c.b16 %v5357, %v5354
  %v5982 = vpack.c.b16 %v5358, %v5355
  %v5983 = vpack.c.b16 %v5359, %v5356
  %v5984 = vpack.c.b16 %v5363, %v5360
  %v5985 = vpack.c.b16 %v5364, %v5361
  %v5986 = vpack.c.b16 %v5365, %v5362
  %v5987 = vpack.c.b16 %v5369, %v5366
  %v5988 = vpack.c.b16 %v5370, %v5367
  %v5989 = vpack.c.b16 %v5371, %v5368
  %v5990 = vpack.c.b16 %v5375, %v5372
  %v5991 = vpack.c.b16 %v5376, %v5373
  %v5992 = vpack.c.b16 %v5377, %v5374
  %v5993 = vpack.c.b16 %v5381, %v5378
  %v5994 = vpack.c.b16 %v5382, %v5379
  %v5995 = vpack.c.b16 %v5383, %v5380
  %v5996 = vpack.c.b16 %v5387, %v5384
  %v5997 = vpack.c.b16 %v5388, %v5385
  %v5998 = vpack.c.b16 %v5389, %v5386
  %v5999 = vpack.c.b16 %v5393, %v5390
  %v6000 = vpack.c.b16 %v5394, %v5391
  %v6001 = vpack.c.b16 %v5395, %v5392
  %v6002 = vpack.c.b16 %v5399, %v5396
  %v6003 = vpack.c.b16 %v5400, %v5397
  %v6004 = vpack.c.b16 %v5401, %v5398
  %v6005 = vpack.c.b16 %v5405, %v5402
  %v6006 = vpack.c.b16 %v5406, %v5403
  %v6007 = vpack.c.b16 %v5407, %v5404
  %v6008 = vpack.c.b16 %v5411, %v5408
  %v6009 = vpack.c.b16 %v5412, %v5409
  %v6010 = vpack.c.b16 %v5413, %v5410
  %v6011 = vpack.c.b16 %v5417, %v5414
  %v6012 = vpack.c.b16 %v5418, %v5415
  %v6013 = vpack.c.b16 %v5419, %v5416
  %v6014 = vpack.c.b16 %v5423, %v5420
  %v6015 = vpack.c.b16 %v5424, %v5421
  %v6016 = vpack.c.b16 %v5425, %v5422
  %v6017 = vpack.c.b16 %v5429, %v5426
  %v6018 = vpack.c.b16 %v5430, %v5427
  %v6019 = vpack.c.b16 %v5431, %v5428
  %v6020 = vpack.c.b16 %v5435, %v5432
  %v6021 = vpack.c.b16 %v5436, %v5433
  %v6022 = vpack.c.b16 %v5437, %v5434
  %v6023 = vpack.c.b16 %v5441, %v5438
  %v6024 = vpack.c.b16 %v5442, %v5439
  %v6025 = vpack.c.b16 %v5443, %v5440
  %v6026 = vpack.c.b16 %v5447, %v5444
  %v6027 = vpack.c.b16 %v5448, %v5445
  %v6028 = vpack.c.b16 %v5449, %v5446
  %v6029 = vpack.c.b16 %v5453, %v5450
  %v6030 = vpack.c.b16 %v5454, %v5451
  %v6031 = vpack.c.b16 %v5455, %v5452
  %v6032 = vpack.c.b16 %v5459, %v5456
  %v6033 = vpack.c.b16 %v5460, %v5457
  %v6034 = vpack.c.b16 %v5461, %v5458
  %v6035 = vpack.c.b16 %v5465, %v5462
  %v6036 = vpack.c.b16 %v5466, %v5463
  %v6037 = vpack.c.b16 %v5467, %v5464
  %v6038 = vpack.c.b16 %v5471, %v5468
  %v6039 = vpack.c.b16 %v5472, %v5469
  %v6040 = vpack.c.b16 %v5473, %v5470
  %v6041 = vpack.c.b16 %v5477, %v5474
  %v6042 = vpack.c.b16 %v5478, %v5475
  %v6043 = vpack.c.b16 %v5479, %v5476
  %v6044 = vpack.c.b16 %v5483, %v5480
  %v6045 = vpack.c.b16 %v5484, %v5481
  %v6046 = vpack.c.b16 %v5485, %v5482
  %v6047 = vpack.c.b16 %v5489, %v5486
  %v6048 = vpack.c.b16 %v5490, %v5487
  %v6049 = vpack.c.b16 %v5491, %v5488
  %v6050 = vpack.c.b16 %v5495, %v5492
  %v6051 = vpack.c.b16 %v5496, %v5493
  %v6052 = vpack.c.b16 %v5497, %v5494
  %v6053 = vpack.c.b16 %v5501, %v5498
  %v6054 = vpack.c.b16 %v5502, %v5499
  %v6055 = vpack.c.b16 %v5503, %v5500
  %v6056 = vpack.c.b16 %v5507, %v5504
  %v6057 = vpack.c.b16 %v5508, %v5505
  %v6058 = vpack.c.b16 %v5509, %v5506
  %v6059 = vpack.c.b16 %v5513, %v5510
  %v6060 = vpack.c.b16 %v5514, %v5511
  %v6061 = vpack.c.b16 %v5515, %v5512
  %v6062 = vpack.c.b16 %v5519, %v5516
  %v6063 = vpack.c.b16 %v5520, %v5517
  %v6064 = vpack.c.b16 %v5521, %v5518
  %v6065 = vpack.c.b16 %v5525, %v5522
  %v6066 = vpack.c.b16 %v5526, %v5523
  %v6067 = vpack.c.b16 %v5527, %v5524
  %v6068 = vpack.c.b16 %v5531, %v5528
  %v6069 = vpack.c.b16 %v5532, %v5529
  %v6070 = vpack.c.b16 %v5533, %v5530
  %v6071 = vpack.c.b16 %v5537, %v5534
  %v6072 = vpack.c.b16 %v5538, %v5535
  %v6073 = vpack.c.b16 %v5539, %v5536
  %v6074 = vpack.c.b16 %v5543, %v5540
  %v6075 = vpack.c.b16 %v5544, %v5541
  %v6076 = vpack.c.b16 %v5545, %v5542
  %v6077 = vpack.c.b16 %v5549, %v5546
  %v6078 = vpack.c.b16 %v5550, %v5547
  %v6079 = vpack.c.b16 %v5551, %v5548
  %v6080 = vpack.c.b16 %v5555, %v5552
  %v6081 = vpack.c.b16 %v5556, %v5553
  %v6082 = vpack.c.b16 %v5557, %v5554
  %v6083 = vpack.c.b16 %v5561, %v5558
  %v6084 = vpack.c.b16 %v5562, %v5559
  %v6085 = vpack.c.b16 %v5563, %v5560
  %v6086 = vpack.c.b16 %v5567, %v5564
  %v6087 = vpack.c.b16 %v5568, %v5565
  %v6088 = vpack.c.b16 %v5569, %v5566
  %v6089 = vpack.c.b16 %v5573, %v5570
  %v6090 = vpack.c.b16 %v5574, %v5571
  %v6091 = vpack.c.b16 %v5575, %v5572
  %v6092 = vpack.c.b16 %v5579, %v5576
  %v6093 = vpack.c.b16 %v5580, %v5577
  %v6094 = vpack.c.b16 %v5581, %v5578
  %v6095 = vpack.c.b16 %v5585, %v5582
  %v6096 = vpack.c.b16 %v5586, %v5583
  %v6097 = vpack.c.b16 %v5587, %v5584
  %v6098 = vpack.c.b16 %v5591, %v5588
  %v6099 = vpack.c.b16 %v5592, %v5589
  %v6100 = vpack.c.b16 %v5593, %v5590
  %v6101 = vpack.c.b16 %v5597, %v5594
  %v6102 = vpack.c.b16 %v5598, %v5595
  %v6103 = vpack.c.b16 %v5599, %v5596
  %v6104 = vpack.c.b16 %v5603, %v5600
  %v6105 = vpack.c.b16 %v5604, %v5601
  %v6106 = vpack.c.b16 %v5605, %v5602
  %v6107 = vpack.c.b16 %v5609, %v5606
  %v6108 = vpack.c.b16 %v5610, %v5607
  %v6109 = vpack.c.b16 %v5611, %v5608
  %v6110 = vpack.c.b16 %v5615, %v5612
  %v6111 = vpack.c.b16 %v5616, %v5613
  %v6112 = vpack.c.b16 %v5617, %v5614
  %v6113 = vpack.c.b16 %v5621, %v5618
  %v6114 = vpack.c.b16 %v5622, %v5619
  %v6115 = vpack.c.b16 %v5623, %v5620
  %v6116 = vpack.c.b16 %v5627, %v5624
  %v6117 = vpack.c.b16 %v5628, %v5625
  %v6118 = vpack.c.b16 %v5629, %v5626
  %v6119 = vpack.c.b16 %v5633, %v5630
  %v6120 = vpack.c.b16 %v5634, %v5631
  %v6121 = vpack.c.b16 %v5635, %v5632
  %v6122 = vpack.c.b16 %v5639, %v5636
  %v6123 = vpack.c.b16 %v5640, %v5637
  %v6124 = vpack.c.b16 %v5641, %v5638
  %v6125 = vpack.c.b16 %v5645, %v5642
  %v6126 = vpack.c.b16 %v5646, %v5643
  %v6127 = vpack.c.b16 %v5647, %v5644
  %v6128 = vpack.c.b16 %v5651, %v5648
  %v6129 = vpack.c.b16 %v5652, %v5649
  %v6130 = vpack.c.b16 %v5653, %v5650
  %v6131 = vpack.c.b16 %v5657, %v5654
  %v6132 = vpack.c.b16 %v5658, %v5655
  %v6133 = vpack.c.b16 %v5659, %v5656
  %v6134 = vpack.c.b16 %v5663, %v5660
  %v6135 = vpack.c.b16 %v5664, %v5661
  %v6136 = vpack.c.b16 %v5665, %v5662
  %v6137 = vpack.c.b16 %v5669, %v5666
  %v6138 = vpack.c.b16 %v5670, %v5667
  %v6139 = vpack.c.b16 %v5671, %v5668
  %v6140 = vpack.c.b16 %v5675, %v5672
  %v6141 = vpack.c.b16 %v5676, %v5673
  %v6142 = vpack.c.b16 %v5677, %v5674
  %v6143 = vpack.c.b16 %v5681, %v5678
  %v6144 = vpack.c.b16 %v5682, %v5679
  %v6145 = vpack.c.b16 %v5683, %v5680
  %v6146 = vpack.c.b16 %v5687, %v5684
  %v6147 = vpack.c.b16 %v5688, %v5685
  %v6148 = vpack.c.b16 %v5689, %v5686
  %v6149 = vpack.c.b16 %v5693, %v5690
  %v6150 = vpack.c.b16 %v5694, %v5691
  %v6151 = vpack.c.b16 %v5695, %v5692
  %v6152 = vpack.c.b16 %v5699, %v5696
  %v6153 = vpack.c.b16 %v5700, %v5697
  %v6154 = vpack.c.b16 %v5701, %v5698
  %v6155 = vpack.c.b16 %v5705, %v5702
  %v6156 = vpack.c.b16 %v5706, %v5703
  %v6157 = vpack.c.b16 %v5707, %v5704
  %v6158 = vpack.c.b16 %v5711, %v5708
  %v6159 = vpack.c.b16 %v5712, %v5709
  %v6160 = vpack.c.b16 %v5713, %v5710
  %v6161 = vpack.c.b16 %v5717, %v5714
  %v6162 = vpack.c.b16 %v5718, %v5715
  %v6163 = vpack.c.b16 %v5719, %v5716
  %v6164 = vpack.c.b16 %v5723, %v5720
  %v6165 = vpack.c.b16 %v5724, %v5721
  %v6166 = vpack.c.b16 %v5725, %v5722
  %v6167 = vpack.c.b16 %v5729, %v5726
  %v6168 = vpack.c.b16 %v5730, %v5727
  %v6169 = vpack.c.b16 %v5731, %v5728
  %v6170 = vpack.c.b16 %v5735, %v5732
  %v6171 = vpack.c.b16 %v5736, %v5733
  %v6172 = vpack.c.b16 %v5737, %v5734
  %v6173 = vpack.c.b16 %v5741, %v5738
  %v6174 = vpack.c.b16 %v5742, %v5739
  %v6175 = vpack.c.b16 %v5743, %v5740
  %v6176 = vpack.c.b16 %v5747, %v5744
  %v6177 = vpack.c.b16 %v5748, %v5745
  %v6178 = vpack.c.b16 %v5749, %v5746
  %v6179 = vpack.c.b16 %v5753, %v5750
  %v6180 = vpack.c.b16 %v5754, %v5751
  %v6181 = vpack.c.b16 %v5755, %v5752
  %v6182 = vpack.c.b16 %v5759, %v5756
  %v6183 = vpack.c.b16 %v5760, %v5757
  %v6184 = vpack.c.b16 %v5761, %v5758
  %v6185 = vpack.c.b16 %v5765, %v5762
  %v6186 = vpack.c.b16 %v5766, %v5763
  %v6187 = vpack.c.b16 %v5767, %v5764
  %v6188 = vpack.c.b16 %v5771, %v5768
  %v6189 = vpack.c.b16 %v5772, %v5769
  %v6190 = vpack.c.b16 %v5773, %v5770
  %v6191 = vpack.c.b16 %v5777, %v5774
  %v6192 = vpack.c.b16 %v5778, %v5775
  %v6193 = vpack.c.b16 %v5779, %v5776
  %v6194 = vpack.c.b16 %v5783, %v5780
  %v6195 = vpack.c.b16 %v5784, %v5781
  %v6196 = vpack.c.b16 %v5785, %v5782
  %v6197 = vpack.c.b16 %v5789, %v5786
  %v6198 = vpack.c.b16 %v5790, %v5787
  %v6199 = vpack.c.b16 %v5791, %v5788
  %v6200 = vpack.c.b16 %v5795, %v5792
  %v6201 = vpack.c.b16 %v5796, %v5793
  %v6202 = vpack.c.b16 %v5797, %v5794
  %v6203 = vpack.c.b16 %v5801, %v5798
  %v6204 = vpack.c.b16 %v5802, %v5799
  %v6205 = vpack.c.b16 %v5803, %v5800
  %v6206 = vpack.c.b16 %v5807, %v5804
  %v6207 = vpack.c.b16 %v5808, %v5805
  %v6208 = vpack.c.b16 %v5809, %v5806
  %v6209 = vpack.c.b16 %v5813, %v5810
  %v6210 = vpack.c.b16 %v5814, %v5811
  %v6211 = vpack.c.b16 %v5815, %v5812
  %v6212 = vpack.c.b16 %v5819, %v5816
  %v6213 = vpack.c.b16 %v5820, %v5817
  %v6214 = vpack.c.b16 %v5821, %v5818
  %v6215 = vpack.c.b16 %v5825, %v5822
  %v6216 = vpack.c.b16 %v5826, %v5823
  %v6217 = vpack.c.b16 %v5827, %v5824
  %v6218 = vpack.c.b16 %v5831, %v5828
  %v6219 = vpack.c.b16 %v5832, %v5829
  %v6220 = vpack.c.b16 %v5833, %v5830
  %vm6608 = vcmask 130048
  %v6610 = vsel %vm6608, %v4536, 0
  %v6613 = vsel %vm6608, %v4537, 0
  %v6616 = vsel %vm6608, %v4538, 0
  %v6619 = vsel %vm6608, %v4539, 0
  %6621 = vmatprep.subr.bf16.mxu0 %v5856
  %6622 = vmatpush1.bf16.msra.mxu0 %v5855
  %6623 = vmatprep.subr.bf16.mxu0 %v5853
  %6624 = vmatpush1.bf16.msra.mxu0 %v5852
  %6625 = vmatprep.subr.bf16.mxu0 %v5850
  %6626 = vmatpush1.bf16.msra.mxu0 %v5849
  %6627 = vmatprep.subr.bf16.mxu0 %v5847
  %6628 = vmatpush1.bf16.msra.mxu0 %v5846
  %6629 = vmatprep.subr.bf16.mxu0 %v5844
  %6630 = vmatpush1.bf16.msra.mxu0 %v5843
  %6631 = vmatprep.subr.bf16.mxu0 %v5841
  %6632 = vmatpush1.bf16.msra.mxu0 %v5840
  %6633 = vmatprep.subr.bf16.mxu0 %v5838
  %6634 = vmatpush1.bf16.msra.mxu0 %v5837
  %6635 = vmatprep.subr.bf16.mxu0 %v5835
  %6636 = vmatpush1.bf16.msra.mxu0 %v5834
  %6637 = vmatprep.subr.bf16.mxu0 %v5880
  %6638 = vmatpush2.bf16.msra.mxu0 %v5879
  %6639 = vmatprep.subr.bf16.mxu0 %v5877
  %6640 = vmatpush2.bf16.msra.mxu0 %v5876
  %6641 = vmatprep.subr.bf16.mxu0 %v5874
  %6642 = vmatpush2.bf16.msra.mxu0 %v5873
  %6643 = vmatprep.subr.bf16.mxu0 %v5871
  %6644 = vmatpush2.bf16.msra.mxu0 %v5870
  %6645 = vmatprep.subr.bf16.mxu0 %v5868
  %6646 = vmatpush2.bf16.msra.mxu0 %v5867
  %6647 = vmatprep.subr.bf16.mxu0 %v5865
  %6648 = vmatpush2.bf16.msra.mxu0 %v5864
  %6649 = vmatprep.subr.bf16.mxu0 %v5862
  %6650 = vmatpush2.bf16.msra.mxu0 %v5861
  %6651 = vmatprep.subr.bf16.mxu0 %v5859
  %6652 = vmatpush2.bf16.msra.mxu0 %v5858
  %6653 = vmatprep.mubr.bf16.mxu0 %v4296
  %6654 = vmatmul.mubr.bf16.gmra.mxu0 %v4280
  %v6655 = vpop.f32.mrf.mxu0
  %v6656 = vadd.f32 0.0, %v6655
  %v6657 = vpop.f32.mrf.mxu0
  %v6658 = vadd.f32 0.0, %v6657
  %v6659 = vpop.f32.mrf.mxu0
  %v6660 = vadd.f32 0.0, %v6659
  %v6661 = vpop.f32.mrf.mxu0
  %v6662 = vadd.f32 0.0, %v6661
  %6663 = vmatprep.mubr.bf16.mxu0 %v4297
  %6664 = vmatmul.mubr.bf16.gmra.mxu0 %v4281
  %v6665 = vpop.f32.mrf.mxu0
  %v6666 = vadd.f32 0.0, %v6665
  %v6667 = vpop.f32.mrf.mxu0
  %v6668 = vadd.f32 0.0, %v6667
  %v6669 = vpop.f32.mrf.mxu0
  %v6670 = vadd.f32 0.0, %v6669
  %v6671 = vpop.f32.mrf.mxu0
  %v6672 = vadd.f32 0.0, %v6671
  %6673 = vmatprep.mubr.bf16.mxu0 %v4298
  %6674 = vmatmul.mubr.bf16.gmra.mxu0 %v4282
  %v6675 = vpop.f32.mrf.mxu0
  %v6676 = vadd.f32 0.0, %v6675
  %v6677 = vpop.f32.mrf.mxu0
  %v6678 = vadd.f32 0.0, %v6677
  %v6679 = vpop.f32.mrf.mxu0
  %v6680 = vadd.f32 0.0, %v6679
  %v6681 = vpop.f32.mrf.mxu0
  %v6682 = vadd.f32 0.0, %v6681
  %6683 = vmatprep.mubr.bf16.mxu0 %v4299
  %6684 = vmatmul.mubr.bf16.gmra.mxu0 %v4283
  %v6685 = vpop.f32.mrf.mxu0
  %v6686 = vadd.f32 0.0, %v6685
  %v6687 = vpop.f32.mrf.mxu0
  %v6688 = vadd.f32 0.0, %v6687
  %v6689 = vpop.f32.mrf.mxu0
  %v6690 = vpop.f32.mrf.mxu0
  %6691 = vdwg.mxu0
  %6692 = vmatprep.subr.bf16.mxu0 %v5904
  %6693 = vmatpush1.bf16.msra.mxu0 %v5903
  %6694 = vmatprep.subr.bf16.mxu0 %v5901
  %6695 = vmatpush1.bf16.msra.mxu0 %v5900
  %6696 = vmatprep.subr.bf16.mxu0 %v5898
  %6697 = vmatpush1.bf16.msra.mxu0 %v5897
  %6698 = vmatprep.subr.bf16.mxu0 %v5895
  %6699 = vmatpush1.bf16.msra.mxu0 %v5894
  %6700 = vmatprep.subr.bf16.mxu0 %v5892
  %6701 = vmatpush1.bf16.msra.mxu0 %v5891
  %6702 = vmatprep.subr.bf16.mxu0 %v5889
  %6703 = vmatpush1.bf16.msra.mxu0 %v5888
  %6704 = vmatprep.subr.bf16.mxu0 %v5886
  %6705 = vmatpush1.bf16.msra.mxu0 %v5885
  %6706 = vmatprep.subr.bf16.mxu0 %v5883
  %6707 = vmatpush1.bf16.msra.mxu0 %v5882
  %6708 = vmatprep.subr.bf16.mxu0 %v5928
  %6709 = vmatpush2.bf16.msra.mxu0 %v5927
  %6710 = vmatprep.subr.bf16.mxu0 %v5925
  %6711 = vmatpush2.bf16.msra.mxu0 %v5924
  %6712 = vmatprep.subr.bf16.mxu0 %v5922
  %6713 = vmatpush2.bf16.msra.mxu0 %v5921
  %6714 = vmatprep.subr.bf16.mxu0 %v5919
  %6715 = vmatpush2.bf16.msra.mxu0 %v5918
  %6716 = vmatprep.subr.bf16.mxu0 %v5916
  %6717 = vmatpush2.bf16.msra.mxu0 %v5915
  %6718 = vmatprep.subr.bf16.mxu0 %v5913
  %6719 = vmatpush2.bf16.msra.mxu0 %v5912
  %6720 = vmatprep.subr.bf16.mxu0 %v5910
  %6721 = vmatpush2.bf16.msra.mxu0 %v5909
  %6722 = vmatprep.subr.bf16.mxu0 %v5907
  %6723 = vmatpush2.bf16.msra.mxu0 %v5906
  %6724 = vmatprep.mubr.bf16.mxu0 %v4328
  %6725 = vmatmul.mubr.bf16.gmra.mxu0 %v4312
  %v6726 = vpop.f32.mrf.mxu0
  %v6727 = vadd.f32 %v6656, %v6726
  %v6728 = vpop.f32.mrf.mxu0
  %v6729 = vadd.f32 %v6658, %v6728
  %v6730 = vpop.f32.mrf.mxu0
  %v6731 = vadd.f32 %v6660, %v6730
  %v6732 = vpop.f32.mrf.mxu0
  %v6733 = vadd.f32 %v6662, %v6732
  %6734 = vmatprep.mubr.bf16.mxu0 %v4329
  %6735 = vmatmul.mubr.bf16.gmra.mxu0 %v4313
  %v6736 = vpop.f32.mrf.mxu0
  %v6737 = vadd.f32 %v6666, %v6736
  %v6738 = vpop.f32.mrf.mxu0
  %v6739 = vadd.f32 %v6668, %v6738
  %v6740 = vpop.f32.mrf.mxu0
  %v6741 = vadd.f32 %v6670, %v6740
  %v6742 = vpop.f32.mrf.mxu0
  %v6743 = vadd.f32 %v6672, %v6742
  %6744 = vmatprep.mubr.bf16.mxu0 %v4330
  %6745 = vmatmul.mubr.bf16.gmra.mxu0 %v4314
  %v6746 = vpop.f32.mrf.mxu0
  %v6747 = vadd.f32 %v6676, %v6746
  %v6748 = vpop.f32.mrf.mxu0
  %v6749 = vadd.f32 %v6678, %v6748
  %v6750 = vpop.f32.mrf.mxu0
  %v6751 = vadd.f32 %v6680, %v6750
  %v6752 = vpop.f32.mrf.mxu0
  %v6753 = vadd.f32 %v6682, %v6752
  %6754 = vmatprep.mubr.bf16.mxu0 %v4331
  %6755 = vmatmul.mubr.bf16.gmra.mxu0 %v4315
  %v6756 = vpop.f32.mrf.mxu0
  %v6757 = vadd.f32 %v6686, %v6756
  %v6758 = vpop.f32.mrf.mxu0
  %v6759 = vadd.f32 %v6688, %v6758
  %v6760 = vpop.f32.mrf.mxu0
  %v6761 = vpop.f32.mrf.mxu0
  %6762 = vdwg.mxu0
  %6763 = vmatprep.subr.bf16.mxu0 %v5952
  %6764 = vmatpush1.bf16.msra.mxu0 %v5951
  %6765 = vmatprep.subr.bf16.mxu0 %v5949
  %6766 = vmatpush1.bf16.msra.mxu0 %v5948
  %6767 = vmatprep.subr.bf16.mxu0 %v5946
  %6768 = vmatpush1.bf16.msra.mxu0 %v5945
  %6769 = vmatprep.subr.bf16.mxu0 %v5943
  %6770 = vmatpush1.bf16.msra.mxu0 %v5942
  %6771 = vmatprep.subr.bf16.mxu0 %v5940
  %6772 = vmatpush1.bf16.msra.mxu0 %v5939
  %6773 = vmatprep.subr.bf16.mxu0 %v5937
  %6774 = vmatpush1.bf16.msra.mxu0 %v5936
  %6775 = vmatprep.subr.bf16.mxu0 %v5934
  %6776 = vmatpush1.bf16.msra.mxu0 %v5933
  %6777 = vmatprep.subr.bf16.mxu0 %v5931
  %6778 = vmatpush1.bf16.msra.mxu0 %v5930
  %6779 = vmatprep.subr.bf16.mxu0 %v5976
  %6780 = vmatpush2.bf16.msra.mxu0 %v5975
  %6781 = vmatprep.subr.bf16.mxu0 %v5973
  %6782 = vmatpush2.bf16.msra.mxu0 %v5972
  %6783 = vmatprep.subr.bf16.mxu0 %v5970
  %6784 = vmatpush2.bf16.msra.mxu0 %v5969
  %6785 = vmatprep.subr.bf16.mxu0 %v5967
  %6786 = vmatpush2.bf16.msra.mxu0 %v5966
  %6787 = vmatprep.subr.bf16.mxu0 %v5964
  %6788 = vmatpush2.bf16.msra.mxu0 %v5963
  %6789 = vmatprep.subr.bf16.mxu0 %v5961
  %6790 = vmatpush2.bf16.msra.mxu0 %v5960
  %6791 = vmatprep.subr.bf16.mxu0 %v5958
  %6792 = vmatpush2.bf16.msra.mxu0 %v5957
  %6793 = vmatprep.subr.bf16.mxu0 %v5955
  %6794 = vmatpush2.bf16.msra.mxu0 %v5954
  %6795 = vmatprep.mubr.bf16.mxu0 %v4360
  %6796 = vmatmul.mubr.bf16.gmra.mxu0 %v4344
  %v6797 = vpop.f32.mrf.mxu0
  %v6798 = vadd.f32 %v6727, %v6797
  %v6799 = vpop.f32.mrf.mxu0
  %v6800 = vadd.f32 %v6729, %v6799
  %v6801 = vpop.f32.mrf.mxu0
  %v6802 = vadd.f32 %v6731, %v6801
  %v6803 = vpop.f32.mrf.mxu0
  %v6804 = vadd.f32 %v6733, %v6803
  %6805 = vmatprep.mubr.bf16.mxu0 %v4361
  %6806 = vmatmul.mubr.bf16.gmra.mxu0 %v4345
  %v6807 = vpop.f32.mrf.mxu0
  %v6808 = vadd.f32 %v6737, %v6807
  %v6809 = vpop.f32.mrf.mxu0
  %v6810 = vadd.f32 %v6739, %v6809
  %v6811 = vpop.f32.mrf.mxu0
  %v6812 = vadd.f32 %v6741, %v6811
  %v6813 = vpop.f32.mrf.mxu0
  %v6814 = vadd.f32 %v6743, %v6813
  %6815 = vmatprep.mubr.bf16.mxu0 %v4362
  %6816 = vmatmul.mubr.bf16.gmra.mxu0 %v4346
  %v6817 = vpop.f32.mrf.mxu0
  %v6818 = vadd.f32 %v6747, %v6817
  %v6819 = vpop.f32.mrf.mxu0
  %v6820 = vadd.f32 %v6749, %v6819
  %v6821 = vpop.f32.mrf.mxu0
  %v6822 = vadd.f32 %v6751, %v6821
  %v6823 = vpop.f32.mrf.mxu0
  %v6824 = vadd.f32 %v6753, %v6823
  %6825 = vmatprep.mubr.bf16.mxu0 %v4363
  %6826 = vmatmul.mubr.bf16.gmra.mxu0 %v4347
  %v6827 = vpop.f32.mrf.mxu0
  %v6828 = vadd.f32 %v6757, %v6827
  %v6829 = vpop.f32.mrf.mxu0
  %v6830 = vadd.f32 %v6759, %v6829
  %v6831 = vpop.f32.mrf.mxu0
  %v6832 = vpop.f32.mrf.mxu0
  %6833 = vdwg.mxu0
  %6834 = vmatprep.subr.bf16.mxu0 %v6000
  %6835 = vmatpush1.bf16.msra.mxu0 %v5999
  %6836 = vmatprep.subr.bf16.mxu0 %v5997
  %6837 = vmatpush1.bf16.msra.mxu0 %v5996
  %6838 = vmatprep.subr.bf16.mxu0 %v5994
  %6839 = vmatpush1.bf16.msra.mxu0 %v5993
  %6840 = vmatprep.subr.bf16.mxu0 %v5991
  %6841 = vmatpush1.bf16.msra.mxu0 %v5990
  %6842 = vmatprep.subr.bf16.mxu0 %v5988
  %6843 = vmatpush1.bf16.msra.mxu0 %v5987
  %6844 = vmatprep.subr.bf16.mxu0 %v5985
  %6845 = vmatpush1.bf16.msra.mxu0 %v5984
  %6846 = vmatprep.subr.bf16.mxu0 %v5982
  %6847 = vmatpush1.bf16.msra.mxu0 %v5981
  %6848 = vmatprep.subr.bf16.mxu0 %v5979
  %6849 = vmatpush1.bf16.msra.mxu0 %v5978
  %6850 = vmatprep.subr.bf16.mxu0 %v6024
  %6851 = vmatpush2.bf16.msra.mxu0 %v6023
  %6852 = vmatprep.subr.bf16.mxu0 %v6021
  %6853 = vmatpush2.bf16.msra.mxu0 %v6020
  %6854 = vmatprep.subr.bf16.mxu0 %v6018
  %6855 = vmatpush2.bf16.msra.mxu0 %v6017
  %6856 = vmatprep.subr.bf16.mxu0 %v6015
  %6857 = vmatpush2.bf16.msra.mxu0 %v6014
  %6858 = vmatprep.subr.bf16.mxu0 %v6012
  %6859 = vmatpush2.bf16.msra.mxu0 %v6011
  %6860 = vmatprep.subr.bf16.mxu0 %v6009
  %6861 = vmatpush2.bf16.msra.mxu0 %v6008
  %6862 = vmatprep.subr.bf16.mxu0 %v6006
  %6863 = vmatpush2.bf16.msra.mxu0 %v6005
  %6864 = vmatprep.subr.bf16.mxu0 %v6003
  %6865 = vmatpush2.bf16.msra.mxu0 %v6002
  %6866 = vmatprep.mubr.bf16.mxu0 %v4392
  %6867 = vmatmul.mubr.bf16.gmra.mxu0 %v4376
  %v6868 = vpop.f32.mrf.mxu0
  %v6869 = vadd.f32 %v6798, %v6868
  %v6870 = vpop.f32.mrf.mxu0
  %v6871 = vadd.f32 %v6800, %v6870
  %v6872 = vpop.f32.mrf.mxu0
  %v6873 = vadd.f32 %v6802, %v6872
  %v6874 = vpop.f32.mrf.mxu0
  %v6875 = vadd.f32 %v6804, %v6874
  %6876 = vmatprep.mubr.bf16.mxu0 %v4393
  %6877 = vmatmul.mubr.bf16.gmra.mxu0 %v4377
  %v6878 = vpop.f32.mrf.mxu0
  %v6879 = vadd.f32 %v6808, %v6878
  %v6880 = vpop.f32.mrf.mxu0
  %v6881 = vadd.f32 %v6810, %v6880
  %v6882 = vpop.f32.mrf.mxu0
  %v6883 = vadd.f32 %v6812, %v6882
  %v6884 = vpop.f32.mrf.mxu0
  %v6885 = vadd.f32 %v6814, %v6884
  %6886 = vmatprep.mubr.bf16.mxu0 %v4394
  %6887 = vmatmul.mubr.bf16.gmra.mxu0 %v4378
  %v6888 = vpop.f32.mrf.mxu0
  %v6889 = vadd.f32 %v6818, %v6888
  %v6890 = vpop.f32.mrf.mxu0
  %v6891 = vadd.f32 %v6820, %v6890
  %v6892 = vpop.f32.mrf.mxu0
  %v6893 = vadd.f32 %v6822, %v6892
  %v6894 = vpop.f32.mrf.mxu0
  %v6895 = vadd.f32 %v6824, %v6894
  %6896 = vmatprep.mubr.bf16.mxu0 %v4395
  %6897 = vmatmul.mubr.bf16.gmra.mxu0 %v4379
  %v6898 = vpop.f32.mrf.mxu0
  %v6899 = vadd.f32 %v6828, %v6898
  %v6900 = vpop.f32.mrf.mxu0
  %v6901 = vadd.f32 %v6830, %v6900
  %v6902 = vpop.f32.mrf.mxu0
  %v6903 = vpop.f32.mrf.mxu0
  %6904 = vdwg.mxu0
  %6905 = vmatprep.subr.bf16.mxu0 %v6048
  %6906 = vmatpush1.bf16.msra.mxu0 %v6047
  %6907 = vmatprep.subr.bf16.mxu0 %v6045
  %6908 = vmatpush1.bf16.msra.mxu0 %v6044
  %6909 = vmatprep.subr.bf16.mxu0 %v6042
  %6910 = vmatpush1.bf16.msra.mxu0 %v6041
  %6911 = vmatprep.subr.bf16.mxu0 %v6039
  %6912 = vmatpush1.bf16.msra.mxu0 %v6038
  %6913 = vmatprep.subr.bf16.mxu0 %v6036
  %6914 = vmatpush1.bf16.msra.mxu0 %v6035
  %6915 = vmatprep.subr.bf16.mxu0 %v6033
  %6916 = vmatpush1.bf16.msra.mxu0 %v6032
  %6917 = vmatprep.subr.bf16.mxu0 %v6030
  %6918 = vmatpush1.bf16.msra.mxu0 %v6029
  %6919 = vmatprep.subr.bf16.mxu0 %v6027
  %6920 = vmatpush1.bf16.msra.mxu0 %v6026
  %6921 = vmatprep.subr.bf16.mxu0 %v6072
  %6922 = vmatpush2.bf16.msra.mxu0 %v6071
  %6923 = vmatprep.subr.bf16.mxu0 %v6069
  %6924 = vmatpush2.bf16.msra.mxu0 %v6068
  %6925 = vmatprep.subr.bf16.mxu0 %v6066
  %6926 = vmatpush2.bf16.msra.mxu0 %v6065
  %6927 = vmatprep.subr.bf16.mxu0 %v6063
  %6928 = vmatpush2.bf16.msra.mxu0 %v6062
  %6929 = vmatprep.subr.bf16.mxu0 %v6060
  %6930 = vmatpush2.bf16.msra.mxu0 %v6059
  %6931 = vmatprep.subr.bf16.mxu0 %v6057
  %6932 = vmatpush2.bf16.msra.mxu0 %v6056
  %6933 = vmatprep.subr.bf16.mxu0 %v6054
  %6934 = vmatpush2.bf16.msra.mxu0 %v6053
  %6935 = vmatprep.subr.bf16.mxu0 %v6051
  %6936 = vmatpush2.bf16.msra.mxu0 %v6050
  %6937 = vmatprep.mubr.bf16.mxu0 %v4424
  %6938 = vmatmul.mubr.bf16.gmra.mxu0 %v4408
  %v6939 = vpop.f32.mrf.mxu0
  %v6940 = vadd.f32 %v6869, %v6939
  %v6941 = vpop.f32.mrf.mxu0
  %v6942 = vadd.f32 %v6871, %v6941
  %v6943 = vpop.f32.mrf.mxu0
  %v6944 = vadd.f32 %v6873, %v6943
  %v6945 = vpop.f32.mrf.mxu0
  %v6946 = vadd.f32 %v6875, %v6945
  %6947 = vmatprep.mubr.bf16.mxu0 %v4425
  %6948 = vmatmul.mubr.bf16.gmra.mxu0 %v4409
  %v6949 = vpop.f32.mrf.mxu0
  %v6950 = vadd.f32 %v6879, %v6949
  %v6951 = vpop.f32.mrf.mxu0
  %v6952 = vadd.f32 %v6881, %v6951
  %v6953 = vpop.f32.mrf.mxu0
  %v6954 = vadd.f32 %v6883, %v6953
  %v6955 = vpop.f32.mrf.mxu0
  %v6956 = vadd.f32 %v6885, %v6955
  %6957 = vmatprep.mubr.bf16.mxu0 %v4426
  %6958 = vmatmul.mubr.bf16.gmra.mxu0 %v4410
  %v6959 = vpop.f32.mrf.mxu0
  %v6960 = vadd.f32 %v6889, %v6959
  %v6961 = vpop.f32.mrf.mxu0
  %v6962 = vadd.f32 %v6891, %v6961
  %v6963 = vpop.f32.mrf.mxu0
  %v6964 = vadd.f32 %v6893, %v6963
  %v6965 = vpop.f32.mrf.mxu0
  %v6966 = vadd.f32 %v6895, %v6965
  %6967 = vmatprep.mubr.bf16.mxu0 %v4427
  %6968 = vmatmul.mubr.bf16.gmra.mxu0 %v4411
  %v6969 = vpop.f32.mrf.mxu0
  %v6970 = vadd.f32 %v6899, %v6969
  %v6971 = vpop.f32.mrf.mxu0
  %v6972 = vadd.f32 %v6901, %v6971
  %v6973 = vpop.f32.mrf.mxu0
  %v6974 = vpop.f32.mrf.mxu0
  %6975 = vdwg.mxu0
  %6976 = vmatprep.subr.bf16.mxu0 %v6096
  %6977 = vmatpush1.bf16.msra.mxu0 %v6095
  %6978 = vmatprep.subr.bf16.mxu0 %v6093
  %6979 = vmatpush1.bf16.msra.mxu0 %v6092
  %6980 = vmatprep.subr.bf16.mxu0 %v6090
  %6981 = vmatpush1.bf16.msra.mxu0 %v6089
  %6982 = vmatprep.subr.bf16.mxu0 %v6087
  %6983 = vmatpush1.bf16.msra.mxu0 %v6086
  %6984 = vmatprep.subr.bf16.mxu0 %v6084
  %6985 = vmatpush1.bf16.msra.mxu0 %v6083
  %6986 = vmatprep.subr.bf16.mxu0 %v6081
  %6987 = vmatpush1.bf16.msra.mxu0 %v6080
  %6988 = vmatprep.subr.bf16.mxu0 %v6078
  %6989 = vmatpush1.bf16.msra.mxu0 %v6077
  %6990 = vmatprep.subr.bf16.mxu0 %v6075
  %6991 = vmatpush1.bf16.msra.mxu0 %v6074
  %6992 = vmatprep.subr.bf16.mxu0 %v6120
  %6993 = vmatpush2.bf16.msra.mxu0 %v6119
  %6994 = vmatprep.subr.bf16.mxu0 %v6117
  %6995 = vmatpush2.bf16.msra.mxu0 %v6116
  %6996 = vmatprep.subr.bf16.mxu0 %v6114
  %6997 = vmatpush2.bf16.msra.mxu0 %v6113
  %6998 = vmatprep.subr.bf16.mxu0 %v6111
  %6999 = vmatpush2.bf16.msra.mxu0 %v6110
  %7000 = vmatprep.subr.bf16.mxu0 %v6108
  %7001 = vmatpush2.bf16.msra.mxu0 %v6107
  %7002 = vmatprep.subr.bf16.mxu0 %v6105
  %7003 = vmatpush2.bf16.msra.mxu0 %v6104
  %7004 = vmatprep.subr.bf16.mxu0 %v6102
  %7005 = vmatpush2.bf16.msra.mxu0 %v6101
  %7006 = vmatprep.subr.bf16.mxu0 %v6099
  %7007 = vmatpush2.bf16.msra.mxu0 %v6098
  %7008 = vmatprep.mubr.bf16.mxu0 %v4456
  %7009 = vmatmul.mubr.bf16.gmra.mxu0 %v4440
  %v7010 = vpop.f32.mrf.mxu0
  %v7011 = vadd.f32 %v6940, %v7010
  %v7012 = vpop.f32.mrf.mxu0
  %v7013 = vadd.f32 %v6942, %v7012
  %v7014 = vpop.f32.mrf.mxu0
  %v7015 = vadd.f32 %v6944, %v7014
  %v7016 = vpop.f32.mrf.mxu0
  %v7017 = vadd.f32 %v6946, %v7016
  %7018 = vmatprep.mubr.bf16.mxu0 %v4457
  %7019 = vmatmul.mubr.bf16.gmra.mxu0 %v4441
  %v7020 = vpop.f32.mrf.mxu0
  %v7021 = vadd.f32 %v6950, %v7020
  %v7022 = vpop.f32.mrf.mxu0
  %v7023 = vadd.f32 %v6952, %v7022
  %v7024 = vpop.f32.mrf.mxu0
  %v7025 = vadd.f32 %v6954, %v7024
  %v7026 = vpop.f32.mrf.mxu0
  %v7027 = vadd.f32 %v6956, %v7026
  %7028 = vmatprep.mubr.bf16.mxu0 %v4458
  %7029 = vmatmul.mubr.bf16.gmra.mxu0 %v4442
  %v7030 = vpop.f32.mrf.mxu0
  %v7031 = vadd.f32 %v6960, %v7030
  %v7032 = vpop.f32.mrf.mxu0
  %v7033 = vadd.f32 %v6962, %v7032
  %v7034 = vpop.f32.mrf.mxu0
  %v7035 = vadd.f32 %v6964, %v7034
  %v7036 = vpop.f32.mrf.mxu0
  %v7037 = vadd.f32 %v6966, %v7036
  %7038 = vmatprep.mubr.bf16.mxu0 %v4459
  %7039 = vmatmul.mubr.bf16.gmra.mxu0 %v4443
  %v7040 = vpop.f32.mrf.mxu0
  %v7041 = vadd.f32 %v6970, %v7040
  %v7042 = vpop.f32.mrf.mxu0
  %v7043 = vadd.f32 %v6972, %v7042
  %v7044 = vpop.f32.mrf.mxu0
  %v7045 = vpop.f32.mrf.mxu0
  %7046 = vdwg.mxu0
  %7047 = vmatprep.subr.bf16.mxu0 %v6144
  %7048 = vmatpush1.bf16.msra.mxu0 %v6143
  %7049 = vmatprep.subr.bf16.mxu0 %v6141
  %7050 = vmatpush1.bf16.msra.mxu0 %v6140
  %7051 = vmatprep.subr.bf16.mxu0 %v6138
  %7052 = vmatpush1.bf16.msra.mxu0 %v6137
  %7053 = vmatprep.subr.bf16.mxu0 %v6135
  %7054 = vmatpush1.bf16.msra.mxu0 %v6134
  %7055 = vmatprep.subr.bf16.mxu0 %v6132
  %7056 = vmatpush1.bf16.msra.mxu0 %v6131
  %7057 = vmatprep.subr.bf16.mxu0 %v6129
  %7058 = vmatpush1.bf16.msra.mxu0 %v6128
  %7059 = vmatprep.subr.bf16.mxu0 %v6126
  %7060 = vmatpush1.bf16.msra.mxu0 %v6125
  %7061 = vmatprep.subr.bf16.mxu0 %v6123
  %7062 = vmatpush1.bf16.msra.mxu0 %v6122
  %7063 = vmatprep.subr.bf16.mxu0 %v6168
  %7064 = vmatpush2.bf16.msra.mxu0 %v6167
  %7065 = vmatprep.subr.bf16.mxu0 %v6165
  %7066 = vmatpush2.bf16.msra.mxu0 %v6164
  %7067 = vmatprep.subr.bf16.mxu0 %v6162
  %7068 = vmatpush2.bf16.msra.mxu0 %v6161
  %7069 = vmatprep.subr.bf16.mxu0 %v6159
  %7070 = vmatpush2.bf16.msra.mxu0 %v6158
  %7071 = vmatprep.subr.bf16.mxu0 %v6156
  %7072 = vmatpush2.bf16.msra.mxu0 %v6155
  %7073 = vmatprep.subr.bf16.mxu0 %v6153
  %7074 = vmatpush2.bf16.msra.mxu0 %v6152
  %7075 = vmatprep.subr.bf16.mxu0 %v6150
  %7076 = vmatpush2.bf16.msra.mxu0 %v6149
  %7077 = vmatprep.subr.bf16.mxu0 %v6147
  %7078 = vmatpush2.bf16.msra.mxu0 %v6146
  %7079 = vmatprep.mubr.bf16.mxu0 %v4488
  %7080 = vmatmul.mubr.bf16.gmra.mxu0 %v4472
  %v7081 = vpop.f32.mrf.mxu0
  %v7082 = vadd.f32 %v7011, %v7081
  %v7083 = vpop.f32.mrf.mxu0
  %v7084 = vadd.f32 %v7013, %v7083
  %v7085 = vpop.f32.mrf.mxu0
  %v7086 = vadd.f32 %v7015, %v7085
  %v7087 = vpop.f32.mrf.mxu0
  %v7088 = vadd.f32 %v7017, %v7087
  %7089 = vmatprep.mubr.bf16.mxu0 %v4489
  %7090 = vmatmul.mubr.bf16.gmra.mxu0 %v4473
  %v7091 = vpop.f32.mrf.mxu0
  %v7092 = vadd.f32 %v7021, %v7091
  %v7093 = vpop.f32.mrf.mxu0
  %v7094 = vadd.f32 %v7023, %v7093
  %v7095 = vpop.f32.mrf.mxu0
  %v7096 = vadd.f32 %v7025, %v7095
  %v7097 = vpop.f32.mrf.mxu0
  %v7098 = vadd.f32 %v7027, %v7097
  %7099 = vmatprep.mubr.bf16.mxu0 %v4490
  %7100 = vmatmul.mubr.bf16.gmra.mxu0 %v4474
  %v7101 = vpop.f32.mrf.mxu0
  %v7102 = vadd.f32 %v7031, %v7101
  %v7103 = vpop.f32.mrf.mxu0
  %v7104 = vadd.f32 %v7033, %v7103
  %v7105 = vpop.f32.mrf.mxu0
  %v7106 = vadd.f32 %v7035, %v7105
  %v7107 = vpop.f32.mrf.mxu0
  %v7108 = vadd.f32 %v7037, %v7107
  %7109 = vmatprep.mubr.bf16.mxu0 %v4491
  %7110 = vmatmul.mubr.bf16.gmra.mxu0 %v4475
  %v7111 = vpop.f32.mrf.mxu0
  %v7112 = vadd.f32 %v7041, %v7111
  %v7113 = vpop.f32.mrf.mxu0
  %v7114 = vadd.f32 %v7043, %v7113
  %v7115 = vpop.f32.mrf.mxu0
  %v7116 = vpop.f32.mrf.mxu0
  %7117 = vdwg.mxu0
  %7118 = vmatprep.subr.bf16.mxu0 %v6192
  %7119 = vmatpush1.bf16.msra.mxu0 %v6191
  %7120 = vmatprep.subr.bf16.mxu0 %v6189
  %7121 = vmatpush1.bf16.msra.mxu0 %v6188
  %7122 = vmatprep.subr.bf16.mxu0 %v6186
  %7123 = vmatpush1.bf16.msra.mxu0 %v6185
  %7124 = vmatprep.subr.bf16.mxu0 %v6183
  %7125 = vmatpush1.bf16.msra.mxu0 %v6182
  %7126 = vmatprep.subr.bf16.mxu0 %v6180
  %7127 = vmatpush1.bf16.msra.mxu0 %v6179
  %7128 = vmatprep.subr.bf16.mxu0 %v6177
  %7129 = vmatpush1.bf16.msra.mxu0 %v6176
  %7130 = vmatprep.subr.bf16.mxu0 %v6174
  %7131 = vmatpush1.bf16.msra.mxu0 %v6173
  %7132 = vmatprep.subr.bf16.mxu0 %v6171
  %7133 = vmatpush1.bf16.msra.mxu0 %v6170
  %7134 = vmatprep.subr.bf16.mxu0 %v6216
  %7135 = vmatpush2.bf16.msra.mxu0 %v6215
  %7136 = vmatprep.subr.bf16.mxu0 %v6213
  %7137 = vmatpush2.bf16.msra.mxu0 %v6212
  %7138 = vmatprep.subr.bf16.mxu0 %v6210
  %7139 = vmatpush2.bf16.msra.mxu0 %v6209
  %7140 = vmatprep.subr.bf16.mxu0 %v6207
  %7141 = vmatpush2.bf16.msra.mxu0 %v6206
  %7142 = vmatprep.subr.bf16.mxu0 %v6204
  %7143 = vmatpush2.bf16.msra.mxu0 %v6203
  %7144 = vmatprep.subr.bf16.mxu0 %v6201
  %7145 = vmatpush2.bf16.msra.mxu0 %v6200
  %7146 = vmatprep.subr.bf16.mxu0 %v6198
  %7147 = vmatpush2.bf16.msra.mxu0 %v6197
  %7148 = vmatprep.subr.bf16.mxu0 %v6195
  %7149 = vmatpush2.bf16.msra.mxu0 %v6194
  %7150 = vmatprep.mubr.bf16.mxu0 %v4520
  %7151 = vmatmul.mubr.bf16.gmra.mxu0 %v4504
  %v7152 = vpop.f32.mrf.mxu0
  %v7153 = vadd.f32 %v7082, %v7152
  %v7154 = vpop.f32.mrf.mxu0
  %v7155 = vadd.f32 %v7084, %v7154
  %v7156 = vpop.f32.mrf.mxu0
  %v7157 = vadd.f32 %v7086, %v7156
  %v7158 = vpop.f32.mrf.mxu0
  %v7159 = vadd.f32 %v7088, %v7158
  %7160 = vmatprep.mubr.bf16.mxu0 %v4521
  %7161 = vmatmul.mubr.bf16.gmra.mxu0 %v4505
  %v7162 = vpop.f32.mrf.mxu0
  %v7163 = vadd.f32 %v7092, %v7162
  %v7164 = vpop.f32.mrf.mxu0
  %v7165 = vadd.f32 %v7094, %v7164
  %v7166 = vpop.f32.mrf.mxu0
  %v7167 = vadd.f32 %v7096, %v7166
  %v7168 = vpop.f32.mrf.mxu0
  %v7169 = vadd.f32 %v7098, %v7168
  %7170 = vmatprep.mubr.bf16.mxu0 %v4522
  %7171 = vmatmul.mubr.bf16.gmra.mxu0 %v4506
  %v7172 = vpop.f32.mrf.mxu0
  %v7173 = vadd.f32 %v7102, %v7172
  %v7174 = vpop.f32.mrf.mxu0
  %v7175 = vadd.f32 %v7104, %v7174
  %v7176 = vpop.f32.mrf.mxu0
  %v7177 = vadd.f32 %v7106, %v7176
  %v7178 = vpop.f32.mrf.mxu0
  %v7179 = vadd.f32 %v7108, %v7178
  %7180 = vmatprep.mubr.bf16.mxu0 %v4523
  %7181 = vmatmul.mubr.bf16.gmra.mxu0 %v4507
  %v7182 = vpop.f32.mrf.mxu0
  %v7183 = vadd.f32 %v7112, %v7182
  %v7184 = vpop.f32.mrf.mxu0
  %v7185 = vadd.f32 %v7114, %v7184
  %v7186 = vpop.f32.mrf.mxu0
  %v7187 = vpop.f32.mrf.mxu0
  %7188 = vdwg.mxu0
  %7189 = vmatprep.subr.bf16.mxu0 0
  %7190 = vmatpush1.bf16.msra.mxu0 0
  %7191 = vmatprep.subr.bf16.mxu0 0
  %7192 = vmatpush1.bf16.msra.mxu0 0
  %7193 = vmatprep.subr.bf16.mxu0 0
  %7194 = vmatpush1.bf16.msra.mxu0 0
  %7195 = vmatprep.subr.bf16.mxu0 0
  %7196 = vmatpush1.bf16.msra.mxu0 0
  %7197 = vmatprep.subr.bf16.mxu0 0
  %7198 = vmatpush1.bf16.msra.mxu0 0
  %7199 = vmatprep.subr.bf16.mxu0 0
  %7200 = vmatpush1.bf16.msra.mxu0 0
  %7201 = vmatprep.subr.bf16.mxu0 0
  %7202 = vmatpush1.bf16.msra.mxu0 0
  %7203 = vmatprep.subr.bf16.mxu0 %v6219
  %7204 = vmatpush1.bf16.msra.mxu0 %v6218
  %7205 = vmatprep.subr.bf16.mxu0 0
  %7206 = vmatpush2.bf16.msra.mxu0 0
  %7207 = vmatprep.subr.bf16.mxu0 0
  %7208 = vmatpush2.bf16.msra.mxu0 0
  %7209 = vmatprep.subr.bf16.mxu0 0
  %7210 = vmatpush2.bf16.msra.mxu0 0
  %7211 = vmatprep.subr.bf16.mxu0 0
  %7212 = vmatpush2.bf16.msra.mxu0 0
  %7213 = vmatprep.subr.bf16.mxu0 0
  %7214 = vmatpush2.bf16.msra.mxu0 0
  %7215 = vmatprep.subr.bf16.mxu0 0
  %7216 = vmatpush2.bf16.msra.mxu0 0
  %7217 = vmatprep.subr.bf16.mxu0 0
  %7218 = vmatpush2.bf16.msra.mxu0 0
  %7219 = vmatprep.subr.bf16.mxu0 0
  %7220 = vmatpush2.bf16.msra.mxu0 0
  %7221 = vmatprep.mubr.bf16.mxu0 0
  %7222 = vmatmul.mubr.bf16.gmra.mxu0 %v6610
  %v7223 = vpop.f32.mrf.mxu0
  %v7224 = vadd.f32 %v7153, %v7223
  %v7225 = vpop.f32.mrf.mxu0
  %v7226 = vadd.f32 %v7155, %v7225
  %v7227 = vpop.f32.mrf.mxu0
  %v7228 = vadd.f32 %v7157, %v7227
  %v7229 = vpop.f32.mrf.mxu0
  %v7230 = vadd.f32 %v7159, %v7229
  %7231 = vmatprep.mubr.bf16.mxu0 0
  %7232 = vmatmul.mubr.bf16.gmra.mxu0 %v6613
  %v7233 = vpop.f32.mrf.mxu0
  %v7234 = vadd.f32 %v7163, %v7233
  %v7235 = vpop.f32.mrf.mxu0
  %v7236 = vadd.f32 %v7165, %v7235
  %v7237 = vpop.f32.mrf.mxu0
  %v7238 = vadd.f32 %v7167, %v7237
  %v7239 = vpop.f32.mrf.mxu0
  %v7240 = vadd.f32 %v7169, %v7239
  %7241 = vmatprep.mubr.bf16.mxu0 0
  %7242 = vmatmul.mubr.bf16.gmra.mxu0 %v6616
  %v7243 = vpop.f32.mrf.mxu0
  %v7244 = vadd.f32 %v7173, %v7243
  %v7245 = vpop.f32.mrf.mxu0
  %v7246 = vadd.f32 %v7175, %v7245
  %v7247 = vpop.f32.mrf.mxu0
  %v7248 = vadd.f32 %v7177, %v7247
  %v7249 = vpop.f32.mrf.mxu0
  %v7250 = vadd.f32 %v7179, %v7249
  %7251 = vmatprep.mubr.bf16.mxu0 0
  %7252 = vmatmul.mubr.bf16.gmra.mxu0 %v6619
  %v7253 = vpop.f32.mrf.mxu0
  %v7254 = vadd.f32 %v7183, %v7253
  %v7255 = vpop.f32.mrf.mxu0
  %v7256 = vadd.f32 %v7185, %v7255
  %v7257 = vpop.f32.mrf.mxu0
  %v7258 = vpop.f32.mrf.mxu0
  %7259 = vdwg.mxu0
  %7260 = vmatprep.subr.bf16.mxu0 0
  %7261 = vmatpush1.bf16.msra.mxu0 %v5857
  %7262 = vmatprep.subr.bf16.mxu0 0
  %7263 = vmatpush1.bf16.msra.mxu0 %v5854
  %7264 = vmatprep.subr.bf16.mxu0 0
  %7265 = vmatpush1.bf16.msra.mxu0 %v5851
  %7266 = vmatprep.subr.bf16.mxu0 0
  %7267 = vmatpush1.bf16.msra.mxu0 %v5848
  %7268 = vmatprep.subr.bf16.mxu0 0
  %7269 = vmatpush1.bf16.msra.mxu0 %v5845
  %7270 = vmatprep.subr.bf16.mxu0 0
  %7271 = vmatpush1.bf16.msra.mxu0 %v5842
  %7272 = vmatprep.subr.bf16.mxu0 0
  %7273 = vmatpush1.bf16.msra.mxu0 %v5839
  %7274 = vmatprep.subr.bf16.mxu0 0
  %7275 = vmatpush1.bf16.msra.mxu0 %v5836
  %7276 = vmatprep.subr.bf16.mxu0 0
  %7277 = vmatpush2.bf16.msra.mxu0 %v5881
  %7278 = vmatprep.subr.bf16.mxu0 0
  %7279 = vmatpush2.bf16.msra.mxu0 %v5878
  %7280 = vmatprep.subr.bf16.mxu0 0
  %7281 = vmatpush2.bf16.msra.mxu0 %v5875
  %7282 = vmatprep.subr.bf16.mxu0 0
  %7283 = vmatpush2.bf16.msra.mxu0 %v5872
  %7284 = vmatprep.subr.bf16.mxu0 0
  %7285 = vmatpush2.bf16.msra.mxu0 %v5869
  %7286 = vmatprep.subr.bf16.mxu0 0
  %7287 = vmatpush2.bf16.msra.mxu0 %v5866
  %7288 = vmatprep.subr.bf16.mxu0 0
  %7289 = vmatpush2.bf16.msra.mxu0 %v5863
  %7290 = vmatprep.subr.bf16.mxu0 0
  %7291 = vmatpush2.bf16.msra.mxu0 %v5860
  %7292 = vmatprep.mubr.bf16.mxu0 %v4296
  %7293 = vmatmul.mubr.bf16.gmra.mxu0 %v4280
  %v7294 = vpop.f32.mrf.mxu0
  %v7295 = vadd.f32 0.0, %v7294
  %v7296 = vpop.f32.mrf.mxu0
  %v7297 = vpop.f32.mrf.mxu0
  %v7298 = vadd.f32 0.0, %v7297
  %v7299 = vpop.f32.mrf.mxu0
  %7300 = vmatprep.mubr.bf16.mxu0 %v4297
  %7301 = vmatmul.mubr.bf16.gmra.mxu0 %v4281
  %v7302 = vpop.f32.mrf.mxu0
  %v7303 = vadd.f32 0.0, %v7302
  %v7304 = vpop.f32.mrf.mxu0
  %v7305 = vpop.f32.mrf.mxu0
  %v7306 = vadd.f32 0.0, %v7305
  %v7307 = vpop.f32.mrf.mxu0
  %7308 = vmatprep.mubr.bf16.mxu0 %v4298
  %7309 = vmatmul.mubr.bf16.gmra.mxu0 %v4282
  %v7310 = vpop.f32.mrf.mxu0
  %v7311 = vadd.f32 0.0, %v7310
  %v7312 = vpop.f32.mrf.mxu0
  %v7313 = vpop.f32.mrf.mxu0
  %v7314 = vadd.f32 0.0, %v7313
  %v7315 = vpop.f32.mrf.mxu0
  %7316 = vmatprep.mubr.bf16.mxu0 %v4299
  %7317 = vmatmul.mubr.bf16.gmra.mxu0 %v4283
  %v7318 = vpop.f32.mrf.mxu0
  %v7319 = vadd.f32 0.0, %v7318
  %v7320 = vpop.f32.mrf.mxu0
  %v7321 = vpop.f32.mrf.mxu0
  %v7322 = vpop.f32.mrf.mxu0
  %7323 = vdwg.mxu0
  %7324 = vmatprep.subr.bf16.mxu0 0
  %7325 = vmatpush1.bf16.msra.mxu0 %v5905
  %7326 = vmatprep.subr.bf16.mxu0 0
  %7327 = vmatpush1.bf16.msra.mxu0 %v5902
  %7328 = vmatprep.subr.bf16.mxu0 0
  %7329 = vmatpush1.bf16.msra.mxu0 %v5899
  %7330 = vmatprep.subr.bf16.mxu0 0
  %7331 = vmatpush1.bf16.msra.mxu0 %v5896
  %7332 = vmatprep.subr.bf16.mxu0 0
  %7333 = vmatpush1.bf16.msra.mxu0 %v5893
  %7334 = vmatprep.subr.bf16.mxu0 0
  %7335 = vmatpush1.bf16.msra.mxu0 %v5890
  %7336 = vmatprep.subr.bf16.mxu0 0
  %7337 = vmatpush1.bf16.msra.mxu0 %v5887
  %7338 = vmatprep.subr.bf16.mxu0 0
  %7339 = vmatpush1.bf16.msra.mxu0 %v5884
  %7340 = vmatprep.subr.bf16.mxu0 0
  %7341 = vmatpush2.bf16.msra.mxu0 %v5929
  %7342 = vmatprep.subr.bf16.mxu0 0
  %7343 = vmatpush2.bf16.msra.mxu0 %v5926
  %7344 = vmatprep.subr.bf16.mxu0 0
  %7345 = vmatpush2.bf16.msra.mxu0 %v5923
  %7346 = vmatprep.subr.bf16.mxu0 0
  %7347 = vmatpush2.bf16.msra.mxu0 %v5920
  %7348 = vmatprep.subr.bf16.mxu0 0
  %7349 = vmatpush2.bf16.msra.mxu0 %v5917
  %7350 = vmatprep.subr.bf16.mxu0 0
  %7351 = vmatpush2.bf16.msra.mxu0 %v5914
  %7352 = vmatprep.subr.bf16.mxu0 0
  %7353 = vmatpush2.bf16.msra.mxu0 %v5911
  %7354 = vmatprep.subr.bf16.mxu0 0
  %7355 = vmatpush2.bf16.msra.mxu0 %v5908
  %7356 = vmatprep.mubr.bf16.mxu0 %v4328
  %7357 = vmatmul.mubr.bf16.gmra.mxu0 %v4312
  %v7358 = vpop.f32.mrf.mxu0
  %v7359 = vadd.f32 %v7295, %v7358
  %v7360 = vpop.f32.mrf.mxu0
  %v7361 = vpop.f32.mrf.mxu0
  %v7362 = vadd.f32 %v7298, %v7361
  %v7363 = vpop.f32.mrf.mxu0
  %7364 = vmatprep.mubr.bf16.mxu0 %v4329
  %7365 = vmatmul.mubr.bf16.gmra.mxu0 %v4313
  %v7366 = vpop.f32.mrf.mxu0
  %v7367 = vadd.f32 %v7303, %v7366
  %v7368 = vpop.f32.mrf.mxu0
  %v7369 = vpop.f32.mrf.mxu0
  %v7370 = vadd.f32 %v7306, %v7369
  %v7371 = vpop.f32.mrf.mxu0
  %7372 = vmatprep.mubr.bf16.mxu0 %v4330
  %7373 = vmatmul.mubr.bf16.gmra.mxu0 %v4314
  %v7374 = vpop.f32.mrf.mxu0
  %v7375 = vadd.f32 %v7311, %v7374
  %v7376 = vpop.f32.mrf.mxu0
  %v7377 = vpop.f32.mrf.mxu0
  %v7378 = vadd.f32 %v7314, %v7377
  %v7379 = vpop.f32.mrf.mxu0
  %7380 = vmatprep.mubr.bf16.mxu0 %v4331
  %7381 = vmatmul.mubr.bf16.gmra.mxu0 %v4315
  %v7382 = vpop.f32.mrf.mxu0
  %v7383 = vadd.f32 %v7319, %v7382
  %v7384 = vpop.f32.mrf.mxu0
  %v7385 = vpop.f32.mrf.mxu0
  %v7386 = vpop.f32.mrf.mxu0
  %7387 = vdwg.mxu0
  %7388 = vmatprep.subr.bf16.mxu0 0
  %7389 = vmatpush1.bf16.msra.mxu0 %v5953
  %7390 = vmatprep.subr.bf16.mxu0 0
  %7391 = vmatpush1.bf16.msra.mxu0 %v5950
  %7392 = vmatprep.subr.bf16.mxu0 0
  %7393 = vmatpush1.bf16.msra.mxu0 %v5947
  %7394 = vmatprep.subr.bf16.mxu0 0
  %7395 = vmatpush1.bf16.msra.mxu0 %v5944
  %7396 = vmatprep.subr.bf16.mxu0 0
  %7397 = vmatpush1.bf16.msra.mxu0 %v5941
  %7398 = vmatprep.subr.bf16.mxu0 0
  %7399 = vmatpush1.bf16.msra.mxu0 %v5938
  %7400 = vmatprep.subr.bf16.mxu0 0
  %7401 = vmatpush1.bf16.msra.mxu0 %v5935
  %7402 = vmatprep.subr.bf16.mxu0 0
  %7403 = vmatpush1.bf16.msra.mxu0 %v5932
  %7404 = vmatprep.subr.bf16.mxu0 0
  %7405 = vmatpush2.bf16.msra.mxu0 %v5977
  %7406 = vmatprep.subr.bf16.mxu0 0
  %7407 = vmatpush2.bf16.msra.mxu0 %v5974
  %7408 = vmatprep.subr.bf16.mxu0 0
  %7409 = vmatpush2.bf16.msra.mxu0 %v5971
  %7410 = vmatprep.subr.bf16.mxu0 0
  %7411 = vmatpush2.bf16.msra.mxu0 %v5968
  %7412 = vmatprep.subr.bf16.mxu0 0
  %7413 = vmatpush2.bf16.msra.mxu0 %v5965
  %7414 = vmatprep.subr.bf16.mxu0 0
  %7415 = vmatpush2.bf16.msra.mxu0 %v5962
  %7416 = vmatprep.subr.bf16.mxu0 0
  %7417 = vmatpush2.bf16.msra.mxu0 %v5959
  %7418 = vmatprep.subr.bf16.mxu0 0
  %7419 = vmatpush2.bf16.msra.mxu0 %v5956
  %7420 = vmatprep.mubr.bf16.mxu0 %v4360
  %7421 = vmatmul.mubr.bf16.gmra.mxu0 %v4344
  %v7422 = vpop.f32.mrf.mxu0
  %v7423 = vadd.f32 %v7359, %v7422
  %v7424 = vpop.f32.mrf.mxu0
  %v7425 = vpop.f32.mrf.mxu0
  %v7426 = vadd.f32 %v7362, %v7425
  %v7427 = vpop.f32.mrf.mxu0
  %7428 = vmatprep.mubr.bf16.mxu0 %v4361
  %7429 = vmatmul.mubr.bf16.gmra.mxu0 %v4345
  %v7430 = vpop.f32.mrf.mxu0
  %v7431 = vadd.f32 %v7367, %v7430
  %v7432 = vpop.f32.mrf.mxu0
  %v7433 = vpop.f32.mrf.mxu0
  %v7434 = vadd.f32 %v7370, %v7433
  %v7435 = vpop.f32.mrf.mxu0
  %7436 = vmatprep.mubr.bf16.mxu0 %v4362
  %7437 = vmatmul.mubr.bf16.gmra.mxu0 %v4346
  %v7438 = vpop.f32.mrf.mxu0
  %v7439 = vadd.f32 %v7375, %v7438
  %v7440 = vpop.f32.mrf.mxu0
  %v7441 = vpop.f32.mrf.mxu0
  %v7442 = vadd.f32 %v7378, %v7441
  %v7443 = vpop.f32.mrf.mxu0
  %7444 = vmatprep.mubr.bf16.mxu0 %v4363
  %7445 = vmatmul.mubr.bf16.gmra.mxu0 %v4347
  %v7446 = vpop.f32.mrf.mxu0
  %v7447 = vadd.f32 %v7383, %v7446
  %v7448 = vpop.f32.mrf.mxu0
  %v7449 = vpop.f32.mrf.mxu0
  %v7450 = vpop.f32.mrf.mxu0
  %7451 = vdwg.mxu0
  %7452 = vmatprep.subr.bf16.mxu0 0
  %7453 = vmatpush1.bf16.msra.mxu0 %v6001
  %7454 = vmatprep.subr.bf16.mxu0 0
  %7455 = vmatpush1.bf16.msra.mxu0 %v5998
  %7456 = vmatprep.subr.bf16.mxu0 0
  %7457 = vmatpush1.bf16.msra.mxu0 %v5995
  %7458 = vmatprep.subr.bf16.mxu0 0
  %7459 = vmatpush1.bf16.msra.mxu0 %v5992
  %7460 = vmatprep.subr.bf16.mxu0 0
  %7461 = vmatpush1.bf16.msra.mxu0 %v5989
  %7462 = vmatprep.subr.bf16.mxu0 0
  %7463 = vmatpush1.bf16.msra.mxu0 %v5986
  %7464 = vmatprep.subr.bf16.mxu0 0
  %7465 = vmatpush1.bf16.msra.mxu0 %v5983
  %7466 = vmatprep.subr.bf16.mxu0 0
  %7467 = vmatpush1.bf16.msra.mxu0 %v5980
  %7468 = vmatprep.subr.bf16.mxu0 0
  %7469 = vmatpush2.bf16.msra.mxu0 %v6025
  %7470 = vmatprep.subr.bf16.mxu0 0
  %7471 = vmatpush2.bf16.msra.mxu0 %v6022
  %7472 = vmatprep.subr.bf16.mxu0 0
  %7473 = vmatpush2.bf16.msra.mxu0 %v6019
  %7474 = vmatprep.subr.bf16.mxu0 0
  %7475 = vmatpush2.bf16.msra.mxu0 %v6016
  %7476 = vmatprep.subr.bf16.mxu0 0
  %7477 = vmatpush2.bf16.msra.mxu0 %v6013
  %7478 = vmatprep.subr.bf16.mxu0 0
  %7479 = vmatpush2.bf16.msra.mxu0 %v6010
  %7480 = vmatprep.subr.bf16.mxu0 0
  %7481 = vmatpush2.bf16.msra.mxu0 %v6007
  %7482 = vmatprep.subr.bf16.mxu0 0
  %7483 = vmatpush2.bf16.msra.mxu0 %v6004
  %7484 = vmatprep.mubr.bf16.mxu0 %v4392
  %7485 = vmatmul.mubr.bf16.gmra.mxu0 %v4376
  %v7486 = vpop.f32.mrf.mxu0
  %v7487 = vadd.f32 %v7423, %v7486
  %v7488 = vpop.f32.mrf.mxu0
  %v7489 = vpop.f32.mrf.mxu0
  %v7490 = vadd.f32 %v7426, %v7489
  %v7491 = vpop.f32.mrf.mxu0
  %7492 = vmatprep.mubr.bf16.mxu0 %v4393
  %7493 = vmatmul.mubr.bf16.gmra.mxu0 %v4377
  %v7494 = vpop.f32.mrf.mxu0
  %v7495 = vadd.f32 %v7431, %v7494
  %v7496 = vpop.f32.mrf.mxu0
  %v7497 = vpop.f32.mrf.mxu0
  %v7498 = vadd.f32 %v7434, %v7497
  %v7499 = vpop.f32.mrf.mxu0
  %7500 = vmatprep.mubr.bf16.mxu0 %v4394
  %7501 = vmatmul.mubr.bf16.gmra.mxu0 %v4378
  %v7502 = vpop.f32.mrf.mxu0
  %v7503 = vadd.f32 %v7439, %v7502
  %v7504 = vpop.f32.mrf.mxu0
  %v7505 = vpop.f32.mrf.mxu0
  %v7506 = vadd.f32 %v7442, %v7505
  %v7507 = vpop.f32.mrf.mxu0
  %7508 = vmatprep.mubr.bf16.mxu0 %v4395
  %7509 = vmatmul.mubr.bf16.gmra.mxu0 %v4379
  %v7510 = vpop.f32.mrf.mxu0
  %v7511 = vadd.f32 %v7447, %v7510
  %v7512 = vpop.f32.mrf.mxu0
  %v7513 = vpop.f32.mrf.mxu0
  %v7514 = vpop.f32.mrf.mxu0
  %7515 = vdwg.mxu0
  %7516 = vmatprep.subr.bf16.mxu0 0
  %7517 = vmatpush1.bf16.msra.mxu0 %v6049
  %7518 = vmatprep.subr.bf16.mxu0 0
  %7519 = vmatpush1.bf16.msra.mxu0 %v6046
  %7520 = vmatprep.subr.bf16.mxu0 0
  %7521 = vmatpush1.bf16.msra.mxu0 %v6043
  %7522 = vmatprep.subr.bf16.mxu0 0
  %7523 = vmatpush1.bf16.msra.mxu0 %v6040
  %7524 = vmatprep.subr.bf16.mxu0 0
  %7525 = vmatpush1.bf16.msra.mxu0 %v6037
  %7526 = vmatprep.subr.bf16.mxu0 0
  %7527 = vmatpush1.bf16.msra.mxu0 %v6034
  %7528 = vmatprep.subr.bf16.mxu0 0
  %7529 = vmatpush1.bf16.msra.mxu0 %v6031
  %7530 = vmatprep.subr.bf16.mxu0 0
  %7531 = vmatpush1.bf16.msra.mxu0 %v6028
  %7532 = vmatprep.subr.bf16.mxu0 0
  %7533 = vmatpush2.bf16.msra.mxu0 %v6073
  %7534 = vmatprep.subr.bf16.mxu0 0
  %7535 = vmatpush2.bf16.msra.mxu0 %v6070
  %7536 = vmatprep.subr.bf16.mxu0 0
  %7537 = vmatpush2.bf16.msra.mxu0 %v6067
  %7538 = vmatprep.subr.bf16.mxu0 0
  %7539 = vmatpush2.bf16.msra.mxu0 %v6064
  %7540 = vmatprep.subr.bf16.mxu0 0
  %7541 = vmatpush2.bf16.msra.mxu0 %v6061
  %7542 = vmatprep.subr.bf16.mxu0 0
  %7543 = vmatpush2.bf16.msra.mxu0 %v6058
  %7544 = vmatprep.subr.bf16.mxu0 0
  %7545 = vmatpush2.bf16.msra.mxu0 %v6055
  %7546 = vmatprep.subr.bf16.mxu0 0
  %7547 = vmatpush2.bf16.msra.mxu0 %v6052
  %7548 = vmatprep.mubr.bf16.mxu0 %v4424
  %7549 = vmatmul.mubr.bf16.gmra.mxu0 %v4408
  %v7550 = vpop.f32.mrf.mxu0
  %v7551 = vadd.f32 %v7487, %v7550
  %v7552 = vpop.f32.mrf.mxu0
  %v7553 = vpop.f32.mrf.mxu0
  %v7554 = vadd.f32 %v7490, %v7553
  %v7555 = vpop.f32.mrf.mxu0
  %7556 = vmatprep.mubr.bf16.mxu0 %v4425
  %7557 = vmatmul.mubr.bf16.gmra.mxu0 %v4409
  %v7558 = vpop.f32.mrf.mxu0
  %v7559 = vadd.f32 %v7495, %v7558
  %v7560 = vpop.f32.mrf.mxu0
  %v7561 = vpop.f32.mrf.mxu0
  %v7562 = vadd.f32 %v7498, %v7561
  %v7563 = vpop.f32.mrf.mxu0
  %7564 = vmatprep.mubr.bf16.mxu0 %v4426
  %7565 = vmatmul.mubr.bf16.gmra.mxu0 %v4410
  %v7566 = vpop.f32.mrf.mxu0
  %v7567 = vadd.f32 %v7503, %v7566
  %v7568 = vpop.f32.mrf.mxu0
  %v7569 = vpop.f32.mrf.mxu0
  %v7570 = vadd.f32 %v7506, %v7569
  %v7571 = vpop.f32.mrf.mxu0
  %7572 = vmatprep.mubr.bf16.mxu0 %v4427
  %7573 = vmatmul.mubr.bf16.gmra.mxu0 %v4411
  %v7574 = vpop.f32.mrf.mxu0
  %v7575 = vadd.f32 %v7511, %v7574
  %v7576 = vpop.f32.mrf.mxu0
  %v7577 = vpop.f32.mrf.mxu0
  %v7578 = vpop.f32.mrf.mxu0
  %7579 = vdwg.mxu0
  %7580 = vmatprep.subr.bf16.mxu0 0
  %7581 = vmatpush1.bf16.msra.mxu0 %v6097
  %7582 = vmatprep.subr.bf16.mxu0 0
  %7583 = vmatpush1.bf16.msra.mxu0 %v6094
  %7584 = vmatprep.subr.bf16.mxu0 0
  %7585 = vmatpush1.bf16.msra.mxu0 %v6091
  %7586 = vmatprep.subr.bf16.mxu0 0
  %7587 = vmatpush1.bf16.msra.mxu0 %v6088
  %7588 = vmatprep.subr.bf16.mxu0 0
  %7589 = vmatpush1.bf16.msra.mxu0 %v6085
  %7590 = vmatprep.subr.bf16.mxu0 0
  %7591 = vmatpush1.bf16.msra.mxu0 %v6082
  %7592 = vmatprep.subr.bf16.mxu0 0
  %7593 = vmatpush1.bf16.msra.mxu0 %v6079
  %7594 = vmatprep.subr.bf16.mxu0 0
  %7595 = vmatpush1.bf16.msra.mxu0 %v6076
  %7596 = vmatprep.subr.bf16.mxu0 0
  %7597 = vmatpush2.bf16.msra.mxu0 %v6121
  %7598 = vmatprep.subr.bf16.mxu0 0
  %7599 = vmatpush2.bf16.msra.mxu0 %v6118
  %7600 = vmatprep.subr.bf16.mxu0 0
  %7601 = vmatpush2.bf16.msra.mxu0 %v6115
  %7602 = vmatprep.subr.bf16.mxu0 0
  %7603 = vmatpush2.bf16.msra.mxu0 %v6112
  %7604 = vmatprep.subr.bf16.mxu0 0
  %7605 = vmatpush2.bf16.msra.mxu0 %v6109
  %7606 = vmatprep.subr.bf16.mxu0 0
  %7607 = vmatpush2.bf16.msra.mxu0 %v6106
  %7608 = vmatprep.subr.bf16.mxu0 0
  %7609 = vmatpush2.bf16.msra.mxu0 %v6103
  %7610 = vmatprep.subr.bf16.mxu0 0
  %7611 = vmatpush2.bf16.msra.mxu0 %v6100
  %7612 = vmatprep.mubr.bf16.mxu0 %v4456
  %7613 = vmatmul.mubr.bf16.gmra.mxu0 %v4440
  %v7614 = vpop.f32.mrf.mxu0
  %v7615 = vadd.f32 %v7551, %v7614
  %v7616 = vpop.f32.mrf.mxu0
  %v7617 = vpop.f32.mrf.mxu0
  %v7618 = vadd.f32 %v7554, %v7617
  %v7619 = vpop.f32.mrf.mxu0
  %7620 = vmatprep.mubr.bf16.mxu0 %v4457
  %7621 = vmatmul.mubr.bf16.gmra.mxu0 %v4441
  %v7622 = vpop.f32.mrf.mxu0
  %v7623 = vadd.f32 %v7559, %v7622
  %v7624 = vpop.f32.mrf.mxu0
  %v7625 = vpop.f32.mrf.mxu0
  %v7626 = vadd.f32 %v7562, %v7625
  %v7627 = vpop.f32.mrf.mxu0
  %7628 = vmatprep.mubr.bf16.mxu0 %v4458
  %7629 = vmatmul.mubr.bf16.gmra.mxu0 %v4442
  %v7630 = vpop.f32.mrf.mxu0
  %v7631 = vadd.f32 %v7567, %v7630
  %v7632 = vpop.f32.mrf.mxu0
  %v7633 = vpop.f32.mrf.mxu0
  %v7634 = vadd.f32 %v7570, %v7633
  %v7635 = vpop.f32.mrf.mxu0
  %7636 = vmatprep.mubr.bf16.mxu0 %v4459
  %7637 = vmatmul.mubr.bf16.gmra.mxu0 %v4443
  %v7638 = vpop.f32.mrf.mxu0
  %v7639 = vadd.f32 %v7575, %v7638
  %v7640 = vpop.f32.mrf.mxu0
  %v7641 = vpop.f32.mrf.mxu0
  %v7642 = vpop.f32.mrf.mxu0
  %7643 = vdwg.mxu0
  %7644 = vmatprep.subr.bf16.mxu0 0
  %7645 = vmatpush1.bf16.msra.mxu0 %v6145
  %7646 = vmatprep.subr.bf16.mxu0 0
  %7647 = vmatpush1.bf16.msra.mxu0 %v6142
  %7648 = vmatprep.subr.bf16.mxu0 0
  %7649 = vmatpush1.bf16.msra.mxu0 %v6139
  %7650 = vmatprep.subr.bf16.mxu0 0
  %7651 = vmatpush1.bf16.msra.mxu0 %v6136
  %7652 = vmatprep.subr.bf16.mxu0 0
  %7653 = vmatpush1.bf16.msra.mxu0 %v6133
  %7654 = vmatprep.subr.bf16.mxu0 0
  %7655 = vmatpush1.bf16.msra.mxu0 %v6130
  %7656 = vmatprep.subr.bf16.mxu0 0
  %7657 = vmatpush1.bf16.msra.mxu0 %v6127
  %7658 = vmatprep.subr.bf16.mxu0 0
  %7659 = vmatpush1.bf16.msra.mxu0 %v6124
  %7660 = vmatprep.subr.bf16.mxu0 0
  %7661 = vmatpush2.bf16.msra.mxu0 %v6169
  %7662 = vmatprep.subr.bf16.mxu0 0
  %7663 = vmatpush2.bf16.msra.mxu0 %v6166
  %7664 = vmatprep.subr.bf16.mxu0 0
  %7665 = vmatpush2.bf16.msra.mxu0 %v6163
  %7666 = vmatprep.subr.bf16.mxu0 0
  %7667 = vmatpush2.bf16.msra.mxu0 %v6160
  %7668 = vmatprep.subr.bf16.mxu0 0
  %7669 = vmatpush2.bf16.msra.mxu0 %v6157
  %7670 = vmatprep.subr.bf16.mxu0 0
  %7671 = vmatpush2.bf16.msra.mxu0 %v6154
  %7672 = vmatprep.subr.bf16.mxu0 0
  %7673 = vmatpush2.bf16.msra.mxu0 %v6151
  %7674 = vmatprep.subr.bf16.mxu0 0
  %7675 = vmatpush2.bf16.msra.mxu0 %v6148
  %7676 = vmatprep.mubr.bf16.mxu0 %v4488
  %7677 = vmatmul.mubr.bf16.gmra.mxu0 %v4472
  %v7678 = vpop.f32.mrf.mxu0
  %v7679 = vadd.f32 %v7615, %v7678
  %v7680 = vpop.f32.mrf.mxu0
  %v7681 = vpop.f32.mrf.mxu0
  %v7682 = vadd.f32 %v7618, %v7681
  %v7683 = vpop.f32.mrf.mxu0
  %7684 = vmatprep.mubr.bf16.mxu0 %v4489
  %7685 = vmatmul.mubr.bf16.gmra.mxu0 %v4473
  %v7686 = vpop.f32.mrf.mxu0
  %v7687 = vadd.f32 %v7623, %v7686
  %v7688 = vpop.f32.mrf.mxu0
  %v7689 = vpop.f32.mrf.mxu0
  %v7690 = vadd.f32 %v7626, %v7689
  %v7691 = vpop.f32.mrf.mxu0
  %7692 = vmatprep.mubr.bf16.mxu0 %v4490
  %7693 = vmatmul.mubr.bf16.gmra.mxu0 %v4474
  %v7694 = vpop.f32.mrf.mxu0
  %v7695 = vadd.f32 %v7631, %v7694
  %v7696 = vpop.f32.mrf.mxu0
  %v7697 = vpop.f32.mrf.mxu0
  %v7698 = vadd.f32 %v7634, %v7697
  %v7699 = vpop.f32.mrf.mxu0
  %7700 = vmatprep.mubr.bf16.mxu0 %v4491
  %7701 = vmatmul.mubr.bf16.gmra.mxu0 %v4475
  %v7702 = vpop.f32.mrf.mxu0
  %v7703 = vadd.f32 %v7639, %v7702
  %v7704 = vpop.f32.mrf.mxu0
  %v7705 = vpop.f32.mrf.mxu0
  %v7706 = vpop.f32.mrf.mxu0
  %7707 = vdwg.mxu0
  %7708 = vmatprep.subr.bf16.mxu0 0
  %7709 = vmatpush1.bf16.msra.mxu0 %v6193
  %7710 = vmatprep.subr.bf16.mxu0 0
  %7711 = vmatpush1.bf16.msra.mxu0 %v6190
  %7712 = vmatprep.subr.bf16.mxu0 0
  %7713 = vmatpush1.bf16.msra.mxu0 %v6187
  %7714 = vmatprep.subr.bf16.mxu0 0
  %7715 = vmatpush1.bf16.msra.mxu0 %v6184
  %7716 = vmatprep.subr.bf16.mxu0 0
  %7717 = vmatpush1.bf16.msra.mxu0 %v6181
  %7718 = vmatprep.subr.bf16.mxu0 0
  %7719 = vmatpush1.bf16.msra.mxu0 %v6178
  %7720 = vmatprep.subr.bf16.mxu0 0
  %7721 = vmatpush1.bf16.msra.mxu0 %v6175
  %7722 = vmatprep.subr.bf16.mxu0 0
  %7723 = vmatpush1.bf16.msra.mxu0 %v6172
  %7724 = vmatprep.subr.bf16.mxu0 0
  %7725 = vmatpush2.bf16.msra.mxu0 %v6217
  %7726 = vmatprep.subr.bf16.mxu0 0
  %7727 = vmatpush2.bf16.msra.mxu0 %v6214
  %7728 = vmatprep.subr.bf16.mxu0 0
  %7729 = vmatpush2.bf16.msra.mxu0 %v6211
  %7730 = vmatprep.subr.bf16.mxu0 0
  %7731 = vmatpush2.bf16.msra.mxu0 %v6208
  %7732 = vmatprep.subr.bf16.mxu0 0
  %7733 = vmatpush2.bf16.msra.mxu0 %v6205
  %7734 = vmatprep.subr.bf16.mxu0 0
  %7735 = vmatpush2.bf16.msra.mxu0 %v6202
  %7736 = vmatprep.subr.bf16.mxu0 0
  %7737 = vmatpush2.bf16.msra.mxu0 %v6199
  %7738 = vmatprep.subr.bf16.mxu0 0
  %7739 = vmatpush2.bf16.msra.mxu0 %v6196
  %7740 = vmatprep.mubr.bf16.mxu0 %v4520
  %7741 = vmatmul.mubr.bf16.gmra.mxu0 %v4504
  %v7742 = vpop.f32.mrf.mxu0
  %v7743 = vadd.f32 %v7679, %v7742
  %v7744 = vpop.f32.mrf.mxu0
  %v7745 = vpop.f32.mrf.mxu0
  %v7746 = vadd.f32 %v7682, %v7745
  %v7747 = vpop.f32.mrf.mxu0
  %7748 = vmatprep.mubr.bf16.mxu0 %v4521
  %7749 = vmatmul.mubr.bf16.gmra.mxu0 %v4505
  %v7750 = vpop.f32.mrf.mxu0
  %v7751 = vadd.f32 %v7687, %v7750
  %v7752 = vpop.f32.mrf.mxu0
  %v7753 = vpop.f32.mrf.mxu0
  %v7754 = vadd.f32 %v7690, %v7753
  %v7755 = vpop.f32.mrf.mxu0
  %7756 = vmatprep.mubr.bf16.mxu0 %v4522
  %7757 = vmatmul.mubr.bf16.gmra.mxu0 %v4506
  %v7758 = vpop.f32.mrf.mxu0
  %v7759 = vadd.f32 %v7695, %v7758
  %v7760 = vpop.f32.mrf.mxu0
  %v7761 = vpop.f32.mrf.mxu0
  %v7762 = vadd.f32 %v7698, %v7761
  %v7763 = vpop.f32.mrf.mxu0
  %7764 = vmatprep.mubr.bf16.mxu0 %v4523
  %7765 = vmatmul.mubr.bf16.gmra.mxu0 %v4507
  %v7766 = vpop.f32.mrf.mxu0
  %v7767 = vadd.f32 %v7703, %v7766
  %v7768 = vpop.f32.mrf.mxu0
  %v7769 = vpop.f32.mrf.mxu0
  %v7770 = vpop.f32.mrf.mxu0
  %7771 = vdwg.mxu0
  %7772 = vmatprep.subr.bf16.mxu0 0
  %7773 = vmatpush1.bf16.msra.mxu0 0
  %7774 = vmatprep.subr.bf16.mxu0 0
  %7775 = vmatpush1.bf16.msra.mxu0 0
  %7776 = vmatprep.subr.bf16.mxu0 0
  %7777 = vmatpush1.bf16.msra.mxu0 0
  %7778 = vmatprep.subr.bf16.mxu0 0
  %7779 = vmatpush1.bf16.msra.mxu0 0
  %7780 = vmatprep.subr.bf16.mxu0 0
  %7781 = vmatpush1.bf16.msra.mxu0 0
  %7782 = vmatprep.subr.bf16.mxu0 0
  %7783 = vmatpush1.bf16.msra.mxu0 0
  %7784 = vmatprep.subr.bf16.mxu0 0
  %7785 = vmatpush1.bf16.msra.mxu0 0
  %7786 = vmatprep.subr.bf16.mxu0 0
  %7787 = vmatpush1.bf16.msra.mxu0 %v6220
  %7788 = vmatprep.subr.bf16.mxu0 0
  %7789 = vmatpush2.bf16.msra.mxu0 0
  %7790 = vmatprep.subr.bf16.mxu0 0
  %7791 = vmatpush2.bf16.msra.mxu0 0
  %7792 = vmatprep.subr.bf16.mxu0 0
  %7793 = vmatpush2.bf16.msra.mxu0 0
  %7794 = vmatprep.subr.bf16.mxu0 0
  %7795 = vmatpush2.bf16.msra.mxu0 0
  %7796 = vmatprep.subr.bf16.mxu0 0
  %7797 = vmatpush2.bf16.msra.mxu0 0
  %7798 = vmatprep.subr.bf16.mxu0 0
  %7799 = vmatpush2.bf16.msra.mxu0 0
  %7800 = vmatprep.subr.bf16.mxu0 0
  %7801 = vmatpush2.bf16.msra.mxu0 0
  %7802 = vmatprep.subr.bf16.mxu0 0
  %7803 = vmatpush2.bf16.msra.mxu0 0
  %7804 = vmatprep.mubr.bf16.mxu0 0
  %7805 = vmatmul.mubr.bf16.gmra.mxu0 %v6610
  %v7806 = vpop.f32.mrf.mxu0
  %v7807 = vadd.f32 %v7743, %v7806
  %v7808 = vpop.f32.mrf.mxu0
  %v7809 = vpop.f32.mrf.mxu0
  %v7810 = vadd.f32 %v7746, %v7809
  %v7811 = vpop.f32.mrf.mxu0
  %7812 = vmatprep.mubr.bf16.mxu0 0
  %7813 = vmatmul.mubr.bf16.gmra.mxu0 %v6613
  %v7814 = vpop.f32.mrf.mxu0
  %v7815 = vadd.f32 %v7751, %v7814
  %v7816 = vpop.f32.mrf.mxu0
  %v7817 = vpop.f32.mrf.mxu0
  %v7818 = vadd.f32 %v7754, %v7817
  %v7819 = vpop.f32.mrf.mxu0
  %7820 = vmatprep.mubr.bf16.mxu0 0
  %7821 = vmatmul.mubr.bf16.gmra.mxu0 %v6616
  %v7822 = vpop.f32.mrf.mxu0
  %v7823 = vadd.f32 %v7759, %v7822
  %v7824 = vpop.f32.mrf.mxu0
  %v7825 = vpop.f32.mrf.mxu0
  %v7826 = vadd.f32 %v7762, %v7825
  %v7827 = vpop.f32.mrf.mxu0
  %7828 = vmatprep.mubr.bf16.mxu0 0
  %7829 = vmatmul.mubr.bf16.gmra.mxu0 %v6619
  %v7830 = vpop.f32.mrf.mxu0
  %v7831 = vadd.f32 %v7767, %v7830
  %v7832 = vpop.f32.mrf.mxu0
  %v7833 = vpop.f32.mrf.mxu0
  %v7834 = vpop.f32.mrf.mxu0
  %7835 = vdwg.mxu0
  %7836 = vst [vmem:[%s3] sm:$0xff] %v7224
  %7837 = vst [vmem:[%s3 + $0x8] sm:$0xff] %v7226
  %vm7838 = vcmask 719872
  %7839 = vst.msk [vmem:[%s3 + $0x10] sm:$0xff] %vm7838, %v7807
  %7840 = vst [vmem:[%s3 + $0x18] sm:$0xff] %v7228
  %7841 = vst [vmem:[%s3 + $0x20] sm:$0xff] %v7230
  %7842 = vst.msk [vmem:[%s3 + $0x28] sm:$0xff] %vm7838, %v7810
  %7843 = vst [vmem:[%s3 + $0x30] sm:$0xff] %v7234
  %7844 = vst [vmem:[%s3 + $0x38] sm:$0xff] %v7236
  %7845 = vst.msk [vmem:[%s3 + $0x40] sm:$0xff] %vm7838, %v7815
  %7846 = vst [vmem:[%s3 + $0x48] sm:$0xff] %v7238
  %7847 = vst [vmem:[%s3 + $0x50] sm:$0xff] %v7240
  %7848 = vst.msk [vmem:[%s3 + $0x58] sm:$0xff] %vm7838, %v7818
  %7849 = vst [vmem:[%s3 + $0x60] sm:$0xff] %v7244
  %7850 = vst [vmem:[%s3 + $0x68] sm:$0xff] %v7246
  %7851 = vst.msk [vmem:[%s3 + $0x70] sm:$0xff] %vm7838, %v7823
  %7852 = vst [vmem:[%s3 + $0x78] sm:$0xff] %v7248
  %7853 = vst [vmem:[%s3 + $0x80] sm:$0xff] %v7250
  %7854 = vst.msk [vmem:[%s3 + $0x88] sm:$0xff] %vm7838, %v7826
  %7855 = vst [vmem:[%s3 + $0x90] sm:$0x1] %v7254
  %7856 = vst [vmem:[%s3 + $0x98] sm:$0x1] %v7256
  %vm7857 = vcmask 712704
  %7858 = vst.msk [vmem:[%s3 + $0xa0] sm:$0x1] %vm7857, %v7831
  // Predicated region
  $region14: #{se_conv1x1.1} parent=0 // pred_check
    _
  $region15: #{se_conv1x1.1} parent=0 // pred_check_branch
    %7860 = sbr.rel (0) target = $region17
  $region16: #{se_conv1x1.1} parent=0 // pred_region
    _
  $region17: #{se_conv1x1.1} parent=0 // pred_fallthru
    _
  // Predicated region
  $region18: #{se_conv1x1.1} parent=0 // pred_check
    _
  $region19: #{se_conv1x1.1} parent=0 // pred_check_branch
    %7862 = sbr.rel (0) target = $region21
  $region20: #{se_conv1x1.1} parent=0 // pred_region
    _
  $region21: #{se_conv1x1.1} parent=0 // pred_fallthru
    _

</llo_original>
